<compile_context>
chip_gen: v7x
topology: tpu7x:2x2x1
jax: 0.10.0
libtpu: 0.0.40
codegen_flags: <defaults>
</compile_context>

<pallas_src>
import functools
import numpy as np
import jax
import jax.numpy as jnp
from jax.experimental import pallas as pl
from jax.experimental.pallas import tpu as pltpu

LEAKY_SLOPE = 0.01   # nn.LeakyReLU() default
BN_EPS = 1e-5        # nn.BatchNorm2d default


# ----------------------------------------------------------------------------
# Host-side constants (functions of the static shapes only; lru_cached)
# ----------------------------------------------------------------------------
@functools.lru_cache(maxsize=None)
def _tap_masks(H, W, K):
    """(K*K, H*W) f32 masks: 1 where the shifted tap stays inside the image."""
    P = K // 2
    r = np.arange(H * W) // W
    c = np.arange(H * W) % W
    masks = np.zeros((K * K, H * W), np.float32)
    for kh in range(K):
        for kw in range(K):
            dh, dw = kh - P, kw - P
            ok = (r + dh >= 0) & (r + dh < H) & (c + dw >= 0) & (c + dw < W)
            masks[kh * K + kw] = ok.astype(np.float32)
    return masks


def _bilinear_matrix(n):
    """(2n, n) bilinear x2 interpolation matrix, align_corners=False (PyTorch)."""
    m = np.zeros((2 * n, n), dtype=np.float32)
    for i in range(2 * n):
        src = max((i + 0.5) / 2.0 - 0.5, 0.0)
        i0 = min(int(np.floor(src)), n - 1)
        i1 = min(i0 + 1, n - 1)
        frac = src - np.floor(src)
        m[i, i0] += 1.0 - frac
        m[i, i1] += frac
    return m


@functools.lru_cache(maxsize=None)
def _bilinear_kron(H, W):
    """(HW, 4HW) f32: transposed kron(Uh, Uw) — flattened x2 bilinear upsample."""
    return np.ascontiguousarray(np.kron(_bilinear_matrix(H), _bilinear_matrix(W)).T)


def _pcol_layout(K, Cin):
    """Column layout of the packed parameter-column array."""
    KK = K * K
    w_base = (0, KK * Cin, 2 * KK * Cin)   # conv weight columns per layer
    b_base = 3 * KK * Cin                  # bias column for layer i at b_base + i
    st_base = b_base + 3                   # bn scale/shift at st_base + 2i / +2i+1
    ncol = st_base + 6
    return w_base, b_base, st_base, ncol


# ----------------------------------------------------------------------------
# Fused UpLayer kernel (one grid step == one batch element)
# ----------------------------------------------------------------------------
def _make_uplayer_kernel(H, W, K, Cin, Cout, pool):
    HW = H * W
    P = K // 2
    KK = K * K
    LPAD = -(-(P * W + P) // 128) * 128     # lane-aligned zero halo on each side
    PADW = HW + 2 * LPAD
    W_BASE, B_BASE, ST_BASE, _ = _pcol_layout(K, Cin)
    NACC = min(4, KK * Cin)                 # independent partial accumulators

    def kernel(x_ref, mask_ref, pcol_ref, *rest):
        if pool:
            up_ref, o_ref, pad_ref = rest
        else:
            o_ref, pad_ref = rest

        # Zero only the halo; each conv overwrites the interior before reading it.
        pad_ref[:, :LPAD] = jnp.zeros((Cin, LPAD), jnp.float32)
        pad_ref[:, LPAD + HW:] = jnp.zeros((Cin, PADW - LPAD - HW), jnp.float32)

        # All per-layer constants live in one (8, 128) slab -> stays register-resident.
        pcol = pcol_ref[...]

        def col(rows, c):                       # (rows, 1) parameter column
            return pcol[:rows, c:c + 1]

        def bn_leaky(z, layer):                 # folded eval-mode BN + LeakyReLU
            y = z * col(Cin, ST_BASE + 2 * layer) + col(Cin, ST_BASE + 2 * layer + 1)
            return jnp.where(y >= 0, y, LEAKY_SLOPE * y)

        def conv(act, layer, cout):
            # act: (Cin, HW) -> (cout, HW); 'same' zero-padded KxK conv as
            # K*K*Cin VPU broadcast-FMAs over lane-dense planes (tiny channels:
            # MXU not worth it).  Window + mask hoisted out of the ci loop.
            pad_ref[:, LPAD:LPAD + HW] = act
            wb = W_BASE[layer]
            accs = [None] * NACC
            for t in range(KK):
                kh, kw = divmod(t, K)
                start = LPAD + (kh - P) * W + (kw - P)
                win = pad_ref[:, start:start + HW]          # (Cin, HW), once per tap
                if kw != P:                                  # halo covers dh; mask only
                    win = win * mask_ref[t:t + 1, :]         # kills horizontal wrap
                for ci in range(Cin):
                    prod = col(cout, wb + t * Cin + ci) * win[ci:ci + 1, :]
                    j = (t * Cin + ci) % NACC
                    accs[j] = prod if accs[j] is None else accs[j] + prod
            parts = [a for a in accs if a is not None]
            while len(parts) > 1:                            # pairwise tree-sum
                nxt = [parts[i] + parts[i + 1] for i in range(0, len(parts) - 1, 2)]
                if len(parts) % 2:
                    nxt.append(parts[-1])
                parts = nxt
            return parts[0] + col(cout, B_BASE + layer)

        x = x_ref[0].astype(jnp.float32)                     # (Cin, HW)
        x = conv(bn_leaky(x, 0), 0, Cin) + x                 # ResidualConv 1
        x = conv(bn_leaky(x, 1), 1, Cin) + x                 # ResidualConv 2
        y = conv(bn_leaky(x, 2), 2, Cout)                    # BN -> LeakyReLU -> Conv
        if pool:
            # Bilinear x2 upsample as one MXU matmul against kron(Uh, Uw)^T.
            # Output (Cout, 4*HW) is already NCHW row-major for (Cout, 2H, 2W).
            y = jnp.dot(y, up_ref[...], preferred_element_type=jnp.float32)
        o_ref[0] = y.astype(o_ref.dtype)

    return kernel, PADW


# ----------------------------------------------------------------------------
# Full UpLayer forward (NCHW in, NCHW out) — single pallas_call
# ----------------------------------------------------------------------------
def up_layer_forward(x_nchw, params, pool=True):
    N, Cin, H, W = x_nchw.shape
    K = params["w"].shape[0]
    Cout = params["w"].shape[-1]
    HW = H * W
    KK = K * K
    OUT = 4 * HW if pool else HW

    CROWS = max(8, Cin, Cout)                       # sublane rows of the param slab
    _, _, _, NCOL = _pcol_layout(K, Cin)
    NCOLP = -(-NCOL // 128) * 128                   # lane-pad to a whole tile

    kernel, PADW = _make_uplayer_kernel(H, W, K, Cin, Cout, pool)

    # ---- pack all per-layer constants into ONE lane-dense (CROWS, NCOLP) array ----
    def wcols(w, co):   # HWIO (K,K,Cin,co) -> (CROWS, KK*Cin); row = out channel
        wm = w.reshape(KK * Cin, co).T.astype(jnp.float32)
        return jnp.pad(wm, ((0, CROWS - co), (0, 0)))

    def onecol(v, rows):
        return jnp.pad(v.astype(jnp.float32), (0, CROWS - rows))[:, None]

    pcol = jnp.concatenate(
        [wcols(params["rc1"]["w"], Cin), wcols(params["rc2"]["w"], Cin),
         wcols(params["w"], Cout),
         onecol(params["rc1"]["b"], Cin), onecol(params["rc2"]["b"], Cin),
         onecol(params["b"], Cout),
         onecol(params["rc1"]["bn_scale"], Cin), onecol(params["rc1"]["bn_shift"], Cin),
         onecol(params["rc2"]["bn_scale"], Cin), onecol(params["rc2"]["bn_shift"], Cin),
         onecol(params["bn_scale"], Cin), onecol(params["bn_shift"], Cin)],
        axis=1)
    pcol = jnp.pad(pcol, ((0, 0), (0, NCOLP - pcol.shape[1])))

    x_flat = x_nchw.reshape(N, Cin, HW)             # contiguous reshape (free)
    masks = jnp.asarray(_tap_masks(H, W, K))

    args = [x_flat, masks, pcol]
    in_specs = [
        pl.BlockSpec((1, Cin, HW), lambda n: (n, 0, 0)),
        pl.BlockSpec((KK, HW), lambda n: (0, 0)),
        pl.BlockSpec((CROWS, NCOLP), lambda n: (0, 0)),
    ]
    if pool:
        args.append(jnp.asarray(_bilinear_kron(H, W)))          # (HW, 4HW) f32
        in_specs.append(pl.BlockSpec((HW, 4 * HW), lambda n: (0, 0)))

    out = pl.pallas_call(
        kernel,
        out_shape=jax.ShapeDtypeStruct((N, Cout, OUT), x_nchw.dtype),
        grid=(N,),
        in_specs=in_specs,
        out_specs=pl.BlockSpec((1, Cout, OUT), lambda n: (n, 0, 0)),
        scratch_shapes=[pltpu.VMEM((Cin, PADW), jnp.float32)],
        compiler_params=pltpu.CompilerParams(dimension_semantics=("parallel",)),
    )(*args)

    if pool:
        return out.reshape(N, Cout, 2 * H, 2 * W)   # contiguous reshape (free)
    return out.reshape(N, Cout, H, W)


# ----------------------------------------------------------------------------
# Deterministic parameter initialization (synthetic; eval-mode BN folded)
# ----------------------------------------------------------------------------
def _fold_bn(gamma, beta, mean, var):
    scale = gamma / jnp.sqrt(var + BN_EPS)
    shift = beta - mean * scale
    return scale, shift


def init_params(key, cin, cout, k):
    def bn_params(key, c):
        k1, k2, k3, k4 = jax.random.split(key, 4)
        gamma = jax.random.uniform(k1, (c,), jnp.float32, 0.5, 1.5)
        beta = 0.1 * jax.random.normal(k2, (c,), jnp.float32)
        mean = 0.1 * jax.random.normal(k3, (c,), jnp.float32)
        var = jax.random.uniform(k4, (c,), jnp.float32, 0.5, 1.5)
        return _fold_bn(gamma, beta, mean, var)

    def conv_params(key, ci, co):
        k1, k2 = jax.random.split(key)
        w = 0.1 * jax.random.normal(k1, (k, k, ci, co), jnp.float32)   # HWIO
        b = 0.1 * jax.random.normal(k2, (co,), jnp.float32)
        return w, b

    keys = jax.random.split(key, 6)
    params = {}
    for i, name in enumerate(("rc1", "rc2")):
        s, t = bn_params(keys[2 * i], cin)
        w, b = conv_params(keys[2 * i + 1], cin, cin)
        params[name] = {"bn_scale": s, "bn_shift": t, "w": w, "b": b}
    s, t = bn_params(keys[4], cin)
    w, b = conv_params(keys[5], cin, cout)
    params.update({"bn_scale": s, "bn_shift": t, "w": w, "b": b})
    return params


# ----------------------------------------------------------------------------
# Pure-JAX reference (for correctness check)
# ----------------------------------------------------------------------------
def reference_forward(x_nchw, params, pool=True):
    x = jnp.transpose(x_nchw, (0, 2, 3, 1))

    def bn_lrelu(x, s, t):
        y = x * s.reshape(1, 1, 1, -1) + t.reshape(1, 1, 1, -1)
        return jnp.where(y >= 0, y, LEAKY_SLOPE * y)

    def conv(x, w, b):
        y = jax.lax.conv_general_dilated(
            x, w, (1, 1), "SAME", dimension_numbers=("NHWC", "HWIO", "NHWC"))
        return y + b.reshape(1, 1, 1, -1)

    for rc in (params["rc1"], params["rc2"]):
        x = conv(bn_lrelu(x, rc["bn_scale"], rc["bn_shift"]), rc["w"], rc["b"]) + x
    y = conv(bn_lrelu(x, params["bn_scale"], params["bn_shift"]),
             params["w"], params["b"])
    if pool:
        H, W_ = y.shape[1], y.shape[2]
        Uh = jnp.asarray(_bilinear_matrix(H))
        Uw = jnp.asarray(_bilinear_matrix(W_))
        y = jnp.einsum("rh,nhwc->nrwc", Uh, y)
        y = jnp.einsum("vw,nrwc->nrvc", Uw, y)
    return jnp.transpose(y, (0, 3, 1, 2))


if __name__ == "__main__":
    key = jax.random.PRNGKey(0)
    kx, kp = jax.random.split(key)

    N, Cin, Cout, H, W, K = 2, 4, 8, 16, 16, 3
    x = jax.random.normal(kx, (N, Cin, H, W), jnp.float32)     # NCHW, like PyTorch
    params = init_params(kp, Cin, Cout, K)

    # pool=True (with bilinear x2 upsample)
    fwd = jax.jit(functools.partial(up_layer_forward, pool=True))
    out = jax.block_until_ready(fwd(x, params))
    ref = jax.block_until_ready(reference_forward(x, params, pool=True))
    assert out.shape == (N, Cout, 2 * H, 2 * W), out.shape
    np.testing.assert_allclose(np.asarray(out), np.asarray(ref), rtol=2e-4, atol=2e-4)

    # pool=False (Identity upsample)
    fwd_np = jax.jit(functools.partial(up_layer_forward, pool=False))
    out2 = jax.block_until_ready(fwd_np(x, params))
    ref2 = jax.block_until_ready(reference_forward(x, params, pool=False))
    assert out2.shape == (N, Cout, H, W), out2.shape
    np.testing.assert_allclose(np.asarray(out2), np.asarray(ref2), rtol=2e-4, atol=2e-4)

    print("KERNEL_OK")
</pallas_src>

<mosaic_0001>
module attributes {stable_mosaic.version = 11 : i64} {
  func.func @kernel(%arg0: i32, %arg1: memref<1x4x256xf32, #tpu.memory_space<vmem>>, %arg2: memref<9x256xf32, #tpu.memory_space<vmem>>, %arg3: memref<8x128xf32, #tpu.memory_space<vmem>>, %arg4: memref<256x1024xf32, #tpu.memory_space<vmem>>, %arg5: memref<1x8x1024xf32, #tpu.memory_space<vmem>>, %arg6: memref<4x512xf32, #tpu.memory_space<vmem>>) attributes {dimension_semantics = [#tpu.dimension_semantics<parallel>], iteration_bounds = array<i64: 2>, scalar_prefetch = 0 : i64, scratch_operands = 1 : i64, tpu.core_type = #tpu.core_type<tc>, window_params = [{transform_indices = @transform_0, window_bounds = array<i64: 1, 4, 256>}, {pipeline_mode = #tpu.pipeline_mode<synchronous>, transform_indices = @transform_1, window_bounds = array<i64: 9, 256>}, {pipeline_mode = #tpu.pipeline_mode<synchronous>, transform_indices = @transform_2, window_bounds = array<i64: 8, 128>}, {pipeline_mode = #tpu.pipeline_mode<synchronous>, transform_indices = @transform_3, window_bounds = array<i64: 256, 1024>}, {transform_indices = @transform_4, window_bounds = array<i64: 1, 8, 1024>}]} {
    %cst = arith.constant 0.000000e+00 : f32
    %0 = vector.broadcast %cst : f32 to vector<4x128xf32>
    %c0 = arith.constant 0 : index
    %c0_0 = arith.constant 0 : index
    %1 = vector.load %arg6[%c0, %c0_0] : memref<4x512xf32, #tpu.memory_space<vmem>>, vector<4x128xf32>
    tpu.vector_store %arg6[%c0, %c0_0], %0 {strides = array<i32>} : memref<4x512xf32, #tpu.memory_space<vmem>>, vector<4x128xf32>,
    %cst_1 = arith.constant 0.000000e+00 : f32
    %2 = vector.broadcast %cst_1 : f32 to vector<4x128xf32>
    %c0_2 = arith.constant 0 : index
    %c384 = arith.constant 384 : index
    %3 = vector.load %arg6[%c0_2, %c384] : memref<4x512xf32, #tpu.memory_space<vmem>>, vector<4x128xf32>
    tpu.vector_store %arg6[%c0_2, %c384], %2 {strides = array<i32>} : memref<4x512xf32, #tpu.memory_space<vmem>>, vector<4x128xf32>,
    %c0_3 = arith.constant 0 : index
    %c0_4 = arith.constant 0 : index
    %4 = vector.load %arg3[%c0_3, %c0_4] : memref<8x128xf32, #tpu.memory_space<vmem>>, vector<8x128xf32>
    %c0_5 = arith.constant 0 : index
    %c0_6 = arith.constant 0 : index
    %c0_7 = arith.constant 0 : index
    %5 = vector.load %arg1[%c0_5, %c0_6, %c0_7] : memref<1x4x256xf32, #tpu.memory_space<vmem>>, vector<1x4x256xf32>
    %6 = vector.shape_cast %5 : vector<1x4x256xf32> to vector<4x256xf32>
    %7 = vector.extract_strided_slice %4 {offsets = [0, 111], sizes = [4, 1], strides = [1, 1]} : vector<8x128xf32> to vector<4x1xf32>
    %8 = vector.broadcast %7 : vector<4x1xf32> to vector<4x256xf32>
    %9 = arith.mulf %6, %8 : vector<4x256xf32>
    %10 = vector.extract_strided_slice %4 {offsets = [0, 112], sizes = [4, 1], strides = [1, 1]} : vector<8x128xf32> to vector<4x1xf32>
    %11 = vector.broadcast %10 : vector<4x1xf32> to vector<4x256xf32>
    %12 = arith.addf %9, %11 : vector<4x256xf32>
    %cst_8 = arith.constant 0.000000e+00 : f32
    %13 = vector.broadcast %cst_8 : f32 to vector<4x256xf32>
    %14 = arith.cmpf oge, %12, %13 : vector<4x256xf32>
    %cst_9 = arith.constant 0.00999999977 : f32
    %15 = vector.broadcast %cst_9 : f32 to vector<4x256xf32>
    %16 = arith.mulf %15, %12 : vector<4x256xf32>
    %17 = arith.select %14, %12, %16 : vector<4x256xi1>, vector<4x256xf32>
    %c0_10 = arith.constant 0 : index
    %c128 = arith.constant 128 : index
    %18 = vector.load %arg6[%c0_10, %c128] : memref<4x512xf32, #tpu.memory_space<vmem>>, vector<4x256xf32>
    tpu.vector_store %arg6[%c0_10, %c128], %17 {strides = array<i32>} : memref<4x512xf32, #tpu.memory_space<vmem>>, vector<4x256xf32>,
    %c0_11 = arith.constant 0 : index
    %c111 = arith.constant 111 : index
    %19 = vector.load %arg6[%c0_11, %c111] : memref<4x512xf32, #tpu.memory_space<vmem>>, vector<4x256xf32>
    %c0_12 = arith.constant 0 : index
    %c0_13 = arith.constant 0 : index
    %20 = vector.load %arg2[%c0_12, %c0_13] : memref<9x256xf32, #tpu.memory_space<vmem>>, vector<1x256xf32>
    %21 = vector.broadcast %20 : vector<1x256xf32> to vector<4x256xf32>
    %22 = arith.mulf %19, %21 : vector<4x256xf32>
    %23 = vector.extract_strided_slice %4 {offsets = [0, 0], sizes = [4, 1], strides = [1, 1]} : vector<8x128xf32> to vector<4x1xf32>
    %24 = vector.extract_strided_slice %22 {offsets = [0, 0], sizes = [1, 256], strides = [1, 1]} : vector<4x256xf32> to vector<1x256xf32>
    %25 = vector.broadcast %23 : vector<4x1xf32> to vector<4x256xf32>
    %26 = vector.broadcast %24 : vector<1x256xf32> to vector<4x256xf32>
    %27 = arith.mulf %25, %26 : vector<4x256xf32>
    %28 = vector.extract_strided_slice %4 {offsets = [0, 1], sizes = [4, 1], strides = [1, 1]} : vector<8x128xf32> to vector<4x1xf32>
    %29 = vector.extract_strided_slice %22 {offsets = [1, 0], sizes = [1, 256], strides = [1, 1]} : vector<4x256xf32> to vector<1x256xf32>
    %30 = vector.broadcast %28 : vector<4x1xf32> to vector<4x256xf32>
    %31 = vector.broadcast %29 : vector<1x256xf32> to vector<4x256xf32>
    %32 = arith.mulf %30, %31 : vector<4x256xf32>
    %33 = vector.extract_strided_slice %4 {offsets = [0, 2], sizes = [4, 1], strides = [1, 1]} : vector<8x128xf32> to vector<4x1xf32>
    %34 = vector.extract_strided_slice %22 {offsets = [2, 0], sizes = [1, 256], strides = [1, 1]} : vector<4x256xf32> to vector<1x256xf32>
    %35 = vector.broadcast %33 : vector<4x1xf32> to vector<4x256xf32>
    %36 = vector.broadcast %34 : vector<1x256xf32> to vector<4x256xf32>
    %37 = arith.mulf %35, %36 : vector<4x256xf32>
    %38 = vector.extract_strided_slice %4 {offsets = [0, 3], sizes = [4, 1], strides = [1, 1]} : vector<8x128xf32> to vector<4x1xf32>
    %39 = vector.extract_strided_slice %22 {offsets = [3, 0], sizes = [1, 256], strides = [1, 1]} : vector<4x256xf32> to vector<1x256xf32>
    %40 = vector.broadcast %38 : vector<4x1xf32> to vector<4x256xf32>
    %41 = vector.broadcast %39 : vector<1x256xf32> to vector<4x256xf32>
    %42 = arith.mulf %40, %41 : vector<4x256xf32>
    %c0_14 = arith.constant 0 : index
    %c112 = arith.constant 112 : index
    %43 = vector.load %arg6[%c0_14, %c112] : memref<4x512xf32, #tpu.memory_space<vmem>>, vector<4x256xf32>
    %44 = vector.extract_strided_slice %4 {offsets = [0, 4], sizes = [4, 1], strides = [1, 1]} : vector<8x128xf32> to vector<4x1xf32>
    %45 = vector.extract_strided_slice %43 {offsets = [0, 0], sizes = [1, 256], strides = [1, 1]} : vector<4x256xf32> to vector<1x256xf32>
    %46 = vector.broadcast %44 : vector<4x1xf32> to vector<4x256xf32>
    %47 = vector.broadcast %45 : vector<1x256xf32> to vector<4x256xf32>
    %48 = arith.mulf %46, %47 : vector<4x256xf32>
    %49 = arith.addf %27, %48 : vector<4x256xf32>
    %50 = vector.extract_strided_slice %4 {offsets = [0, 5], sizes = [4, 1], strides = [1, 1]} : vector<8x128xf32> to vector<4x1xf32>
    %51 = vector.extract_strided_slice %43 {offsets = [1, 0], sizes = [1, 256], strides = [1, 1]} : vector<4x256xf32> to vector<1x256xf32>
    %52 = vector.broadcast %50 : vector<4x1xf32> to vector<4x256xf32>
    %53 = vector.broadcast %51 : vector<1x256xf32> to vector<4x256xf32>
    %54 = arith.mulf %52, %53 : vector<4x256xf32>
    %55 = arith.addf %32, %54 : vector<4x256xf32>
    %56 = vector.extract_strided_slice %4 {offsets = [0, 6], sizes = [4, 1], strides = [1, 1]} : vector<8x128xf32> to vector<4x1xf32>
    %57 = vector.extract_strided_slice %43 {offsets = [2, 0], sizes = [1, 256], strides = [1, 1]} : vector<4x256xf32> to vector<1x256xf32>
    %58 = vector.broadcast %56 : vector<4x1xf32> to vector<4x256xf32>
    %59 = vector.broadcast %57 : vector<1x256xf32> to vector<4x256xf32>
    %60 = arith.mulf %58, %59 : vector<4x256xf32>
    %61 = arith.addf %37, %60 : vector<4x256xf32>
    %62 = vector.extract_strided_slice %4 {offsets = [0, 7], sizes = [4, 1], strides = [1, 1]} : vector<8x128xf32> to vector<4x1xf32>
    %63 = vector.extract_strided_slice %43 {offsets = [3, 0], sizes = [1, 256], strides = [1, 1]} : vector<4x256xf32> to vector<1x256xf32>
    %64 = vector.broadcast %62 : vector<4x1xf32> to vector<4x256xf32>
    %65 = vector.broadcast %63 : vector<1x256xf32> to vector<4x256xf32>
    %66 = arith.mulf %64, %65 : vector<4x256xf32>
    %67 = arith.addf %42, %66 : vector<4x256xf32>
    %c0_15 = arith.constant 0 : index
    %c113 = arith.constant 113 : index
    %68 = vector.load %arg6[%c0_15, %c113] : memref<4x512xf32, #tpu.memory_space<vmem>>, vector<4x256xf32>
    %c2 = arith.constant 2 : index
    %c0_16 = arith.constant 0 : index
    %69 = vector.load %arg2[%c2, %c0_16] : memref<9x256xf32, #tpu.memory_space<vmem>>, vector<1x256xf32>
    %70 = vector.broadcast %69 : vector<1x256xf32> to vector<4x256xf32>
    %71 = arith.mulf %68, %70 : vector<4x256xf32>
    %72 = vector.extract_strided_slice %4 {offsets = [0, 8], sizes = [4, 1], strides = [1, 1]} : vector<8x128xf32> to vector<4x1xf32>
    %73 = vector.extract_strided_slice %71 {offsets = [0, 0], sizes = [1, 256], strides = [1, 1]} : vector<4x256xf32> to vector<1x256xf32>
    %74 = vector.broadcast %72 : vector<4x1xf32> to vector<4x256xf32>
    %75 = vector.broadcast %73 : vector<1x256xf32> to vector<4x256xf32>
    %76 = arith.mulf %74, %75 : vector<4x256xf32>
    %77 = arith.addf %49, %76 : vector<4x256xf32>
    %78 = vector.extract_strided_slice %4 {offsets = [0, 9], sizes = [4, 1], strides = [1, 1]} : vector<8x128xf32> to vector<4x1xf32>
    %79 = vector.extract_strided_slice %71 {offsets = [1, 0], sizes = [1, 256], strides = [1, 1]} : vector<4x256xf32> to vector<1x256xf32>
    %80 = vector.broadcast %78 : vector<4x1xf32> to vector<4x256xf32>
    %81 = vector.broadcast %79 : vector<1x256xf32> to vector<4x256xf32>
    %82 = arith.mulf %80, %81 : vector<4x256xf32>
    %83 = arith.addf %55, %82 : vector<4x256xf32>
    %84 = vector.extract_strided_slice %4 {offsets = [0, 10], sizes = [4, 1], strides = [1, 1]} : vector<8x128xf32> to vector<4x1xf32>
    %85 = vector.extract_strided_slice %71 {offsets = [2, 0], sizes = [1, 256], strides = [1, 1]} : vector<4x256xf32> to vector<1x256xf32>
    %86 = vector.broadcast %84 : vector<4x1xf32> to vector<4x256xf32>
    %87 = vector.broadcast %85 : vector<1x256xf32> to vector<4x256xf32>
    %88 = arith.mulf %86, %87 : vector<4x256xf32>
    %89 = arith.addf %61, %88 : vector<4x256xf32>
    %90 = vector.extract_strided_slice %4 {offsets = [0, 11], sizes = [4, 1], strides = [1, 1]} : vector<8x128xf32> to vector<4x1xf32>
    %91 = vector.extract_strided_slice %71 {offsets = [3, 0], sizes = [1, 256], strides = [1, 1]} : vector<4x256xf32> to vector<1x256xf32>
    %92 = vector.broadcast %90 : vector<4x1xf32> to vector<4x256xf32>
    %93 = vector.broadcast %91 : vector<1x256xf32> to vector<4x256xf32>
    %94 = arith.mulf %92, %93 : vector<4x256xf32>
    %95 = arith.addf %67, %94 : vector<4x256xf32>
    %c0_17 = arith.constant 0 : index
    %c127 = arith.constant 127 : index
    %96 = vector.load %arg6[%c0_17, %c127] : memref<4x512xf32, #tpu.memory_space<vmem>>, vector<4x256xf32>
    %c3 = arith.constant 3 : index
    %c0_18 = arith.constant 0 : index
    %97 = vector.load %arg2[%c3, %c0_18] : memref<9x256xf32, #tpu.memory_space<vmem>>, vector<1x256xf32>
    %98 = vector.broadcast %97 : vector<1x256xf32> to vector<4x256xf32>
    %99 = arith.mulf %96, %98 : vector<4x256xf32>
    %100 = vector.extract_strided_slice %4 {offsets = [0, 12], sizes = [4, 1], strides = [1, 1]} : vector<8x128xf32> to vector<4x1xf32>
    %101 = vector.extract_strided_slice %99 {offsets = [0, 0], sizes = [1, 256], strides = [1, 1]} : vector<4x256xf32> to vector<1x256xf32>
    %102 = vector.broadcast %100 : vector<4x1xf32> to vector<4x256xf32>
    %103 = vector.broadcast %101 : vector<1x256xf32> to vector<4x256xf32>
    %104 = arith.mulf %102, %103 : vector<4x256xf32>
    %105 = arith.addf %77, %104 : vector<4x256xf32>
    %106 = vector.extract_strided_slice %4 {offsets = [0, 13], sizes = [4, 1], strides = [1, 1]} : vector<8x128xf32> to vector<4x1xf32>
    %107 = vector.extract_strided_slice %99 {offsets = [1, 0], sizes = [1, 256], strides = [1, 1]} : vector<4x256xf32> to vector<1x256xf32>
    %108 = vector.broadcast %106 : vector<4x1xf32> to vector<4x256xf32>
    %109 = vector.broadcast %107 : vector<1x256xf32> to vector<4x256xf32>
    %110 = arith.mulf %108, %109 : vector<4x256xf32>
    %111 = arith.addf %83, %110 : vector<4x256xf32>
    %112 = vector.extract_strided_slice %4 {offsets = [0, 14], sizes = [4, 1], strides = [1, 1]} : vector<8x128xf32> to vector<4x1xf32>
    %113 = vector.extract_strided_slice %99 {offsets = [2, 0], sizes = [1, 256], strides = [1, 1]} : vector<4x256xf32> to vector<1x256xf32>
    %114 = vector.broadcast %112 : vector<4x1xf32> to vector<4x256xf32>
    %115 = vector.broadcast %113 : vector<1x256xf32> to vector<4x256xf32>
    %116 = arith.mulf %114, %115 : vector<4x256xf32>
    %117 = arith.addf %89, %116 : vector<4x256xf32>
    %118 = vector.extract_strided_slice %4 {offsets = [0, 15], sizes = [4, 1], strides = [1, 1]} : vector<8x128xf32> to vector<4x1xf32>
    %119 = vector.extract_strided_slice %99 {offsets = [3, 0], sizes = [1, 256], strides = [1, 1]} : vector<4x256xf32> to vector<1x256xf32>
    %120 = vector.broadcast %118 : vector<4x1xf32> to vector<4x256xf32>
    %121 = vector.broadcast %119 : vector<1x256xf32> to vector<4x256xf32>
    %122 = arith.mulf %120, %121 : vector<4x256xf32>
    %123 = arith.addf %95, %122 : vector<4x256xf32>
    %c0_19 = arith.constant 0 : index
    %c128_20 = arith.constant 128 : index
    %124 = vector.load %arg6[%c0_19, %c128_20] : memref<4x512xf32, #tpu.memory_space<vmem>>, vector<4x256xf32>
    %125 = vector.extract_strided_slice %4 {offsets = [0, 16], sizes = [4, 1], strides = [1, 1]} : vector<8x128xf32> to vector<4x1xf32>
    %126 = vector.extract_strided_slice %124 {offsets = [0, 0], sizes = [1, 256], strides = [1, 1]} : vector<4x256xf32> to vector<1x256xf32>
    %127 = vector.broadcast %125 : vector<4x1xf32> to vector<4x256xf32>
    %128 = vector.broadcast %126 : vector<1x256xf32> to vector<4x256xf32>
    %129 = arith.mulf %127, %128 : vector<4x256xf32>
    %130 = arith.addf %105, %129 : vector<4x256xf32>
    %131 = vector.extract_strided_slice %4 {offsets = [0, 17], sizes = [4, 1], strides = [1, 1]} : vector<8x128xf32> to vector<4x1xf32>
    %132 = vector.extract_strided_slice %124 {offsets = [1, 0], sizes = [1, 256], strides = [1, 1]} : vector<4x256xf32> to vector<1x256xf32>
    %133 = vector.broadcast %131 : vector<4x1xf32> to vector<4x256xf32>
    %134 = vector.broadcast %132 : vector<1x256xf32> to vector<4x256xf32>
    %135 = arith.mulf %133, %134 : vector<4x256xf32>
    %136 = arith.addf %111, %135 : vector<4x256xf32>
    %137 = vector.extract_strided_slice %4 {offsets = [0, 18], sizes = [4, 1], strides = [1, 1]} : vector<8x128xf32> to vector<4x1xf32>
    %138 = vector.extract_strided_slice %124 {offsets = [2, 0], sizes = [1, 256], strides = [1, 1]} : vector<4x256xf32> to vector<1x256xf32>
    %139 = vector.broadcast %137 : vector<4x1xf32> to vector<4x256xf32>
    %140 = vector.broadcast %138 : vector<1x256xf32> to vector<4x256xf32>
    %141 = arith.mulf %139, %140 : vector<4x256xf32>
    %142 = arith.addf %117, %141 : vector<4x256xf32>
    %143 = vector.extract_strided_slice %4 {offsets = [0, 19], sizes = [4, 1], strides = [1, 1]} : vector<8x128xf32> to vector<4x1xf32>
    %144 = vector.extract_strided_slice %124 {offsets = [3, 0], sizes = [1, 256], strides = [1, 1]} : vector<4x256xf32> to vector<1x256xf32>
    %145 = vector.broadcast %143 : vector<4x1xf32> to vector<4x256xf32>
    %146 = vector.broadcast %144 : vector<1x256xf32> to vector<4x256xf32>
    %147 = arith.mulf %145, %146 : vector<4x256xf32>
    %148 = arith.addf %123, %147 : vector<4x256xf32>
    %c0_21 = arith.constant 0 : index
    %c129 = arith.constant 129 : index
    %149 = vector.load %arg6[%c0_21, %c129] : memref<4x512xf32, #tpu.memory_space<vmem>>, vector<4x256xf32>
    %c5 = arith.constant 5 : index
    %c0_22 = arith.constant 0 : index
    %150 = vector.load %arg2[%c5, %c0_22] : memref<9x256xf32, #tpu.memory_space<vmem>>, vector<1x256xf32>
    %151 = vector.broadcast %150 : vector<1x256xf32> to vector<4x256xf32>
    %152 = arith.mulf %149, %151 : vector<4x256xf32>
    %153 = vector.extract_strided_slice %4 {offsets = [0, 20], sizes = [4, 1], strides = [1, 1]} : vector<8x128xf32> to vector<4x1xf32>
    %154 = vector.extract_strided_slice %152 {offsets = [0, 0], sizes = [1, 256], strides = [1, 1]} : vector<4x256xf32> to vector<1x256xf32>
    %155 = vector.broadcast %153 : vector<4x1xf32> to vector<4x256xf32>
    %156 = vector.broadcast %154 : vector<1x256xf32> to vector<4x256xf32>
    %157 = arith.mulf %155, %156 : vector<4x256xf32>
    %158 = arith.addf %130, %157 : vector<4x256xf32>
    %159 = vector.extract_strided_slice %4 {offsets = [0, 21], sizes = [4, 1], strides = [1, 1]} : vector<8x128xf32> to vector<4x1xf32>
    %160 = vector.extract_strided_slice %152 {offsets = [1, 0], sizes = [1, 256], strides = [1, 1]} : vector<4x256xf32> to vector<1x256xf32>
    %161 = vector.broadcast %159 : vector<4x1xf32> to vector<4x256xf32>
    %162 = vector.broadcast %160 : vector<1x256xf32> to vector<4x256xf32>
    %163 = arith.mulf %161, %162 : vector<4x256xf32>
    %164 = arith.addf %136, %163 : vector<4x256xf32>
    %165 = vector.extract_strided_slice %4 {offsets = [0, 22], sizes = [4, 1], strides = [1, 1]} : vector<8x128xf32> to vector<4x1xf32>
    %166 = vector.extract_strided_slice %152 {offsets = [2, 0], sizes = [1, 256], strides = [1, 1]} : vector<4x256xf32> to vector<1x256xf32>
    %167 = vector.broadcast %165 : vector<4x1xf32> to vector<4x256xf32>
    %168 = vector.broadcast %166 : vector<1x256xf32> to vector<4x256xf32>
    %169 = arith.mulf %167, %168 : vector<4x256xf32>
    %170 = arith.addf %142, %169 : vector<4x256xf32>
    %171 = vector.extract_strided_slice %4 {offsets = [0, 23], sizes = [4, 1], strides = [1, 1]} : vector<8x128xf32> to vector<4x1xf32>
    %172 = vector.extract_strided_slice %152 {offsets = [3, 0], sizes = [1, 256], strides = [1, 1]} : vector<4x256xf32> to vector<1x256xf32>
    %173 = vector.broadcast %171 : vector<4x1xf32> to vector<4x256xf32>
    %174 = vector.broadcast %172 : vector<1x256xf32> to vector<4x256xf32>
    %175 = arith.mulf %173, %174 : vector<4x256xf32>
    %176 = arith.addf %148, %175 : vector<4x256xf32>
    %c0_23 = arith.constant 0 : index
    %c143 = arith.constant 143 : index
    %177 = vector.load %arg6[%c0_23, %c143] : memref<4x512xf32, #tpu.memory_space<vmem>>, vector<4x256xf32>
    %c6 = arith.constant 6 : index
    %c0_24 = arith.constant 0 : index
    %178 = vector.load %arg2[%c6, %c0_24] : memref<9x256xf32, #tpu.memory_space<vmem>>, vector<1x256xf32>
    %179 = vector.broadcast %178 : vector<1x256xf32> to vector<4x256xf32>
    %180 = arith.mulf %177, %179 : vector<4x256xf32>
    %181 = vector.extract_strided_slice %4 {offsets = [0, 24], sizes = [4, 1], strides = [1, 1]} : vector<8x128xf32> to vector<4x1xf32>
    %182 = vector.extract_strided_slice %180 {offsets = [0, 0], sizes = [1, 256], strides = [1, 1]} : vector<4x256xf32> to vector<1x256xf32>
    %183 = vector.broadcast %181 : vector<4x1xf32> to vector<4x256xf32>
    %184 = vector.broadcast %182 : vector<1x256xf32> to vector<4x256xf32>
    %185 = arith.mulf %183, %184 : vector<4x256xf32>
    %186 = arith.addf %158, %185 : vector<4x256xf32>
    %187 = vector.extract_strided_slice %4 {offsets = [0, 25], sizes = [4, 1], strides = [1, 1]} : vector<8x128xf32> to vector<4x1xf32>
    %188 = vector.extract_strided_slice %180 {offsets = [1, 0], sizes = [1, 256], strides = [1, 1]} : vector<4x256xf32> to vector<1x256xf32>
    %189 = vector.broadcast %187 : vector<4x1xf32> to vector<4x256xf32>
    %190 = vector.broadcast %188 : vector<1x256xf32> to vector<4x256xf32>
    %191 = arith.mulf %189, %190 : vector<4x256xf32>
    %192 = arith.addf %164, %191 : vector<4x256xf32>
    %193 = vector.extract_strided_slice %4 {offsets = [0, 26], sizes = [4, 1], strides = [1, 1]} : vector<8x128xf32> to vector<4x1xf32>
    %194 = vector.extract_strided_slice %180 {offsets = [2, 0], sizes = [1, 256], strides = [1, 1]} : vector<4x256xf32> to vector<1x256xf32>
    %195 = vector.broadcast %193 : vector<4x1xf32> to vector<4x256xf32>
    %196 = vector.broadcast %194 : vector<1x256xf32> to vector<4x256xf32>
    %197 = arith.mulf %195, %196 : vector<4x256xf32>
    %198 = arith.addf %170, %197 : vector<4x256xf32>
    %199 = vector.extract_strided_slice %4 {offsets = [0, 27], sizes = [4, 1], strides = [1, 1]} : vector<8x128xf32> to vector<4x1xf32>
    %200 = vector.extract_strided_slice %180 {offsets = [3, 0], sizes = [1, 256], strides = [1, 1]} : vector<4x256xf32> to vector<1x256xf32>
    %201 = vector.broadcast %199 : vector<4x1xf32> to vector<4x256xf32>
    %202 = vector.broadcast %200 : vector<1x256xf32> to vector<4x256xf32>
    %203 = arith.mulf %201, %202 : vector<4x256xf32>
    %204 = arith.addf %176, %203 : vector<4x256xf32>
    %c0_25 = arith.constant 0 : index
    %c144 = arith.constant 144 : index
    %205 = vector.load %arg6[%c0_25, %c144] : memref<4x512xf32, #tpu.memory_space<vmem>>, vector<4x256xf32>
    %206 = vector.extract_strided_slice %4 {offsets = [0, 28], sizes = [4, 1], strides = [1, 1]} : vector<8x128xf32> to vector<4x1xf32>
    %207 = vector.extract_strided_slice %205 {offsets = [0, 0], sizes = [1, 256], strides = [1, 1]} : vector<4x256xf32> to vector<1x256xf32>
    %208 = vector.broadcast %206 : vector<4x1xf32> to vector<4x256xf32>
    %209 = vector.broadcast %207 : vector<1x256xf32> to vector<4x256xf32>
    %210 = arith.mulf %208, %209 : vector<4x256xf32>
    %211 = arith.addf %186, %210 : vector<4x256xf32>
    %212 = vector.extract_strided_slice %4 {offsets = [0, 29], sizes = [4, 1], strides = [1, 1]} : vector<8x128xf32> to vector<4x1xf32>
    %213 = vector.extract_strided_slice %205 {offsets = [1, 0], sizes = [1, 256], strides = [1, 1]} : vector<4x256xf32> to vector<1x256xf32>
    %214 = vector.broadcast %212 : vector<4x1xf32> to vector<4x256xf32>
    %215 = vector.broadcast %213 : vector<1x256xf32> to vector<4x256xf32>
    %216 = arith.mulf %214, %215 : vector<4x256xf32>
    %217 = arith.addf %192, %216 : vector<4x256xf32>
    %218 = vector.extract_strided_slice %4 {offsets = [0, 30], sizes = [4, 1], strides = [1, 1]} : vector<8x128xf32> to vector<4x1xf32>
    %219 = vector.extract_strided_slice %205 {offsets = [2, 0], sizes = [1, 256], strides = [1, 1]} : vector<4x256xf32> to vector<1x256xf32>
    %220 = vector.broadcast %218 : vector<4x1xf32> to vector<4x256xf32>
    %221 = vector.broadcast %219 : vector<1x256xf32> to vector<4x256xf32>
    %222 = arith.mulf %220, %221 : vector<4x256xf32>
    %223 = arith.addf %198, %222 : vector<4x256xf32>
    %224 = vector.extract_strided_slice %4 {offsets = [0, 31], sizes = [4, 1], strides = [1, 1]} : vector<8x128xf32> to vector<4x1xf32>
    %225 = vector.extract_strided_slice %205 {offsets = [3, 0], sizes = [1, 256], strides = [1, 1]} : vector<4x256xf32> to vector<1x256xf32>
    %226 = vector.broadcast %224 : vector<4x1xf32> to vector<4x256xf32>
    %227 = vector.broadcast %225 : vector<1x256xf32> to vector<4x256xf32>
    %228 = arith.mulf %226, %227 : vector<4x256xf32>
    %229 = arith.addf %204, %228 : vector<4x256xf32>
    %c0_26 = arith.constant 0 : index
    %c145 = arith.constant 145 : index
    %230 = vector.load %arg6[%c0_26, %c145] : memref<4x512xf32, #tpu.memory_space<vmem>>, vector<4x256xf32>
    %c8 = arith.constant 8 : index
    %c0_27 = arith.constant 0 : index
    %231 = vector.load %arg2[%c8, %c0_27] : memref<9x256xf32, #tpu.memory_space<vmem>>, vector<1x256xf32>
    %232 = vector.broadcast %231 : vector<1x256xf32> to vector<4x256xf32>
    %233 = arith.mulf %230, %232 : vector<4x256xf32>
    %234 = vector.extract_strided_slice %4 {offsets = [0, 32], sizes = [4, 1], strides = [1, 1]} : vector<8x128xf32> to vector<4x1xf32>
    %235 = vector.extract_strided_slice %233 {offsets = [0, 0], sizes = [1, 256], strides = [1, 1]} : vector<4x256xf32> to vector<1x256xf32>
    %236 = vector.broadcast %234 : vector<4x1xf32> to vector<4x256xf32>
    %237 = vector.broadcast %235 : vector<1x256xf32> to vector<4x256xf32>
    %238 = arith.mulf %236, %237 : vector<4x256xf32>
    %239 = arith.addf %211, %238 : vector<4x256xf32>
    %240 = vector.extract_strided_slice %4 {offsets = [0, 33], sizes = [4, 1], strides = [1, 1]} : vector<8x128xf32> to vector<4x1xf32>
    %241 = vector.extract_strided_slice %233 {offsets = [1, 0], sizes = [1, 256], strides = [1, 1]} : vector<4x256xf32> to vector<1x256xf32>
    %242 = vector.broadcast %240 : vector<4x1xf32> to vector<4x256xf32>
    %243 = vector.broadcast %241 : vector<1x256xf32> to vector<4x256xf32>
    %244 = arith.mulf %242, %243 : vector<4x256xf32>
    %245 = arith.addf %217, %244 : vector<4x256xf32>
    %246 = vector.extract_strided_slice %4 {offsets = [0, 34], sizes = [4, 1], strides = [1, 1]} : vector<8x128xf32> to vector<4x1xf32>
    %247 = vector.extract_strided_slice %233 {offsets = [2, 0], sizes = [1, 256], strides = [1, 1]} : vector<4x256xf32> to vector<1x256xf32>
    %248 = vector.broadcast %246 : vector<4x1xf32> to vector<4x256xf32>
    %249 = vector.broadcast %247 : vector<1x256xf32> to vector<4x256xf32>
    %250 = arith.mulf %248, %249 : vector<4x256xf32>
    %251 = arith.addf %223, %250 : vector<4x256xf32>
    %252 = vector.extract_strided_slice %4 {offsets = [0, 35], sizes = [4, 1], strides = [1, 1]} : vector<8x128xf32> to vector<4x1xf32>
    %253 = vector.extract_strided_slice %233 {offsets = [3, 0], sizes = [1, 256], strides = [1, 1]} : vector<4x256xf32> to vector<1x256xf32>
    %254 = vector.broadcast %252 : vector<4x1xf32> to vector<4x256xf32>
    %255 = vector.broadcast %253 : vector<1x256xf32> to vector<4x256xf32>
    %256 = arith.mulf %254, %255 : vector<4x256xf32>
    %257 = arith.addf %229, %256 : vector<4x256xf32>
    %258 = arith.addf %239, %245 : vector<4x256xf32>
    %259 = arith.addf %251, %257 : vector<4x256xf32>
    %260 = arith.addf %258, %259 : vector<4x256xf32>
    %261 = vector.extract_strided_slice %4 {offsets = [0, 108], sizes = [4, 1], strides = [1, 1]} : vector<8x128xf32> to vector<4x1xf32>
    %262 = vector.broadcast %261 : vector<4x1xf32> to vector<4x256xf32>
    %263 = arith.addf %260, %262 : vector<4x256xf32>
    %264 = arith.addf %263, %6 : vector<4x256xf32>
    %265 = vector.extract_strided_slice %4 {offsets = [0, 113], sizes = [4, 1], strides = [1, 1]} : vector<8x128xf32> to vector<4x1xf32>
    %266 = vector.broadcast %265 : vector<4x1xf32> to vector<4x256xf32>
    %267 = arith.mulf %264, %266 : vector<4x256xf32>
    %268 = vector.extract_strided_slice %4 {offsets = [0, 114], sizes = [4, 1], strides = [1, 1]} : vector<8x128xf32> to vector<4x1xf32>
    %269 = vector.broadcast %268 : vector<4x1xf32> to vector<4x256xf32>
    %270 = arith.addf %267, %269 : vector<4x256xf32>
    %cst_28 = arith.constant 0.000000e+00 : f32
    %271 = vector.broadcast %cst_28 : f32 to vector<4x256xf32>
    %272 = arith.cmpf oge, %270, %271 : vector<4x256xf32>
    %cst_29 = arith.constant 0.00999999977 : f32
    %273 = vector.broadcast %cst_29 : f32 to vector<4x256xf32>
    %274 = arith.mulf %273, %270 : vector<4x256xf32>
    %275 = arith.select %272, %270, %274 : vector<4x256xi1>, vector<4x256xf32>
    %c0_30 = arith.constant 0 : index
    %c128_31 = arith.constant 128 : index
    %276 = vector.load %arg6[%c0_30, %c128_31] : memref<4x512xf32, #tpu.memory_space<vmem>>, vector<4x256xf32>
    tpu.vector_store %arg6[%c0_30, %c128_31], %275 {strides = array<i32>} : memref<4x512xf32, #tpu.memory_space<vmem>>, vector<4x256xf32>,
    %c0_32 = arith.constant 0 : index
    %c111_33 = arith.constant 111 : index
    %277 = vector.load %arg6[%c0_32, %c111_33] : memref<4x512xf32, #tpu.memory_space<vmem>>, vector<4x256xf32>
    %c0_34 = arith.constant 0 : index
    %c0_35 = arith.constant 0 : index
    %278 = vector.load %arg2[%c0_34, %c0_35] : memref<9x256xf32, #tpu.memory_space<vmem>>, vector<1x256xf32>
    %279 = vector.broadcast %278 : vector<1x256xf32> to vector<4x256xf32>
    %280 = arith.mulf %277, %279 : vector<4x256xf32>
    %281 = vector.extract_strided_slice %4 {offsets = [0, 36], sizes = [4, 1], strides = [1, 1]} : vector<8x128xf32> to vector<4x1xf32>
    %282 = vector.extract_strided_slice %280 {offsets = [0, 0], sizes = [1, 256], strides = [1, 1]} : vector<4x256xf32> to vector<1x256xf32>
    %283 = vector.broadcast %281 : vector<4x1xf32> to vector<4x256xf32>
    %284 = vector.broadcast %282 : vector<1x256xf32> to vector<4x256xf32>
    %285 = arith.mulf %283, %284 : vector<4x256xf32>
    %286 = vector.extract_strided_slice %4 {offsets = [0, 37], sizes = [4, 1], strides = [1, 1]} : vector<8x128xf32> to vector<4x1xf32>
    %287 = vector.extract_strided_slice %280 {offsets = [1, 0], sizes = [1, 256], strides = [1, 1]} : vector<4x256xf32> to vector<1x256xf32>
    %288 = vector.broadcast %286 : vector<4x1xf32> to vector<4x256xf32>
    %289 = vector.broadcast %287 : vector<1x256xf32> to vector<4x256xf32>
    %290 = arith.mulf %288, %289 : vector<4x256xf32>
    %291 = vector.extract_strided_slice %4 {offsets = [0, 38], sizes = [4, 1], strides = [1, 1]} : vector<8x128xf32> to vector<4x1xf32>
    %292 = vector.extract_strided_slice %280 {offsets = [2, 0], sizes = [1, 256], strides = [1, 1]} : vector<4x256xf32> to vector<1x256xf32>
    %293 = vector.broadcast %291 : vector<4x1xf32> to vector<4x256xf32>
    %294 = vector.broadcast %292 : vector<1x256xf32> to vector<4x256xf32>
    %295 = arith.mulf %293, %294 : vector<4x256xf32>
    %296 = vector.extract_strided_slice %4 {offsets = [0, 39], sizes = [4, 1], strides = [1, 1]} : vector<8x128xf32> to vector<4x1xf32>
    %297 = vector.extract_strided_slice %280 {offsets = [3, 0], sizes = [1, 256], strides = [1, 1]} : vector<4x256xf32> to vector<1x256xf32>
    %298 = vector.broadcast %296 : vector<4x1xf32> to vector<4x256xf32>
    %299 = vector.broadcast %297 : vector<1x256xf32> to vector<4x256xf32>
    %300 = arith.mulf %298, %299 : vector<4x256xf32>
    %c0_36 = arith.constant 0 : index
    %c112_37 = arith.constant 112 : index
    %301 = vector.load %arg6[%c0_36, %c112_37] : memref<4x512xf32, #tpu.memory_space<vmem>>, vector<4x256xf32>
    %302 = vector.extract_strided_slice %4 {offsets = [0, 40], sizes = [4, 1], strides = [1, 1]} : vector<8x128xf32> to vector<4x1xf32>
    %303 = vector.extract_strided_slice %301 {offsets = [0, 0], sizes = [1, 256], strides = [1, 1]} : vector<4x256xf32> to vector<1x256xf32>
    %304 = vector.broadcast %302 : vector<4x1xf32> to vector<4x256xf32>
    %305 = vector.broadcast %303 : vector<1x256xf32> to vector<4x256xf32>
    %306 = arith.mulf %304, %305 : vector<4x256xf32>
    %307 = arith.addf %285, %306 : vector<4x256xf32>
    %308 = vector.extract_strided_slice %4 {offsets = [0, 41], sizes = [4, 1], strides = [1, 1]} : vector<8x128xf32> to vector<4x1xf32>
    %309 = vector.extract_strided_slice %301 {offsets = [1, 0], sizes = [1, 256], strides = [1, 1]} : vector<4x256xf32> to vector<1x256xf32>
    %310 = vector.broadcast %308 : vector<4x1xf32> to vector<4x256xf32>
    %311 = vector.broadcast %309 : vector<1x256xf32> to vector<4x256xf32>
    %312 = arith.mulf %310, %311 : vector<4x256xf32>
    %313 = arith.addf %290, %312 : vector<4x256xf32>
    %314 = vector.extract_strided_slice %4 {offsets = [0, 42], sizes = [4, 1], strides = [1, 1]} : vector<8x128xf32> to vector<4x1xf32>
    %315 = vector.extract_strided_slice %301 {offsets = [2, 0], sizes = [1, 256], strides = [1, 1]} : vector<4x256xf32> to vector<1x256xf32>
    %316 = vector.broadcast %314 : vector<4x1xf32> to vector<4x256xf32>
    %317 = vector.broadcast %315 : vector<1x256xf32> to vector<4x256xf32>
    %318 = arith.mulf %316, %317 : vector<4x256xf32>
    %319 = arith.addf %295, %318 : vector<4x256xf32>
    %320 = vector.extract_strided_slice %4 {offsets = [0, 43], sizes = [4, 1], strides = [1, 1]} : vector<8x128xf32> to vector<4x1xf32>
    %321 = vector.extract_strided_slice %301 {offsets = [3, 0], sizes = [1, 256], strides = [1, 1]} : vector<4x256xf32> to vector<1x256xf32>
    %322 = vector.broadcast %320 : vector<4x1xf32> to vector<4x256xf32>
    %323 = vector.broadcast %321 : vector<1x256xf32> to vector<4x256xf32>
    %324 = arith.mulf %322, %323 : vector<4x256xf32>
    %325 = arith.addf %300, %324 : vector<4x256xf32>
    %c0_38 = arith.constant 0 : index
    %c113_39 = arith.constant 113 : index
    %326 = vector.load %arg6[%c0_38, %c113_39] : memref<4x512xf32, #tpu.memory_space<vmem>>, vector<4x256xf32>
    %c2_40 = arith.constant 2 : index
    %c0_41 = arith.constant 0 : index
    %327 = vector.load %arg2[%c2_40, %c0_41] : memref<9x256xf32, #tpu.memory_space<vmem>>, vector<1x256xf32>
    %328 = vector.broadcast %327 : vector<1x256xf32> to vector<4x256xf32>
    %329 = arith.mulf %326, %328 : vector<4x256xf32>
    %330 = vector.extract_strided_slice %4 {offsets = [0, 44], sizes = [4, 1], strides = [1, 1]} : vector<8x128xf32> to vector<4x1xf32>
    %331 = vector.extract_strided_slice %329 {offsets = [0, 0], sizes = [1, 256], strides = [1, 1]} : vector<4x256xf32> to vector<1x256xf32>
    %332 = vector.broadcast %330 : vector<4x1xf32> to vector<4x256xf32>
    %333 = vector.broadcast %331 : vector<1x256xf32> to vector<4x256xf32>
    %334 = arith.mulf %332, %333 : vector<4x256xf32>
    %335 = arith.addf %307, %334 : vector<4x256xf32>
    %336 = vector.extract_strided_slice %4 {offsets = [0, 45], sizes = [4, 1], strides = [1, 1]} : vector<8x128xf32> to vector<4x1xf32>
    %337 = vector.extract_strided_slice %329 {offsets = [1, 0], sizes = [1, 256], strides = [1, 1]} : vector<4x256xf32> to vector<1x256xf32>
    %338 = vector.broadcast %336 : vector<4x1xf32> to vector<4x256xf32>
    %339 = vector.broadcast %337 : vector<1x256xf32> to vector<4x256xf32>
    %340 = arith.mulf %338, %339 : vector<4x256xf32>
    %341 = arith.addf %313, %340 : vector<4x256xf32>
    %342 = vector.extract_strided_slice %4 {offsets = [0, 46], sizes = [4, 1], strides = [1, 1]} : vector<8x128xf32> to vector<4x1xf32>
    %343 = vector.extract_strided_slice %329 {offsets = [2, 0], sizes = [1, 256], strides = [1, 1]} : vector<4x256xf32> to vector<1x256xf32>
    %344 = vector.broadcast %342 : vector<4x1xf32> to vector<4x256xf32>
    %345 = vector.broadcast %343 : vector<1x256xf32> to vector<4x256xf32>
    %346 = arith.mulf %344, %345 : vector<4x256xf32>
    %347 = arith.addf %319, %346 : vector<4x256xf32>
    %348 = vector.extract_strided_slice %4 {offsets = [0, 47], sizes = [4, 1], strides = [1, 1]} : vector<8x128xf32> to vector<4x1xf32>
    %349 = vector.extract_strided_slice %329 {offsets = [3, 0], sizes = [1, 256], strides = [1, 1]} : vector<4x256xf32> to vector<1x256xf32>
    %350 = vector.broadcast %348 : vector<4x1xf32> to vector<4x256xf32>
    %351 = vector.broadcast %349 : vector<1x256xf32> to vector<4x256xf32>
    %352 = arith.mulf %350, %351 : vector<4x256xf32>
    %353 = arith.addf %325, %352 : vector<4x256xf32>
    %c0_42 = arith.constant 0 : index
    %c127_43 = arith.constant 127 : index
    %354 = vector.load %arg6[%c0_42, %c127_43] : memref<4x512xf32, #tpu.memory_space<vmem>>, vector<4x256xf32>
    %c3_44 = arith.constant 3 : index
    %c0_45 = arith.constant 0 : index
    %355 = vector.load %arg2[%c3_44, %c0_45] : memref<9x256xf32, #tpu.memory_space<vmem>>, vector<1x256xf32>
    %356 = vector.broadcast %355 : vector<1x256xf32> to vector<4x256xf32>
    %357 = arith.mulf %354, %356 : vector<4x256xf32>
    %358 = vector.extract_strided_slice %4 {offsets = [0, 48], sizes = [4, 1], strides = [1, 1]} : vector<8x128xf32> to vector<4x1xf32>
    %359 = vector.extract_strided_slice %357 {offsets = [0, 0], sizes = [1, 256], strides = [1, 1]} : vector<4x256xf32> to vector<1x256xf32>
    %360 = vector.broadcast %358 : vector<4x1xf32> to vector<4x256xf32>
    %361 = vector.broadcast %359 : vector<1x256xf32> to vector<4x256xf32>
    %362 = arith.mulf %360, %361 : vector<4x256xf32>
    %363 = arith.addf %335, %362 : vector<4x256xf32>
    %364 = vector.extract_strided_slice %4 {offsets = [0, 49], sizes = [4, 1], strides = [1, 1]} : vector<8x128xf32> to vector<4x1xf32>
    %365 = vector.extract_strided_slice %357 {offsets = [1, 0], sizes = [1, 256], strides = [1, 1]} : vector<4x256xf32> to vector<1x256xf32>
    %366 = vector.broadcast %364 : vector<4x1xf32> to vector<4x256xf32>
    %367 = vector.broadcast %365 : vector<1x256xf32> to vector<4x256xf32>
    %368 = arith.mulf %366, %367 : vector<4x256xf32>
    %369 = arith.addf %341, %368 : vector<4x256xf32>
    %370 = vector.extract_strided_slice %4 {offsets = [0, 50], sizes = [4, 1], strides = [1, 1]} : vector<8x128xf32> to vector<4x1xf32>
    %371 = vector.extract_strided_slice %357 {offsets = [2, 0], sizes = [1, 256], strides = [1, 1]} : vector<4x256xf32> to vector<1x256xf32>
    %372 = vector.broadcast %370 : vector<4x1xf32> to vector<4x256xf32>
    %373 = vector.broadcast %371 : vector<1x256xf32> to vector<4x256xf32>
    %374 = arith.mulf %372, %373 : vector<4x256xf32>
    %375 = arith.addf %347, %374 : vector<4x256xf32>
    %376 = vector.extract_strided_slice %4 {offsets = [0, 51], sizes = [4, 1], strides = [1, 1]} : vector<8x128xf32> to vector<4x1xf32>
    %377 = vector.extract_strided_slice %357 {offsets = [3, 0], sizes = [1, 256], strides = [1, 1]} : vector<4x256xf32> to vector<1x256xf32>
    %378 = vector.broadcast %376 : vector<4x1xf32> to vector<4x256xf32>
    %379 = vector.broadcast %377 : vector<1x256xf32> to vector<4x256xf32>
    %380 = arith.mulf %378, %379 : vector<4x256xf32>
    %381 = arith.addf %353, %380 : vector<4x256xf32>
    %c0_46 = arith.constant 0 : index
    %c128_47 = arith.constant 128 : index
    %382 = vector.load %arg6[%c0_46, %c128_47] : memref<4x512xf32, #tpu.memory_space<vmem>>, vector<4x256xf32>
    %383 = vector.extract_strided_slice %4 {offsets = [0, 52], sizes = [4, 1], strides = [1, 1]} : vector<8x128xf32> to vector<4x1xf32>
    %384 = vector.extract_strided_slice %382 {offsets = [0, 0], sizes = [1, 256], strides = [1, 1]} : vector<4x256xf32> to vector<1x256xf32>
    %385 = vector.broadcast %383 : vector<4x1xf32> to vector<4x256xf32>
    %386 = vector.broadcast %384 : vector<1x256xf32> to vector<4x256xf32>
    %387 = arith.mulf %385, %386 : vector<4x256xf32>
    %388 = arith.addf %363, %387 : vector<4x256xf32>
    %389 = vector.extract_strided_slice %4 {offsets = [0, 53], sizes = [4, 1], strides = [1, 1]} : vector<8x128xf32> to vector<4x1xf32>
    %390 = vector.extract_strided_slice %382 {offsets = [1, 0], sizes = [1, 256], strides = [1, 1]} : vector<4x256xf32> to vector<1x256xf32>
    %391 = vector.broadcast %389 : vector<4x1xf32> to vector<4x256xf32>
    %392 = vector.broadcast %390 : vector<1x256xf32> to vector<4x256xf32>
    %393 = arith.mulf %391, %392 : vector<4x256xf32>
    %394 = arith.addf %369, %393 : vector<4x256xf32>
    %395 = vector.extract_strided_slice %4 {offsets = [0, 54], sizes = [4, 1], strides = [1, 1]} : vector<8x128xf32> to vector<4x1xf32>
    %396 = vector.extract_strided_slice %382 {offsets = [2, 0], sizes = [1, 256], strides = [1, 1]} : vector<4x256xf32> to vector<1x256xf32>
    %397 = vector.broadcast %395 : vector<4x1xf32> to vector<4x256xf32>
    %398 = vector.broadcast %396 : vector<1x256xf32> to vector<4x256xf32>
    %399 = arith.mulf %397, %398 : vector<4x256xf32>
    %400 = arith.addf %375, %399 : vector<4x256xf32>
    %401 = vector.extract_strided_slice %4 {offsets = [0, 55], sizes = [4, 1], strides = [1, 1]} : vector<8x128xf32> to vector<4x1xf32>
    %402 = vector.extract_strided_slice %382 {offsets = [3, 0], sizes = [1, 256], strides = [1, 1]} : vector<4x256xf32> to vector<1x256xf32>
    %403 = vector.broadcast %401 : vector<4x1xf32> to vector<4x256xf32>
    %404 = vector.broadcast %402 : vector<1x256xf32> to vector<4x256xf32>
    %405 = arith.mulf %403, %404 : vector<4x256xf32>
    %406 = arith.addf %381, %405 : vector<4x256xf32>
    %c0_48 = arith.constant 0 : index
    %c129_49 = arith.constant 129 : index
    %407 = vector.load %arg6[%c0_48, %c129_49] : memref<4x512xf32, #tpu.memory_space<vmem>>, vector<4x256xf32>
    %c5_50 = arith.constant 5 : index
    %c0_51 = arith.constant 0 : index
    %408 = vector.load %arg2[%c5_50, %c0_51] : memref<9x256xf32, #tpu.memory_space<vmem>>, vector<1x256xf32>
    %409 = vector.broadcast %408 : vector<1x256xf32> to vector<4x256xf32>
    %410 = arith.mulf %407, %409 : vector<4x256xf32>
    %411 = vector.extract_strided_slice %4 {offsets = [0, 56], sizes = [4, 1], strides = [1, 1]} : vector<8x128xf32> to vector<4x1xf32>
    %412 = vector.extract_strided_slice %410 {offsets = [0, 0], sizes = [1, 256], strides = [1, 1]} : vector<4x256xf32> to vector<1x256xf32>
    %413 = vector.broadcast %411 : vector<4x1xf32> to vector<4x256xf32>
    %414 = vector.broadcast %412 : vector<1x256xf32> to vector<4x256xf32>
    %415 = arith.mulf %413, %414 : vector<4x256xf32>
    %416 = arith.addf %388, %415 : vector<4x256xf32>
    %417 = vector.extract_strided_slice %4 {offsets = [0, 57], sizes = [4, 1], strides = [1, 1]} : vector<8x128xf32> to vector<4x1xf32>
    %418 = vector.extract_strided_slice %410 {offsets = [1, 0], sizes = [1, 256], strides = [1, 1]} : vector<4x256xf32> to vector<1x256xf32>
    %419 = vector.broadcast %417 : vector<4x1xf32> to vector<4x256xf32>
    %420 = vector.broadcast %418 : vector<1x256xf32> to vector<4x256xf32>
    %421 = arith.mulf %419, %420 : vector<4x256xf32>
    %422 = arith.addf %394, %421 : vector<4x256xf32>
    %423 = vector.extract_strided_slice %4 {offsets = [0, 58], sizes = [4, 1], strides = [1, 1]} : vector<8x128xf32> to vector<4x1xf32>
    %424 = vector.extract_strided_slice %410 {offsets = [2, 0], sizes = [1, 256], strides = [1, 1]} : vector<4x256xf32> to vector<1x256xf32>
    %425 = vector.broadcast %423 : vector<4x1xf32> to vector<4x256xf32>
    %426 = vector.broadcast %424 : vector<1x256xf32> to vector<4x256xf32>
    %427 = arith.mulf %425, %426 : vector<4x256xf32>
    %428 = arith.addf %400, %427 : vector<4x256xf32>
    %429 = vector.extract_strided_slice %4 {offsets = [0, 59], sizes = [4, 1], strides = [1, 1]} : vector<8x128xf32> to vector<4x1xf32>
    %430 = vector.extract_strided_slice %410 {offsets = [3, 0], sizes = [1, 256], strides = [1, 1]} : vector<4x256xf32> to vector<1x256xf32>
    %431 = vector.broadcast %429 : vector<4x1xf32> to vector<4x256xf32>
    %432 = vector.broadcast %430 : vector<1x256xf32> to vector<4x256xf32>
    %433 = arith.mulf %431, %432 : vector<4x256xf32>
    %434 = arith.addf %406, %433 : vector<4x256xf32>
    %c0_52 = arith.constant 0 : index
    %c143_53 = arith.constant 143 : index
    %435 = vector.load %arg6[%c0_52, %c143_53] : memref<4x512xf32, #tpu.memory_space<vmem>>, vector<4x256xf32>
    %c6_54 = arith.constant 6 : index
    %c0_55 = arith.constant 0 : index
    %436 = vector.load %arg2[%c6_54, %c0_55] : memref<9x256xf32, #tpu.memory_space<vmem>>, vector<1x256xf32>
    %437 = vector.broadcast %436 : vector<1x256xf32> to vector<4x256xf32>
    %438 = arith.mulf %435, %437 : vector<4x256xf32>
    %439 = vector.extract_strided_slice %4 {offsets = [0, 60], sizes = [4, 1], strides = [1, 1]} : vector<8x128xf32> to vector<4x1xf32>
    %440 = vector.extract_strided_slice %438 {offsets = [0, 0], sizes = [1, 256], strides = [1, 1]} : vector<4x256xf32> to vector<1x256xf32>
    %441 = vector.broadcast %439 : vector<4x1xf32> to vector<4x256xf32>
    %442 = vector.broadcast %440 : vector<1x256xf32> to vector<4x256xf32>
    %443 = arith.mulf %441, %442 : vector<4x256xf32>
    %444 = arith.addf %416, %443 : vector<4x256xf32>
    %445 = vector.extract_strided_slice %4 {offsets = [0, 61], sizes = [4, 1], strides = [1, 1]} : vector<8x128xf32> to vector<4x1xf32>
    %446 = vector.extract_strided_slice %438 {offsets = [1, 0], sizes = [1, 256], strides = [1, 1]} : vector<4x256xf32> to vector<1x256xf32>
    %447 = vector.broadcast %445 : vector<4x1xf32> to vector<4x256xf32>
    %448 = vector.broadcast %446 : vector<1x256xf32> to vector<4x256xf32>
    %449 = arith.mulf %447, %448 : vector<4x256xf32>
    %450 = arith.addf %422, %449 : vector<4x256xf32>
    %451 = vector.extract_strided_slice %4 {offsets = [0, 62], sizes = [4, 1], strides = [1, 1]} : vector<8x128xf32> to vector<4x1xf32>
    %452 = vector.extract_strided_slice %438 {offsets = [2, 0], sizes = [1, 256], strides = [1, 1]} : vector<4x256xf32> to vector<1x256xf32>
    %453 = vector.broadcast %451 : vector<4x1xf32> to vector<4x256xf32>
    %454 = vector.broadcast %452 : vector<1x256xf32> to vector<4x256xf32>
    %455 = arith.mulf %453, %454 : vector<4x256xf32>
    %456 = arith.addf %428, %455 : vector<4x256xf32>
    %457 = vector.extract_strided_slice %4 {offsets = [0, 63], sizes = [4, 1], strides = [1, 1]} : vector<8x128xf32> to vector<4x1xf32>
    %458 = vector.extract_strided_slice %438 {offsets = [3, 0], sizes = [1, 256], strides = [1, 1]} : vector<4x256xf32> to vector<1x256xf32>
    %459 = vector.broadcast %457 : vector<4x1xf32> to vector<4x256xf32>
    %460 = vector.broadcast %458 : vector<1x256xf32> to vector<4x256xf32>
    %461 = arith.mulf %459, %460 : vector<4x256xf32>
    %462 = arith.addf %434, %461 : vector<4x256xf32>
    %c0_56 = arith.constant 0 : index
    %c144_57 = arith.constant 144 : index
    %463 = vector.load %arg6[%c0_56, %c144_57] : memref<4x512xf32, #tpu.memory_space<vmem>>, vector<4x256xf32>
    %464 = vector.extract_strided_slice %4 {offsets = [0, 64], sizes = [4, 1], strides = [1, 1]} : vector<8x128xf32> to vector<4x1xf32>
    %465 = vector.extract_strided_slice %463 {offsets = [0, 0], sizes = [1, 256], strides = [1, 1]} : vector<4x256xf32> to vector<1x256xf32>
    %466 = vector.broadcast %464 : vector<4x1xf32> to vector<4x256xf32>
    %467 = vector.broadcast %465 : vector<1x256xf32> to vector<4x256xf32>
    %468 = arith.mulf %466, %467 : vector<4x256xf32>
    %469 = arith.addf %444, %468 : vector<4x256xf32>
    %470 = vector.extract_strided_slice %4 {offsets = [0, 65], sizes = [4, 1], strides = [1, 1]} : vector<8x128xf32> to vector<4x1xf32>
    %471 = vector.extract_strided_slice %463 {offsets = [1, 0], sizes = [1, 256], strides = [1, 1]} : vector<4x256xf32> to vector<1x256xf32>
    %472 = vector.broadcast %470 : vector<4x1xf32> to vector<4x256xf32>
    %473 = vector.broadcast %471 : vector<1x256xf32> to vector<4x256xf32>
    %474 = arith.mulf %472, %473 : vector<4x256xf32>
    %475 = arith.addf %450, %474 : vector<4x256xf32>
    %476 = vector.extract_strided_slice %4 {offsets = [0, 66], sizes = [4, 1], strides = [1, 1]} : vector<8x128xf32> to vector<4x1xf32>
    %477 = vector.extract_strided_slice %463 {offsets = [2, 0], sizes = [1, 256], strides = [1, 1]} : vector<4x256xf32> to vector<1x256xf32>
    %478 = vector.broadcast %476 : vector<4x1xf32> to vector<4x256xf32>
    %479 = vector.broadcast %477 : vector<1x256xf32> to vector<4x256xf32>
    %480 = arith.mulf %478, %479 : vector<4x256xf32>
    %481 = arith.addf %456, %480 : vector<4x256xf32>
    %482 = vector.extract_strided_slice %4 {offsets = [0, 67], sizes = [4, 1], strides = [1, 1]} : vector<8x128xf32> to vector<4x1xf32>
    %483 = vector.extract_strided_slice %463 {offsets = [3, 0], sizes = [1, 256], strides = [1, 1]} : vector<4x256xf32> to vector<1x256xf32>
    %484 = vector.broadcast %482 : vector<4x1xf32> to vector<4x256xf32>
    %485 = vector.broadcast %483 : vector<1x256xf32> to vector<4x256xf32>
    %486 = arith.mulf %484, %485 : vector<4x256xf32>
    %487 = arith.addf %462, %486 : vector<4x256xf32>
    %c0_58 = arith.constant 0 : index
    %c145_59 = arith.constant 145 : index
    %488 = vector.load %arg6[%c0_58, %c145_59] : memref<4x512xf32, #tpu.memory_space<vmem>>, vector<4x256xf32>
    %c8_60 = arith.constant 8 : index
    %c0_61 = arith.constant 0 : index
    %489 = vector.load %arg2[%c8_60, %c0_61] : memref<9x256xf32, #tpu.memory_space<vmem>>, vector<1x256xf32>
    %490 = vector.broadcast %489 : vector<1x256xf32> to vector<4x256xf32>
    %491 = arith.mulf %488, %490 : vector<4x256xf32>
    %492 = vector.extract_strided_slice %4 {offsets = [0, 68], sizes = [4, 1], strides = [1, 1]} : vector<8x128xf32> to vector<4x1xf32>
    %493 = vector.extract_strided_slice %491 {offsets = [0, 0], sizes = [1, 256], strides = [1, 1]} : vector<4x256xf32> to vector<1x256xf32>
    %494 = vector.broadcast %492 : vector<4x1xf32> to vector<4x256xf32>
    %495 = vector.broadcast %493 : vector<1x256xf32> to vector<4x256xf32>
    %496 = arith.mulf %494, %495 : vector<4x256xf32>
    %497 = arith.addf %469, %496 : vector<4x256xf32>
    %498 = vector.extract_strided_slice %4 {offsets = [0, 69], sizes = [4, 1], strides = [1, 1]} : vector<8x128xf32> to vector<4x1xf32>
    %499 = vector.extract_strided_slice %491 {offsets = [1, 0], sizes = [1, 256], strides = [1, 1]} : vector<4x256xf32> to vector<1x256xf32>
    %500 = vector.broadcast %498 : vector<4x1xf32> to vector<4x256xf32>
    %501 = vector.broadcast %499 : vector<1x256xf32> to vector<4x256xf32>
    %502 = arith.mulf %500, %501 : vector<4x256xf32>
    %503 = arith.addf %475, %502 : vector<4x256xf32>
    %504 = vector.extract_strided_slice %4 {offsets = [0, 70], sizes = [4, 1], strides = [1, 1]} : vector<8x128xf32> to vector<4x1xf32>
    %505 = vector.extract_strided_slice %491 {offsets = [2, 0], sizes = [1, 256], strides = [1, 1]} : vector<4x256xf32> to vector<1x256xf32>
    %506 = vector.broadcast %504 : vector<4x1xf32> to vector<4x256xf32>
    %507 = vector.broadcast %505 : vector<1x256xf32> to vector<4x256xf32>
    %508 = arith.mulf %506, %507 : vector<4x256xf32>
    %509 = arith.addf %481, %508 : vector<4x256xf32>
    %510 = vector.extract_strided_slice %4 {offsets = [0, 71], sizes = [4, 1], strides = [1, 1]} : vector<8x128xf32> to vector<4x1xf32>
    %511 = vector.extract_strided_slice %491 {offsets = [3, 0], sizes = [1, 256], strides = [1, 1]} : vector<4x256xf32> to vector<1x256xf32>
    %512 = vector.broadcast %510 : vector<4x1xf32> to vector<4x256xf32>
    %513 = vector.broadcast %511 : vector<1x256xf32> to vector<4x256xf32>
    %514 = arith.mulf %512, %513 : vector<4x256xf32>
    %515 = arith.addf %487, %514 : vector<4x256xf32>
    %516 = arith.addf %497, %503 : vector<4x256xf32>
    %517 = arith.addf %509, %515 : vector<4x256xf32>
    %518 = arith.addf %516, %517 : vector<4x256xf32>
    %519 = vector.extract_strided_slice %4 {offsets = [0, 109], sizes = [4, 1], strides = [1, 1]} : vector<8x128xf32> to vector<4x1xf32>
    %520 = vector.broadcast %519 : vector<4x1xf32> to vector<4x256xf32>
    %521 = arith.addf %518, %520 : vector<4x256xf32>
    %522 = arith.addf %521, %264 : vector<4x256xf32>
    %523 = vector.extract_strided_slice %4 {offsets = [0, 115], sizes = [4, 1], strides = [1, 1]} : vector<8x128xf32> to vector<4x1xf32>
    %524 = vector.broadcast %523 : vector<4x1xf32> to vector<4x256xf32>
    %525 = arith.mulf %522, %524 : vector<4x256xf32>
    %526 = vector.extract_strided_slice %4 {offsets = [0, 116], sizes = [4, 1], strides = [1, 1]} : vector<8x128xf32> to vector<4x1xf32>
    %527 = vector.broadcast %526 : vector<4x1xf32> to vector<4x256xf32>
    %528 = arith.addf %525, %527 : vector<4x256xf32>
    %cst_62 = arith.constant 0.000000e+00 : f32
    %529 = vector.broadcast %cst_62 : f32 to vector<4x256xf32>
    %530 = arith.cmpf oge, %528, %529 : vector<4x256xf32>
    %cst_63 = arith.constant 0.00999999977 : f32
    %531 = vector.broadcast %cst_63 : f32 to vector<4x256xf32>
    %532 = arith.mulf %531, %528 : vector<4x256xf32>
    %533 = arith.select %530, %528, %532 : vector<4x256xi1>, vector<4x256xf32>
    %c0_64 = arith.constant 0 : index
    %c128_65 = arith.constant 128 : index
    %534 = vector.load %arg6[%c0_64, %c128_65] : memref<4x512xf32, #tpu.memory_space<vmem>>, vector<4x256xf32>
    tpu.vector_store %arg6[%c0_64, %c128_65], %533 {strides = array<i32>} : memref<4x512xf32, #tpu.memory_space<vmem>>, vector<4x256xf32>,
    %c0_66 = arith.constant 0 : index
    %c111_67 = arith.constant 111 : index
    %535 = vector.load %arg6[%c0_66, %c111_67] : memref<4x512xf32, #tpu.memory_space<vmem>>, vector<4x256xf32>
    %c0_68 = arith.constant 0 : index
    %c0_69 = arith.constant 0 : index
    %536 = vector.load %arg2[%c0_68, %c0_69] : memref<9x256xf32, #tpu.memory_space<vmem>>, vector<1x256xf32>
    %537 = vector.broadcast %536 : vector<1x256xf32> to vector<4x256xf32>
    %538 = arith.mulf %535, %537 : vector<4x256xf32>
    %539 = vector.extract_strided_slice %4 {offsets = [0, 72], sizes = [8, 1], strides = [1, 1]} : vector<8x128xf32> to vector<8x1xf32>
    %540 = vector.extract_strided_slice %538 {offsets = [0, 0], sizes = [1, 256], strides = [1, 1]} : vector<4x256xf32> to vector<1x256xf32>
    %541 = vector.broadcast %539 : vector<8x1xf32> to vector<8x256xf32>
    %542 = vector.broadcast %540 : vector<1x256xf32> to vector<8x256xf32>
    %543 = arith.mulf %541, %542 : vector<8x256xf32>
    %544 = vector.extract_strided_slice %4 {offsets = [0, 73], sizes = [8, 1], strides = [1, 1]} : vector<8x128xf32> to vector<8x1xf32>
    %545 = vector.extract_strided_slice %538 {offsets = [1, 0], sizes = [1, 256], strides = [1, 1]} : vector<4x256xf32> to vector<1x256xf32>
    %546 = vector.broadcast %544 : vector<8x1xf32> to vector<8x256xf32>
    %547 = vector.broadcast %545 : vector<1x256xf32> to vector<8x256xf32>
    %548 = arith.mulf %546, %547 : vector<8x256xf32>
    %549 = vector.extract_strided_slice %4 {offsets = [0, 74], sizes = [8, 1], strides = [1, 1]} : vector<8x128xf32> to vector<8x1xf32>
    %550 = vector.extract_strided_slice %538 {offsets = [2, 0], sizes = [1, 256], strides = [1, 1]} : vector<4x256xf32> to vector<1x256xf32>
    %551 = vector.broadcast %549 : vector<8x1xf32> to vector<8x256xf32>
    %552 = vector.broadcast %550 : vector<1x256xf32> to vector<8x256xf32>
    %553 = arith.mulf %551, %552 : vector<8x256xf32>
    %554 = vector.extract_strided_slice %4 {offsets = [0, 75], sizes = [8, 1], strides = [1, 1]} : vector<8x128xf32> to vector<8x1xf32>
    %555 = vector.extract_strided_slice %538 {offsets = [3, 0], sizes = [1, 256], strides = [1, 1]} : vector<4x256xf32> to vector<1x256xf32>
    %556 = vector.broadcast %554 : vector<8x1xf32> to vector<8x256xf32>
    %557 = vector.broadcast %555 : vector<1x256xf32> to vector<8x256xf32>
    %558 = arith.mulf %556, %557 : vector<8x256xf32>
    %c0_70 = arith.constant 0 : index
    %c112_71 = arith.constant 112 : index
    %559 = vector.load %arg6[%c0_70, %c112_71] : memref<4x512xf32, #tpu.memory_space<vmem>>, vector<4x256xf32>
    %560 = vector.extract_strided_slice %4 {offsets = [0, 76], sizes = [8, 1], strides = [1, 1]} : vector<8x128xf32> to vector<8x1xf32>
    %561 = vector.extract_strided_slice %559 {offsets = [0, 0], sizes = [1, 256], strides = [1, 1]} : vector<4x256xf32> to vector<1x256xf32>
    %562 = vector.broadcast %560 : vector<8x1xf32> to vector<8x256xf32>
    %563 = vector.broadcast %561 : vector<1x256xf32> to vector<8x256xf32>
    %564 = arith.mulf %562, %563 : vector<8x256xf32>
    %565 = arith.addf %543, %564 : vector<8x256xf32>
    %566 = vector.extract_strided_slice %4 {offsets = [0, 77], sizes = [8, 1], strides = [1, 1]} : vector<8x128xf32> to vector<8x1xf32>
    %567 = vector.extract_strided_slice %559 {offsets = [1, 0], sizes = [1, 256], strides = [1, 1]} : vector<4x256xf32> to vector<1x256xf32>
    %568 = vector.broadcast %566 : vector<8x1xf32> to vector<8x256xf32>
    %569 = vector.broadcast %567 : vector<1x256xf32> to vector<8x256xf32>
    %570 = arith.mulf %568, %569 : vector<8x256xf32>
    %571 = arith.addf %548, %570 : vector<8x256xf32>
    %572 = vector.extract_strided_slice %4 {offsets = [0, 78], sizes = [8, 1], strides = [1, 1]} : vector<8x128xf32> to vector<8x1xf32>
    %573 = vector.extract_strided_slice %559 {offsets = [2, 0], sizes = [1, 256], strides = [1, 1]} : vector<4x256xf32> to vector<1x256xf32>
    %574 = vector.broadcast %572 : vector<8x1xf32> to vector<8x256xf32>
    %575 = vector.broadcast %573 : vector<1x256xf32> to vector<8x256xf32>
    %576 = arith.mulf %574, %575 : vector<8x256xf32>
    %577 = arith.addf %553, %576 : vector<8x256xf32>
    %578 = vector.extract_strided_slice %4 {offsets = [0, 79], sizes = [8, 1], strides = [1, 1]} : vector<8x128xf32> to vector<8x1xf32>
    %579 = vector.extract_strided_slice %559 {offsets = [3, 0], sizes = [1, 256], strides = [1, 1]} : vector<4x256xf32> to vector<1x256xf32>
    %580 = vector.broadcast %578 : vector<8x1xf32> to vector<8x256xf32>
    %581 = vector.broadcast %579 : vector<1x256xf32> to vector<8x256xf32>
    %582 = arith.mulf %580, %581 : vector<8x256xf32>
    %583 = arith.addf %558, %582 : vector<8x256xf32>
    %c0_72 = arith.constant 0 : index
    %c113_73 = arith.constant 113 : index
    %584 = vector.load %arg6[%c0_72, %c113_73] : memref<4x512xf32, #tpu.memory_space<vmem>>, vector<4x256xf32>
    %c2_74 = arith.constant 2 : index
    %c0_75 = arith.constant 0 : index
    %585 = vector.load %arg2[%c2_74, %c0_75] : memref<9x256xf32, #tpu.memory_space<vmem>>, vector<1x256xf32>
    %586 = vector.broadcast %585 : vector<1x256xf32> to vector<4x256xf32>
    %587 = arith.mulf %584, %586 : vector<4x256xf32>
    %588 = vector.extract_strided_slice %4 {offsets = [0, 80], sizes = [8, 1], strides = [1, 1]} : vector<8x128xf32> to vector<8x1xf32>
    %589 = vector.extract_strided_slice %587 {offsets = [0, 0], sizes = [1, 256], strides = [1, 1]} : vector<4x256xf32> to vector<1x256xf32>
    %590 = vector.broadcast %588 : vector<8x1xf32> to vector<8x256xf32>
    %591 = vector.broadcast %589 : vector<1x256xf32> to vector<8x256xf32>
    %592 = arith.mulf %590, %591 : vector<8x256xf32>
    %593 = arith.addf %565, %592 : vector<8x256xf32>
    %594 = vector.extract_strided_slice %4 {offsets = [0, 81], sizes = [8, 1], strides = [1, 1]} : vector<8x128xf32> to vector<8x1xf32>
    %595 = vector.extract_strided_slice %587 {offsets = [1, 0], sizes = [1, 256], strides = [1, 1]} : vector<4x256xf32> to vector<1x256xf32>
    %596 = vector.broadcast %594 : vector<8x1xf32> to vector<8x256xf32>
    %597 = vector.broadcast %595 : vector<1x256xf32> to vector<8x256xf32>
    %598 = arith.mulf %596, %597 : vector<8x256xf32>
    %599 = arith.addf %571, %598 : vector<8x256xf32>
    %600 = vector.extract_strided_slice %4 {offsets = [0, 82], sizes = [8, 1], strides = [1, 1]} : vector<8x128xf32> to vector<8x1xf32>
    %601 = vector.extract_strided_slice %587 {offsets = [2, 0], sizes = [1, 256], strides = [1, 1]} : vector<4x256xf32> to vector<1x256xf32>
    %602 = vector.broadcast %600 : vector<8x1xf32> to vector<8x256xf32>
    %603 = vector.broadcast %601 : vector<1x256xf32> to vector<8x256xf32>
    %604 = arith.mulf %602, %603 : vector<8x256xf32>
    %605 = arith.addf %577, %604 : vector<8x256xf32>
    %606 = vector.extract_strided_slice %4 {offsets = [0, 83], sizes = [8, 1], strides = [1, 1]} : vector<8x128xf32> to vector<8x1xf32>
    %607 = vector.extract_strided_slice %587 {offsets = [3, 0], sizes = [1, 256], strides = [1, 1]} : vector<4x256xf32> to vector<1x256xf32>
    %608 = vector.broadcast %606 : vector<8x1xf32> to vector<8x256xf32>
    %609 = vector.broadcast %607 : vector<1x256xf32> to vector<8x256xf32>
    %610 = arith.mulf %608, %609 : vector<8x256xf32>
    %611 = arith.addf %583, %610 : vector<8x256xf32>
    %c0_76 = arith.constant 0 : index
    %c127_77 = arith.constant 127 : index
    %612 = vector.load %arg6[%c0_76, %c127_77] : memref<4x512xf32, #tpu.memory_space<vmem>>, vector<4x256xf32>
    %c3_78 = arith.constant 3 : index
    %c0_79 = arith.constant 0 : index
    %613 = vector.load %arg2[%c3_78, %c0_79] : memref<9x256xf32, #tpu.memory_space<vmem>>, vector<1x256xf32>
    %614 = vector.broadcast %613 : vector<1x256xf32> to vector<4x256xf32>
    %615 = arith.mulf %612, %614 : vector<4x256xf32>
    %616 = vector.extract_strided_slice %4 {offsets = [0, 84], sizes = [8, 1], strides = [1, 1]} : vector<8x128xf32> to vector<8x1xf32>
    %617 = vector.extract_strided_slice %615 {offsets = [0, 0], sizes = [1, 256], strides = [1, 1]} : vector<4x256xf32> to vector<1x256xf32>
    %618 = vector.broadcast %616 : vector<8x1xf32> to vector<8x256xf32>
    %619 = vector.broadcast %617 : vector<1x256xf32> to vector<8x256xf32>
    %620 = arith.mulf %618, %619 : vector<8x256xf32>
    %621 = arith.addf %593, %620 : vector<8x256xf32>
    %622 = vector.extract_strided_slice %4 {offsets = [0, 85], sizes = [8, 1], strides = [1, 1]} : vector<8x128xf32> to vector<8x1xf32>
    %623 = vector.extract_strided_slice %615 {offsets = [1, 0], sizes = [1, 256], strides = [1, 1]} : vector<4x256xf32> to vector<1x256xf32>
    %624 = vector.broadcast %622 : vector<8x1xf32> to vector<8x256xf32>
    %625 = vector.broadcast %623 : vector<1x256xf32> to vector<8x256xf32>
    %626 = arith.mulf %624, %625 : vector<8x256xf32>
    %627 = arith.addf %599, %626 : vector<8x256xf32>
    %628 = vector.extract_strided_slice %4 {offsets = [0, 86], sizes = [8, 1], strides = [1, 1]} : vector<8x128xf32> to vector<8x1xf32>
    %629 = vector.extract_strided_slice %615 {offsets = [2, 0], sizes = [1, 256], strides = [1, 1]} : vector<4x256xf32> to vector<1x256xf32>
    %630 = vector.broadcast %628 : vector<8x1xf32> to vector<8x256xf32>
    %631 = vector.broadcast %629 : vector<1x256xf32> to vector<8x256xf32>
    %632 = arith.mulf %630, %631 : vector<8x256xf32>
    %633 = arith.addf %605, %632 : vector<8x256xf32>
    %634 = vector.extract_strided_slice %4 {offsets = [0, 87], sizes = [8, 1], strides = [1, 1]} : vector<8x128xf32> to vector<8x1xf32>
    %635 = vector.extract_strided_slice %615 {offsets = [3, 0], sizes = [1, 256], strides = [1, 1]} : vector<4x256xf32> to vector<1x256xf32>
    %636 = vector.broadcast %634 : vector<8x1xf32> to vector<8x256xf32>
    %637 = vector.broadcast %635 : vector<1x256xf32> to vector<8x256xf32>
    %638 = arith.mulf %636, %637 : vector<8x256xf32>
    %639 = arith.addf %611, %638 : vector<8x256xf32>
    %c0_80 = arith.constant 0 : index
    %c128_81 = arith.constant 128 : index
    %640 = vector.load %arg6[%c0_80, %c128_81] : memref<4x512xf32, #tpu.memory_space<vmem>>, vector<4x256xf32>
    %641 = vector.extract_strided_slice %4 {offsets = [0, 88], sizes = [8, 1], strides = [1, 1]} : vector<8x128xf32> to vector<8x1xf32>
    %642 = vector.extract_strided_slice %640 {offsets = [0, 0], sizes = [1, 256], strides = [1, 1]} : vector<4x256xf32> to vector<1x256xf32>
    %643 = vector.broadcast %641 : vector<8x1xf32> to vector<8x256xf32>
    %644 = vector.broadcast %642 : vector<1x256xf32> to vector<8x256xf32>
    %645 = arith.mulf %643, %644 : vector<8x256xf32>
    %646 = arith.addf %621, %645 : vector<8x256xf32>
    %647 = vector.extract_strided_slice %4 {offsets = [0, 89], sizes = [8, 1], strides = [1, 1]} : vector<8x128xf32> to vector<8x1xf32>
    %648 = vector.extract_strided_slice %640 {offsets = [1, 0], sizes = [1, 256], strides = [1, 1]} : vector<4x256xf32> to vector<1x256xf32>
    %649 = vector.broadcast %647 : vector<8x1xf32> to vector<8x256xf32>
    %650 = vector.broadcast %648 : vector<1x256xf32> to vector<8x256xf32>
    %651 = arith.mulf %649, %650 : vector<8x256xf32>
    %652 = arith.addf %627, %651 : vector<8x256xf32>
    %653 = vector.extract_strided_slice %4 {offsets = [0, 90], sizes = [8, 1], strides = [1, 1]} : vector<8x128xf32> to vector<8x1xf32>
    %654 = vector.extract_strided_slice %640 {offsets = [2, 0], sizes = [1, 256], strides = [1, 1]} : vector<4x256xf32> to vector<1x256xf32>
    %655 = vector.broadcast %653 : vector<8x1xf32> to vector<8x256xf32>
    %656 = vector.broadcast %654 : vector<1x256xf32> to vector<8x256xf32>
    %657 = arith.mulf %655, %656 : vector<8x256xf32>
    %658 = arith.addf %633, %657 : vector<8x256xf32>
    %659 = vector.extract_strided_slice %4 {offsets = [0, 91], sizes = [8, 1], strides = [1, 1]} : vector<8x128xf32> to vector<8x1xf32>
    %660 = vector.extract_strided_slice %640 {offsets = [3, 0], sizes = [1, 256], strides = [1, 1]} : vector<4x256xf32> to vector<1x256xf32>
    %661 = vector.broadcast %659 : vector<8x1xf32> to vector<8x256xf32>
    %662 = vector.broadcast %660 : vector<1x256xf32> to vector<8x256xf32>
    %663 = arith.mulf %661, %662 : vector<8x256xf32>
    %664 = arith.addf %639, %663 : vector<8x256xf32>
    %c0_82 = arith.constant 0 : index
    %c129_83 = arith.constant 129 : index
    %665 = vector.load %arg6[%c0_82, %c129_83] : memref<4x512xf32, #tpu.memory_space<vmem>>, vector<4x256xf32>
    %c5_84 = arith.constant 5 : index
    %c0_85 = arith.constant 0 : index
    %666 = vector.load %arg2[%c5_84, %c0_85] : memref<9x256xf32, #tpu.memory_space<vmem>>, vector<1x256xf32>
    %667 = vector.broadcast %666 : vector<1x256xf32> to vector<4x256xf32>
    %668 = arith.mulf %665, %667 : vector<4x256xf32>
    %669 = vector.extract_strided_slice %4 {offsets = [0, 92], sizes = [8, 1], strides = [1, 1]} : vector<8x128xf32> to vector<8x1xf32>
    %670 = vector.extract_strided_slice %668 {offsets = [0, 0], sizes = [1, 256], strides = [1, 1]} : vector<4x256xf32> to vector<1x256xf32>
    %671 = vector.broadcast %669 : vector<8x1xf32> to vector<8x256xf32>
    %672 = vector.broadcast %670 : vector<1x256xf32> to vector<8x256xf32>
    %673 = arith.mulf %671, %672 : vector<8x256xf32>
    %674 = arith.addf %646, %673 : vector<8x256xf32>
    %675 = vector.extract_strided_slice %4 {offsets = [0, 93], sizes = [8, 1], strides = [1, 1]} : vector<8x128xf32> to vector<8x1xf32>
    %676 = vector.extract_strided_slice %668 {offsets = [1, 0], sizes = [1, 256], strides = [1, 1]} : vector<4x256xf32> to vector<1x256xf32>
    %677 = vector.broadcast %675 : vector<8x1xf32> to vector<8x256xf32>
    %678 = vector.broadcast %676 : vector<1x256xf32> to vector<8x256xf32>
    %679 = arith.mulf %677, %678 : vector<8x256xf32>
    %680 = arith.addf %652, %679 : vector<8x256xf32>
    %681 = vector.extract_strided_slice %4 {offsets = [0, 94], sizes = [8, 1], strides = [1, 1]} : vector<8x128xf32> to vector<8x1xf32>
    %682 = vector.extract_strided_slice %668 {offsets = [2, 0], sizes = [1, 256], strides = [1, 1]} : vector<4x256xf32> to vector<1x256xf32>
    %683 = vector.broadcast %681 : vector<8x1xf32> to vector<8x256xf32>
    %684 = vector.broadcast %682 : vector<1x256xf32> to vector<8x256xf32>
    %685 = arith.mulf %683, %684 : vector<8x256xf32>
    %686 = arith.addf %658, %685 : vector<8x256xf32>
    %687 = vector.extract_strided_slice %4 {offsets = [0, 95], sizes = [8, 1], strides = [1, 1]} : vector<8x128xf32> to vector<8x1xf32>
    %688 = vector.extract_strided_slice %668 {offsets = [3, 0], sizes = [1, 256], strides = [1, 1]} : vector<4x256xf32> to vector<1x256xf32>
    %689 = vector.broadcast %687 : vector<8x1xf32> to vector<8x256xf32>
    %690 = vector.broadcast %688 : vector<1x256xf32> to vector<8x256xf32>
    %691 = arith.mulf %689, %690 : vector<8x256xf32>
    %692 = arith.addf %664, %691 : vector<8x256xf32>
    %c0_86 = arith.constant 0 : index
    %c143_87 = arith.constant 143 : index
    %693 = vector.load %arg6[%c0_86, %c143_87] : memref<4x512xf32, #tpu.memory_space<vmem>>, vector<4x256xf32>
    %c6_88 = arith.constant 6 : index
    %c0_89 = arith.constant 0 : index
    %694 = vector.load %arg2[%c6_88, %c0_89] : memref<9x256xf32, #tpu.memory_space<vmem>>, vector<1x256xf32>
    %695 = vector.broadcast %694 : vector<1x256xf32> to vector<4x256xf32>
    %696 = arith.mulf %693, %695 : vector<4x256xf32>
    %697 = vector.extract_strided_slice %4 {offsets = [0, 96], sizes = [8, 1], strides = [1, 1]} : vector<8x128xf32> to vector<8x1xf32>
    %698 = vector.extract_strided_slice %696 {offsets = [0, 0], sizes = [1, 256], strides = [1, 1]} : vector<4x256xf32> to vector<1x256xf32>
    %699 = vector.broadcast %697 : vector<8x1xf32> to vector<8x256xf32>
    %700 = vector.broadcast %698 : vector<1x256xf32> to vector<8x256xf32>
    %701 = arith.mulf %699, %700 : vector<8x256xf32>
    %702 = arith.addf %674, %701 : vector<8x256xf32>
    %703 = vector.extract_strided_slice %4 {offsets = [0, 97], sizes = [8, 1], strides = [1, 1]} : vector<8x128xf32> to vector<8x1xf32>
    %704 = vector.extract_strided_slice %696 {offsets = [1, 0], sizes = [1, 256], strides = [1, 1]} : vector<4x256xf32> to vector<1x256xf32>
    %705 = vector.broadcast %703 : vector<8x1xf32> to vector<8x256xf32>
    %706 = vector.broadcast %704 : vector<1x256xf32> to vector<8x256xf32>
    %707 = arith.mulf %705, %706 : vector<8x256xf32>
    %708 = arith.addf %680, %707 : vector<8x256xf32>
    %709 = vector.extract_strided_slice %4 {offsets = [0, 98], sizes = [8, 1], strides = [1, 1]} : vector<8x128xf32> to vector<8x1xf32>
    %710 = vector.extract_strided_slice %696 {offsets = [2, 0], sizes = [1, 256], strides = [1, 1]} : vector<4x256xf32> to vector<1x256xf32>
    %711 = vector.broadcast %709 : vector<8x1xf32> to vector<8x256xf32>
    %712 = vector.broadcast %710 : vector<1x256xf32> to vector<8x256xf32>
    %713 = arith.mulf %711, %712 : vector<8x256xf32>
    %714 = arith.addf %686, %713 : vector<8x256xf32>
    %715 = vector.extract_strided_slice %4 {offsets = [0, 99], sizes = [8, 1], strides = [1, 1]} : vector<8x128xf32> to vector<8x1xf32>
    %716 = vector.extract_strided_slice %696 {offsets = [3, 0], sizes = [1, 256], strides = [1, 1]} : vector<4x256xf32> to vector<1x256xf32>
    %717 = vector.broadcast %715 : vector<8x1xf32> to vector<8x256xf32>
    %718 = vector.broadcast %716 : vector<1x256xf32> to vector<8x256xf32>
    %719 = arith.mulf %717, %718 : vector<8x256xf32>
    %720 = arith.addf %692, %719 : vector<8x256xf32>
    %c0_90 = arith.constant 0 : index
    %c144_91 = arith.constant 144 : index
    %721 = vector.load %arg6[%c0_90, %c144_91] : memref<4x512xf32, #tpu.memory_space<vmem>>, vector<4x256xf32>
    %722 = vector.extract_strided_slice %4 {offsets = [0, 100], sizes = [8, 1], strides = [1, 1]} : vector<8x128xf32> to vector<8x1xf32>
    %723 = vector.extract_strided_slice %721 {offsets = [0, 0], sizes = [1, 256], strides = [1, 1]} : vector<4x256xf32> to vector<1x256xf32>
    %724 = vector.broadcast %722 : vector<8x1xf32> to vector<8x256xf32>
    %725 = vector.broadcast %723 : vector<1x256xf32> to vector<8x256xf32>
    %726 = arith.mulf %724, %725 : vector<8x256xf32>
    %727 = arith.addf %702, %726 : vector<8x256xf32>
    %728 = vector.extract_strided_slice %4 {offsets = [0, 101], sizes = [8, 1], strides = [1, 1]} : vector<8x128xf32> to vector<8x1xf32>
    %729 = vector.extract_strided_slice %721 {offsets = [1, 0], sizes = [1, 256], strides = [1, 1]} : vector<4x256xf32> to vector<1x256xf32>
    %730 = vector.broadcast %728 : vector<8x1xf32> to vector<8x256xf32>
    %731 = vector.broadcast %729 : vector<1x256xf32> to vector<8x256xf32>
    %732 = arith.mulf %730, %731 : vector<8x256xf32>
    %733 = arith.addf %708, %732 : vector<8x256xf32>
    %734 = vector.extract_strided_slice %4 {offsets = [0, 102], sizes = [8, 1], strides = [1, 1]} : vector<8x128xf32> to vector<8x1xf32>
    %735 = vector.extract_strided_slice %721 {offsets = [2, 0], sizes = [1, 256], strides = [1, 1]} : vector<4x256xf32> to vector<1x256xf32>
    %736 = vector.broadcast %734 : vector<8x1xf32> to vector<8x256xf32>
    %737 = vector.broadcast %735 : vector<1x256xf32> to vector<8x256xf32>
    %738 = arith.mulf %736, %737 : vector<8x256xf32>
    %739 = arith.addf %714, %738 : vector<8x256xf32>
    %740 = vector.extract_strided_slice %4 {offsets = [0, 103], sizes = [8, 1], strides = [1, 1]} : vector<8x128xf32> to vector<8x1xf32>
    %741 = vector.extract_strided_slice %721 {offsets = [3, 0], sizes = [1, 256], strides = [1, 1]} : vector<4x256xf32> to vector<1x256xf32>
    %742 = vector.broadcast %740 : vector<8x1xf32> to vector<8x256xf32>
    %743 = vector.broadcast %741 : vector<1x256xf32> to vector<8x256xf32>
    %744 = arith.mulf %742, %743 : vector<8x256xf32>
    %745 = arith.addf %720, %744 : vector<8x256xf32>
    %c0_92 = arith.constant 0 : index
    %c145_93 = arith.constant 145 : index
    %746 = vector.load %arg6[%c0_92, %c145_93] : memref<4x512xf32, #tpu.memory_space<vmem>>, vector<4x256xf32>
    %c8_94 = arith.constant 8 : index
    %c0_95 = arith.constant 0 : index
    %747 = vector.load %arg2[%c8_94, %c0_95] : memref<9x256xf32, #tpu.memory_space<vmem>>, vector<1x256xf32>
    %748 = vector.broadcast %747 : vector<1x256xf32> to vector<4x256xf32>
    %749 = arith.mulf %746, %748 : vector<4x256xf32>
    %750 = vector.extract_strided_slice %4 {offsets = [0, 104], sizes = [8, 1], strides = [1, 1]} : vector<8x128xf32> to vector<8x1xf32>
    %751 = vector.extract_strided_slice %749 {offsets = [0, 0], sizes = [1, 256], strides = [1, 1]} : vector<4x256xf32> to vector<1x256xf32>
    %752 = vector.broadcast %750 : vector<8x1xf32> to vector<8x256xf32>
    %753 = vector.broadcast %751 : vector<1x256xf32> to vector<8x256xf32>
    %754 = arith.mulf %752, %753 : vector<8x256xf32>
    %755 = arith.addf %727, %754 : vector<8x256xf32>
    %756 = vector.extract_strided_slice %4 {offsets = [0, 105], sizes = [8, 1], strides = [1, 1]} : vector<8x128xf32> to vector<8x1xf32>
    %757 = vector.extract_strided_slice %749 {offsets = [1, 0], sizes = [1, 256], strides = [1, 1]} : vector<4x256xf32> to vector<1x256xf32>
    %758 = vector.broadcast %756 : vector<8x1xf32> to vector<8x256xf32>
    %759 = vector.broadcast %757 : vector<1x256xf32> to vector<8x256xf32>
    %760 = arith.mulf %758, %759 : vector<8x256xf32>
    %761 = arith.addf %733, %760 : vector<8x256xf32>
    %762 = vector.extract_strided_slice %4 {offsets = [0, 106], sizes = [8, 1], strides = [1, 1]} : vector<8x128xf32> to vector<8x1xf32>
    %763 = vector.extract_strided_slice %749 {offsets = [2, 0], sizes = [1, 256], strides = [1, 1]} : vector<4x256xf32> to vector<1x256xf32>
    %764 = vector.broadcast %762 : vector<8x1xf32> to vector<8x256xf32>
    %765 = vector.broadcast %763 : vector<1x256xf32> to vector<8x256xf32>
    %766 = arith.mulf %764, %765 : vector<8x256xf32>
    %767 = arith.addf %739, %766 : vector<8x256xf32>
    %768 = vector.extract_strided_slice %4 {offsets = [0, 107], sizes = [8, 1], strides = [1, 1]} : vector<8x128xf32> to vector<8x1xf32>
    %769 = vector.extract_strided_slice %749 {offsets = [3, 0], sizes = [1, 256], strides = [1, 1]} : vector<4x256xf32> to vector<1x256xf32>
    %770 = vector.broadcast %768 : vector<8x1xf32> to vector<8x256xf32>
    %771 = vector.broadcast %769 : vector<1x256xf32> to vector<8x256xf32>
    %772 = arith.mulf %770, %771 : vector<8x256xf32>
    %773 = arith.addf %745, %772 : vector<8x256xf32>
    %774 = arith.addf %755, %761 : vector<8x256xf32>
    %775 = arith.addf %767, %773 : vector<8x256xf32>
    %776 = arith.addf %774, %775 : vector<8x256xf32>
    %777 = vector.extract_strided_slice %4 {offsets = [0, 110], sizes = [8, 1], strides = [1, 1]} : vector<8x128xf32> to vector<8x1xf32>
    %778 = vector.broadcast %777 : vector<8x1xf32> to vector<8x256xf32>
    %779 = arith.addf %776, %778 : vector<8x256xf32>
    %c0_96 = arith.constant 0 : index
    %c0_97 = arith.constant 0 : index
    %780 = vector.load %arg4[%c0_96, %c0_97] : memref<256x1024xf32, #tpu.memory_space<vmem>>, vector<256x1024xf32>
    %cst_98 = arith.constant dense<0.000000e+00> : vector<8x1024xf32>
    %781 = tpu.matmul %779, %780, %cst_98 {dimension_numbers = #tpu.dot_dimension_numbers<[1], [0], [0], [1], [0, 0, 1, 1], [], []>} : vector<8x256xf32>, vector<256x1024xf32>, vector<8x1024xf32> -> vector<8x1024xf32>
    %c0_99 = arith.constant 0 : index
    %c0_100 = arith.constant 0 : index
    %c0_101 = arith.constant 0 : index
    %782 = vector.load %arg5[%c0_99, %c0_100, %c0_101] : memref<1x8x1024xf32, #tpu.memory_space<vmem>>, vector<1x8x1024xf32>
    %783 = vector.shape_cast %782 : vector<1x8x1024xf32> to vector<8x1024xf32>
    %784 = vector.shape_cast %781 : vector<8x1024xf32> to vector<1x8x1024xf32>
    tpu.vector_store %arg5[%c0_99, %c0_100, %c0_101], %784 {strides = array<i32>} : memref<1x8x1024xf32, #tpu.memory_space<vmem>>, vector<1x8x1024xf32>,
    return
  }
  func.func @transform_0(%arg0: i32) -> (i32, i32, i32) {
    %c0_i32 = arith.constant 0 : i32
    %c0_i32_0 = arith.constant 0 : i32
    %c0_i32_1 = arith.constant 0 : i32
    return %arg0, %c0_i32, %c0_i32_0 : i32, i32, i32
  }
  func.func @transform_1(%arg0: i32) -> (i32, i32) {
    %c0_i32 = arith.constant 0 : i32
    %c0_i32_0 = arith.constant 0 : i32
    %c0_i32_1 = arith.constant 0 : i32
    return %c0_i32, %c0_i32_0 : i32, i32
  }
  func.func @transform_2(%arg0: i32) -> (i32, i32) {
    %c0_i32 = arith.constant 0 : i32
    %c0_i32_0 = arith.constant 0 : i32
    %c0_i32_1 = arith.constant 0 : i32
    return %c0_i32, %c0_i32_0 : i32, i32
  }
  func.func @transform_3(%arg0: i32) -> (i32, i32) {
    %c0_i32 = arith.constant 0 : i32
    %c0_i32_0 = arith.constant 0 : i32
    %c0_i32_1 = arith.constant 0 : i32
    return %c0_i32, %c0_i32_0 : i32, i32
  }
  func.func @transform_4(%arg0: i32) -> (i32, i32, i32) {
    %c0_i32 = arith.constant 0 : i32
    %c0_i32_0 = arith.constant 0 : i32
    %c0_i32_1 = arith.constant 0 : i32
    return %arg0, %c0_i32, %c0_i32_0 : i32, i32, i32
  }
}

</mosaic_0001>

<llo_original>
// kernel: up_layer_forward.1
$region0: #{up_layer_forward.1}
  #allocation0 [shape = 'u32[]', space=smem, size = 0x4, offset = 0x4, fixed_abs, tag = 'smem constant byte address 0x4 - core index']
  #allocation1 [shape = 'u32[144,128]{1,0:T(1,128)}', space=vmem, size = 0x12000, scoped, tag = 'internal scratch']
  #allocation2 [shape = 'f32[4,512]{1,0:T(4,128)}', space=vmem, size = 0x2000, scoped, tag = 'scratch operand']
  %s0 = inlined_call_operand.vmem [shape: f32[2,4,256], index: 0, kind: input, shape index: {}]
  %s1 = inlined_call_operand.vmem [shape: f32[9,256], index: 1, kind: input, shape index: {}]
  %s2 = inlined_call_operand.vmem [shape: f32[8,128], index: 2, kind: input, shape index: {}]
  %s3 = inlined_call_operand.hbm [shape: f32[256,1024], index: 3, kind: input, shape index: {}]
  %s4 = inlined_call_operand.vmem [shape: f32[2,8,1024], index: 4, kind: output, shape index: {}]
  %s5 = sld [smem:[#allocation0]]
  $region53: #{up_layer_forward.1} parent=0
    _
  %s7 = ssub.s32 1, %s5
  %s8 = scalar_select 0, %s7, %s5
  $region1: #{up_layer_forward.1} parent=0
    #allocation3 [shape = 'u8[1048576]{0}', space=vmem, size = 0x100000, scoped, tag = 'input window, operand 3, single buffered']
    #allocation4 [shape = 's32[2]{0}', space=sflag, size = 0x8, scoped, tag = 'scoped memory for up_layer_forward.1']
    %9 = vsyncpa [#allocation4], 0
    loop: start=0, step=1, limit=4
    $region2: #{up_layer_forward.1} parent=1 // loop_pre_header
      _
    $region3: #{up_layer_forward.1} parent=1 // loop_header
      %s11 = sphi 0, %s15
      %p12 = scmp.ge.s32.totalorder %s11, 4
      %s21 = sphi 0, %s23
      %s24 = sphi 0, %s21
      %s25 = sphi 0, %s24
      %s41 = sphi 0, %s25
      %s45 = sphi 0, %s45
      %s47 = sphi 0, %s45
      %s48 = sphi 0, %s47
      %s62 = sphi 0, %s48
      %s66 = sphi 0, %s66
      %s68 = sphi 0, %s66
      %s69 = sphi 0, %s68
      %s83 = sphi 0, %s69
      %s87 = sphi 0, %s87
      %s89 = sphi 0, %s87
      %s90 = sphi 0, %s89
      %s104 = sphi 0, %s90
      %s110 = sphi 0, %s112
      %s113 = sphi 0, %s110
      %s114 = sphi 0, %s113
      %s130 = sphi 0, %s114
    $region4: #{up_layer_forward.1} parent=1 // loop_header_branch
      %14 = sbr.rel (%p12) target = $region8
    $region5: #{up_layer_forward.1} parent=1 // loop_body
      %s16 = ssub.s32 %s11, 1
      %s17 = ssub.s32 %s11, 2
      %s18 = sadd.s32 %s11, 1
      %s19 = ssub.s32 %s11, %s18
      %p20 = scmp.eq.s32.totalorder %s19, 0
      %s22 = sadd.s32 %s21, 1
      %s23 = scalar_select %p20, %s21, %s22
      %p26 = pneg %p20
      %p27 = scmp.eq.s32.totalorder %s11, 1
      %p28 = por %p26, %p27
      %p29 = scmp.ne.s32.totalorder %s21, %s24
      %p30 = scmp.eq.s32.totalorder %s11, 0
      %p31 = por %p29, %p30
      %p32 = scmp.ne.s32.totalorder %s21, %s24
      %p33 = scmp.eq.s32.totalorder %s16, 1
      %p34 = por %p32, %p33
      %p35 = scmp.ne.s32.totalorder %s24, %s25
      %p36 = scmp.eq.s32.totalorder %s16, 0
      %p37 = por %p35, %p36
      %p38 = scmp.ne.s32.totalorder %s24, %s25
      %p39 = scmp.eq.s32.totalorder %s17, 1
      %p40 = por %p38, %p39
      %p42 = scmp.ne.s32.totalorder %s25, %s41
      %p43 = scmp.eq.s32.totalorder %s17, 0
      %p44 = por %p42, %p43
      %s46 = sadd.s32 %s45, 1
      %p49 = scmp.eq.s32.totalorder %s11, 1
      %p50 = scmp.ne.s32.totalorder %s45, %s47
      %p51 = scmp.eq.s32.totalorder %s11, 0
      %p52 = por %p50, %p51
      %p53 = scmp.ne.s32.totalorder %s45, %s47
      %p54 = scmp.eq.s32.totalorder %s16, 1
      %p55 = por %p53, %p54
      %p56 = scmp.ne.s32.totalorder %s47, %s48
      %p57 = scmp.eq.s32.totalorder %s16, 0
      %p58 = por %p56, %p57
      %p59 = scmp.ne.s32.totalorder %s47, %s48
      %p60 = scmp.eq.s32.totalorder %s17, 1
      %p61 = por %p59, %p60
      %p63 = scmp.ne.s32.totalorder %s48, %s62
      %p64 = scmp.eq.s32.totalorder %s17, 0
      %p65 = por %p63, %p64
      %s67 = sadd.s32 %s66, 1
      %p70 = scmp.eq.s32.totalorder %s11, 1
      %p71 = scmp.ne.s32.totalorder %s66, %s68
      %p72 = scmp.eq.s32.totalorder %s11, 0
      %p73 = por %p71, %p72
      %p74 = scmp.ne.s32.totalorder %s66, %s68
      %p75 = scmp.eq.s32.totalorder %s16, 1
      %p76 = por %p74, %p75
      %p77 = scmp.ne.s32.totalorder %s68, %s69
      %p78 = scmp.eq.s32.totalorder %s16, 0
      %p79 = por %p77, %p78
      %p80 = scmp.ne.s32.totalorder %s68, %s69
      %p81 = scmp.eq.s32.totalorder %s17, 1
      %p82 = por %p80, %p81
      %p84 = scmp.ne.s32.totalorder %s69, %s83
      %p85 = scmp.eq.s32.totalorder %s17, 0
      %p86 = por %p84, %p85
      %s88 = sadd.s32 %s87, 1
      %p91 = scmp.eq.s32.totalorder %s11, 1
      %p92 = scmp.ne.s32.totalorder %s87, %s89
      %p93 = scmp.eq.s32.totalorder %s11, 0
      %p94 = por %p92, %p93
      %p95 = scmp.ne.s32.totalorder %s87, %s89
      %p96 = scmp.eq.s32.totalorder %s16, 1
      %p97 = por %p95, %p96
      %p98 = scmp.ne.s32.totalorder %s89, %s90
      %p99 = scmp.eq.s32.totalorder %s16, 0
      %p100 = por %p98, %p99
      %p101 = scmp.ne.s32.totalorder %s89, %s90
      %p102 = scmp.eq.s32.totalorder %s17, 1
      %p103 = por %p101, %p102
      %p105 = scmp.ne.s32.totalorder %s90, %s104
      %p106 = scmp.eq.s32.totalorder %s17, 0
      %p107 = por %p105, %p106
      %s108 = ssub.s32 %s11, %s18
      %p109 = scmp.eq.s32.totalorder %s108, 0
      %s111 = sadd.s32 %s110, 1
      %s112 = scalar_select %p109, %s110, %s111
      %p115 = pneg %p109
      %p116 = scmp.eq.s32.totalorder %s11, 1
      %p117 = por %p115, %p116
      %p118 = scmp.ne.s32.totalorder %s110, %s113
      %p119 = scmp.eq.s32.totalorder %s11, 0
      %p120 = por %p118, %p119
      %p121 = scmp.ne.s32.totalorder %s110, %s113
      %p122 = scmp.eq.s32.totalorder %s16, 1
      %p123 = por %p121, %p122
      %p124 = scmp.ne.s32.totalorder %s113, %s114
      %p125 = scmp.eq.s32.totalorder %s16, 0
      %p126 = por %p124, %p125
      %p127 = scmp.ne.s32.totalorder %s113, %s114
      %p128 = scmp.eq.s32.totalorder %s17, 1
      %p129 = por %p127, %p128
      %p131 = scmp.ne.s32.totalorder %s114, %s130
      %p132 = scmp.eq.s32.totalorder %s17, 0
      %p133 = por %p131, %p132
      %p134 = scmp.le.s32.totalorder 1, %s11
      %p135 = scmp.lt.s32.totalorder %s11, 3
      %p136 = pnand %p134, %p135
      %p137 = pneg %p136
      // Predicated region
      $region9: #{up_layer_forward.1} parent=5 // pred_check
        _
      $region10: #{up_layer_forward.1} parent=5 // pred_check_branch
        %139 = sbr.rel (%p136) target = $region12
      $region11: #{up_layer_forward.1} parent=5 // pred_region
        %s140 = ssub.s32 %s11, 1
        // Predicated region
        $region13: #{up_layer_forward.1} parent=11 // pred_check
          %p141 = pneg %p58
        $region14: #{up_layer_forward.1} parent=11 // pred_check_branch
          %143 = sbr.rel (%p141) target = $region16
        $region15: #{up_layer_forward.1} parent=11 // pred_region
          _
        $region16: #{up_layer_forward.1} parent=11 // pred_fallthru
          _
        // Predicated region
        $region17: #{up_layer_forward.1} parent=11 // pred_check
          %p144 = pneg %p79
        $region18: #{up_layer_forward.1} parent=11 // pred_check_branch
          %146 = sbr.rel (%p144) target = $region20
        $region19: #{up_layer_forward.1} parent=11 // pred_region
          _
        $region20: #{up_layer_forward.1} parent=11 // pred_fallthru
          _
        // Predicated region
        $region21: #{up_layer_forward.1} parent=11 // pred_check
          %p147 = pneg %p100
        $region22: #{up_layer_forward.1} parent=11 // pred_check_branch
          %149 = sbr.rel (%p147) target = $region24
        $region23: #{up_layer_forward.1} parent=11 // pred_region
          %s151 = ssub.s32 32768, 32768
          %152 = vsyncadd [#allocation4], %s151
          %s153 = sshll.u32 [#allocation3], 4
          %s154 = int_to_ptr.vmem [resolvable:$true] %s153
          %159 = dma.hbm_to_vmem [thread:$0]  %s3, 32768, %s154, [#allocation4], 1024, 1024, 64
        $region24: #{up_layer_forward.1} parent=11 // pred_fallthru
          _
      $region12: #{up_layer_forward.1} parent=5 // pred_fallthru
        _
      %p160 = scmp.lt.s32.totalorder %s11, 2
      // Predicated region
      $region25: #{up_layer_forward.1} parent=5 // pred_check
        %p161 = pneg %p160
      $region26: #{up_layer_forward.1} parent=5 // pred_check_branch
        %163 = sbr.rel (%p161) target = $region28
      $region27: #{up_layer_forward.1} parent=5 // pred_region
        // Predicated region
        $region29: #{up_layer_forward.1} parent=27 // pred_check
          %p164 = pneg %p31
        $region30: #{up_layer_forward.1} parent=27 // pred_check_branch
          %166 = sbr.rel (%p164) target = $region32
        $region31: #{up_layer_forward.1} parent=27 // pred_region
          %p167 = scmp.lt.s32.totalorder %s11, 1
          %s168 = scalar_select %p167, %s11, 1
          %s169 = smul.addr %s168, 2
          %s170 = smul.addr %s169, 4
          %s171 = scalar_lea.vmem %s0, %s170
        $region32: #{up_layer_forward.1} parent=27 // pred_fallthru
          _
      $region28: #{up_layer_forward.1} parent=5 // pred_fallthru
        _
      %p172 = scmp.le.s32.totalorder 1, %s11
      %p173 = scmp.lt.s32.totalorder %s11, 3
      %p174 = pnand %p172, %p173
      %p175 = pneg %p174
      // Predicated region
      $region33: #{up_layer_forward.1} parent=5 // pred_check
        _
      $region34: #{up_layer_forward.1} parent=5 // pred_check_branch
        %177 = sbr.rel (%p174) target = $region36
      $region35: #{up_layer_forward.1} parent=5 // pred_region
        %s178 = ssub.s32 %s11, 1
        // Predicated region
        $region37: #{up_layer_forward.1} parent=35 // pred_check
          %p179 = pneg %p100
        $region38: #{up_layer_forward.1} parent=35 // pred_check_branch
          %181 = sbr.rel (%p179) target = $region40
        $region39: #{up_layer_forward.1} parent=35 // pred_region
          %182 = dma.done [#allocation4], 32768
        $region40: #{up_layer_forward.1} parent=35 // pred_fallthru
          _
        %p183 = scmp.lt.s32.totalorder %s16, 1
        %s184 = scalar_select %p183, %s16, 1
        %s185 = smul.addr %s184, 2
        %s186 = smul.addr %s185, 4
        %s187 = scalar_lea.vmem %s0, %s186
        %p188 = pneg %p37
        %p189 = pneg %p34
        %p190 = pneg %p58
        %p191 = pneg %p55
        %p192 = pneg %p79
        %p193 = pneg %p76
        %p194 = pneg %p100
        %p195 = pneg %p97
        %p196 = pneg %p126
        %p197 = pneg %p123
        %p198 = scmp.lt.s32.totalorder %s16, 1
        %s199 = scalar_select %p198, %s16, 1
        %s200 = smul.addr %s199, 8
        %s201 = smul.addr %s200, 8
        %s202 = scalar_lea.vmem %s4, %s201
        %p203 = scmp.lt.s32.totalorder %s16, 1
        %s204 = scalar_select %p203, %s16, 1
        %s205 = smul.addr %s204, 2
        %s206 = smul.addr %s205, 4
        %s207 = scalar_lea.vmem %s0, %s206
        %p208 = scmp.lt.s32.totalorder %s16, 1
        %s209 = scalar_select %p208, %s16, 1
        %s210 = smul.addr %s209, 8
        %s211 = smul.addr %s210, 8
        %s212 = scalar_lea.vmem %s4, %s211
        %213 = vst [vmem:[#allocation2] sm:$0xf] 0.0
        %214 = vst [vmem:[#allocation2 + $0xc] sm:$0xf] 0.0
        %v215 = vld [vmem:[%s2] sm:$0xff]
        %v216 = vld [vmem:[%s207] sm:$0xff]
        %218 = vset.pattern.permute.xlu0 111
        %219 = vperm.xlu0 %218, %v215
        %v220 = vpop.permute.xlu0 %219
        %v222 = vunpack.c.l.s4 839922192
        %v223 = vunpack.c.0.s8 %v222
        %v224 = vlaneseq
        %v225 = vshrl.u32 %v224, 7
        %v226 = vsub.s32 %v223, %v225
        %v227 = vrot.slane %v220, %v226
        %v229 = vmul.f32 %v216, %v227
        %230 = vset.pattern.permute.xlu0 112
        %231 = vperm.xlu0 %230, %v215
        %v232 = vpop.permute.xlu0 %231
        %v234 = vunpack.c.l.s4 839922192
        %v235 = vunpack.c.0.s8 %v234
        %v236 = vlaneseq
        %v237 = vshrl.u32 %v236, 7
        %v238 = vsub.s32 %v235, %v237
        %v239 = vrot.slane %v232, %v238
        %v241 = vadd.f32 %v229, %v239
        %vm242 = vcmp.ge.f32.partialorder %v241, 0.0
        %v243 = vmul.f32 %v241, 0.01
        %v244 = vsel %vm242, %v241, %v243
        %245 = vst [vmem:[#allocation2 + $0x4] sm:$0xff] %v244
        %v246 = vld [vmem:[#allocation2] sm:$0xff]
        %v247 = vld [vmem:[#allocation2 + $0x8] sm:$0xf]
        %v248 = vld [vmem:[%s1] ss:$8 sm:$0x3]
        %v250 = vlaneseq
        %v251 = vshrl.u32 %v250, 7
        %v252 = vsub.s32 0, %v251
        %v253 = vrot.slane %v248, %v252
        %v254 = vlaneseq
        %v255 = vshrl.u32 %v254, 7
        %v256 = vsub.s32 1, %v255
        %v257 = vrot.slane %v248, %v256
        %v258 = vcombine.low %v253, %v257
        %259 = vrot.lane.b32.xlu0 %v258, 111
        %v260 = vpop.permute.xlu0 %259
        %v261 = vrot.slane %v260, 4
        %vm262 = vcmask 908288
        %v263 = vsel %vm262, %v261, %v260
        %v266 = vmul.f32 %v246, %v263
        %v267 = vmul.f32 %v247, %v261
        %268 = vset.pattern.permute.xlu0 0
        %269 = vperm.xlu0 %268, %v215
        %v270 = vpop.permute.xlu0 %269
        %v274 = vlaneseq
        %v275 = vshrl.u32 %v274, 7
        %v276 = vsub.s32 0, %v275
        %v277 = vrot.slane %v266, %v276
        %v278 = vlaneseq
        %v279 = vshrl.u32 %v278, 7
        %v280 = vsub.s32 4, %v279
        %v281 = vrot.slane %v266, %v280
        %v282 = vlaneseq
        %v283 = vshrl.u32 %v282, 7
        %v284 = vsub.s32 0, %v283
        %v285 = vrot.slane %v267, %v284
        %v289 = vlaneseq
        %v290 = vshrl.u32 %v289, 7
        %v291 = vsub.s32 0, %v290
        %v292 = vrot.slane %v277, %v291
        %v293 = vlaneseq
        %v294 = vshrl.u32 %v293, 7
        %v295 = vsub.s32 0, %v294
        %v296 = vrot.slane %v281, %v295
        %v297 = vlaneseq
        %v298 = vshrl.u32 %v297, 7
        %v299 = vsub.s32 0, %v298
        %v300 = vrot.slane %v285, %v299
        %v301 = vmul.f32 %v270, %v292
        %v302 = vmul.f32 %v270, %v296
        %v303 = vmul.f32 %v270, %v300
        %304 = vset.pattern.permute.xlu0 1
        %305 = vperm.xlu0 %304, %v215
        %v306 = vpop.permute.xlu0 %305
        %v308 = vlaneseq
        %v309 = vshrl.u32 %v308, 7
        %v310 = vsub.s32 1, %v309
        %v311 = vrot.slane %v266, %v310
        %v312 = vlaneseq
        %v313 = vshrl.u32 %v312, 7
        %v314 = vsub.s32 5, %v313
        %v315 = vrot.slane %v266, %v314
        %v316 = vlaneseq
        %v317 = vshrl.u32 %v316, 7
        %v318 = vsub.s32 1, %v317
        %v319 = vrot.slane %v267, %v318
        %v323 = vlaneseq
        %v324 = vshrl.u32 %v323, 7
        %v325 = vsub.s32 1, %v324
        %v326 = vrot.slane %v311, %v325
        %v327 = vlaneseq
        %v328 = vshrl.u32 %v327, 7
        %v329 = vsub.s32 1, %v328
        %v330 = vrot.slane %v315, %v329
        %v331 = vlaneseq
        %v332 = vshrl.u32 %v331, 7
        %v333 = vsub.s32 1, %v332
        %v334 = vrot.slane %v319, %v333
        %v335 = vmul.f32 %v306, %v326
        %v336 = vmul.f32 %v306, %v330
        %v337 = vmul.f32 %v306, %v334
        %338 = vset.pattern.permute.xlu0 2
        %339 = vperm.xlu0 %338, %v215
        %v340 = vpop.permute.xlu0 %339
        %v342 = vlaneseq
        %v343 = vshrl.u32 %v342, 7
        %v344 = vsub.s32 2, %v343
        %v345 = vrot.slane %v266, %v344
        %v346 = vlaneseq
        %v347 = vshrl.u32 %v346, 7
        %v348 = vsub.s32 6, %v347
        %v349 = vrot.slane %v266, %v348
        %v350 = vlaneseq
        %v351 = vshrl.u32 %v350, 7
        %v352 = vsub.s32 2, %v351
        %v353 = vrot.slane %v267, %v352
        %v357 = vlaneseq
        %v358 = vshrl.u32 %v357, 7
        %v359 = vsub.s32 2, %v358
        %v360 = vrot.slane %v345, %v359
        %v361 = vlaneseq
        %v362 = vshrl.u32 %v361, 7
        %v363 = vsub.s32 2, %v362
        %v364 = vrot.slane %v349, %v363
        %v365 = vlaneseq
        %v366 = vshrl.u32 %v365, 7
        %v367 = vsub.s32 2, %v366
        %v368 = vrot.slane %v353, %v367
        %v369 = vmul.f32 %v340, %v360
        %v370 = vmul.f32 %v340, %v364
        %v371 = vmul.f32 %v340, %v368
        %372 = vset.pattern.permute.xlu0 3
        %373 = vperm.xlu0 %372, %v215
        %v374 = vpop.permute.xlu0 %373
        %v376 = vlaneseq
        %v377 = vshrl.u32 %v376, 7
        %v378 = vsub.s32 3, %v377
        %v379 = vrot.slane %v266, %v378
        %v380 = vlaneseq
        %v381 = vshrl.u32 %v380, 7
        %v382 = vsub.s32 7, %v381
        %v383 = vrot.slane %v266, %v382
        %v384 = vlaneseq
        %v385 = vshrl.u32 %v384, 7
        %v386 = vsub.s32 3, %v385
        %v387 = vrot.slane %v267, %v386
        %v391 = vlaneseq
        %v392 = vshrl.u32 %v391, 7
        %v393 = vsub.s32 3, %v392
        %v394 = vrot.slane %v379, %v393
        %v395 = vlaneseq
        %v396 = vshrl.u32 %v395, 7
        %v397 = vsub.s32 3, %v396
        %v398 = vrot.slane %v383, %v397
        %v399 = vlaneseq
        %v400 = vshrl.u32 %v399, 7
        %v401 = vsub.s32 3, %v400
        %v402 = vrot.slane %v387, %v401
        %v403 = vmul.f32 %v374, %v394
        %v404 = vmul.f32 %v374, %v398
        %v405 = vmul.f32 %v374, %v402
        %v406 = vld [vmem:[#allocation2] sm:$0xff]
        %v407 = vld [vmem:[#allocation2 + $0x8] sm:$0xf]
        %408 = vset.pattern.permute.xlu0 4
        %409 = vperm.xlu0 %408, %v215
        %v410 = vpop.permute.xlu0 %409
        %v414 = vlaneseq
        %v415 = vshrl.u32 %v414, 7
        %v416 = vsub.s32 0, %v415
        %v417 = vrot.slane %v406, %v416
        %v418 = vlaneseq
        %v419 = vshrl.u32 %v418, 7
        %v420 = vsub.s32 4, %v419
        %v421 = vrot.slane %v406, %v420
        %v422 = vlaneseq
        %v423 = vshrl.u32 %v422, 7
        %v424 = vsub.s32 0, %v423
        %v425 = vrot.slane %v407, %v424
        %v429 = vlaneseq
        %v430 = vshrl.u32 %v429, 7
        %v431 = vsub.s32 0, %v430
        %v432 = vrot.slane %v417, %v431
        %v433 = vlaneseq
        %v434 = vshrl.u32 %v433, 7
        %v435 = vsub.s32 0, %v434
        %v436 = vrot.slane %v421, %v435
        %v437 = vlaneseq
        %v438 = vshrl.u32 %v437, 7
        %v439 = vsub.s32 0, %v438
        %v440 = vrot.slane %v425, %v439
        %v441 = vmul.f32 %v410, %v432
        %v442 = vmul.f32 %v410, %v436
        %v443 = vmul.f32 %v410, %v440
        %447 = vrot.lane.b32.xlu0 %v441, 127
        %v448 = vpop.permute.xlu0 %447
        %449 = vrot.lane.b32.xlu0 %v442, 127
        %v450 = vpop.permute.xlu0 %449
        %451 = vrot.lane.b32.xlu0 %v443, 127
        %v452 = vpop.permute.xlu0 %451
        %vm453 = vcmask 1039360
        %v454 = vsel %vm453, %v448, %v450
        %v455 = vsel %vm453, %v450, %v452
        %v459 = vadd.f32 %v301, %v454
        %v460 = vadd.f32 %v302, %v455
        %v461 = vadd.f32 %v303, %v452
        %462 = vset.pattern.permute.xlu0 5
        %463 = vperm.xlu0 %462, %v215
        %v464 = vpop.permute.xlu0 %463
        %v466 = vlaneseq
        %v467 = vshrl.u32 %v466, 7
        %v468 = vsub.s32 1, %v467
        %v469 = vrot.slane %v406, %v468
        %v470 = vlaneseq
        %v471 = vshrl.u32 %v470, 7
        %v472 = vsub.s32 5, %v471
        %v473 = vrot.slane %v406, %v472
        %v474 = vlaneseq
        %v475 = vshrl.u32 %v474, 7
        %v476 = vsub.s32 1, %v475
        %v477 = vrot.slane %v407, %v476
        %v481 = vlaneseq
        %v482 = vshrl.u32 %v481, 7
        %v483 = vsub.s32 1, %v482
        %v484 = vrot.slane %v469, %v483
        %v485 = vlaneseq
        %v486 = vshrl.u32 %v485, 7
        %v487 = vsub.s32 1, %v486
        %v488 = vrot.slane %v473, %v487
        %v489 = vlaneseq
        %v490 = vshrl.u32 %v489, 7
        %v491 = vsub.s32 1, %v490
        %v492 = vrot.slane %v477, %v491
        %v493 = vmul.f32 %v464, %v484
        %v494 = vmul.f32 %v464, %v488
        %v495 = vmul.f32 %v464, %v492
        %499 = vrot.lane.b32.xlu0 %v493, 127
        %v500 = vpop.permute.xlu0 %499
        %501 = vrot.lane.b32.xlu0 %v494, 127
        %v502 = vpop.permute.xlu0 %501
        %503 = vrot.lane.b32.xlu0 %v495, 127
        %v504 = vpop.permute.xlu0 %503
        %v505 = vsel %vm453, %v500, %v502
        %v506 = vsel %vm453, %v502, %v504
        %v510 = vadd.f32 %v335, %v505
        %v511 = vadd.f32 %v336, %v506
        %v512 = vadd.f32 %v337, %v504
        %513 = vset.pattern.permute.xlu0 6
        %514 = vperm.xlu0 %513, %v215
        %v515 = vpop.permute.xlu0 %514
        %v517 = vlaneseq
        %v518 = vshrl.u32 %v517, 7
        %v519 = vsub.s32 2, %v518
        %v520 = vrot.slane %v406, %v519
        %v521 = vlaneseq
        %v522 = vshrl.u32 %v521, 7
        %v523 = vsub.s32 6, %v522
        %v524 = vrot.slane %v406, %v523
        %v525 = vlaneseq
        %v526 = vshrl.u32 %v525, 7
        %v527 = vsub.s32 2, %v526
        %v528 = vrot.slane %v407, %v527
        %v532 = vlaneseq
        %v533 = vshrl.u32 %v532, 7
        %v534 = vsub.s32 2, %v533
        %v535 = vrot.slane %v520, %v534
        %v536 = vlaneseq
        %v537 = vshrl.u32 %v536, 7
        %v538 = vsub.s32 2, %v537
        %v539 = vrot.slane %v524, %v538
        %v540 = vlaneseq
        %v541 = vshrl.u32 %v540, 7
        %v542 = vsub.s32 2, %v541
        %v543 = vrot.slane %v528, %v542
        %v544 = vmul.f32 %v515, %v535
        %v545 = vmul.f32 %v515, %v539
        %v546 = vmul.f32 %v515, %v543
        %550 = vrot.lane.b32.xlu0 %v544, 127
        %v551 = vpop.permute.xlu0 %550
        %552 = vrot.lane.b32.xlu0 %v545, 127
        %v553 = vpop.permute.xlu0 %552
        %554 = vrot.lane.b32.xlu0 %v546, 127
        %v555 = vpop.permute.xlu0 %554
        %v556 = vsel %vm453, %v551, %v553
        %v557 = vsel %vm453, %v553, %v555
        %v561 = vadd.f32 %v369, %v556
        %v562 = vadd.f32 %v370, %v557
        %v563 = vadd.f32 %v371, %v555
        %564 = vset.pattern.permute.xlu0 7
        %565 = vperm.xlu0 %564, %v215
        %v566 = vpop.permute.xlu0 %565
        %v568 = vlaneseq
        %v569 = vshrl.u32 %v568, 7
        %v570 = vsub.s32 3, %v569
        %v571 = vrot.slane %v406, %v570
        %v572 = vlaneseq
        %v573 = vshrl.u32 %v572, 7
        %v574 = vsub.s32 7, %v573
        %v575 = vrot.slane %v406, %v574
        %v576 = vlaneseq
        %v577 = vshrl.u32 %v576, 7
        %v578 = vsub.s32 3, %v577
        %v579 = vrot.slane %v407, %v578
        %v583 = vlaneseq
        %v584 = vshrl.u32 %v583, 7
        %v585 = vsub.s32 3, %v584
        %v586 = vrot.slane %v571, %v585
        %v587 = vlaneseq
        %v588 = vshrl.u32 %v587, 7
        %v589 = vsub.s32 3, %v588
        %v590 = vrot.slane %v575, %v589
        %v591 = vlaneseq
        %v592 = vshrl.u32 %v591, 7
        %v593 = vsub.s32 3, %v592
        %v594 = vrot.slane %v579, %v593
        %v595 = vmul.f32 %v566, %v586
        %v596 = vmul.f32 %v566, %v590
        %v597 = vmul.f32 %v566, %v594
        %601 = vrot.lane.b32.xlu0 %v595, 127
        %v602 = vpop.permute.xlu0 %601
        %603 = vrot.lane.b32.xlu0 %v596, 127
        %v604 = vpop.permute.xlu0 %603
        %605 = vrot.lane.b32.xlu0 %v597, 127
        %v606 = vpop.permute.xlu0 %605
        %v607 = vsel %vm453, %v602, %v604
        %v608 = vsel %vm453, %v604, %v606
        %v612 = vadd.f32 %v403, %v607
        %v613 = vadd.f32 %v404, %v608
        %v614 = vadd.f32 %v405, %v606
        %s615 = scalar_lea.vmem %s1, 2
        %v616 = vld [vmem:[%s615] ss:$8 sm:$0x3]
        %v618 = vlaneseq
        %v619 = vshrl.u32 %v618, 7
        %v620 = vsub.s32 0, %v619
        %v621 = vrot.slane %v616, %v620
        %v622 = vlaneseq
        %v623 = vshrl.u32 %v622, 7
        %v624 = vsub.s32 1, %v623
        %v625 = vrot.slane %v616, %v624
        %v626 = vcombine.low %v621, %v625
        %627 = vrot.lane.b32.xlu0 %v626, 113
        %v628 = vpop.permute.xlu0 %627
        %v629 = vrot.slane %v628, 4
        %vm630 = vcmask 924672
        %v631 = vsel %vm630, %v629, %v628
        %v634 = vmul.f32 %v406, %v631
        %v635 = vmul.f32 %v407, %v629
        %636 = vset.pattern.permute.xlu0 8
        %637 = vperm.xlu0 %636, %v215
        %v638 = vpop.permute.xlu0 %637
        %v642 = vlaneseq
        %v643 = vshrl.u32 %v642, 7
        %v644 = vsub.s32 0, %v643
        %v645 = vrot.slane %v634, %v644
        %v646 = vlaneseq
        %v647 = vshrl.u32 %v646, 7
        %v648 = vsub.s32 4, %v647
        %v649 = vrot.slane %v634, %v648
        %v650 = vlaneseq
        %v651 = vshrl.u32 %v650, 7
        %v652 = vsub.s32 0, %v651
        %v653 = vrot.slane %v635, %v652
        %v657 = vlaneseq
        %v658 = vshrl.u32 %v657, 7
        %v659 = vsub.s32 0, %v658
        %v660 = vrot.slane %v645, %v659
        %v661 = vlaneseq
        %v662 = vshrl.u32 %v661, 7
        %v663 = vsub.s32 0, %v662
        %v664 = vrot.slane %v649, %v663
        %v665 = vlaneseq
        %v666 = vshrl.u32 %v665, 7
        %v667 = vsub.s32 0, %v666
        %v668 = vrot.slane %v653, %v667
        %v669 = vmul.f32 %v638, %v660
        %v670 = vmul.f32 %v638, %v664
        %v671 = vmul.f32 %v638, %v668
        %675 = vrot.lane.b32.xlu0 %v669, 126
        %v676 = vpop.permute.xlu0 %675
        %677 = vrot.lane.b32.xlu0 %v670, 126
        %v678 = vpop.permute.xlu0 %677
        %679 = vrot.lane.b32.xlu0 %v671, 126
        %v680 = vpop.permute.xlu0 %679
        %vm681 = vcmask 1031168
        %v682 = vsel %vm681, %v676, %v678
        %v683 = vsel %vm681, %v678, %v680
        %v687 = vadd.f32 %v459, %v682
        %v688 = vadd.f32 %v460, %v683
        %v689 = vadd.f32 %v461, %v680
        %690 = vset.pattern.permute.xlu0 9
        %691 = vperm.xlu0 %690, %v215
        %v692 = vpop.permute.xlu0 %691
        %v694 = vlaneseq
        %v695 = vshrl.u32 %v694, 7
        %v696 = vsub.s32 1, %v695
        %v697 = vrot.slane %v634, %v696
        %v698 = vlaneseq
        %v699 = vshrl.u32 %v698, 7
        %v700 = vsub.s32 5, %v699
        %v701 = vrot.slane %v634, %v700
        %v702 = vlaneseq
        %v703 = vshrl.u32 %v702, 7
        %v704 = vsub.s32 1, %v703
        %v705 = vrot.slane %v635, %v704
        %v709 = vlaneseq
        %v710 = vshrl.u32 %v709, 7
        %v711 = vsub.s32 1, %v710
        %v712 = vrot.slane %v697, %v711
        %v713 = vlaneseq
        %v714 = vshrl.u32 %v713, 7
        %v715 = vsub.s32 1, %v714
        %v716 = vrot.slane %v701, %v715
        %v717 = vlaneseq
        %v718 = vshrl.u32 %v717, 7
        %v719 = vsub.s32 1, %v718
        %v720 = vrot.slane %v705, %v719
        %v721 = vmul.f32 %v692, %v712
        %v722 = vmul.f32 %v692, %v716
        %v723 = vmul.f32 %v692, %v720
        %727 = vrot.lane.b32.xlu0 %v721, 126
        %v728 = vpop.permute.xlu0 %727
        %729 = vrot.lane.b32.xlu0 %v722, 126
        %v730 = vpop.permute.xlu0 %729
        %731 = vrot.lane.b32.xlu0 %v723, 126
        %v732 = vpop.permute.xlu0 %731
        %v733 = vsel %vm681, %v728, %v730
        %v734 = vsel %vm681, %v730, %v732
        %v738 = vadd.f32 %v510, %v733
        %v739 = vadd.f32 %v511, %v734
        %v740 = vadd.f32 %v512, %v732
        %741 = vset.pattern.permute.xlu0 10
        %742 = vperm.xlu0 %741, %v215
        %v743 = vpop.permute.xlu0 %742
        %v745 = vlaneseq
        %v746 = vshrl.u32 %v745, 7
        %v747 = vsub.s32 2, %v746
        %v748 = vrot.slane %v634, %v747
        %v749 = vlaneseq
        %v750 = vshrl.u32 %v749, 7
        %v751 = vsub.s32 6, %v750
        %v752 = vrot.slane %v634, %v751
        %v753 = vlaneseq
        %v754 = vshrl.u32 %v753, 7
        %v755 = vsub.s32 2, %v754
        %v756 = vrot.slane %v635, %v755
        %v760 = vlaneseq
        %v761 = vshrl.u32 %v760, 7
        %v762 = vsub.s32 2, %v761
        %v763 = vrot.slane %v748, %v762
        %v764 = vlaneseq
        %v765 = vshrl.u32 %v764, 7
        %v766 = vsub.s32 2, %v765
        %v767 = vrot.slane %v752, %v766
        %v768 = vlaneseq
        %v769 = vshrl.u32 %v768, 7
        %v770 = vsub.s32 2, %v769
        %v771 = vrot.slane %v756, %v770
        %v772 = vmul.f32 %v743, %v763
        %v773 = vmul.f32 %v743, %v767
        %v774 = vmul.f32 %v743, %v771
        %778 = vrot.lane.b32.xlu0 %v772, 126
        %v779 = vpop.permute.xlu0 %778
        %780 = vrot.lane.b32.xlu0 %v773, 126
        %v781 = vpop.permute.xlu0 %780
        %782 = vrot.lane.b32.xlu0 %v774, 126
        %v783 = vpop.permute.xlu0 %782
        %v784 = vsel %vm681, %v779, %v781
        %v785 = vsel %vm681, %v781, %v783
        %v789 = vadd.f32 %v561, %v784
        %v790 = vadd.f32 %v562, %v785
        %v791 = vadd.f32 %v563, %v783
        %792 = vset.pattern.permute.xlu0 11
        %793 = vperm.xlu0 %792, %v215
        %v794 = vpop.permute.xlu0 %793
        %v796 = vlaneseq
        %v797 = vshrl.u32 %v796, 7
        %v798 = vsub.s32 3, %v797
        %v799 = vrot.slane %v634, %v798
        %v800 = vlaneseq
        %v801 = vshrl.u32 %v800, 7
        %v802 = vsub.s32 7, %v801
        %v803 = vrot.slane %v634, %v802
        %v804 = vlaneseq
        %v805 = vshrl.u32 %v804, 7
        %v806 = vsub.s32 3, %v805
        %v807 = vrot.slane %v635, %v806
        %v811 = vlaneseq
        %v812 = vshrl.u32 %v811, 7
        %v813 = vsub.s32 3, %v812
        %v814 = vrot.slane %v799, %v813
        %v815 = vlaneseq
        %v816 = vshrl.u32 %v815, 7
        %v817 = vsub.s32 3, %v816
        %v818 = vrot.slane %v803, %v817
        %v819 = vlaneseq
        %v820 = vshrl.u32 %v819, 7
        %v821 = vsub.s32 3, %v820
        %v822 = vrot.slane %v807, %v821
        %v823 = vmul.f32 %v794, %v814
        %v824 = vmul.f32 %v794, %v818
        %v825 = vmul.f32 %v794, %v822
        %829 = vrot.lane.b32.xlu0 %v823, 126
        %v830 = vpop.permute.xlu0 %829
        %831 = vrot.lane.b32.xlu0 %v824, 126
        %v832 = vpop.permute.xlu0 %831
        %833 = vrot.lane.b32.xlu0 %v825, 126
        %v834 = vpop.permute.xlu0 %833
        %v835 = vsel %vm681, %v830, %v832
        %v836 = vsel %vm681, %v832, %v834
        %v840 = vadd.f32 %v612, %v835
        %v841 = vadd.f32 %v613, %v836
        %v842 = vadd.f32 %v614, %v834
        %v843 = vld [vmem:[#allocation2] sm:$0xff]
        %v844 = vld [vmem:[#allocation2 + $0x8] sm:$0xf]
        %s845 = scalar_lea.vmem %s1, 3
        %v846 = vld [vmem:[%s845] ss:$8 sm:$0x3]
        %v848 = vlaneseq
        %v849 = vshrl.u32 %v848, 7
        %v850 = vsub.s32 0, %v849
        %v851 = vrot.slane %v846, %v850
        %v852 = vlaneseq
        %v853 = vshrl.u32 %v852, 7
        %v854 = vsub.s32 1, %v853
        %v855 = vrot.slane %v846, %v854
        %v856 = vcombine.low %v851, %v855
        %857 = vrot.lane.b32.xlu0 %v856, 127
        %v858 = vpop.permute.xlu0 %857
        %v859 = vrot.slane %v858, 4
        %v860 = vsel %vm453, %v859, %v858
        %v863 = vmul.f32 %v843, %v860
        %v864 = vmul.f32 %v844, %v859
        %865 = vset.pattern.permute.xlu0 12
        %866 = vperm.xlu0 %865, %v215
        %v867 = vpop.permute.xlu0 %866
        %v871 = vlaneseq
        %v872 = vshrl.u32 %v871, 7
        %v873 = vsub.s32 0, %v872
        %v874 = vrot.slane %v863, %v873
        %v875 = vlaneseq
        %v876 = vshrl.u32 %v875, 7
        %v877 = vsub.s32 4, %v876
        %v878 = vrot.slane %v863, %v877
        %v879 = vlaneseq
        %v880 = vshrl.u32 %v879, 7
        %v881 = vsub.s32 0, %v880
        %v882 = vrot.slane %v864, %v881
        %v886 = vlaneseq
        %v887 = vshrl.u32 %v886, 7
        %v888 = vsub.s32 0, %v887
        %v889 = vrot.slane %v874, %v888
        %v890 = vlaneseq
        %v891 = vshrl.u32 %v890, 7
        %v892 = vsub.s32 0, %v891
        %v893 = vrot.slane %v878, %v892
        %v894 = vlaneseq
        %v895 = vshrl.u32 %v894, 7
        %v896 = vsub.s32 0, %v895
        %v897 = vrot.slane %v882, %v896
        %v898 = vmul.f32 %v867, %v889
        %v899 = vmul.f32 %v867, %v893
        %v900 = vmul.f32 %v867, %v897
        %904 = vrot.lane.b32.xlu0 %v898, 112
        %v905 = vpop.permute.xlu0 %904
        %906 = vrot.lane.b32.xlu0 %v899, 112
        %v907 = vpop.permute.xlu0 %906
        %908 = vrot.lane.b32.xlu0 %v900, 112
        %v909 = vpop.permute.xlu0 %908
        %vm910 = vcmask 916480
        %v911 = vsel %vm910, %v905, %v907
        %v912 = vsel %vm910, %v907, %v909
        %v916 = vadd.f32 %v687, %v911
        %v917 = vadd.f32 %v688, %v912
        %v918 = vadd.f32 %v689, %v909
        %919 = vset.pattern.permute.xlu0 13
        %920 = vperm.xlu0 %919, %v215
        %v921 = vpop.permute.xlu0 %920
        %v923 = vlaneseq
        %v924 = vshrl.u32 %v923, 7
        %v925 = vsub.s32 1, %v924
        %v926 = vrot.slane %v863, %v925
        %v927 = vlaneseq
        %v928 = vshrl.u32 %v927, 7
        %v929 = vsub.s32 5, %v928
        %v930 = vrot.slane %v863, %v929
        %v931 = vlaneseq
        %v932 = vshrl.u32 %v931, 7
        %v933 = vsub.s32 1, %v932
        %v934 = vrot.slane %v864, %v933
        %v938 = vlaneseq
        %v939 = vshrl.u32 %v938, 7
        %v940 = vsub.s32 1, %v939
        %v941 = vrot.slane %v926, %v940
        %v942 = vlaneseq
        %v943 = vshrl.u32 %v942, 7
        %v944 = vsub.s32 1, %v943
        %v945 = vrot.slane %v930, %v944
        %v946 = vlaneseq
        %v947 = vshrl.u32 %v946, 7
        %v948 = vsub.s32 1, %v947
        %v949 = vrot.slane %v934, %v948
        %v950 = vmul.f32 %v921, %v941
        %v951 = vmul.f32 %v921, %v945
        %v952 = vmul.f32 %v921, %v949
        %956 = vrot.lane.b32.xlu0 %v950, 112
        %v957 = vpop.permute.xlu0 %956
        %958 = vrot.lane.b32.xlu0 %v951, 112
        %v959 = vpop.permute.xlu0 %958
        %960 = vrot.lane.b32.xlu0 %v952, 112
        %v961 = vpop.permute.xlu0 %960
        %v962 = vsel %vm910, %v957, %v959
        %v963 = vsel %vm910, %v959, %v961
        %v967 = vadd.f32 %v738, %v962
        %v968 = vadd.f32 %v739, %v963
        %v969 = vadd.f32 %v740, %v961
        %970 = vset.pattern.permute.xlu0 14
        %971 = vperm.xlu0 %970, %v215
        %v972 = vpop.permute.xlu0 %971
        %v974 = vlaneseq
        %v975 = vshrl.u32 %v974, 7
        %v976 = vsub.s32 2, %v975
        %v977 = vrot.slane %v863, %v976
        %v978 = vlaneseq
        %v979 = vshrl.u32 %v978, 7
        %v980 = vsub.s32 6, %v979
        %v981 = vrot.slane %v863, %v980
        %v982 = vlaneseq
        %v983 = vshrl.u32 %v982, 7
        %v984 = vsub.s32 2, %v983
        %v985 = vrot.slane %v864, %v984
        %v989 = vlaneseq
        %v990 = vshrl.u32 %v989, 7
        %v991 = vsub.s32 2, %v990
        %v992 = vrot.slane %v977, %v991
        %v993 = vlaneseq
        %v994 = vshrl.u32 %v993, 7
        %v995 = vsub.s32 2, %v994
        %v996 = vrot.slane %v981, %v995
        %v997 = vlaneseq
        %v998 = vshrl.u32 %v997, 7
        %v999 = vsub.s32 2, %v998
        %v1000 = vrot.slane %v985, %v999
        %v1001 = vmul.f32 %v972, %v992
        %v1002 = vmul.f32 %v972, %v996
        %v1003 = vmul.f32 %v972, %v1000
        %1007 = vrot.lane.b32.xlu0 %v1001, 112
        %v1008 = vpop.permute.xlu0 %1007
        %1009 = vrot.lane.b32.xlu0 %v1002, 112
        %v1010 = vpop.permute.xlu0 %1009
        %1011 = vrot.lane.b32.xlu0 %v1003, 112
        %v1012 = vpop.permute.xlu0 %1011
        %v1013 = vsel %vm910, %v1008, %v1010
        %v1014 = vsel %vm910, %v1010, %v1012
        %v1018 = vadd.f32 %v789, %v1013
        %v1019 = vadd.f32 %v790, %v1014
        %v1020 = vadd.f32 %v791, %v1012
        %1021 = vset.pattern.permute.xlu0 15
        %1022 = vperm.xlu0 %1021, %v215
        %v1023 = vpop.permute.xlu0 %1022
        %v1025 = vlaneseq
        %v1026 = vshrl.u32 %v1025, 7
        %v1027 = vsub.s32 3, %v1026
        %v1028 = vrot.slane %v863, %v1027
        %v1029 = vlaneseq
        %v1030 = vshrl.u32 %v1029, 7
        %v1031 = vsub.s32 7, %v1030
        %v1032 = vrot.slane %v863, %v1031
        %v1033 = vlaneseq
        %v1034 = vshrl.u32 %v1033, 7
        %v1035 = vsub.s32 3, %v1034
        %v1036 = vrot.slane %v864, %v1035
        %v1040 = vlaneseq
        %v1041 = vshrl.u32 %v1040, 7
        %v1042 = vsub.s32 3, %v1041
        %v1043 = vrot.slane %v1028, %v1042
        %v1044 = vlaneseq
        %v1045 = vshrl.u32 %v1044, 7
        %v1046 = vsub.s32 3, %v1045
        %v1047 = vrot.slane %v1032, %v1046
        %v1048 = vlaneseq
        %v1049 = vshrl.u32 %v1048, 7
        %v1050 = vsub.s32 3, %v1049
        %v1051 = vrot.slane %v1036, %v1050
        %v1052 = vmul.f32 %v1023, %v1043
        %v1053 = vmul.f32 %v1023, %v1047
        %v1054 = vmul.f32 %v1023, %v1051
        %1058 = vrot.lane.b32.xlu0 %v1052, 112
        %v1059 = vpop.permute.xlu0 %1058
        %1060 = vrot.lane.b32.xlu0 %v1053, 112
        %v1061 = vpop.permute.xlu0 %1060
        %1062 = vrot.lane.b32.xlu0 %v1054, 112
        %v1063 = vpop.permute.xlu0 %1062
        %v1064 = vsel %vm910, %v1059, %v1061
        %v1065 = vsel %vm910, %v1061, %v1063
        %v1069 = vadd.f32 %v840, %v1064
        %v1070 = vadd.f32 %v841, %v1065
        %v1071 = vadd.f32 %v842, %v1063
        %v1072 = vld [vmem:[#allocation2 + $0x4] sm:$0xff]
        %1073 = vset.pattern.permute.xlu0 16
        %1074 = vperm.xlu0 %1073, %v215
        %v1075 = vpop.permute.xlu0 %1074
        %v1078 = vlaneseq
        %v1079 = vshrl.u32 %v1078, 7
        %v1080 = vsub.s32 0, %v1079
        %v1081 = vrot.slane %v1072, %v1080
        %v1082 = vlaneseq
        %v1083 = vshrl.u32 %v1082, 7
        %v1084 = vsub.s32 4, %v1083
        %v1085 = vrot.slane %v1072, %v1084
        %v1088 = vlaneseq
        %v1089 = vshrl.u32 %v1088, 7
        %v1090 = vsub.s32 0, %v1089
        %v1091 = vrot.slane %v1081, %v1090
        %v1092 = vlaneseq
        %v1093 = vshrl.u32 %v1092, 7
        %v1094 = vsub.s32 0, %v1093
        %v1095 = vrot.slane %v1085, %v1094
        %v1096 = vmul.f32 %v1075, %v1091
        %v1097 = vmul.f32 %v1075, %v1095
        %1100 = vrot.lane.b32.xlu0 %v1096, 111
        %v1101 = vpop.permute.xlu0 %1100
        %1102 = vrot.lane.b32.xlu0 %v1097, 111
        %v1103 = vpop.permute.xlu0 %1102
        %v1104 = vsel %vm262, %v1101, %v1103
        %v1108 = vadd.f32 %v916, %v1101
        %v1109 = vadd.f32 %v917, %v1104
        %v1110 = vadd.f32 %v918, %v1103
        %1111 = vset.pattern.permute.xlu0 17
        %1112 = vperm.xlu0 %1111, %v215
        %v1113 = vpop.permute.xlu0 %1112
        %v1115 = vlaneseq
        %v1116 = vshrl.u32 %v1115, 7
        %v1117 = vsub.s32 1, %v1116
        %v1118 = vrot.slane %v1072, %v1117
        %v1119 = vlaneseq
        %v1120 = vshrl.u32 %v1119, 7
        %v1121 = vsub.s32 5, %v1120
        %v1122 = vrot.slane %v1072, %v1121
        %v1125 = vlaneseq
        %v1126 = vshrl.u32 %v1125, 7
        %v1127 = vsub.s32 1, %v1126
        %v1128 = vrot.slane %v1118, %v1127
        %v1129 = vlaneseq
        %v1130 = vshrl.u32 %v1129, 7
        %v1131 = vsub.s32 1, %v1130
        %v1132 = vrot.slane %v1122, %v1131
        %v1133 = vmul.f32 %v1113, %v1128
        %v1134 = vmul.f32 %v1113, %v1132
        %1137 = vrot.lane.b32.xlu0 %v1133, 111
        %v1138 = vpop.permute.xlu0 %1137
        %1139 = vrot.lane.b32.xlu0 %v1134, 111
        %v1140 = vpop.permute.xlu0 %1139
        %v1141 = vsel %vm262, %v1138, %v1140
        %v1145 = vadd.f32 %v967, %v1138
        %v1146 = vadd.f32 %v968, %v1141
        %v1147 = vadd.f32 %v969, %v1140
        %1148 = vset.pattern.permute.xlu0 18
        %1149 = vperm.xlu0 %1148, %v215
        %v1150 = vpop.permute.xlu0 %1149
        %v1152 = vlaneseq
        %v1153 = vshrl.u32 %v1152, 7
        %v1154 = vsub.s32 2, %v1153
        %v1155 = vrot.slane %v1072, %v1154
        %v1156 = vlaneseq
        %v1157 = vshrl.u32 %v1156, 7
        %v1158 = vsub.s32 6, %v1157
        %v1159 = vrot.slane %v1072, %v1158
        %v1162 = vlaneseq
        %v1163 = vshrl.u32 %v1162, 7
        %v1164 = vsub.s32 2, %v1163
        %v1165 = vrot.slane %v1155, %v1164
        %v1166 = vlaneseq
        %v1167 = vshrl.u32 %v1166, 7
        %v1168 = vsub.s32 2, %v1167
        %v1169 = vrot.slane %v1159, %v1168
        %v1170 = vmul.f32 %v1150, %v1165
        %v1171 = vmul.f32 %v1150, %v1169
        %1174 = vrot.lane.b32.xlu0 %v1170, 111
        %v1175 = vpop.permute.xlu0 %1174
        %1176 = vrot.lane.b32.xlu0 %v1171, 111
        %v1177 = vpop.permute.xlu0 %1176
        %v1178 = vsel %vm262, %v1175, %v1177
        %v1182 = vadd.f32 %v1018, %v1175
        %v1183 = vadd.f32 %v1019, %v1178
        %v1184 = vadd.f32 %v1020, %v1177
        %1185 = vset.pattern.permute.xlu0 19
        %1186 = vperm.xlu0 %1185, %v215
        %v1187 = vpop.permute.xlu0 %1186
        %v1189 = vlaneseq
        %v1190 = vshrl.u32 %v1189, 7
        %v1191 = vsub.s32 3, %v1190
        %v1192 = vrot.slane %v1072, %v1191
        %v1193 = vlaneseq
        %v1194 = vshrl.u32 %v1193, 7
        %v1195 = vsub.s32 7, %v1194
        %v1196 = vrot.slane %v1072, %v1195
        %v1199 = vlaneseq
        %v1200 = vshrl.u32 %v1199, 7
        %v1201 = vsub.s32 3, %v1200
        %v1202 = vrot.slane %v1192, %v1201
        %v1203 = vlaneseq
        %v1204 = vshrl.u32 %v1203, 7
        %v1205 = vsub.s32 3, %v1204
        %v1206 = vrot.slane %v1196, %v1205
        %v1207 = vmul.f32 %v1187, %v1202
        %v1208 = vmul.f32 %v1187, %v1206
        %1211 = vrot.lane.b32.xlu0 %v1207, 111
        %v1212 = vpop.permute.xlu0 %1211
        %1213 = vrot.lane.b32.xlu0 %v1208, 111
        %v1214 = vpop.permute.xlu0 %1213
        %v1215 = vsel %vm262, %v1212, %v1214
        %v1219 = vadd.f32 %v1069, %v1212
        %v1220 = vadd.f32 %v1070, %v1215
        %v1221 = vadd.f32 %v1071, %v1214
        %v1222 = vld [vmem:[#allocation2 + $0x4] sm:$0xff]
        %v1223 = vld [vmem:[#allocation2 + $0xc] sm:$0xf]
        %s1224 = scalar_lea.vmem %s1, 5
        %v1225 = vld [vmem:[%s1224] ss:$8 sm:$0x3]
        %v1227 = vlaneseq
        %v1228 = vshrl.u32 %v1227, 7
        %v1229 = vsub.s32 0, %v1228
        %v1230 = vrot.slane %v1225, %v1229
        %v1231 = vlaneseq
        %v1232 = vshrl.u32 %v1231, 7
        %v1233 = vsub.s32 1, %v1232
        %v1234 = vrot.slane %v1225, %v1233
        %v1235 = vcombine.low %v1230, %v1234
        %1236 = vrot.lane.b32.xlu0 %v1235, 1
        %v1237 = vpop.permute.xlu0 %1236
        %v1238 = vrot.slane %v1237, 4
        %vm1239 = vcmask 7168
        %v1240 = vsel %vm1239, %v1238, %v1237
        %v1243 = vmul.f32 %v1222, %v1240
        %v1244 = vmul.f32 %v1223, %v1238
        %1245 = vset.pattern.permute.xlu0 20
        %1246 = vperm.xlu0 %1245, %v215
        %v1247 = vpop.permute.xlu0 %1246
        %v1251 = vlaneseq
        %v1252 = vshrl.u32 %v1251, 7
        %v1253 = vsub.s32 0, %v1252
        %v1254 = vrot.slane %v1243, %v1253
        %v1255 = vlaneseq
        %v1256 = vshrl.u32 %v1255, 7
        %v1257 = vsub.s32 4, %v1256
        %v1258 = vrot.slane %v1243, %v1257
        %v1259 = vlaneseq
        %v1260 = vshrl.u32 %v1259, 7
        %v1261 = vsub.s32 0, %v1260
        %v1262 = vrot.slane %v1244, %v1261
        %v1266 = vlaneseq
        %v1267 = vshrl.u32 %v1266, 7
        %v1268 = vsub.s32 0, %v1267
        %v1269 = vrot.slane %v1254, %v1268
        %v1270 = vlaneseq
        %v1271 = vshrl.u32 %v1270, 7
        %v1272 = vsub.s32 0, %v1271
        %v1273 = vrot.slane %v1258, %v1272
        %v1274 = vlaneseq
        %v1275 = vshrl.u32 %v1274, 7
        %v1276 = vsub.s32 0, %v1275
        %v1277 = vrot.slane %v1262, %v1276
        %v1278 = vmul.f32 %v1247, %v1269
        %v1279 = vmul.f32 %v1247, %v1273
        %v1280 = vmul.f32 %v1247, %v1277
        %1284 = vrot.lane.b32.xlu0 %v1278, 110
        %v1285 = vpop.permute.xlu0 %1284
        %1286 = vrot.lane.b32.xlu0 %v1279, 110
        %v1287 = vpop.permute.xlu0 %1286
        %1288 = vrot.lane.b32.xlu0 %v1280, 110
        %v1289 = vpop.permute.xlu0 %1288
        %vm1290 = vcmask 900096
        %v1291 = vsel %vm1290, %v1285, %v1287
        %v1292 = vsel %vm1290, %v1287, %v1289
        %v1296 = vadd.f32 %v1108, %v1285
        %v1297 = vadd.f32 %v1109, %v1291
        %v1298 = vadd.f32 %v1110, %v1292
        %1299 = vset.pattern.permute.xlu0 21
        %1300 = vperm.xlu0 %1299, %v215
        %v1301 = vpop.permute.xlu0 %1300
        %v1303 = vlaneseq
        %v1304 = vshrl.u32 %v1303, 7
        %v1305 = vsub.s32 1, %v1304
        %v1306 = vrot.slane %v1243, %v1305
        %v1307 = vlaneseq
        %v1308 = vshrl.u32 %v1307, 7
        %v1309 = vsub.s32 5, %v1308
        %v1310 = vrot.slane %v1243, %v1309
        %v1311 = vlaneseq
        %v1312 = vshrl.u32 %v1311, 7
        %v1313 = vsub.s32 1, %v1312
        %v1314 = vrot.slane %v1244, %v1313
        %v1318 = vlaneseq
        %v1319 = vshrl.u32 %v1318, 7
        %v1320 = vsub.s32 1, %v1319
        %v1321 = vrot.slane %v1306, %v1320
        %v1322 = vlaneseq
        %v1323 = vshrl.u32 %v1322, 7
        %v1324 = vsub.s32 1, %v1323
        %v1325 = vrot.slane %v1310, %v1324
        %v1326 = vlaneseq
        %v1327 = vshrl.u32 %v1326, 7
        %v1328 = vsub.s32 1, %v1327
        %v1329 = vrot.slane %v1314, %v1328
        %v1330 = vmul.f32 %v1301, %v1321
        %v1331 = vmul.f32 %v1301, %v1325
        %v1332 = vmul.f32 %v1301, %v1329
        %1336 = vrot.lane.b32.xlu0 %v1330, 110
        %v1337 = vpop.permute.xlu0 %1336
        %1338 = vrot.lane.b32.xlu0 %v1331, 110
        %v1339 = vpop.permute.xlu0 %1338
        %1340 = vrot.lane.b32.xlu0 %v1332, 110
        %v1341 = vpop.permute.xlu0 %1340
        %v1342 = vsel %vm1290, %v1337, %v1339
        %v1343 = vsel %vm1290, %v1339, %v1341
        %v1347 = vadd.f32 %v1145, %v1337
        %v1348 = vadd.f32 %v1146, %v1342
        %v1349 = vadd.f32 %v1147, %v1343
        %1350 = vset.pattern.permute.xlu0 22
        %1351 = vperm.xlu0 %1350, %v215
        %v1352 = vpop.permute.xlu0 %1351
        %v1354 = vlaneseq
        %v1355 = vshrl.u32 %v1354, 7
        %v1356 = vsub.s32 2, %v1355
        %v1357 = vrot.slane %v1243, %v1356
        %v1358 = vlaneseq
        %v1359 = vshrl.u32 %v1358, 7
        %v1360 = vsub.s32 6, %v1359
        %v1361 = vrot.slane %v1243, %v1360
        %v1362 = vlaneseq
        %v1363 = vshrl.u32 %v1362, 7
        %v1364 = vsub.s32 2, %v1363
        %v1365 = vrot.slane %v1244, %v1364
        %v1369 = vlaneseq
        %v1370 = vshrl.u32 %v1369, 7
        %v1371 = vsub.s32 2, %v1370
        %v1372 = vrot.slane %v1357, %v1371
        %v1373 = vlaneseq
        %v1374 = vshrl.u32 %v1373, 7
        %v1375 = vsub.s32 2, %v1374
        %v1376 = vrot.slane %v1361, %v1375
        %v1377 = vlaneseq
        %v1378 = vshrl.u32 %v1377, 7
        %v1379 = vsub.s32 2, %v1378
        %v1380 = vrot.slane %v1365, %v1379
        %v1381 = vmul.f32 %v1352, %v1372
        %v1382 = vmul.f32 %v1352, %v1376
        %v1383 = vmul.f32 %v1352, %v1380
        %1387 = vrot.lane.b32.xlu0 %v1381, 110
        %v1388 = vpop.permute.xlu0 %1387
        %1389 = vrot.lane.b32.xlu0 %v1382, 110
        %v1390 = vpop.permute.xlu0 %1389
        %1391 = vrot.lane.b32.xlu0 %v1383, 110
        %v1392 = vpop.permute.xlu0 %1391
        %v1393 = vsel %vm1290, %v1388, %v1390
        %v1394 = vsel %vm1290, %v1390, %v1392
        %v1398 = vadd.f32 %v1182, %v1388
        %v1399 = vadd.f32 %v1183, %v1393
        %v1400 = vadd.f32 %v1184, %v1394
        %1401 = vset.pattern.permute.xlu0 23
        %1402 = vperm.xlu0 %1401, %v215
        %v1403 = vpop.permute.xlu0 %1402
        %v1405 = vlaneseq
        %v1406 = vshrl.u32 %v1405, 7
        %v1407 = vsub.s32 3, %v1406
        %v1408 = vrot.slane %v1243, %v1407
        %v1409 = vlaneseq
        %v1410 = vshrl.u32 %v1409, 7
        %v1411 = vsub.s32 7, %v1410
        %v1412 = vrot.slane %v1243, %v1411
        %v1413 = vlaneseq
        %v1414 = vshrl.u32 %v1413, 7
        %v1415 = vsub.s32 3, %v1414
        %v1416 = vrot.slane %v1244, %v1415
        %v1420 = vlaneseq
        %v1421 = vshrl.u32 %v1420, 7
        %v1422 = vsub.s32 3, %v1421
        %v1423 = vrot.slane %v1408, %v1422
        %v1424 = vlaneseq
        %v1425 = vshrl.u32 %v1424, 7
        %v1426 = vsub.s32 3, %v1425
        %v1427 = vrot.slane %v1412, %v1426
        %v1428 = vlaneseq
        %v1429 = vshrl.u32 %v1428, 7
        %v1430 = vsub.s32 3, %v1429
        %v1431 = vrot.slane %v1416, %v1430
        %v1432 = vmul.f32 %v1403, %v1423
        %v1433 = vmul.f32 %v1403, %v1427
        %v1434 = vmul.f32 %v1403, %v1431
        %1438 = vrot.lane.b32.xlu0 %v1432, 110
        %v1439 = vpop.permute.xlu0 %1438
        %1440 = vrot.lane.b32.xlu0 %v1433, 110
        %v1441 = vpop.permute.xlu0 %1440
        %1442 = vrot.lane.b32.xlu0 %v1434, 110
        %v1443 = vpop.permute.xlu0 %1442
        %v1444 = vsel %vm1290, %v1439, %v1441
        %v1445 = vsel %vm1290, %v1441, %v1443
        %v1449 = vadd.f32 %v1219, %v1439
        %v1450 = vadd.f32 %v1220, %v1444
        %v1451 = vadd.f32 %v1221, %v1445
        %v1452 = vld [vmem:[#allocation2 + $0x4] sm:$0xff]
        %v1453 = vld [vmem:[#allocation2 + $0xc] sm:$0xf]
        %s1454 = scalar_lea.vmem %s1, 6
        %v1455 = vld [vmem:[%s1454] ss:$8 sm:$0x3]
        %v1457 = vlaneseq
        %v1458 = vshrl.u32 %v1457, 7
        %v1459 = vsub.s32 0, %v1458
        %v1460 = vrot.slane %v1455, %v1459
        %v1461 = vlaneseq
        %v1462 = vshrl.u32 %v1461, 7
        %v1463 = vsub.s32 1, %v1462
        %v1464 = vrot.slane %v1455, %v1463
        %v1465 = vcombine.low %v1460, %v1464
        %1466 = vrot.lane.b32.xlu0 %v1465, 15
        %v1467 = vpop.permute.xlu0 %1466
        %v1468 = vrot.slane %v1467, 4
        %vm1469 = vcmask 121856
        %v1470 = vsel %vm1469, %v1468, %v1467
        %v1473 = vmul.f32 %v1452, %v1470
        %v1474 = vmul.f32 %v1453, %v1468
        %1475 = vset.pattern.permute.xlu0 24
        %1476 = vperm.xlu0 %1475, %v215
        %v1477 = vpop.permute.xlu0 %1476
        %v1481 = vlaneseq
        %v1482 = vshrl.u32 %v1481, 7
        %v1483 = vsub.s32 0, %v1482
        %v1484 = vrot.slane %v1473, %v1483
        %v1485 = vlaneseq
        %v1486 = vshrl.u32 %v1485, 7
        %v1487 = vsub.s32 4, %v1486
        %v1488 = vrot.slane %v1473, %v1487
        %v1489 = vlaneseq
        %v1490 = vshrl.u32 %v1489, 7
        %v1491 = vsub.s32 0, %v1490
        %v1492 = vrot.slane %v1474, %v1491
        %v1496 = vlaneseq
        %v1497 = vshrl.u32 %v1496, 7
        %v1498 = vsub.s32 0, %v1497
        %v1499 = vrot.slane %v1484, %v1498
        %v1500 = vlaneseq
        %v1501 = vshrl.u32 %v1500, 7
        %v1502 = vsub.s32 0, %v1501
        %v1503 = vrot.slane %v1488, %v1502
        %v1504 = vlaneseq
        %v1505 = vshrl.u32 %v1504, 7
        %v1506 = vsub.s32 0, %v1505
        %v1507 = vrot.slane %v1492, %v1506
        %v1508 = vmul.f32 %v1477, %v1499
        %v1509 = vmul.f32 %v1477, %v1503
        %v1510 = vmul.f32 %v1477, %v1507
        %1514 = vrot.lane.b32.xlu0 %v1508, 96
        %v1515 = vpop.permute.xlu0 %1514
        %1516 = vrot.lane.b32.xlu0 %v1509, 96
        %v1517 = vpop.permute.xlu0 %1516
        %1518 = vrot.lane.b32.xlu0 %v1510, 96
        %v1519 = vpop.permute.xlu0 %1518
        %vm1520 = vcmask 785408
        %v1521 = vsel %vm1520, %v1515, %v1517
        %v1522 = vsel %vm1520, %v1517, %v1519
        %v1526 = vadd.f32 %v1296, %v1515
        %v1527 = vadd.f32 %v1297, %v1521
        %v1528 = vadd.f32 %v1298, %v1522
        %1529 = vset.pattern.permute.xlu0 25
        %1530 = vperm.xlu0 %1529, %v215
        %v1531 = vpop.permute.xlu0 %1530
        %v1533 = vlaneseq
        %v1534 = vshrl.u32 %v1533, 7
        %v1535 = vsub.s32 1, %v1534
        %v1536 = vrot.slane %v1473, %v1535
        %v1537 = vlaneseq
        %v1538 = vshrl.u32 %v1537, 7
        %v1539 = vsub.s32 5, %v1538
        %v1540 = vrot.slane %v1473, %v1539
        %v1541 = vlaneseq
        %v1542 = vshrl.u32 %v1541, 7
        %v1543 = vsub.s32 1, %v1542
        %v1544 = vrot.slane %v1474, %v1543
        %v1548 = vlaneseq
        %v1549 = vshrl.u32 %v1548, 7
        %v1550 = vsub.s32 1, %v1549
        %v1551 = vrot.slane %v1536, %v1550
        %v1552 = vlaneseq
        %v1553 = vshrl.u32 %v1552, 7
        %v1554 = vsub.s32 1, %v1553
        %v1555 = vrot.slane %v1540, %v1554
        %v1556 = vlaneseq
        %v1557 = vshrl.u32 %v1556, 7
        %v1558 = vsub.s32 1, %v1557
        %v1559 = vrot.slane %v1544, %v1558
        %v1560 = vmul.f32 %v1531, %v1551
        %v1561 = vmul.f32 %v1531, %v1555
        %v1562 = vmul.f32 %v1531, %v1559
        %1566 = vrot.lane.b32.xlu0 %v1560, 96
        %v1567 = vpop.permute.xlu0 %1566
        %1568 = vrot.lane.b32.xlu0 %v1561, 96
        %v1569 = vpop.permute.xlu0 %1568
        %1570 = vrot.lane.b32.xlu0 %v1562, 96
        %v1571 = vpop.permute.xlu0 %1570
        %v1572 = vsel %vm1520, %v1567, %v1569
        %v1573 = vsel %vm1520, %v1569, %v1571
        %v1577 = vadd.f32 %v1347, %v1567
        %v1578 = vadd.f32 %v1348, %v1572
        %v1579 = vadd.f32 %v1349, %v1573
        %1580 = vset.pattern.permute.xlu0 26
        %1581 = vperm.xlu0 %1580, %v215
        %v1582 = vpop.permute.xlu0 %1581
        %v1584 = vlaneseq
        %v1585 = vshrl.u32 %v1584, 7
        %v1586 = vsub.s32 2, %v1585
        %v1587 = vrot.slane %v1473, %v1586
        %v1588 = vlaneseq
        %v1589 = vshrl.u32 %v1588, 7
        %v1590 = vsub.s32 6, %v1589
        %v1591 = vrot.slane %v1473, %v1590
        %v1592 = vlaneseq
        %v1593 = vshrl.u32 %v1592, 7
        %v1594 = vsub.s32 2, %v1593
        %v1595 = vrot.slane %v1474, %v1594
        %v1599 = vlaneseq
        %v1600 = vshrl.u32 %v1599, 7
        %v1601 = vsub.s32 2, %v1600
        %v1602 = vrot.slane %v1587, %v1601
        %v1603 = vlaneseq
        %v1604 = vshrl.u32 %v1603, 7
        %v1605 = vsub.s32 2, %v1604
        %v1606 = vrot.slane %v1591, %v1605
        %v1607 = vlaneseq
        %v1608 = vshrl.u32 %v1607, 7
        %v1609 = vsub.s32 2, %v1608
        %v1610 = vrot.slane %v1595, %v1609
        %v1611 = vmul.f32 %v1582, %v1602
        %v1612 = vmul.f32 %v1582, %v1606
        %v1613 = vmul.f32 %v1582, %v1610
        %1617 = vrot.lane.b32.xlu0 %v1611, 96
        %v1618 = vpop.permute.xlu0 %1617
        %1619 = vrot.lane.b32.xlu0 %v1612, 96
        %v1620 = vpop.permute.xlu0 %1619
        %1621 = vrot.lane.b32.xlu0 %v1613, 96
        %v1622 = vpop.permute.xlu0 %1621
        %v1623 = vsel %vm1520, %v1618, %v1620
        %v1624 = vsel %vm1520, %v1620, %v1622
        %v1628 = vadd.f32 %v1398, %v1618
        %v1629 = vadd.f32 %v1399, %v1623
        %v1630 = vadd.f32 %v1400, %v1624
        %1631 = vset.pattern.permute.xlu0 27
        %1632 = vperm.xlu0 %1631, %v215
        %v1633 = vpop.permute.xlu0 %1632
        %v1635 = vlaneseq
        %v1636 = vshrl.u32 %v1635, 7
        %v1637 = vsub.s32 3, %v1636
        %v1638 = vrot.slane %v1473, %v1637
        %v1639 = vlaneseq
        %v1640 = vshrl.u32 %v1639, 7
        %v1641 = vsub.s32 7, %v1640
        %v1642 = vrot.slane %v1473, %v1641
        %v1643 = vlaneseq
        %v1644 = vshrl.u32 %v1643, 7
        %v1645 = vsub.s32 3, %v1644
        %v1646 = vrot.slane %v1474, %v1645
        %v1650 = vlaneseq
        %v1651 = vshrl.u32 %v1650, 7
        %v1652 = vsub.s32 3, %v1651
        %v1653 = vrot.slane %v1638, %v1652
        %v1654 = vlaneseq
        %v1655 = vshrl.u32 %v1654, 7
        %v1656 = vsub.s32 3, %v1655
        %v1657 = vrot.slane %v1642, %v1656
        %v1658 = vlaneseq
        %v1659 = vshrl.u32 %v1658, 7
        %v1660 = vsub.s32 3, %v1659
        %v1661 = vrot.slane %v1646, %v1660
        %v1662 = vmul.f32 %v1633, %v1653
        %v1663 = vmul.f32 %v1633, %v1657
        %v1664 = vmul.f32 %v1633, %v1661
        %1668 = vrot.lane.b32.xlu0 %v1662, 96
        %v1669 = vpop.permute.xlu0 %1668
        %1670 = vrot.lane.b32.xlu0 %v1663, 96
        %v1671 = vpop.permute.xlu0 %1670
        %1672 = vrot.lane.b32.xlu0 %v1664, 96
        %v1673 = vpop.permute.xlu0 %1672
        %v1674 = vsel %vm1520, %v1669, %v1671
        %v1675 = vsel %vm1520, %v1671, %v1673
        %v1679 = vadd.f32 %v1449, %v1669
        %v1680 = vadd.f32 %v1450, %v1674
        %v1681 = vadd.f32 %v1451, %v1675
        %v1682 = vld [vmem:[#allocation2 + $0x4] sm:$0xff]
        %v1683 = vld [vmem:[#allocation2 + $0xc] sm:$0xf]
        %1684 = vset.pattern.permute.xlu0 28
        %1685 = vperm.xlu0 %1684, %v215
        %v1686 = vpop.permute.xlu0 %1685
        %v1690 = vlaneseq
        %v1691 = vshrl.u32 %v1690, 7
        %v1692 = vsub.s32 0, %v1691
        %v1693 = vrot.slane %v1682, %v1692
        %v1694 = vlaneseq
        %v1695 = vshrl.u32 %v1694, 7
        %v1696 = vsub.s32 4, %v1695
        %v1697 = vrot.slane %v1682, %v1696
        %v1698 = vlaneseq
        %v1699 = vshrl.u32 %v1698, 7
        %v1700 = vsub.s32 0, %v1699
        %v1701 = vrot.slane %v1683, %v1700
        %v1705 = vlaneseq
        %v1706 = vshrl.u32 %v1705, 7
        %v1707 = vsub.s32 0, %v1706
        %v1708 = vrot.slane %v1693, %v1707
        %v1709 = vlaneseq
        %v1710 = vshrl.u32 %v1709, 7
        %v1711 = vsub.s32 0, %v1710
        %v1712 = vrot.slane %v1697, %v1711
        %v1713 = vlaneseq
        %v1714 = vshrl.u32 %v1713, 7
        %v1715 = vsub.s32 0, %v1714
        %v1716 = vrot.slane %v1701, %v1715
        %v1717 = vmul.f32 %v1686, %v1708
        %v1718 = vmul.f32 %v1686, %v1712
        %v1719 = vmul.f32 %v1686, %v1716
        %1723 = vrot.lane.b32.xlu0 %v1717, 95
        %v1724 = vpop.permute.xlu0 %1723
        %1725 = vrot.lane.b32.xlu0 %v1718, 95
        %v1726 = vpop.permute.xlu0 %1725
        %1727 = vrot.lane.b32.xlu0 %v1719, 95
        %v1728 = vpop.permute.xlu0 %1727
        %vm1729 = vcmask 777216
        %v1730 = vsel %vm1729, %v1724, %v1726
        %v1731 = vsel %vm1729, %v1726, %v1728
        %v1735 = vadd.f32 %v1526, %v1724
        %v1736 = vadd.f32 %v1527, %v1730
        %v1737 = vadd.f32 %v1528, %v1731
        %1738 = vset.pattern.permute.xlu0 29
        %1739 = vperm.xlu0 %1738, %v215
        %v1740 = vpop.permute.xlu0 %1739
        %v1742 = vlaneseq
        %v1743 = vshrl.u32 %v1742, 7
        %v1744 = vsub.s32 1, %v1743
        %v1745 = vrot.slane %v1682, %v1744
        %v1746 = vlaneseq
        %v1747 = vshrl.u32 %v1746, 7
        %v1748 = vsub.s32 5, %v1747
        %v1749 = vrot.slane %v1682, %v1748
        %v1750 = vlaneseq
        %v1751 = vshrl.u32 %v1750, 7
        %v1752 = vsub.s32 1, %v1751
        %v1753 = vrot.slane %v1683, %v1752
        %v1757 = vlaneseq
        %v1758 = vshrl.u32 %v1757, 7
        %v1759 = vsub.s32 1, %v1758
        %v1760 = vrot.slane %v1745, %v1759
        %v1761 = vlaneseq
        %v1762 = vshrl.u32 %v1761, 7
        %v1763 = vsub.s32 1, %v1762
        %v1764 = vrot.slane %v1749, %v1763
        %v1765 = vlaneseq
        %v1766 = vshrl.u32 %v1765, 7
        %v1767 = vsub.s32 1, %v1766
        %v1768 = vrot.slane %v1753, %v1767
        %v1769 = vmul.f32 %v1740, %v1760
        %v1770 = vmul.f32 %v1740, %v1764
        %v1771 = vmul.f32 %v1740, %v1768
        %1775 = vrot.lane.b32.xlu0 %v1769, 95
        %v1776 = vpop.permute.xlu0 %1775
        %1777 = vrot.lane.b32.xlu0 %v1770, 95
        %v1778 = vpop.permute.xlu0 %1777
        %1779 = vrot.lane.b32.xlu0 %v1771, 95
        %v1780 = vpop.permute.xlu0 %1779
        %v1781 = vsel %vm1729, %v1776, %v1778
        %v1782 = vsel %vm1729, %v1778, %v1780
        %v1786 = vadd.f32 %v1577, %v1776
        %v1787 = vadd.f32 %v1578, %v1781
        %v1788 = vadd.f32 %v1579, %v1782
        %1789 = vset.pattern.permute.xlu0 30
        %1790 = vperm.xlu0 %1789, %v215
        %v1791 = vpop.permute.xlu0 %1790
        %v1793 = vlaneseq
        %v1794 = vshrl.u32 %v1793, 7
        %v1795 = vsub.s32 2, %v1794
        %v1796 = vrot.slane %v1682, %v1795
        %v1797 = vlaneseq
        %v1798 = vshrl.u32 %v1797, 7
        %v1799 = vsub.s32 6, %v1798
        %v1800 = vrot.slane %v1682, %v1799
        %v1801 = vlaneseq
        %v1802 = vshrl.u32 %v1801, 7
        %v1803 = vsub.s32 2, %v1802
        %v1804 = vrot.slane %v1683, %v1803
        %v1808 = vlaneseq
        %v1809 = vshrl.u32 %v1808, 7
        %v1810 = vsub.s32 2, %v1809
        %v1811 = vrot.slane %v1796, %v1810
        %v1812 = vlaneseq
        %v1813 = vshrl.u32 %v1812, 7
        %v1814 = vsub.s32 2, %v1813
        %v1815 = vrot.slane %v1800, %v1814
        %v1816 = vlaneseq
        %v1817 = vshrl.u32 %v1816, 7
        %v1818 = vsub.s32 2, %v1817
        %v1819 = vrot.slane %v1804, %v1818
        %v1820 = vmul.f32 %v1791, %v1811
        %v1821 = vmul.f32 %v1791, %v1815
        %v1822 = vmul.f32 %v1791, %v1819
        %1826 = vrot.lane.b32.xlu0 %v1820, 95
        %v1827 = vpop.permute.xlu0 %1826
        %1828 = vrot.lane.b32.xlu0 %v1821, 95
        %v1829 = vpop.permute.xlu0 %1828
        %1830 = vrot.lane.b32.xlu0 %v1822, 95
        %v1831 = vpop.permute.xlu0 %1830
        %v1832 = vsel %vm1729, %v1827, %v1829
        %v1833 = vsel %vm1729, %v1829, %v1831
        %v1837 = vadd.f32 %v1628, %v1827
        %v1838 = vadd.f32 %v1629, %v1832
        %v1839 = vadd.f32 %v1630, %v1833
        %1840 = vset.pattern.permute.xlu0 31
        %1841 = vperm.xlu0 %1840, %v215
        %v1842 = vpop.permute.xlu0 %1841
        %v1844 = vlaneseq
        %v1845 = vshrl.u32 %v1844, 7
        %v1846 = vsub.s32 3, %v1845
        %v1847 = vrot.slane %v1682, %v1846
        %v1848 = vlaneseq
        %v1849 = vshrl.u32 %v1848, 7
        %v1850 = vsub.s32 7, %v1849
        %v1851 = vrot.slane %v1682, %v1850
        %v1852 = vlaneseq
        %v1853 = vshrl.u32 %v1852, 7
        %v1854 = vsub.s32 3, %v1853
        %v1855 = vrot.slane %v1683, %v1854
        %v1859 = vlaneseq
        %v1860 = vshrl.u32 %v1859, 7
        %v1861 = vsub.s32 3, %v1860
        %v1862 = vrot.slane %v1847, %v1861
        %v1863 = vlaneseq
        %v1864 = vshrl.u32 %v1863, 7
        %v1865 = vsub.s32 3, %v1864
        %v1866 = vrot.slane %v1851, %v1865
        %v1867 = vlaneseq
        %v1868 = vshrl.u32 %v1867, 7
        %v1869 = vsub.s32 3, %v1868
        %v1870 = vrot.slane %v1855, %v1869
        %v1871 = vmul.f32 %v1842, %v1862
        %v1872 = vmul.f32 %v1842, %v1866
        %v1873 = vmul.f32 %v1842, %v1870
        %1877 = vrot.lane.b32.xlu0 %v1871, 95
        %v1878 = vpop.permute.xlu0 %1877
        %1879 = vrot.lane.b32.xlu0 %v1872, 95
        %v1880 = vpop.permute.xlu0 %1879
        %1881 = vrot.lane.b32.xlu0 %v1873, 95
        %v1882 = vpop.permute.xlu0 %1881
        %v1883 = vsel %vm1729, %v1878, %v1880
        %v1884 = vsel %vm1729, %v1880, %v1882
        %v1888 = vadd.f32 %v1679, %v1878
        %v1889 = vadd.f32 %v1680, %v1883
        %v1890 = vadd.f32 %v1681, %v1884
        %s1891 = scalar_lea.vmem %s1, 16
        %v1892 = vld [vmem:[%s1891] ss:$8 sm:$0x3]
        %v1894 = vlaneseq
        %v1895 = vshrl.u32 %v1894, 7
        %v1896 = vsub.s32 0, %v1895
        %v1897 = vrot.slane %v1892, %v1896
        %v1898 = vlaneseq
        %v1899 = vshrl.u32 %v1898, 7
        %v1900 = vsub.s32 1, %v1899
        %v1901 = vrot.slane %v1892, %v1900
        %v1902 = vcombine.low %v1897, %v1901
        %1903 = vrot.lane.b32.xlu0 %v1902, 17
        %v1904 = vpop.permute.xlu0 %1903
        %v1905 = vrot.slane %v1904, 4
        %vm1906 = vcmask 138240
        %v1907 = vsel %vm1906, %v1905, %v1904
        %v1910 = vmul.f32 %v1682, %v1907
        %v1911 = vmul.f32 %v1683, %v1905
        %1912 = vset.pattern.permute.xlu0 32
        %1913 = vperm.xlu0 %1912, %v215
        %v1914 = vpop.permute.xlu0 %1913
        %v1918 = vlaneseq
        %v1919 = vshrl.u32 %v1918, 7
        %v1920 = vsub.s32 0, %v1919
        %v1921 = vrot.slane %v1910, %v1920
        %v1922 = vlaneseq
        %v1923 = vshrl.u32 %v1922, 7
        %v1924 = vsub.s32 4, %v1923
        %v1925 = vrot.slane %v1910, %v1924
        %v1926 = vlaneseq
        %v1927 = vshrl.u32 %v1926, 7
        %v1928 = vsub.s32 0, %v1927
        %v1929 = vrot.slane %v1911, %v1928
        %v1933 = vlaneseq
        %v1934 = vshrl.u32 %v1933, 7
        %v1935 = vsub.s32 0, %v1934
        %v1936 = vrot.slane %v1921, %v1935
        %v1937 = vlaneseq
        %v1938 = vshrl.u32 %v1937, 7
        %v1939 = vsub.s32 0, %v1938
        %v1940 = vrot.slane %v1925, %v1939
        %v1941 = vlaneseq
        %v1942 = vshrl.u32 %v1941, 7
        %v1943 = vsub.s32 0, %v1942
        %v1944 = vrot.slane %v1929, %v1943
        %v1945 = vmul.f32 %v1914, %v1936
        %v1946 = vmul.f32 %v1914, %v1940
        %v1947 = vmul.f32 %v1914, %v1944
        %1951 = vrot.lane.b32.xlu0 %v1945, 94
        %v1952 = vpop.permute.xlu0 %1951
        %1953 = vrot.lane.b32.xlu0 %v1946, 94
        %v1954 = vpop.permute.xlu0 %1953
        %1955 = vrot.lane.b32.xlu0 %v1947, 94
        %v1956 = vpop.permute.xlu0 %1955
        %vm1957 = vcmask 769024
        %v1958 = vsel %vm1957, %v1952, %v1954
        %v1959 = vsel %vm1957, %v1954, %v1956
        %v1963 = vadd.f32 %v1735, %v1952
        %v1964 = vadd.f32 %v1736, %v1958
        %v1965 = vadd.f32 %v1737, %v1959
        %1966 = vset.pattern.permute.xlu0 33
        %1967 = vperm.xlu0 %1966, %v215
        %v1968 = vpop.permute.xlu0 %1967
        %v1970 = vlaneseq
        %v1971 = vshrl.u32 %v1970, 7
        %v1972 = vsub.s32 1, %v1971
        %v1973 = vrot.slane %v1910, %v1972
        %v1974 = vlaneseq
        %v1975 = vshrl.u32 %v1974, 7
        %v1976 = vsub.s32 5, %v1975
        %v1977 = vrot.slane %v1910, %v1976
        %v1978 = vlaneseq
        %v1979 = vshrl.u32 %v1978, 7
        %v1980 = vsub.s32 1, %v1979
        %v1981 = vrot.slane %v1911, %v1980
        %v1985 = vlaneseq
        %v1986 = vshrl.u32 %v1985, 7
        %v1987 = vsub.s32 1, %v1986
        %v1988 = vrot.slane %v1973, %v1987
        %v1989 = vlaneseq
        %v1990 = vshrl.u32 %v1989, 7
        %v1991 = vsub.s32 1, %v1990
        %v1992 = vrot.slane %v1977, %v1991
        %v1993 = vlaneseq
        %v1994 = vshrl.u32 %v1993, 7
        %v1995 = vsub.s32 1, %v1994
        %v1996 = vrot.slane %v1981, %v1995
        %v1997 = vmul.f32 %v1968, %v1988
        %v1998 = vmul.f32 %v1968, %v1992
        %v1999 = vmul.f32 %v1968, %v1996
        %2003 = vrot.lane.b32.xlu0 %v1997, 94
        %v2004 = vpop.permute.xlu0 %2003
        %2005 = vrot.lane.b32.xlu0 %v1998, 94
        %v2006 = vpop.permute.xlu0 %2005
        %2007 = vrot.lane.b32.xlu0 %v1999, 94
        %v2008 = vpop.permute.xlu0 %2007
        %v2009 = vsel %vm1957, %v2004, %v2006
        %v2010 = vsel %vm1957, %v2006, %v2008
        %v2014 = vadd.f32 %v1786, %v2004
        %v2015 = vadd.f32 %v1787, %v2009
        %v2016 = vadd.f32 %v1788, %v2010
        %2017 = vset.pattern.permute.xlu0 34
        %2018 = vperm.xlu0 %2017, %v215
        %v2019 = vpop.permute.xlu0 %2018
        %v2021 = vlaneseq
        %v2022 = vshrl.u32 %v2021, 7
        %v2023 = vsub.s32 2, %v2022
        %v2024 = vrot.slane %v1910, %v2023
        %v2025 = vlaneseq
        %v2026 = vshrl.u32 %v2025, 7
        %v2027 = vsub.s32 6, %v2026
        %v2028 = vrot.slane %v1910, %v2027
        %v2029 = vlaneseq
        %v2030 = vshrl.u32 %v2029, 7
        %v2031 = vsub.s32 2, %v2030
        %v2032 = vrot.slane %v1911, %v2031
        %v2036 = vlaneseq
        %v2037 = vshrl.u32 %v2036, 7
        %v2038 = vsub.s32 2, %v2037
        %v2039 = vrot.slane %v2024, %v2038
        %v2040 = vlaneseq
        %v2041 = vshrl.u32 %v2040, 7
        %v2042 = vsub.s32 2, %v2041
        %v2043 = vrot.slane %v2028, %v2042
        %v2044 = vlaneseq
        %v2045 = vshrl.u32 %v2044, 7
        %v2046 = vsub.s32 2, %v2045
        %v2047 = vrot.slane %v2032, %v2046
        %v2048 = vmul.f32 %v2019, %v2039
        %v2049 = vmul.f32 %v2019, %v2043
        %v2050 = vmul.f32 %v2019, %v2047
        %2054 = vrot.lane.b32.xlu0 %v2048, 94
        %v2055 = vpop.permute.xlu0 %2054
        %2056 = vrot.lane.b32.xlu0 %v2049, 94
        %v2057 = vpop.permute.xlu0 %2056
        %2058 = vrot.lane.b32.xlu0 %v2050, 94
        %v2059 = vpop.permute.xlu0 %2058
        %v2060 = vsel %vm1957, %v2055, %v2057
        %v2061 = vsel %vm1957, %v2057, %v2059
        %v2065 = vadd.f32 %v1837, %v2055
        %v2066 = vadd.f32 %v1838, %v2060
        %v2067 = vadd.f32 %v1839, %v2061
        %2068 = vset.pattern.permute.xlu0 35
        %2069 = vperm.xlu0 %2068, %v215
        %v2070 = vpop.permute.xlu0 %2069
        %v2072 = vlaneseq
        %v2073 = vshrl.u32 %v2072, 7
        %v2074 = vsub.s32 3, %v2073
        %v2075 = vrot.slane %v1910, %v2074
        %v2076 = vlaneseq
        %v2077 = vshrl.u32 %v2076, 7
        %v2078 = vsub.s32 7, %v2077
        %v2079 = vrot.slane %v1910, %v2078
        %v2080 = vlaneseq
        %v2081 = vshrl.u32 %v2080, 7
        %v2082 = vsub.s32 3, %v2081
        %v2083 = vrot.slane %v1911, %v2082
        %v2087 = vlaneseq
        %v2088 = vshrl.u32 %v2087, 7
        %v2089 = vsub.s32 3, %v2088
        %v2090 = vrot.slane %v2075, %v2089
        %v2091 = vlaneseq
        %v2092 = vshrl.u32 %v2091, 7
        %v2093 = vsub.s32 3, %v2092
        %v2094 = vrot.slane %v2079, %v2093
        %v2095 = vlaneseq
        %v2096 = vshrl.u32 %v2095, 7
        %v2097 = vsub.s32 3, %v2096
        %v2098 = vrot.slane %v2083, %v2097
        %v2099 = vmul.f32 %v2070, %v2090
        %v2100 = vmul.f32 %v2070, %v2094
        %v2101 = vmul.f32 %v2070, %v2098
        %2105 = vrot.lane.b32.xlu0 %v2099, 94
        %v2106 = vpop.permute.xlu0 %2105
        %2107 = vrot.lane.b32.xlu0 %v2100, 94
        %v2108 = vpop.permute.xlu0 %2107
        %2109 = vrot.lane.b32.xlu0 %v2101, 94
        %v2110 = vpop.permute.xlu0 %2109
        %v2111 = vsel %vm1957, %v2106, %v2108
        %v2112 = vsel %vm1957, %v2108, %v2110
        %v2116 = vadd.f32 %v1888, %v2106
        %v2117 = vadd.f32 %v1889, %v2111
        %v2118 = vadd.f32 %v1890, %v2112
        %v2119 = vadd.f32 %v1963, %v2014
        %v2120 = vadd.f32 %v1964, %v2015
        %v2121 = vadd.f32 %v1965, %v2016
        %v2122 = vadd.f32 %v2065, %v2116
        %v2123 = vadd.f32 %v2066, %v2117
        %v2124 = vadd.f32 %v2067, %v2118
        %v2125 = vadd.f32 %v2119, %v2122
        %v2126 = vadd.f32 %v2120, %v2123
        %v2127 = vadd.f32 %v2121, %v2124
        %2128 = vset.pattern.permute.xlu0 108
        %2129 = vperm.xlu0 %2128, %v215
        %v2130 = vpop.permute.xlu0 %2129
        %v2132 = vadd.f32 %v2125, %v2130
        %v2133 = vadd.f32 %v2126, %v2130
        %v2134 = vadd.f32 %v2127, %v2130
        %v2136 = vcombine.high %v216, %v216
        %2137 = vrot.lane.b32.xlu0 %v216, 111
        %v2138 = vpop.permute.xlu0 %2137
        %2139 = vrot.lane.b32.xlu0 %v2136, 111
        %v2140 = vpop.permute.xlu0 %2139
        %v2141 = vsel %vm262, %v2138, %v2140
        %v2145 = vadd.f32 %v2132, %v2138
        %v2146 = vadd.f32 %v2133, %v2141
        %v2147 = vadd.f32 %v2134, %v2140
        %2148 = vset.pattern.permute.xlu0 113
        %2149 = vperm.xlu0 %2148, %v215
        %v2150 = vpop.permute.xlu0 %2149
        %v2152 = vmul.f32 %v2145, %v2150
        %v2153 = vmul.f32 %v2146, %v2150
        %v2154 = vmul.f32 %v2147, %v2150
        %2155 = vset.pattern.permute.xlu0 114
        %2156 = vperm.xlu0 %2155, %v215
        %v2157 = vpop.permute.xlu0 %2156
        %v2159 = vadd.f32 %v2152, %v2157
        %v2160 = vadd.f32 %v2153, %v2157
        %v2161 = vadd.f32 %v2154, %v2157
        %vm2162 = vcmp.ge.f32.partialorder %v2159, 0.0
        %vm2163 = vcmp.ge.f32.partialorder %v2160, 0.0
        %vm2164 = vcmp.ge.f32.partialorder %v2161, 0.0
        %v2165 = vmul.f32 %v2159, 0.01
        %v2166 = vmul.f32 %v2160, 0.01
        %v2167 = vmul.f32 %v2161, 0.01
        %v2168 = vsel %vm2162, %v2159, %v2165
        %v2169 = vsel %vm2163, %v2160, %v2166
        %v2170 = vsel %vm2164, %v2161, %v2167
        %v2174 = vcombine.low %v2168, %v2169
        %2175 = vrot.lane.b32.xlu0 %v2174, 17
        %v2176 = vpop.permute.xlu0 %2175
        %2177 = vrot.lane.b32.xlu0 %v2170, 17
        %v2178 = vpop.permute.xlu0 %2177
        %v2179 = vrot.slane %v2176, 4
        %v2180 = vrot.slane %v2178, 4
        %vm2181 = vcmask 1043456
        %v2182 = vsel %vm2181, %v2179, %v2180
        %v2183 = vsel %vm1906, %v2176, %v2182
        %2185 = vst [vmem:[#allocation2 + $0x4] sm:$0xff] %v2183
        %v2186 = vld [vmem:[#allocation2] sm:$0xff]
        %v2187 = vld [vmem:[#allocation2 + $0x8] sm:$0xf]
        %v2188 = vld [vmem:[%s1] ss:$8 sm:$0x3]
        %v2190 = vlaneseq
        %v2191 = vshrl.u32 %v2190, 7
        %v2192 = vsub.s32 0, %v2191
        %v2193 = vrot.slane %v2188, %v2192
        %v2194 = vlaneseq
        %v2195 = vshrl.u32 %v2194, 7
        %v2196 = vsub.s32 1, %v2195
        %v2197 = vrot.slane %v2188, %v2196
        %v2198 = vcombine.low %v2193, %v2197
        %2199 = vrot.lane.b32.xlu0 %v2198, 111
        %v2200 = vpop.permute.xlu0 %2199
        %v2201 = vrot.slane %v2200, 4
        %v2202 = vsel %vm262, %v2201, %v2200
        %v2205 = vmul.f32 %v2186, %v2202
        %v2206 = vmul.f32 %v2187, %v2201
        %2207 = vset.pattern.permute.xlu0 36
        %2208 = vperm.xlu0 %2207, %v215
        %v2209 = vpop.permute.xlu0 %2208
        %v2213 = vlaneseq
        %v2214 = vshrl.u32 %v2213, 7
        %v2215 = vsub.s32 0, %v2214
        %v2216 = vrot.slane %v2205, %v2215
        %v2217 = vlaneseq
        %v2218 = vshrl.u32 %v2217, 7
        %v2219 = vsub.s32 4, %v2218
        %v2220 = vrot.slane %v2205, %v2219
        %v2221 = vlaneseq
        %v2222 = vshrl.u32 %v2221, 7
        %v2223 = vsub.s32 0, %v2222
        %v2224 = vrot.slane %v2206, %v2223
        %v2228 = vlaneseq
        %v2229 = vshrl.u32 %v2228, 7
        %v2230 = vsub.s32 0, %v2229
        %v2231 = vrot.slane %v2216, %v2230
        %v2232 = vlaneseq
        %v2233 = vshrl.u32 %v2232, 7
        %v2234 = vsub.s32 0, %v2233
        %v2235 = vrot.slane %v2220, %v2234
        %v2236 = vlaneseq
        %v2237 = vshrl.u32 %v2236, 7
        %v2238 = vsub.s32 0, %v2237
        %v2239 = vrot.slane %v2224, %v2238
        %v2240 = vmul.f32 %v2209, %v2231
        %v2241 = vmul.f32 %v2209, %v2235
        %v2242 = vmul.f32 %v2209, %v2239
        %2243 = vset.pattern.permute.xlu0 37
        %2244 = vperm.xlu0 %2243, %v215
        %v2245 = vpop.permute.xlu0 %2244
        %v2247 = vlaneseq
        %v2248 = vshrl.u32 %v2247, 7
        %v2249 = vsub.s32 1, %v2248
        %v2250 = vrot.slane %v2205, %v2249
        %v2251 = vlaneseq
        %v2252 = vshrl.u32 %v2251, 7
        %v2253 = vsub.s32 5, %v2252
        %v2254 = vrot.slane %v2205, %v2253
        %v2255 = vlaneseq
        %v2256 = vshrl.u32 %v2255, 7
        %v2257 = vsub.s32 1, %v2256
        %v2258 = vrot.slane %v2206, %v2257
        %v2262 = vlaneseq
        %v2263 = vshrl.u32 %v2262, 7
        %v2264 = vsub.s32 1, %v2263
        %v2265 = vrot.slane %v2250, %v2264
        %v2266 = vlaneseq
        %v2267 = vshrl.u32 %v2266, 7
        %v2268 = vsub.s32 1, %v2267
        %v2269 = vrot.slane %v2254, %v2268
        %v2270 = vlaneseq
        %v2271 = vshrl.u32 %v2270, 7
        %v2272 = vsub.s32 1, %v2271
        %v2273 = vrot.slane %v2258, %v2272
        %v2274 = vmul.f32 %v2245, %v2265
        %v2275 = vmul.f32 %v2245, %v2269
        %v2276 = vmul.f32 %v2245, %v2273
        %2277 = vset.pattern.permute.xlu0 38
        %2278 = vperm.xlu0 %2277, %v215
        %v2279 = vpop.permute.xlu0 %2278
        %v2281 = vlaneseq
        %v2282 = vshrl.u32 %v2281, 7
        %v2283 = vsub.s32 2, %v2282
        %v2284 = vrot.slane %v2205, %v2283
        %v2285 = vlaneseq
        %v2286 = vshrl.u32 %v2285, 7
        %v2287 = vsub.s32 6, %v2286
        %v2288 = vrot.slane %v2205, %v2287
        %v2289 = vlaneseq
        %v2290 = vshrl.u32 %v2289, 7
        %v2291 = vsub.s32 2, %v2290
        %v2292 = vrot.slane %v2206, %v2291
        %v2296 = vlaneseq
        %v2297 = vshrl.u32 %v2296, 7
        %v2298 = vsub.s32 2, %v2297
        %v2299 = vrot.slane %v2284, %v2298
        %v2300 = vlaneseq
        %v2301 = vshrl.u32 %v2300, 7
        %v2302 = vsub.s32 2, %v2301
        %v2303 = vrot.slane %v2288, %v2302
        %v2304 = vlaneseq
        %v2305 = vshrl.u32 %v2304, 7
        %v2306 = vsub.s32 2, %v2305
        %v2307 = vrot.slane %v2292, %v2306
        %v2308 = vmul.f32 %v2279, %v2299
        %v2309 = vmul.f32 %v2279, %v2303
        %v2310 = vmul.f32 %v2279, %v2307
        %2311 = vset.pattern.permute.xlu0 39
        %2312 = vperm.xlu0 %2311, %v215
        %v2313 = vpop.permute.xlu0 %2312
        %v2315 = vlaneseq
        %v2316 = vshrl.u32 %v2315, 7
        %v2317 = vsub.s32 3, %v2316
        %v2318 = vrot.slane %v2205, %v2317
        %v2319 = vlaneseq
        %v2320 = vshrl.u32 %v2319, 7
        %v2321 = vsub.s32 7, %v2320
        %v2322 = vrot.slane %v2205, %v2321
        %v2323 = vlaneseq
        %v2324 = vshrl.u32 %v2323, 7
        %v2325 = vsub.s32 3, %v2324
        %v2326 = vrot.slane %v2206, %v2325
        %v2330 = vlaneseq
        %v2331 = vshrl.u32 %v2330, 7
        %v2332 = vsub.s32 3, %v2331
        %v2333 = vrot.slane %v2318, %v2332
        %v2334 = vlaneseq
        %v2335 = vshrl.u32 %v2334, 7
        %v2336 = vsub.s32 3, %v2335
        %v2337 = vrot.slane %v2322, %v2336
        %v2338 = vlaneseq
        %v2339 = vshrl.u32 %v2338, 7
        %v2340 = vsub.s32 3, %v2339
        %v2341 = vrot.slane %v2326, %v2340
        %v2342 = vmul.f32 %v2313, %v2333
        %v2343 = vmul.f32 %v2313, %v2337
        %v2344 = vmul.f32 %v2313, %v2341
        %v2345 = vld [vmem:[#allocation2] sm:$0xff]
        %v2346 = vld [vmem:[#allocation2 + $0x8] sm:$0xf]
        %2347 = vset.pattern.permute.xlu0 40
        %2348 = vperm.xlu0 %2347, %v215
        %v2349 = vpop.permute.xlu0 %2348
        %v2353 = vlaneseq
        %v2354 = vshrl.u32 %v2353, 7
        %v2355 = vsub.s32 0, %v2354
        %v2356 = vrot.slane %v2345, %v2355
        %v2357 = vlaneseq
        %v2358 = vshrl.u32 %v2357, 7
        %v2359 = vsub.s32 4, %v2358
        %v2360 = vrot.slane %v2345, %v2359
        %v2361 = vlaneseq
        %v2362 = vshrl.u32 %v2361, 7
        %v2363 = vsub.s32 0, %v2362
        %v2364 = vrot.slane %v2346, %v2363
        %v2368 = vlaneseq
        %v2369 = vshrl.u32 %v2368, 7
        %v2370 = vsub.s32 0, %v2369
        %v2371 = vrot.slane %v2356, %v2370
        %v2372 = vlaneseq
        %v2373 = vshrl.u32 %v2372, 7
        %v2374 = vsub.s32 0, %v2373
        %v2375 = vrot.slane %v2360, %v2374
        %v2376 = vlaneseq
        %v2377 = vshrl.u32 %v2376, 7
        %v2378 = vsub.s32 0, %v2377
        %v2379 = vrot.slane %v2364, %v2378
        %v2380 = vmul.f32 %v2349, %v2371
        %v2381 = vmul.f32 %v2349, %v2375
        %v2382 = vmul.f32 %v2349, %v2379
        %2386 = vrot.lane.b32.xlu0 %v2380, 127
        %v2387 = vpop.permute.xlu0 %2386
        %2388 = vrot.lane.b32.xlu0 %v2381, 127
        %v2389 = vpop.permute.xlu0 %2388
        %2390 = vrot.lane.b32.xlu0 %v2382, 127
        %v2391 = vpop.permute.xlu0 %2390
        %v2392 = vsel %vm453, %v2387, %v2389
        %v2393 = vsel %vm453, %v2389, %v2391
        %v2397 = vadd.f32 %v2240, %v2392
        %v2398 = vadd.f32 %v2241, %v2393
        %v2399 = vadd.f32 %v2242, %v2391
        %2400 = vset.pattern.permute.xlu0 41
        %2401 = vperm.xlu0 %2400, %v215
        %v2402 = vpop.permute.xlu0 %2401
        %v2404 = vlaneseq
        %v2405 = vshrl.u32 %v2404, 7
        %v2406 = vsub.s32 1, %v2405
        %v2407 = vrot.slane %v2345, %v2406
        %v2408 = vlaneseq
        %v2409 = vshrl.u32 %v2408, 7
        %v2410 = vsub.s32 5, %v2409
        %v2411 = vrot.slane %v2345, %v2410
        %v2412 = vlaneseq
        %v2413 = vshrl.u32 %v2412, 7
        %v2414 = vsub.s32 1, %v2413
        %v2415 = vrot.slane %v2346, %v2414
        %v2419 = vlaneseq
        %v2420 = vshrl.u32 %v2419, 7
        %v2421 = vsub.s32 1, %v2420
        %v2422 = vrot.slane %v2407, %v2421
        %v2423 = vlaneseq
        %v2424 = vshrl.u32 %v2423, 7
        %v2425 = vsub.s32 1, %v2424
        %v2426 = vrot.slane %v2411, %v2425
        %v2427 = vlaneseq
        %v2428 = vshrl.u32 %v2427, 7
        %v2429 = vsub.s32 1, %v2428
        %v2430 = vrot.slane %v2415, %v2429
        %v2431 = vmul.f32 %v2402, %v2422
        %v2432 = vmul.f32 %v2402, %v2426
        %v2433 = vmul.f32 %v2402, %v2430
        %2437 = vrot.lane.b32.xlu0 %v2431, 127
        %v2438 = vpop.permute.xlu0 %2437
        %2439 = vrot.lane.b32.xlu0 %v2432, 127
        %v2440 = vpop.permute.xlu0 %2439
        %2441 = vrot.lane.b32.xlu0 %v2433, 127
        %v2442 = vpop.permute.xlu0 %2441
        %v2443 = vsel %vm453, %v2438, %v2440
        %v2444 = vsel %vm453, %v2440, %v2442
        %v2448 = vadd.f32 %v2274, %v2443
        %v2449 = vadd.f32 %v2275, %v2444
        %v2450 = vadd.f32 %v2276, %v2442
        %2451 = vset.pattern.permute.xlu0 42
        %2452 = vperm.xlu0 %2451, %v215
        %v2453 = vpop.permute.xlu0 %2452
        %v2455 = vlaneseq
        %v2456 = vshrl.u32 %v2455, 7
        %v2457 = vsub.s32 2, %v2456
        %v2458 = vrot.slane %v2345, %v2457
        %v2459 = vlaneseq
        %v2460 = vshrl.u32 %v2459, 7
        %v2461 = vsub.s32 6, %v2460
        %v2462 = vrot.slane %v2345, %v2461
        %v2463 = vlaneseq
        %v2464 = vshrl.u32 %v2463, 7
        %v2465 = vsub.s32 2, %v2464
        %v2466 = vrot.slane %v2346, %v2465
        %v2470 = vlaneseq
        %v2471 = vshrl.u32 %v2470, 7
        %v2472 = vsub.s32 2, %v2471
        %v2473 = vrot.slane %v2458, %v2472
        %v2474 = vlaneseq
        %v2475 = vshrl.u32 %v2474, 7
        %v2476 = vsub.s32 2, %v2475
        %v2477 = vrot.slane %v2462, %v2476
        %v2478 = vlaneseq
        %v2479 = vshrl.u32 %v2478, 7
        %v2480 = vsub.s32 2, %v2479
        %v2481 = vrot.slane %v2466, %v2480
        %v2482 = vmul.f32 %v2453, %v2473
        %v2483 = vmul.f32 %v2453, %v2477
        %v2484 = vmul.f32 %v2453, %v2481
        %2488 = vrot.lane.b32.xlu0 %v2482, 127
        %v2489 = vpop.permute.xlu0 %2488
        %2490 = vrot.lane.b32.xlu0 %v2483, 127
        %v2491 = vpop.permute.xlu0 %2490
        %2492 = vrot.lane.b32.xlu0 %v2484, 127
        %v2493 = vpop.permute.xlu0 %2492
        %v2494 = vsel %vm453, %v2489, %v2491
        %v2495 = vsel %vm453, %v2491, %v2493
        %v2499 = vadd.f32 %v2308, %v2494
        %v2500 = vadd.f32 %v2309, %v2495
        %v2501 = vadd.f32 %v2310, %v2493
        %2502 = vset.pattern.permute.xlu0 43
        %2503 = vperm.xlu0 %2502, %v215
        %v2504 = vpop.permute.xlu0 %2503
        %v2506 = vlaneseq
        %v2507 = vshrl.u32 %v2506, 7
        %v2508 = vsub.s32 3, %v2507
        %v2509 = vrot.slane %v2345, %v2508
        %v2510 = vlaneseq
        %v2511 = vshrl.u32 %v2510, 7
        %v2512 = vsub.s32 7, %v2511
        %v2513 = vrot.slane %v2345, %v2512
        %v2514 = vlaneseq
        %v2515 = vshrl.u32 %v2514, 7
        %v2516 = vsub.s32 3, %v2515
        %v2517 = vrot.slane %v2346, %v2516
        %v2521 = vlaneseq
        %v2522 = vshrl.u32 %v2521, 7
        %v2523 = vsub.s32 3, %v2522
        %v2524 = vrot.slane %v2509, %v2523
        %v2525 = vlaneseq
        %v2526 = vshrl.u32 %v2525, 7
        %v2527 = vsub.s32 3, %v2526
        %v2528 = vrot.slane %v2513, %v2527
        %v2529 = vlaneseq
        %v2530 = vshrl.u32 %v2529, 7
        %v2531 = vsub.s32 3, %v2530
        %v2532 = vrot.slane %v2517, %v2531
        %v2533 = vmul.f32 %v2504, %v2524
        %v2534 = vmul.f32 %v2504, %v2528
        %v2535 = vmul.f32 %v2504, %v2532
        %2539 = vrot.lane.b32.xlu0 %v2533, 127
        %v2540 = vpop.permute.xlu0 %2539
        %2541 = vrot.lane.b32.xlu0 %v2534, 127
        %v2542 = vpop.permute.xlu0 %2541
        %2543 = vrot.lane.b32.xlu0 %v2535, 127
        %v2544 = vpop.permute.xlu0 %2543
        %v2545 = vsel %vm453, %v2540, %v2542
        %v2546 = vsel %vm453, %v2542, %v2544
        %v2550 = vadd.f32 %v2342, %v2545
        %v2551 = vadd.f32 %v2343, %v2546
        %v2552 = vadd.f32 %v2344, %v2544
        %v2553 = vld [vmem:[%s615] ss:$8 sm:$0x3]
        %v2555 = vlaneseq
        %v2556 = vshrl.u32 %v2555, 7
        %v2557 = vsub.s32 0, %v2556
        %v2558 = vrot.slane %v2553, %v2557
        %v2559 = vlaneseq
        %v2560 = vshrl.u32 %v2559, 7
        %v2561 = vsub.s32 1, %v2560
        %v2562 = vrot.slane %v2553, %v2561
        %v2563 = vcombine.low %v2558, %v2562
        %2564 = vrot.lane.b32.xlu0 %v2563, 113
        %v2565 = vpop.permute.xlu0 %2564
        %v2566 = vrot.slane %v2565, 4
        %v2567 = vsel %vm630, %v2566, %v2565
        %v2570 = vmul.f32 %v2345, %v2567
        %v2571 = vmul.f32 %v2346, %v2566
        %2572 = vset.pattern.permute.xlu0 44
        %2573 = vperm.xlu0 %2572, %v215
        %v2574 = vpop.permute.xlu0 %2573
        %v2578 = vlaneseq
        %v2579 = vshrl.u32 %v2578, 7
        %v2580 = vsub.s32 0, %v2579
        %v2581 = vrot.slane %v2570, %v2580
        %v2582 = vlaneseq
        %v2583 = vshrl.u32 %v2582, 7
        %v2584 = vsub.s32 4, %v2583
        %v2585 = vrot.slane %v2570, %v2584
        %v2586 = vlaneseq
        %v2587 = vshrl.u32 %v2586, 7
        %v2588 = vsub.s32 0, %v2587
        %v2589 = vrot.slane %v2571, %v2588
        %v2593 = vlaneseq
        %v2594 = vshrl.u32 %v2593, 7
        %v2595 = vsub.s32 0, %v2594
        %v2596 = vrot.slane %v2581, %v2595
        %v2597 = vlaneseq
        %v2598 = vshrl.u32 %v2597, 7
        %v2599 = vsub.s32 0, %v2598
        %v2600 = vrot.slane %v2585, %v2599
        %v2601 = vlaneseq
        %v2602 = vshrl.u32 %v2601, 7
        %v2603 = vsub.s32 0, %v2602
        %v2604 = vrot.slane %v2589, %v2603
        %v2605 = vmul.f32 %v2574, %v2596
        %v2606 = vmul.f32 %v2574, %v2600
        %v2607 = vmul.f32 %v2574, %v2604
        %2611 = vrot.lane.b32.xlu0 %v2605, 126
        %v2612 = vpop.permute.xlu0 %2611
        %2613 = vrot.lane.b32.xlu0 %v2606, 126
        %v2614 = vpop.permute.xlu0 %2613
        %2615 = vrot.lane.b32.xlu0 %v2607, 126
        %v2616 = vpop.permute.xlu0 %2615
        %v2617 = vsel %vm681, %v2612, %v2614
        %v2618 = vsel %vm681, %v2614, %v2616
        %v2622 = vadd.f32 %v2397, %v2617
        %v2623 = vadd.f32 %v2398, %v2618
        %v2624 = vadd.f32 %v2399, %v2616
        %2625 = vset.pattern.permute.xlu0 45
        %2626 = vperm.xlu0 %2625, %v215
        %v2627 = vpop.permute.xlu0 %2626
        %v2629 = vlaneseq
        %v2630 = vshrl.u32 %v2629, 7
        %v2631 = vsub.s32 1, %v2630
        %v2632 = vrot.slane %v2570, %v2631
        %v2633 = vlaneseq
        %v2634 = vshrl.u32 %v2633, 7
        %v2635 = vsub.s32 5, %v2634
        %v2636 = vrot.slane %v2570, %v2635
        %v2637 = vlaneseq
        %v2638 = vshrl.u32 %v2637, 7
        %v2639 = vsub.s32 1, %v2638
        %v2640 = vrot.slane %v2571, %v2639
        %v2644 = vlaneseq
        %v2645 = vshrl.u32 %v2644, 7
        %v2646 = vsub.s32 1, %v2645
        %v2647 = vrot.slane %v2632, %v2646
        %v2648 = vlaneseq
        %v2649 = vshrl.u32 %v2648, 7
        %v2650 = vsub.s32 1, %v2649
        %v2651 = vrot.slane %v2636, %v2650
        %v2652 = vlaneseq
        %v2653 = vshrl.u32 %v2652, 7
        %v2654 = vsub.s32 1, %v2653
        %v2655 = vrot.slane %v2640, %v2654
        %v2656 = vmul.f32 %v2627, %v2647
        %v2657 = vmul.f32 %v2627, %v2651
        %v2658 = vmul.f32 %v2627, %v2655
        %2662 = vrot.lane.b32.xlu0 %v2656, 126
        %v2663 = vpop.permute.xlu0 %2662
        %2664 = vrot.lane.b32.xlu0 %v2657, 126
        %v2665 = vpop.permute.xlu0 %2664
        %2666 = vrot.lane.b32.xlu0 %v2658, 126
        %v2667 = vpop.permute.xlu0 %2666
        %v2668 = vsel %vm681, %v2663, %v2665
        %v2669 = vsel %vm681, %v2665, %v2667
        %v2673 = vadd.f32 %v2448, %v2668
        %v2674 = vadd.f32 %v2449, %v2669
        %v2675 = vadd.f32 %v2450, %v2667
        %2676 = vset.pattern.permute.xlu0 46
        %2677 = vperm.xlu0 %2676, %v215
        %v2678 = vpop.permute.xlu0 %2677
        %v2680 = vlaneseq
        %v2681 = vshrl.u32 %v2680, 7
        %v2682 = vsub.s32 2, %v2681
        %v2683 = vrot.slane %v2570, %v2682
        %v2684 = vlaneseq
        %v2685 = vshrl.u32 %v2684, 7
        %v2686 = vsub.s32 6, %v2685
        %v2687 = vrot.slane %v2570, %v2686
        %v2688 = vlaneseq
        %v2689 = vshrl.u32 %v2688, 7
        %v2690 = vsub.s32 2, %v2689
        %v2691 = vrot.slane %v2571, %v2690
        %v2695 = vlaneseq
        %v2696 = vshrl.u32 %v2695, 7
        %v2697 = vsub.s32 2, %v2696
        %v2698 = vrot.slane %v2683, %v2697
        %v2699 = vlaneseq
        %v2700 = vshrl.u32 %v2699, 7
        %v2701 = vsub.s32 2, %v2700
        %v2702 = vrot.slane %v2687, %v2701
        %v2703 = vlaneseq
        %v2704 = vshrl.u32 %v2703, 7
        %v2705 = vsub.s32 2, %v2704
        %v2706 = vrot.slane %v2691, %v2705
        %v2707 = vmul.f32 %v2678, %v2698
        %v2708 = vmul.f32 %v2678, %v2702
        %v2709 = vmul.f32 %v2678, %v2706
        %2713 = vrot.lane.b32.xlu0 %v2707, 126
        %v2714 = vpop.permute.xlu0 %2713
        %2715 = vrot.lane.b32.xlu0 %v2708, 126
        %v2716 = vpop.permute.xlu0 %2715
        %2717 = vrot.lane.b32.xlu0 %v2709, 126
        %v2718 = vpop.permute.xlu0 %2717
        %v2719 = vsel %vm681, %v2714, %v2716
        %v2720 = vsel %vm681, %v2716, %v2718
        %v2724 = vadd.f32 %v2499, %v2719
        %v2725 = vadd.f32 %v2500, %v2720
        %v2726 = vadd.f32 %v2501, %v2718
        %2727 = vset.pattern.permute.xlu0 47
        %2728 = vperm.xlu0 %2727, %v215
        %v2729 = vpop.permute.xlu0 %2728
        %v2731 = vlaneseq
        %v2732 = vshrl.u32 %v2731, 7
        %v2733 = vsub.s32 3, %v2732
        %v2734 = vrot.slane %v2570, %v2733
        %v2735 = vlaneseq
        %v2736 = vshrl.u32 %v2735, 7
        %v2737 = vsub.s32 7, %v2736
        %v2738 = vrot.slane %v2570, %v2737
        %v2739 = vlaneseq
        %v2740 = vshrl.u32 %v2739, 7
        %v2741 = vsub.s32 3, %v2740
        %v2742 = vrot.slane %v2571, %v2741
        %v2746 = vlaneseq
        %v2747 = vshrl.u32 %v2746, 7
        %v2748 = vsub.s32 3, %v2747
        %v2749 = vrot.slane %v2734, %v2748
        %v2750 = vlaneseq
        %v2751 = vshrl.u32 %v2750, 7
        %v2752 = vsub.s32 3, %v2751
        %v2753 = vrot.slane %v2738, %v2752
        %v2754 = vlaneseq
        %v2755 = vshrl.u32 %v2754, 7
        %v2756 = vsub.s32 3, %v2755
        %v2757 = vrot.slane %v2742, %v2756
        %v2758 = vmul.f32 %v2729, %v2749
        %v2759 = vmul.f32 %v2729, %v2753
        %v2760 = vmul.f32 %v2729, %v2757
        %2764 = vrot.lane.b32.xlu0 %v2758, 126
        %v2765 = vpop.permute.xlu0 %2764
        %2766 = vrot.lane.b32.xlu0 %v2759, 126
        %v2767 = vpop.permute.xlu0 %2766
        %2768 = vrot.lane.b32.xlu0 %v2760, 126
        %v2769 = vpop.permute.xlu0 %2768
        %v2770 = vsel %vm681, %v2765, %v2767
        %v2771 = vsel %vm681, %v2767, %v2769
        %v2775 = vadd.f32 %v2550, %v2770
        %v2776 = vadd.f32 %v2551, %v2771
        %v2777 = vadd.f32 %v2552, %v2769
        %v2778 = vld [vmem:[#allocation2] sm:$0xff]
        %v2779 = vld [vmem:[#allocation2 + $0x8] sm:$0xf]
        %v2780 = vld [vmem:[%s845] ss:$8 sm:$0x3]
        %v2782 = vlaneseq
        %v2783 = vshrl.u32 %v2782, 7
        %v2784 = vsub.s32 0, %v2783
        %v2785 = vrot.slane %v2780, %v2784
        %v2786 = vlaneseq
        %v2787 = vshrl.u32 %v2786, 7
        %v2788 = vsub.s32 1, %v2787
        %v2789 = vrot.slane %v2780, %v2788
        %v2790 = vcombine.low %v2785, %v2789
        %2791 = vrot.lane.b32.xlu0 %v2790, 127
        %v2792 = vpop.permute.xlu0 %2791
        %v2793 = vrot.slane %v2792, 4
        %v2794 = vsel %vm453, %v2793, %v2792
        %v2797 = vmul.f32 %v2778, %v2794
        %v2798 = vmul.f32 %v2779, %v2793
        %2799 = vset.pattern.permute.xlu0 48
        %2800 = vperm.xlu0 %2799, %v215
        %v2801 = vpop.permute.xlu0 %2800
        %v2805 = vlaneseq
        %v2806 = vshrl.u32 %v2805, 7
        %v2807 = vsub.s32 0, %v2806
        %v2808 = vrot.slane %v2797, %v2807
        %v2809 = vlaneseq
        %v2810 = vshrl.u32 %v2809, 7
        %v2811 = vsub.s32 4, %v2810
        %v2812 = vrot.slane %v2797, %v2811
        %v2813 = vlaneseq
        %v2814 = vshrl.u32 %v2813, 7
        %v2815 = vsub.s32 0, %v2814
        %v2816 = vrot.slane %v2798, %v2815
        %v2820 = vlaneseq
        %v2821 = vshrl.u32 %v2820, 7
        %v2822 = vsub.s32 0, %v2821
        %v2823 = vrot.slane %v2808, %v2822
        %v2824 = vlaneseq
        %v2825 = vshrl.u32 %v2824, 7
        %v2826 = vsub.s32 0, %v2825
        %v2827 = vrot.slane %v2812, %v2826
        %v2828 = vlaneseq
        %v2829 = vshrl.u32 %v2828, 7
        %v2830 = vsub.s32 0, %v2829
        %v2831 = vrot.slane %v2816, %v2830
        %v2832 = vmul.f32 %v2801, %v2823
        %v2833 = vmul.f32 %v2801, %v2827
        %v2834 = vmul.f32 %v2801, %v2831
        %2838 = vrot.lane.b32.xlu0 %v2832, 112
        %v2839 = vpop.permute.xlu0 %2838
        %2840 = vrot.lane.b32.xlu0 %v2833, 112
        %v2841 = vpop.permute.xlu0 %2840
        %2842 = vrot.lane.b32.xlu0 %v2834, 112
        %v2843 = vpop.permute.xlu0 %2842
        %v2844 = vsel %vm910, %v2839, %v2841
        %v2845 = vsel %vm910, %v2841, %v2843
        %v2849 = vadd.f32 %v2622, %v2844
        %v2850 = vadd.f32 %v2623, %v2845
        %v2851 = vadd.f32 %v2624, %v2843
        %2852 = vset.pattern.permute.xlu0 49
        %2853 = vperm.xlu0 %2852, %v215
        %v2854 = vpop.permute.xlu0 %2853
        %v2856 = vlaneseq
        %v2857 = vshrl.u32 %v2856, 7
        %v2858 = vsub.s32 1, %v2857
        %v2859 = vrot.slane %v2797, %v2858
        %v2860 = vlaneseq
        %v2861 = vshrl.u32 %v2860, 7
        %v2862 = vsub.s32 5, %v2861
        %v2863 = vrot.slane %v2797, %v2862
        %v2864 = vlaneseq
        %v2865 = vshrl.u32 %v2864, 7
        %v2866 = vsub.s32 1, %v2865
        %v2867 = vrot.slane %v2798, %v2866
        %v2871 = vlaneseq
        %v2872 = vshrl.u32 %v2871, 7
        %v2873 = vsub.s32 1, %v2872
        %v2874 = vrot.slane %v2859, %v2873
        %v2875 = vlaneseq
        %v2876 = vshrl.u32 %v2875, 7
        %v2877 = vsub.s32 1, %v2876
        %v2878 = vrot.slane %v2863, %v2877
        %v2879 = vlaneseq
        %v2880 = vshrl.u32 %v2879, 7
        %v2881 = vsub.s32 1, %v2880
        %v2882 = vrot.slane %v2867, %v2881
        %v2883 = vmul.f32 %v2854, %v2874
        %v2884 = vmul.f32 %v2854, %v2878
        %v2885 = vmul.f32 %v2854, %v2882
        %2889 = vrot.lane.b32.xlu0 %v2883, 112
        %v2890 = vpop.permute.xlu0 %2889
        %2891 = vrot.lane.b32.xlu0 %v2884, 112
        %v2892 = vpop.permute.xlu0 %2891
        %2893 = vrot.lane.b32.xlu0 %v2885, 112
        %v2894 = vpop.permute.xlu0 %2893
        %v2895 = vsel %vm910, %v2890, %v2892
        %v2896 = vsel %vm910, %v2892, %v2894
        %v2900 = vadd.f32 %v2673, %v2895
        %v2901 = vadd.f32 %v2674, %v2896
        %v2902 = vadd.f32 %v2675, %v2894
        %2903 = vset.pattern.permute.xlu0 50
        %2904 = vperm.xlu0 %2903, %v215
        %v2905 = vpop.permute.xlu0 %2904
        %v2907 = vlaneseq
        %v2908 = vshrl.u32 %v2907, 7
        %v2909 = vsub.s32 2, %v2908
        %v2910 = vrot.slane %v2797, %v2909
        %v2911 = vlaneseq
        %v2912 = vshrl.u32 %v2911, 7
        %v2913 = vsub.s32 6, %v2912
        %v2914 = vrot.slane %v2797, %v2913
        %v2915 = vlaneseq
        %v2916 = vshrl.u32 %v2915, 7
        %v2917 = vsub.s32 2, %v2916
        %v2918 = vrot.slane %v2798, %v2917
        %v2922 = vlaneseq
        %v2923 = vshrl.u32 %v2922, 7
        %v2924 = vsub.s32 2, %v2923
        %v2925 = vrot.slane %v2910, %v2924
        %v2926 = vlaneseq
        %v2927 = vshrl.u32 %v2926, 7
        %v2928 = vsub.s32 2, %v2927
        %v2929 = vrot.slane %v2914, %v2928
        %v2930 = vlaneseq
        %v2931 = vshrl.u32 %v2930, 7
        %v2932 = vsub.s32 2, %v2931
        %v2933 = vrot.slane %v2918, %v2932
        %v2934 = vmul.f32 %v2905, %v2925
        %v2935 = vmul.f32 %v2905, %v2929
        %v2936 = vmul.f32 %v2905, %v2933
        %2940 = vrot.lane.b32.xlu0 %v2934, 112
        %v2941 = vpop.permute.xlu0 %2940
        %2942 = vrot.lane.b32.xlu0 %v2935, 112
        %v2943 = vpop.permute.xlu0 %2942
        %2944 = vrot.lane.b32.xlu0 %v2936, 112
        %v2945 = vpop.permute.xlu0 %2944
        %v2946 = vsel %vm910, %v2941, %v2943
        %v2947 = vsel %vm910, %v2943, %v2945
        %v2951 = vadd.f32 %v2724, %v2946
        %v2952 = vadd.f32 %v2725, %v2947
        %v2953 = vadd.f32 %v2726, %v2945
        %2954 = vset.pattern.permute.xlu0 51
        %2955 = vperm.xlu0 %2954, %v215
        %v2956 = vpop.permute.xlu0 %2955
        %v2958 = vlaneseq
        %v2959 = vshrl.u32 %v2958, 7
        %v2960 = vsub.s32 3, %v2959
        %v2961 = vrot.slane %v2797, %v2960
        %v2962 = vlaneseq
        %v2963 = vshrl.u32 %v2962, 7
        %v2964 = vsub.s32 7, %v2963
        %v2965 = vrot.slane %v2797, %v2964
        %v2966 = vlaneseq
        %v2967 = vshrl.u32 %v2966, 7
        %v2968 = vsub.s32 3, %v2967
        %v2969 = vrot.slane %v2798, %v2968
        %v2973 = vlaneseq
        %v2974 = vshrl.u32 %v2973, 7
        %v2975 = vsub.s32 3, %v2974
        %v2976 = vrot.slane %v2961, %v2975
        %v2977 = vlaneseq
        %v2978 = vshrl.u32 %v2977, 7
        %v2979 = vsub.s32 3, %v2978
        %v2980 = vrot.slane %v2965, %v2979
        %v2981 = vlaneseq
        %v2982 = vshrl.u32 %v2981, 7
        %v2983 = vsub.s32 3, %v2982
        %v2984 = vrot.slane %v2969, %v2983
        %v2985 = vmul.f32 %v2956, %v2976
        %v2986 = vmul.f32 %v2956, %v2980
        %v2987 = vmul.f32 %v2956, %v2984
        %2991 = vrot.lane.b32.xlu0 %v2985, 112
        %v2992 = vpop.permute.xlu0 %2991
        %2993 = vrot.lane.b32.xlu0 %v2986, 112
        %v2994 = vpop.permute.xlu0 %2993
        %2995 = vrot.lane.b32.xlu0 %v2987, 112
        %v2996 = vpop.permute.xlu0 %2995
        %v2997 = vsel %vm910, %v2992, %v2994
        %v2998 = vsel %vm910, %v2994, %v2996
        %v3002 = vadd.f32 %v2775, %v2997
        %v3003 = vadd.f32 %v2776, %v2998
        %v3004 = vadd.f32 %v2777, %v2996
        %v3005 = vld [vmem:[#allocation2 + $0x4] sm:$0xff]
        %3006 = vset.pattern.permute.xlu0 52
        %3007 = vperm.xlu0 %3006, %v215
        %v3008 = vpop.permute.xlu0 %3007
        %v3011 = vlaneseq
        %v3012 = vshrl.u32 %v3011, 7
        %v3013 = vsub.s32 0, %v3012
        %v3014 = vrot.slane %v3005, %v3013
        %v3015 = vlaneseq
        %v3016 = vshrl.u32 %v3015, 7
        %v3017 = vsub.s32 4, %v3016
        %v3018 = vrot.slane %v3005, %v3017
        %v3021 = vlaneseq
        %v3022 = vshrl.u32 %v3021, 7
        %v3023 = vsub.s32 0, %v3022
        %v3024 = vrot.slane %v3014, %v3023
        %v3025 = vlaneseq
        %v3026 = vshrl.u32 %v3025, 7
        %v3027 = vsub.s32 0, %v3026
        %v3028 = vrot.slane %v3018, %v3027
        %v3029 = vmul.f32 %v3008, %v3024
        %v3030 = vmul.f32 %v3008, %v3028
        %3033 = vrot.lane.b32.xlu0 %v3029, 111
        %v3034 = vpop.permute.xlu0 %3033
        %3035 = vrot.lane.b32.xlu0 %v3030, 111
        %v3036 = vpop.permute.xlu0 %3035
        %v3037 = vsel %vm262, %v3034, %v3036
        %v3041 = vadd.f32 %v2849, %v3034
        %v3042 = vadd.f32 %v2850, %v3037
        %v3043 = vadd.f32 %v2851, %v3036
        %3044 = vset.pattern.permute.xlu0 53
        %3045 = vperm.xlu0 %3044, %v215
        %v3046 = vpop.permute.xlu0 %3045
        %v3048 = vlaneseq
        %v3049 = vshrl.u32 %v3048, 7
        %v3050 = vsub.s32 1, %v3049
        %v3051 = vrot.slane %v3005, %v3050
        %v3052 = vlaneseq
        %v3053 = vshrl.u32 %v3052, 7
        %v3054 = vsub.s32 5, %v3053
        %v3055 = vrot.slane %v3005, %v3054
        %v3058 = vlaneseq
        %v3059 = vshrl.u32 %v3058, 7
        %v3060 = vsub.s32 1, %v3059
        %v3061 = vrot.slane %v3051, %v3060
        %v3062 = vlaneseq
        %v3063 = vshrl.u32 %v3062, 7
        %v3064 = vsub.s32 1, %v3063
        %v3065 = vrot.slane %v3055, %v3064
        %v3066 = vmul.f32 %v3046, %v3061
        %v3067 = vmul.f32 %v3046, %v3065
        %3070 = vrot.lane.b32.xlu0 %v3066, 111
        %v3071 = vpop.permute.xlu0 %3070
        %3072 = vrot.lane.b32.xlu0 %v3067, 111
        %v3073 = vpop.permute.xlu0 %3072
        %v3074 = vsel %vm262, %v3071, %v3073
        %v3078 = vadd.f32 %v2900, %v3071
        %v3079 = vadd.f32 %v2901, %v3074
        %v3080 = vadd.f32 %v2902, %v3073
        %3081 = vset.pattern.permute.xlu0 54
        %3082 = vperm.xlu0 %3081, %v215
        %v3083 = vpop.permute.xlu0 %3082
        %v3085 = vlaneseq
        %v3086 = vshrl.u32 %v3085, 7
        %v3087 = vsub.s32 2, %v3086
        %v3088 = vrot.slane %v3005, %v3087
        %v3089 = vlaneseq
        %v3090 = vshrl.u32 %v3089, 7
        %v3091 = vsub.s32 6, %v3090
        %v3092 = vrot.slane %v3005, %v3091
        %v3095 = vlaneseq
        %v3096 = vshrl.u32 %v3095, 7
        %v3097 = vsub.s32 2, %v3096
        %v3098 = vrot.slane %v3088, %v3097
        %v3099 = vlaneseq
        %v3100 = vshrl.u32 %v3099, 7
        %v3101 = vsub.s32 2, %v3100
        %v3102 = vrot.slane %v3092, %v3101
        %v3103 = vmul.f32 %v3083, %v3098
        %v3104 = vmul.f32 %v3083, %v3102
        %3107 = vrot.lane.b32.xlu0 %v3103, 111
        %v3108 = vpop.permute.xlu0 %3107
        %3109 = vrot.lane.b32.xlu0 %v3104, 111
        %v3110 = vpop.permute.xlu0 %3109
        %v3111 = vsel %vm262, %v3108, %v3110
        %v3115 = vadd.f32 %v2951, %v3108
        %v3116 = vadd.f32 %v2952, %v3111
        %v3117 = vadd.f32 %v2953, %v3110
        %3118 = vset.pattern.permute.xlu0 55
        %3119 = vperm.xlu0 %3118, %v215
        %v3120 = vpop.permute.xlu0 %3119
        %v3122 = vlaneseq
        %v3123 = vshrl.u32 %v3122, 7
        %v3124 = vsub.s32 3, %v3123
        %v3125 = vrot.slane %v3005, %v3124
        %v3126 = vlaneseq
        %v3127 = vshrl.u32 %v3126, 7
        %v3128 = vsub.s32 7, %v3127
        %v3129 = vrot.slane %v3005, %v3128
        %v3132 = vlaneseq
        %v3133 = vshrl.u32 %v3132, 7
        %v3134 = vsub.s32 3, %v3133
        %v3135 = vrot.slane %v3125, %v3134
        %v3136 = vlaneseq
        %v3137 = vshrl.u32 %v3136, 7
        %v3138 = vsub.s32 3, %v3137
        %v3139 = vrot.slane %v3129, %v3138
        %v3140 = vmul.f32 %v3120, %v3135
        %v3141 = vmul.f32 %v3120, %v3139
        %3144 = vrot.lane.b32.xlu0 %v3140, 111
        %v3145 = vpop.permute.xlu0 %3144
        %3146 = vrot.lane.b32.xlu0 %v3141, 111
        %v3147 = vpop.permute.xlu0 %3146
        %v3148 = vsel %vm262, %v3145, %v3147
        %v3152 = vadd.f32 %v3002, %v3145
        %v3153 = vadd.f32 %v3003, %v3148
        %v3154 = vadd.f32 %v3004, %v3147
        %v3155 = vld [vmem:[#allocation2 + $0x4] sm:$0xff]
        %v3156 = vld [vmem:[#allocation2 + $0xc] sm:$0xf]
        %v3157 = vld [vmem:[%s1224] ss:$8 sm:$0x3]
        %v3159 = vlaneseq
        %v3160 = vshrl.u32 %v3159, 7
        %v3161 = vsub.s32 0, %v3160
        %v3162 = vrot.slane %v3157, %v3161
        %v3163 = vlaneseq
        %v3164 = vshrl.u32 %v3163, 7
        %v3165 = vsub.s32 1, %v3164
        %v3166 = vrot.slane %v3157, %v3165
        %v3167 = vcombine.low %v3162, %v3166
        %3168 = vrot.lane.b32.xlu0 %v3167, 1
        %v3169 = vpop.permute.xlu0 %3168
        %v3170 = vrot.slane %v3169, 4
        %v3171 = vsel %vm1239, %v3170, %v3169
        %v3174 = vmul.f32 %v3155, %v3171
        %v3175 = vmul.f32 %v3156, %v3170
        %3176 = vset.pattern.permute.xlu0 56
        %3177 = vperm.xlu0 %3176, %v215
        %v3178 = vpop.permute.xlu0 %3177
        %v3182 = vlaneseq
        %v3183 = vshrl.u32 %v3182, 7
        %v3184 = vsub.s32 0, %v3183
        %v3185 = vrot.slane %v3174, %v3184
        %v3186 = vlaneseq
        %v3187 = vshrl.u32 %v3186, 7
        %v3188 = vsub.s32 4, %v3187
        %v3189 = vrot.slane %v3174, %v3188
        %v3190 = vlaneseq
        %v3191 = vshrl.u32 %v3190, 7
        %v3192 = vsub.s32 0, %v3191
        %v3193 = vrot.slane %v3175, %v3192
        %v3197 = vlaneseq
        %v3198 = vshrl.u32 %v3197, 7
        %v3199 = vsub.s32 0, %v3198
        %v3200 = vrot.slane %v3185, %v3199
        %v3201 = vlaneseq
        %v3202 = vshrl.u32 %v3201, 7
        %v3203 = vsub.s32 0, %v3202
        %v3204 = vrot.slane %v3189, %v3203
        %v3205 = vlaneseq
        %v3206 = vshrl.u32 %v3205, 7
        %v3207 = vsub.s32 0, %v3206
        %v3208 = vrot.slane %v3193, %v3207
        %v3209 = vmul.f32 %v3178, %v3200
        %v3210 = vmul.f32 %v3178, %v3204
        %v3211 = vmul.f32 %v3178, %v3208
        %3215 = vrot.lane.b32.xlu0 %v3209, 110
        %v3216 = vpop.permute.xlu0 %3215
        %3217 = vrot.lane.b32.xlu0 %v3210, 110
        %v3218 = vpop.permute.xlu0 %3217
        %3219 = vrot.lane.b32.xlu0 %v3211, 110
        %v3220 = vpop.permute.xlu0 %3219
        %v3221 = vsel %vm1290, %v3216, %v3218
        %v3222 = vsel %vm1290, %v3218, %v3220
        %v3226 = vadd.f32 %v3041, %v3216
        %v3227 = vadd.f32 %v3042, %v3221
        %v3228 = vadd.f32 %v3043, %v3222
        %3229 = vset.pattern.permute.xlu0 57
        %3230 = vperm.xlu0 %3229, %v215
        %v3231 = vpop.permute.xlu0 %3230
        %v3233 = vlaneseq
        %v3234 = vshrl.u32 %v3233, 7
        %v3235 = vsub.s32 1, %v3234
        %v3236 = vrot.slane %v3174, %v3235
        %v3237 = vlaneseq
        %v3238 = vshrl.u32 %v3237, 7
        %v3239 = vsub.s32 5, %v3238
        %v3240 = vrot.slane %v3174, %v3239
        %v3241 = vlaneseq
        %v3242 = vshrl.u32 %v3241, 7
        %v3243 = vsub.s32 1, %v3242
        %v3244 = vrot.slane %v3175, %v3243
        %v3248 = vlaneseq
        %v3249 = vshrl.u32 %v3248, 7
        %v3250 = vsub.s32 1, %v3249
        %v3251 = vrot.slane %v3236, %v3250
        %v3252 = vlaneseq
        %v3253 = vshrl.u32 %v3252, 7
        %v3254 = vsub.s32 1, %v3253
        %v3255 = vrot.slane %v3240, %v3254
        %v3256 = vlaneseq
        %v3257 = vshrl.u32 %v3256, 7
        %v3258 = vsub.s32 1, %v3257
        %v3259 = vrot.slane %v3244, %v3258
        %v3260 = vmul.f32 %v3231, %v3251
        %v3261 = vmul.f32 %v3231, %v3255
        %v3262 = vmul.f32 %v3231, %v3259
        %3266 = vrot.lane.b32.xlu0 %v3260, 110
        %v3267 = vpop.permute.xlu0 %3266
        %3268 = vrot.lane.b32.xlu0 %v3261, 110
        %v3269 = vpop.permute.xlu0 %3268
        %3270 = vrot.lane.b32.xlu0 %v3262, 110
        %v3271 = vpop.permute.xlu0 %3270
        %v3272 = vsel %vm1290, %v3267, %v3269
        %v3273 = vsel %vm1290, %v3269, %v3271
        %v3277 = vadd.f32 %v3078, %v3267
        %v3278 = vadd.f32 %v3079, %v3272
        %v3279 = vadd.f32 %v3080, %v3273
        %3280 = vset.pattern.permute.xlu0 58
        %3281 = vperm.xlu0 %3280, %v215
        %v3282 = vpop.permute.xlu0 %3281
        %v3284 = vlaneseq
        %v3285 = vshrl.u32 %v3284, 7
        %v3286 = vsub.s32 2, %v3285
        %v3287 = vrot.slane %v3174, %v3286
        %v3288 = vlaneseq
        %v3289 = vshrl.u32 %v3288, 7
        %v3290 = vsub.s32 6, %v3289
        %v3291 = vrot.slane %v3174, %v3290
        %v3292 = vlaneseq
        %v3293 = vshrl.u32 %v3292, 7
        %v3294 = vsub.s32 2, %v3293
        %v3295 = vrot.slane %v3175, %v3294
        %v3299 = vlaneseq
        %v3300 = vshrl.u32 %v3299, 7
        %v3301 = vsub.s32 2, %v3300
        %v3302 = vrot.slane %v3287, %v3301
        %v3303 = vlaneseq
        %v3304 = vshrl.u32 %v3303, 7
        %v3305 = vsub.s32 2, %v3304
        %v3306 = vrot.slane %v3291, %v3305
        %v3307 = vlaneseq
        %v3308 = vshrl.u32 %v3307, 7
        %v3309 = vsub.s32 2, %v3308
        %v3310 = vrot.slane %v3295, %v3309
        %v3311 = vmul.f32 %v3282, %v3302
        %v3312 = vmul.f32 %v3282, %v3306
        %v3313 = vmul.f32 %v3282, %v3310
        %3317 = vrot.lane.b32.xlu0 %v3311, 110
        %v3318 = vpop.permute.xlu0 %3317
        %3319 = vrot.lane.b32.xlu0 %v3312, 110
        %v3320 = vpop.permute.xlu0 %3319
        %3321 = vrot.lane.b32.xlu0 %v3313, 110
        %v3322 = vpop.permute.xlu0 %3321
        %v3323 = vsel %vm1290, %v3318, %v3320
        %v3324 = vsel %vm1290, %v3320, %v3322
        %v3328 = vadd.f32 %v3115, %v3318
        %v3329 = vadd.f32 %v3116, %v3323
        %v3330 = vadd.f32 %v3117, %v3324
        %3331 = vset.pattern.permute.xlu0 59
        %3332 = vperm.xlu0 %3331, %v215
        %v3333 = vpop.permute.xlu0 %3332
        %v3335 = vlaneseq
        %v3336 = vshrl.u32 %v3335, 7
        %v3337 = vsub.s32 3, %v3336
        %v3338 = vrot.slane %v3174, %v3337
        %v3339 = vlaneseq
        %v3340 = vshrl.u32 %v3339, 7
        %v3341 = vsub.s32 7, %v3340
        %v3342 = vrot.slane %v3174, %v3341
        %v3343 = vlaneseq
        %v3344 = vshrl.u32 %v3343, 7
        %v3345 = vsub.s32 3, %v3344
        %v3346 = vrot.slane %v3175, %v3345
        %v3350 = vlaneseq
        %v3351 = vshrl.u32 %v3350, 7
        %v3352 = vsub.s32 3, %v3351
        %v3353 = vrot.slane %v3338, %v3352
        %v3354 = vlaneseq
        %v3355 = vshrl.u32 %v3354, 7
        %v3356 = vsub.s32 3, %v3355
        %v3357 = vrot.slane %v3342, %v3356
        %v3358 = vlaneseq
        %v3359 = vshrl.u32 %v3358, 7
        %v3360 = vsub.s32 3, %v3359
        %v3361 = vrot.slane %v3346, %v3360
        %v3362 = vmul.f32 %v3333, %v3353
        %v3363 = vmul.f32 %v3333, %v3357
        %v3364 = vmul.f32 %v3333, %v3361
        %3368 = vrot.lane.b32.xlu0 %v3362, 110
        %v3369 = vpop.permute.xlu0 %3368
        %3370 = vrot.lane.b32.xlu0 %v3363, 110
        %v3371 = vpop.permute.xlu0 %3370
        %3372 = vrot.lane.b32.xlu0 %v3364, 110
        %v3373 = vpop.permute.xlu0 %3372
        %v3374 = vsel %vm1290, %v3369, %v3371
        %v3375 = vsel %vm1290, %v3371, %v3373
        %v3379 = vadd.f32 %v3152, %v3369
        %v3380 = vadd.f32 %v3153, %v3374
        %v3381 = vadd.f32 %v3154, %v3375
        %v3382 = vld [vmem:[#allocation2 + $0x4] sm:$0xff]
        %v3383 = vld [vmem:[#allocation2 + $0xc] sm:$0xf]
        %v3384 = vld [vmem:[%s1454] ss:$8 sm:$0x3]
        %v3386 = vlaneseq
        %v3387 = vshrl.u32 %v3386, 7
        %v3388 = vsub.s32 0, %v3387
        %v3389 = vrot.slane %v3384, %v3388
        %v3390 = vlaneseq
        %v3391 = vshrl.u32 %v3390, 7
        %v3392 = vsub.s32 1, %v3391
        %v3393 = vrot.slane %v3384, %v3392
        %v3394 = vcombine.low %v3389, %v3393
        %3395 = vrot.lane.b32.xlu0 %v3394, 15
        %v3396 = vpop.permute.xlu0 %3395
        %v3397 = vrot.slane %v3396, 4
        %v3398 = vsel %vm1469, %v3397, %v3396
        %v3401 = vmul.f32 %v3382, %v3398
        %v3402 = vmul.f32 %v3383, %v3397
        %3403 = vset.pattern.permute.xlu0 60
        %3404 = vperm.xlu0 %3403, %v215
        %v3405 = vpop.permute.xlu0 %3404
        %v3409 = vlaneseq
        %v3410 = vshrl.u32 %v3409, 7
        %v3411 = vsub.s32 0, %v3410
        %v3412 = vrot.slane %v3401, %v3411
        %v3413 = vlaneseq
        %v3414 = vshrl.u32 %v3413, 7
        %v3415 = vsub.s32 4, %v3414
        %v3416 = vrot.slane %v3401, %v3415
        %v3417 = vlaneseq
        %v3418 = vshrl.u32 %v3417, 7
        %v3419 = vsub.s32 0, %v3418
        %v3420 = vrot.slane %v3402, %v3419
        %v3424 = vlaneseq
        %v3425 = vshrl.u32 %v3424, 7
        %v3426 = vsub.s32 0, %v3425
        %v3427 = vrot.slane %v3412, %v3426
        %v3428 = vlaneseq
        %v3429 = vshrl.u32 %v3428, 7
        %v3430 = vsub.s32 0, %v3429
        %v3431 = vrot.slane %v3416, %v3430
        %v3432 = vlaneseq
        %v3433 = vshrl.u32 %v3432, 7
        %v3434 = vsub.s32 0, %v3433
        %v3435 = vrot.slane %v3420, %v3434
        %v3436 = vmul.f32 %v3405, %v3427
        %v3437 = vmul.f32 %v3405, %v3431
        %v3438 = vmul.f32 %v3405, %v3435
        %3442 = vrot.lane.b32.xlu0 %v3436, 96
        %v3443 = vpop.permute.xlu0 %3442
        %3444 = vrot.lane.b32.xlu0 %v3437, 96
        %v3445 = vpop.permute.xlu0 %3444
        %3446 = vrot.lane.b32.xlu0 %v3438, 96
        %v3447 = vpop.permute.xlu0 %3446
        %v3448 = vsel %vm1520, %v3443, %v3445
        %v3449 = vsel %vm1520, %v3445, %v3447
        %v3453 = vadd.f32 %v3226, %v3443
        %v3454 = vadd.f32 %v3227, %v3448
        %v3455 = vadd.f32 %v3228, %v3449
        %3456 = vset.pattern.permute.xlu0 61
        %3457 = vperm.xlu0 %3456, %v215
        %v3458 = vpop.permute.xlu0 %3457
        %v3460 = vlaneseq
        %v3461 = vshrl.u32 %v3460, 7
        %v3462 = vsub.s32 1, %v3461
        %v3463 = vrot.slane %v3401, %v3462
        %v3464 = vlaneseq
        %v3465 = vshrl.u32 %v3464, 7
        %v3466 = vsub.s32 5, %v3465
        %v3467 = vrot.slane %v3401, %v3466
        %v3468 = vlaneseq
        %v3469 = vshrl.u32 %v3468, 7
        %v3470 = vsub.s32 1, %v3469
        %v3471 = vrot.slane %v3402, %v3470
        %v3475 = vlaneseq
        %v3476 = vshrl.u32 %v3475, 7
        %v3477 = vsub.s32 1, %v3476
        %v3478 = vrot.slane %v3463, %v3477
        %v3479 = vlaneseq
        %v3480 = vshrl.u32 %v3479, 7
        %v3481 = vsub.s32 1, %v3480
        %v3482 = vrot.slane %v3467, %v3481
        %v3483 = vlaneseq
        %v3484 = vshrl.u32 %v3483, 7
        %v3485 = vsub.s32 1, %v3484
        %v3486 = vrot.slane %v3471, %v3485
        %v3487 = vmul.f32 %v3458, %v3478
        %v3488 = vmul.f32 %v3458, %v3482
        %v3489 = vmul.f32 %v3458, %v3486
        %3493 = vrot.lane.b32.xlu0 %v3487, 96
        %v3494 = vpop.permute.xlu0 %3493
        %3495 = vrot.lane.b32.xlu0 %v3488, 96
        %v3496 = vpop.permute.xlu0 %3495
        %3497 = vrot.lane.b32.xlu0 %v3489, 96
        %v3498 = vpop.permute.xlu0 %3497
        %v3499 = vsel %vm1520, %v3494, %v3496
        %v3500 = vsel %vm1520, %v3496, %v3498
        %v3504 = vadd.f32 %v3277, %v3494
        %v3505 = vadd.f32 %v3278, %v3499
        %v3506 = vadd.f32 %v3279, %v3500
        %3507 = vset.pattern.permute.xlu0 62
        %3508 = vperm.xlu0 %3507, %v215
        %v3509 = vpop.permute.xlu0 %3508
        %v3511 = vlaneseq
        %v3512 = vshrl.u32 %v3511, 7
        %v3513 = vsub.s32 2, %v3512
        %v3514 = vrot.slane %v3401, %v3513
        %v3515 = vlaneseq
        %v3516 = vshrl.u32 %v3515, 7
        %v3517 = vsub.s32 6, %v3516
        %v3518 = vrot.slane %v3401, %v3517
        %v3519 = vlaneseq
        %v3520 = vshrl.u32 %v3519, 7
        %v3521 = vsub.s32 2, %v3520
        %v3522 = vrot.slane %v3402, %v3521
        %v3526 = vlaneseq
        %v3527 = vshrl.u32 %v3526, 7
        %v3528 = vsub.s32 2, %v3527
        %v3529 = vrot.slane %v3514, %v3528
        %v3530 = vlaneseq
        %v3531 = vshrl.u32 %v3530, 7
        %v3532 = vsub.s32 2, %v3531
        %v3533 = vrot.slane %v3518, %v3532
        %v3534 = vlaneseq
        %v3535 = vshrl.u32 %v3534, 7
        %v3536 = vsub.s32 2, %v3535
        %v3537 = vrot.slane %v3522, %v3536
        %v3538 = vmul.f32 %v3509, %v3529
        %v3539 = vmul.f32 %v3509, %v3533
        %v3540 = vmul.f32 %v3509, %v3537
        %3544 = vrot.lane.b32.xlu0 %v3538, 96
        %v3545 = vpop.permute.xlu0 %3544
        %3546 = vrot.lane.b32.xlu0 %v3539, 96
        %v3547 = vpop.permute.xlu0 %3546
        %3548 = vrot.lane.b32.xlu0 %v3540, 96
        %v3549 = vpop.permute.xlu0 %3548
        %v3550 = vsel %vm1520, %v3545, %v3547
        %v3551 = vsel %vm1520, %v3547, %v3549
        %v3555 = vadd.f32 %v3328, %v3545
        %v3556 = vadd.f32 %v3329, %v3550
        %v3557 = vadd.f32 %v3330, %v3551
        %3558 = vset.pattern.permute.xlu0 63
        %3559 = vperm.xlu0 %3558, %v215
        %v3560 = vpop.permute.xlu0 %3559
        %v3562 = vlaneseq
        %v3563 = vshrl.u32 %v3562, 7
        %v3564 = vsub.s32 3, %v3563
        %v3565 = vrot.slane %v3401, %v3564
        %v3566 = vlaneseq
        %v3567 = vshrl.u32 %v3566, 7
        %v3568 = vsub.s32 7, %v3567
        %v3569 = vrot.slane %v3401, %v3568
        %v3570 = vlaneseq
        %v3571 = vshrl.u32 %v3570, 7
        %v3572 = vsub.s32 3, %v3571
        %v3573 = vrot.slane %v3402, %v3572
        %v3577 = vlaneseq
        %v3578 = vshrl.u32 %v3577, 7
        %v3579 = vsub.s32 3, %v3578
        %v3580 = vrot.slane %v3565, %v3579
        %v3581 = vlaneseq
        %v3582 = vshrl.u32 %v3581, 7
        %v3583 = vsub.s32 3, %v3582
        %v3584 = vrot.slane %v3569, %v3583
        %v3585 = vlaneseq
        %v3586 = vshrl.u32 %v3585, 7
        %v3587 = vsub.s32 3, %v3586
        %v3588 = vrot.slane %v3573, %v3587
        %v3589 = vmul.f32 %v3560, %v3580
        %v3590 = vmul.f32 %v3560, %v3584
        %v3591 = vmul.f32 %v3560, %v3588
        %3595 = vrot.lane.b32.xlu0 %v3589, 96
        %v3596 = vpop.permute.xlu0 %3595
        %3597 = vrot.lane.b32.xlu0 %v3590, 96
        %v3598 = vpop.permute.xlu0 %3597
        %3599 = vrot.lane.b32.xlu0 %v3591, 96
        %v3600 = vpop.permute.xlu0 %3599
        %v3601 = vsel %vm1520, %v3596, %v3598
        %v3602 = vsel %vm1520, %v3598, %v3600
        %v3606 = vadd.f32 %v3379, %v3596
        %v3607 = vadd.f32 %v3380, %v3601
        %v3608 = vadd.f32 %v3381, %v3602
        %v3609 = vld [vmem:[#allocation2 + $0x4] sm:$0xff]
        %v3610 = vld [vmem:[#allocation2 + $0xc] sm:$0xf]
        %3611 = vset.pattern.permute.xlu0 64
        %3612 = vperm.xlu0 %3611, %v215
        %v3613 = vpop.permute.xlu0 %3612
        %v3617 = vlaneseq
        %v3618 = vshrl.u32 %v3617, 7
        %v3619 = vsub.s32 0, %v3618
        %v3620 = vrot.slane %v3609, %v3619
        %v3621 = vlaneseq
        %v3622 = vshrl.u32 %v3621, 7
        %v3623 = vsub.s32 4, %v3622
        %v3624 = vrot.slane %v3609, %v3623
        %v3625 = vlaneseq
        %v3626 = vshrl.u32 %v3625, 7
        %v3627 = vsub.s32 0, %v3626
        %v3628 = vrot.slane %v3610, %v3627
        %v3632 = vlaneseq
        %v3633 = vshrl.u32 %v3632, 7
        %v3634 = vsub.s32 0, %v3633
        %v3635 = vrot.slane %v3620, %v3634
        %v3636 = vlaneseq
        %v3637 = vshrl.u32 %v3636, 7
        %v3638 = vsub.s32 0, %v3637
        %v3639 = vrot.slane %v3624, %v3638
        %v3640 = vlaneseq
        %v3641 = vshrl.u32 %v3640, 7
        %v3642 = vsub.s32 0, %v3641
        %v3643 = vrot.slane %v3628, %v3642
        %v3644 = vmul.f32 %v3613, %v3635
        %v3645 = vmul.f32 %v3613, %v3639
        %v3646 = vmul.f32 %v3613, %v3643
        %3650 = vrot.lane.b32.xlu0 %v3644, 95
        %v3651 = vpop.permute.xlu0 %3650
        %3652 = vrot.lane.b32.xlu0 %v3645, 95
        %v3653 = vpop.permute.xlu0 %3652
        %3654 = vrot.lane.b32.xlu0 %v3646, 95
        %v3655 = vpop.permute.xlu0 %3654
        %v3656 = vsel %vm1729, %v3651, %v3653
        %v3657 = vsel %vm1729, %v3653, %v3655
        %v3661 = vadd.f32 %v3453, %v3651
        %v3662 = vadd.f32 %v3454, %v3656
        %v3663 = vadd.f32 %v3455, %v3657
        %3664 = vset.pattern.permute.xlu0 65
        %3665 = vperm.xlu0 %3664, %v215
        %v3666 = vpop.permute.xlu0 %3665
        %v3668 = vlaneseq
        %v3669 = vshrl.u32 %v3668, 7
        %v3670 = vsub.s32 1, %v3669
        %v3671 = vrot.slane %v3609, %v3670
        %v3672 = vlaneseq
        %v3673 = vshrl.u32 %v3672, 7
        %v3674 = vsub.s32 5, %v3673
        %v3675 = vrot.slane %v3609, %v3674
        %v3676 = vlaneseq
        %v3677 = vshrl.u32 %v3676, 7
        %v3678 = vsub.s32 1, %v3677
        %v3679 = vrot.slane %v3610, %v3678
        %v3683 = vlaneseq
        %v3684 = vshrl.u32 %v3683, 7
        %v3685 = vsub.s32 1, %v3684
        %v3686 = vrot.slane %v3671, %v3685
        %v3687 = vlaneseq
        %v3688 = vshrl.u32 %v3687, 7
        %v3689 = vsub.s32 1, %v3688
        %v3690 = vrot.slane %v3675, %v3689
        %v3691 = vlaneseq
        %v3692 = vshrl.u32 %v3691, 7
        %v3693 = vsub.s32 1, %v3692
        %v3694 = vrot.slane %v3679, %v3693
        %v3695 = vmul.f32 %v3666, %v3686
        %v3696 = vmul.f32 %v3666, %v3690
        %v3697 = vmul.f32 %v3666, %v3694
        %3701 = vrot.lane.b32.xlu0 %v3695, 95
        %v3702 = vpop.permute.xlu0 %3701
        %3703 = vrot.lane.b32.xlu0 %v3696, 95
        %v3704 = vpop.permute.xlu0 %3703
        %3705 = vrot.lane.b32.xlu0 %v3697, 95
        %v3706 = vpop.permute.xlu0 %3705
        %v3707 = vsel %vm1729, %v3702, %v3704
        %v3708 = vsel %vm1729, %v3704, %v3706
        %v3712 = vadd.f32 %v3504, %v3702
        %v3713 = vadd.f32 %v3505, %v3707
        %v3714 = vadd.f32 %v3506, %v3708
        %3715 = vset.pattern.permute.xlu0 66
        %3716 = vperm.xlu0 %3715, %v215
        %v3717 = vpop.permute.xlu0 %3716
        %v3719 = vlaneseq
        %v3720 = vshrl.u32 %v3719, 7
        %v3721 = vsub.s32 2, %v3720
        %v3722 = vrot.slane %v3609, %v3721
        %v3723 = vlaneseq
        %v3724 = vshrl.u32 %v3723, 7
        %v3725 = vsub.s32 6, %v3724
        %v3726 = vrot.slane %v3609, %v3725
        %v3727 = vlaneseq
        %v3728 = vshrl.u32 %v3727, 7
        %v3729 = vsub.s32 2, %v3728
        %v3730 = vrot.slane %v3610, %v3729
        %v3734 = vlaneseq
        %v3735 = vshrl.u32 %v3734, 7
        %v3736 = vsub.s32 2, %v3735
        %v3737 = vrot.slane %v3722, %v3736
        %v3738 = vlaneseq
        %v3739 = vshrl.u32 %v3738, 7
        %v3740 = vsub.s32 2, %v3739
        %v3741 = vrot.slane %v3726, %v3740
        %v3742 = vlaneseq
        %v3743 = vshrl.u32 %v3742, 7
        %v3744 = vsub.s32 2, %v3743
        %v3745 = vrot.slane %v3730, %v3744
        %v3746 = vmul.f32 %v3717, %v3737
        %v3747 = vmul.f32 %v3717, %v3741
        %v3748 = vmul.f32 %v3717, %v3745
        %3752 = vrot.lane.b32.xlu0 %v3746, 95
        %v3753 = vpop.permute.xlu0 %3752
        %3754 = vrot.lane.b32.xlu0 %v3747, 95
        %v3755 = vpop.permute.xlu0 %3754
        %3756 = vrot.lane.b32.xlu0 %v3748, 95
        %v3757 = vpop.permute.xlu0 %3756
        %v3758 = vsel %vm1729, %v3753, %v3755
        %v3759 = vsel %vm1729, %v3755, %v3757
        %v3763 = vadd.f32 %v3555, %v3753
        %v3764 = vadd.f32 %v3556, %v3758
        %v3765 = vadd.f32 %v3557, %v3759
        %3766 = vset.pattern.permute.xlu0 67
        %3767 = vperm.xlu0 %3766, %v215
        %v3768 = vpop.permute.xlu0 %3767
        %v3770 = vlaneseq
        %v3771 = vshrl.u32 %v3770, 7
        %v3772 = vsub.s32 3, %v3771
        %v3773 = vrot.slane %v3609, %v3772
        %v3774 = vlaneseq
        %v3775 = vshrl.u32 %v3774, 7
        %v3776 = vsub.s32 7, %v3775
        %v3777 = vrot.slane %v3609, %v3776
        %v3778 = vlaneseq
        %v3779 = vshrl.u32 %v3778, 7
        %v3780 = vsub.s32 3, %v3779
        %v3781 = vrot.slane %v3610, %v3780
        %v3785 = vlaneseq
        %v3786 = vshrl.u32 %v3785, 7
        %v3787 = vsub.s32 3, %v3786
        %v3788 = vrot.slane %v3773, %v3787
        %v3789 = vlaneseq
        %v3790 = vshrl.u32 %v3789, 7
        %v3791 = vsub.s32 3, %v3790
        %v3792 = vrot.slane %v3777, %v3791
        %v3793 = vlaneseq
        %v3794 = vshrl.u32 %v3793, 7
        %v3795 = vsub.s32 3, %v3794
        %v3796 = vrot.slane %v3781, %v3795
        %v3797 = vmul.f32 %v3768, %v3788
        %v3798 = vmul.f32 %v3768, %v3792
        %v3799 = vmul.f32 %v3768, %v3796
        %3803 = vrot.lane.b32.xlu0 %v3797, 95
        %v3804 = vpop.permute.xlu0 %3803
        %3805 = vrot.lane.b32.xlu0 %v3798, 95
        %v3806 = vpop.permute.xlu0 %3805
        %3807 = vrot.lane.b32.xlu0 %v3799, 95
        %v3808 = vpop.permute.xlu0 %3807
        %v3809 = vsel %vm1729, %v3804, %v3806
        %v3810 = vsel %vm1729, %v3806, %v3808
        %v3814 = vadd.f32 %v3606, %v3804
        %v3815 = vadd.f32 %v3607, %v3809
        %v3816 = vadd.f32 %v3608, %v3810
        %v3817 = vld [vmem:[%s1891] ss:$8 sm:$0x3]
        %v3819 = vlaneseq
        %v3820 = vshrl.u32 %v3819, 7
        %v3821 = vsub.s32 0, %v3820
        %v3822 = vrot.slane %v3817, %v3821
        %v3823 = vlaneseq
        %v3824 = vshrl.u32 %v3823, 7
        %v3825 = vsub.s32 1, %v3824
        %v3826 = vrot.slane %v3817, %v3825
        %v3827 = vcombine.low %v3822, %v3826
        %3828 = vrot.lane.b32.xlu0 %v3827, 17
        %v3829 = vpop.permute.xlu0 %3828
        %v3830 = vrot.slane %v3829, 4
        %v3831 = vsel %vm1906, %v3830, %v3829
        %v3834 = vmul.f32 %v3609, %v3831
        %v3835 = vmul.f32 %v3610, %v3830
        %3836 = vset.pattern.permute.xlu0 68
        %3837 = vperm.xlu0 %3836, %v215
        %v3838 = vpop.permute.xlu0 %3837
        %v3842 = vlaneseq
        %v3843 = vshrl.u32 %v3842, 7
        %v3844 = vsub.s32 0, %v3843
        %v3845 = vrot.slane %v3834, %v3844
        %v3846 = vlaneseq
        %v3847 = vshrl.u32 %v3846, 7
        %v3848 = vsub.s32 4, %v3847
        %v3849 = vrot.slane %v3834, %v3848
        %v3850 = vlaneseq
        %v3851 = vshrl.u32 %v3850, 7
        %v3852 = vsub.s32 0, %v3851
        %v3853 = vrot.slane %v3835, %v3852
        %v3857 = vlaneseq
        %v3858 = vshrl.u32 %v3857, 7
        %v3859 = vsub.s32 0, %v3858
        %v3860 = vrot.slane %v3845, %v3859
        %v3861 = vlaneseq
        %v3862 = vshrl.u32 %v3861, 7
        %v3863 = vsub.s32 0, %v3862
        %v3864 = vrot.slane %v3849, %v3863
        %v3865 = vlaneseq
        %v3866 = vshrl.u32 %v3865, 7
        %v3867 = vsub.s32 0, %v3866
        %v3868 = vrot.slane %v3853, %v3867
        %v3869 = vmul.f32 %v3838, %v3860
        %v3870 = vmul.f32 %v3838, %v3864
        %v3871 = vmul.f32 %v3838, %v3868
        %3875 = vrot.lane.b32.xlu0 %v3869, 94
        %v3876 = vpop.permute.xlu0 %3875
        %3877 = vrot.lane.b32.xlu0 %v3870, 94
        %v3878 = vpop.permute.xlu0 %3877
        %3879 = vrot.lane.b32.xlu0 %v3871, 94
        %v3880 = vpop.permute.xlu0 %3879
        %v3881 = vsel %vm1957, %v3876, %v3878
        %v3882 = vsel %vm1957, %v3878, %v3880
        %v3886 = vadd.f32 %v3661, %v3876
        %v3887 = vadd.f32 %v3662, %v3881
        %v3888 = vadd.f32 %v3663, %v3882
        %3889 = vset.pattern.permute.xlu0 69
        %3890 = vperm.xlu0 %3889, %v215
        %v3891 = vpop.permute.xlu0 %3890
        %v3893 = vlaneseq
        %v3894 = vshrl.u32 %v3893, 7
        %v3895 = vsub.s32 1, %v3894
        %v3896 = vrot.slane %v3834, %v3895
        %v3897 = vlaneseq
        %v3898 = vshrl.u32 %v3897, 7
        %v3899 = vsub.s32 5, %v3898
        %v3900 = vrot.slane %v3834, %v3899
        %v3901 = vlaneseq
        %v3902 = vshrl.u32 %v3901, 7
        %v3903 = vsub.s32 1, %v3902
        %v3904 = vrot.slane %v3835, %v3903
        %v3908 = vlaneseq
        %v3909 = vshrl.u32 %v3908, 7
        %v3910 = vsub.s32 1, %v3909
        %v3911 = vrot.slane %v3896, %v3910
        %v3912 = vlaneseq
        %v3913 = vshrl.u32 %v3912, 7
        %v3914 = vsub.s32 1, %v3913
        %v3915 = vrot.slane %v3900, %v3914
        %v3916 = vlaneseq
        %v3917 = vshrl.u32 %v3916, 7
        %v3918 = vsub.s32 1, %v3917
        %v3919 = vrot.slane %v3904, %v3918
        %v3920 = vmul.f32 %v3891, %v3911
        %v3921 = vmul.f32 %v3891, %v3915
        %v3922 = vmul.f32 %v3891, %v3919
        %3926 = vrot.lane.b32.xlu0 %v3920, 94
        %v3927 = vpop.permute.xlu0 %3926
        %3928 = vrot.lane.b32.xlu0 %v3921, 94
        %v3929 = vpop.permute.xlu0 %3928
        %3930 = vrot.lane.b32.xlu0 %v3922, 94
        %v3931 = vpop.permute.xlu0 %3930
        %v3932 = vsel %vm1957, %v3927, %v3929
        %v3933 = vsel %vm1957, %v3929, %v3931
        %v3937 = vadd.f32 %v3712, %v3927
        %v3938 = vadd.f32 %v3713, %v3932
        %v3939 = vadd.f32 %v3714, %v3933
        %3940 = vset.pattern.permute.xlu0 70
        %3941 = vperm.xlu0 %3940, %v215
        %v3942 = vpop.permute.xlu0 %3941
        %v3944 = vlaneseq
        %v3945 = vshrl.u32 %v3944, 7
        %v3946 = vsub.s32 2, %v3945
        %v3947 = vrot.slane %v3834, %v3946
        %v3948 = vlaneseq
        %v3949 = vshrl.u32 %v3948, 7
        %v3950 = vsub.s32 6, %v3949
        %v3951 = vrot.slane %v3834, %v3950
        %v3952 = vlaneseq
        %v3953 = vshrl.u32 %v3952, 7
        %v3954 = vsub.s32 2, %v3953
        %v3955 = vrot.slane %v3835, %v3954
        %v3959 = vlaneseq
        %v3960 = vshrl.u32 %v3959, 7
        %v3961 = vsub.s32 2, %v3960
        %v3962 = vrot.slane %v3947, %v3961
        %v3963 = vlaneseq
        %v3964 = vshrl.u32 %v3963, 7
        %v3965 = vsub.s32 2, %v3964
        %v3966 = vrot.slane %v3951, %v3965
        %v3967 = vlaneseq
        %v3968 = vshrl.u32 %v3967, 7
        %v3969 = vsub.s32 2, %v3968
        %v3970 = vrot.slane %v3955, %v3969
        %v3971 = vmul.f32 %v3942, %v3962
        %v3972 = vmul.f32 %v3942, %v3966
        %v3973 = vmul.f32 %v3942, %v3970
        %3977 = vrot.lane.b32.xlu0 %v3971, 94
        %v3978 = vpop.permute.xlu0 %3977
        %3979 = vrot.lane.b32.xlu0 %v3972, 94
        %v3980 = vpop.permute.xlu0 %3979
        %3981 = vrot.lane.b32.xlu0 %v3973, 94
        %v3982 = vpop.permute.xlu0 %3981
        %v3983 = vsel %vm1957, %v3978, %v3980
        %v3984 = vsel %vm1957, %v3980, %v3982
        %v3988 = vadd.f32 %v3763, %v3978
        %v3989 = vadd.f32 %v3764, %v3983
        %v3990 = vadd.f32 %v3765, %v3984
        %3991 = vset.pattern.permute.xlu0 71
        %3992 = vperm.xlu0 %3991, %v215
        %v3993 = vpop.permute.xlu0 %3992
        %v3995 = vlaneseq
        %v3996 = vshrl.u32 %v3995, 7
        %v3997 = vsub.s32 3, %v3996
        %v3998 = vrot.slane %v3834, %v3997
        %v3999 = vlaneseq
        %v4000 = vshrl.u32 %v3999, 7
        %v4001 = vsub.s32 7, %v4000
        %v4002 = vrot.slane %v3834, %v4001
        %v4003 = vlaneseq
        %v4004 = vshrl.u32 %v4003, 7
        %v4005 = vsub.s32 3, %v4004
        %v4006 = vrot.slane %v3835, %v4005
        %v4010 = vlaneseq
        %v4011 = vshrl.u32 %v4010, 7
        %v4012 = vsub.s32 3, %v4011
        %v4013 = vrot.slane %v3998, %v4012
        %v4014 = vlaneseq
        %v4015 = vshrl.u32 %v4014, 7
        %v4016 = vsub.s32 3, %v4015
        %v4017 = vrot.slane %v4002, %v4016
        %v4018 = vlaneseq
        %v4019 = vshrl.u32 %v4018, 7
        %v4020 = vsub.s32 3, %v4019
        %v4021 = vrot.slane %v4006, %v4020
        %v4022 = vmul.f32 %v3993, %v4013
        %v4023 = vmul.f32 %v3993, %v4017
        %v4024 = vmul.f32 %v3993, %v4021
        %4028 = vrot.lane.b32.xlu0 %v4022, 94
        %v4029 = vpop.permute.xlu0 %4028
        %4030 = vrot.lane.b32.xlu0 %v4023, 94
        %v4031 = vpop.permute.xlu0 %4030
        %4032 = vrot.lane.b32.xlu0 %v4024, 94
        %v4033 = vpop.permute.xlu0 %4032
        %v4034 = vsel %vm1957, %v4029, %v4031
        %v4035 = vsel %vm1957, %v4031, %v4033
        %v4039 = vadd.f32 %v3814, %v4029
        %v4040 = vadd.f32 %v3815, %v4034
        %v4041 = vadd.f32 %v3816, %v4035
        %v4042 = vadd.f32 %v3886, %v3937
        %v4043 = vadd.f32 %v3887, %v3938
        %v4044 = vadd.f32 %v3888, %v3939
        %v4045 = vadd.f32 %v3988, %v4039
        %v4046 = vadd.f32 %v3989, %v4040
        %v4047 = vadd.f32 %v3990, %v4041
        %v4048 = vadd.f32 %v4042, %v4045
        %v4049 = vadd.f32 %v4043, %v4046
        %v4050 = vadd.f32 %v4044, %v4047
        %4051 = vset.pattern.permute.xlu0 109
        %4052 = vperm.xlu0 %4051, %v215
        %v4053 = vpop.permute.xlu0 %4052
        %v4055 = vadd.f32 %v4048, %v4053
        %v4056 = vadd.f32 %v4049, %v4053
        %v4057 = vadd.f32 %v4050, %v4053
        %v4058 = vadd.f32 %v4055, %v2145
        %v4059 = vadd.f32 %v4056, %v2146
        %v4060 = vadd.f32 %v4057, %v2147
        %4061 = vset.pattern.permute.xlu0 115
        %4062 = vperm.xlu0 %4061, %v215
        %v4063 = vpop.permute.xlu0 %4062
        %v4065 = vmul.f32 %v4058, %v4063
        %v4066 = vmul.f32 %v4059, %v4063
        %v4067 = vmul.f32 %v4060, %v4063
        %4068 = vset.pattern.permute.xlu0 116
        %4069 = vperm.xlu0 %4068, %v215
        %v4070 = vpop.permute.xlu0 %4069
        %v4072 = vadd.f32 %v4065, %v4070
        %v4073 = vadd.f32 %v4066, %v4070
        %v4074 = vadd.f32 %v4067, %v4070
        %vm4075 = vcmp.ge.f32.partialorder %v4072, 0.0
        %vm4076 = vcmp.ge.f32.partialorder %v4073, 0.0
        %vm4077 = vcmp.ge.f32.partialorder %v4074, 0.0
        %v4078 = vmul.f32 %v4072, 0.01
        %v4079 = vmul.f32 %v4073, 0.01
        %v4080 = vmul.f32 %v4074, 0.01
        %v4081 = vsel %vm4075, %v4072, %v4078
        %v4082 = vsel %vm4076, %v4073, %v4079
        %v4083 = vsel %vm4077, %v4074, %v4080
        %v4087 = vcombine.low %v4081, %v4082
        %4088 = vrot.lane.b32.xlu0 %v4087, 17
        %v4089 = vpop.permute.xlu0 %4088
        %4090 = vrot.lane.b32.xlu0 %v4083, 17
        %v4091 = vpop.permute.xlu0 %4090
        %v4092 = vrot.slane %v4089, 4
        %v4093 = vrot.slane %v4091, 4
        %v4094 = vsel %vm2181, %v4092, %v4093
        %v4095 = vsel %vm1906, %v4089, %v4094
        %4097 = vst [vmem:[#allocation2 + $0x4] sm:$0xff] %v4095
        %v4098 = vld [vmem:[#allocation2] sm:$0xff]
        %v4099 = vld [vmem:[#allocation2 + $0x8] sm:$0xf]
        %v4100 = vld [vmem:[%s1] ss:$8 sm:$0x3]
        %v4102 = vlaneseq
        %v4103 = vshrl.u32 %v4102, 7
        %v4104 = vsub.s32 0, %v4103
        %v4105 = vrot.slane %v4100, %v4104
        %v4106 = vlaneseq
        %v4107 = vshrl.u32 %v4106, 7
        %v4108 = vsub.s32 1, %v4107
        %v4109 = vrot.slane %v4100, %v4108
        %v4110 = vcombine.low %v4105, %v4109
        %4111 = vrot.lane.b32.xlu0 %v4110, 111
        %v4112 = vpop.permute.xlu0 %4111
        %v4113 = vrot.slane %v4112, 4
        %v4114 = vsel %vm262, %v4113, %v4112
        %v4117 = vmul.f32 %v4098, %v4114
        %v4118 = vmul.f32 %v4099, %v4113
        %4119 = vset.pattern.permute.xlu0 72
        %4120 = vperm.xlu0 %4119, %v215
        %v4121 = vpop.permute.xlu0 %4120
        %v4125 = vlaneseq
        %v4126 = vshrl.u32 %v4125, 7
        %v4127 = vsub.s32 0, %v4126
        %v4128 = vrot.slane %v4117, %v4127
        %v4129 = vlaneseq
        %v4130 = vshrl.u32 %v4129, 7
        %v4131 = vsub.s32 4, %v4130
        %v4132 = vrot.slane %v4117, %v4131
        %v4133 = vlaneseq
        %v4134 = vshrl.u32 %v4133, 7
        %v4135 = vsub.s32 0, %v4134
        %v4136 = vrot.slane %v4118, %v4135
        %v4140 = vlaneseq
        %v4141 = vshrl.u32 %v4140, 7
        %v4142 = vsub.s32 0, %v4141
        %v4143 = vrot.slane %v4128, %v4142
        %v4144 = vlaneseq
        %v4145 = vshrl.u32 %v4144, 7
        %v4146 = vsub.s32 0, %v4145
        %v4147 = vrot.slane %v4132, %v4146
        %v4148 = vlaneseq
        %v4149 = vshrl.u32 %v4148, 7
        %v4150 = vsub.s32 0, %v4149
        %v4151 = vrot.slane %v4136, %v4150
        %v4152 = vmul.f32 %v4121, %v4143
        %v4153 = vmul.f32 %v4121, %v4147
        %v4154 = vmul.f32 %v4121, %v4151
        %4155 = vset.pattern.permute.xlu0 73
        %4156 = vperm.xlu0 %4155, %v215
        %v4157 = vpop.permute.xlu0 %4156
        %v4159 = vlaneseq
        %v4160 = vshrl.u32 %v4159, 7
        %v4161 = vsub.s32 1, %v4160
        %v4162 = vrot.slane %v4117, %v4161
        %v4163 = vlaneseq
        %v4164 = vshrl.u32 %v4163, 7
        %v4165 = vsub.s32 5, %v4164
        %v4166 = vrot.slane %v4117, %v4165
        %v4167 = vlaneseq
        %v4168 = vshrl.u32 %v4167, 7
        %v4169 = vsub.s32 1, %v4168
        %v4170 = vrot.slane %v4118, %v4169
        %v4174 = vlaneseq
        %v4175 = vshrl.u32 %v4174, 7
        %v4176 = vsub.s32 1, %v4175
        %v4177 = vrot.slane %v4162, %v4176
        %v4178 = vlaneseq
        %v4179 = vshrl.u32 %v4178, 7
        %v4180 = vsub.s32 1, %v4179
        %v4181 = vrot.slane %v4166, %v4180
        %v4182 = vlaneseq
        %v4183 = vshrl.u32 %v4182, 7
        %v4184 = vsub.s32 1, %v4183
        %v4185 = vrot.slane %v4170, %v4184
        %v4186 = vmul.f32 %v4157, %v4177
        %v4187 = vmul.f32 %v4157, %v4181
        %v4188 = vmul.f32 %v4157, %v4185
        %4189 = vset.pattern.permute.xlu0 74
        %4190 = vperm.xlu0 %4189, %v215
        %v4191 = vpop.permute.xlu0 %4190
        %v4193 = vlaneseq
        %v4194 = vshrl.u32 %v4193, 7
        %v4195 = vsub.s32 2, %v4194
        %v4196 = vrot.slane %v4117, %v4195
        %v4197 = vlaneseq
        %v4198 = vshrl.u32 %v4197, 7
        %v4199 = vsub.s32 6, %v4198
        %v4200 = vrot.slane %v4117, %v4199
        %v4201 = vlaneseq
        %v4202 = vshrl.u32 %v4201, 7
        %v4203 = vsub.s32 2, %v4202
        %v4204 = vrot.slane %v4118, %v4203
        %v4208 = vlaneseq
        %v4209 = vshrl.u32 %v4208, 7
        %v4210 = vsub.s32 2, %v4209
        %v4211 = vrot.slane %v4196, %v4210
        %v4212 = vlaneseq
        %v4213 = vshrl.u32 %v4212, 7
        %v4214 = vsub.s32 2, %v4213
        %v4215 = vrot.slane %v4200, %v4214
        %v4216 = vlaneseq
        %v4217 = vshrl.u32 %v4216, 7
        %v4218 = vsub.s32 2, %v4217
        %v4219 = vrot.slane %v4204, %v4218
        %v4220 = vmul.f32 %v4191, %v4211
        %v4221 = vmul.f32 %v4191, %v4215
        %v4222 = vmul.f32 %v4191, %v4219
        %4223 = vset.pattern.permute.xlu0 75
        %4224 = vperm.xlu0 %4223, %v215
        %v4225 = vpop.permute.xlu0 %4224
        %v4227 = vlaneseq
        %v4228 = vshrl.u32 %v4227, 7
        %v4229 = vsub.s32 3, %v4228
        %v4230 = vrot.slane %v4117, %v4229
        %v4231 = vlaneseq
        %v4232 = vshrl.u32 %v4231, 7
        %v4233 = vsub.s32 7, %v4232
        %v4234 = vrot.slane %v4117, %v4233
        %v4235 = vlaneseq
        %v4236 = vshrl.u32 %v4235, 7
        %v4237 = vsub.s32 3, %v4236
        %v4238 = vrot.slane %v4118, %v4237
        %v4242 = vlaneseq
        %v4243 = vshrl.u32 %v4242, 7
        %v4244 = vsub.s32 3, %v4243
        %v4245 = vrot.slane %v4230, %v4244
        %v4246 = vlaneseq
        %v4247 = vshrl.u32 %v4246, 7
        %v4248 = vsub.s32 3, %v4247
        %v4249 = vrot.slane %v4234, %v4248
        %v4250 = vlaneseq
        %v4251 = vshrl.u32 %v4250, 7
        %v4252 = vsub.s32 3, %v4251
        %v4253 = vrot.slane %v4238, %v4252
        %v4254 = vmul.f32 %v4225, %v4245
        %v4255 = vmul.f32 %v4225, %v4249
        %v4256 = vmul.f32 %v4225, %v4253
        %v4257 = vld [vmem:[#allocation2] sm:$0xff]
        %v4258 = vld [vmem:[#allocation2 + $0x8] sm:$0xf]
        %4259 = vset.pattern.permute.xlu0 76
        %4260 = vperm.xlu0 %4259, %v215
        %v4261 = vpop.permute.xlu0 %4260
        %v4265 = vlaneseq
        %v4266 = vshrl.u32 %v4265, 7
        %v4267 = vsub.s32 0, %v4266
        %v4268 = vrot.slane %v4257, %v4267
        %v4269 = vlaneseq
        %v4270 = vshrl.u32 %v4269, 7
        %v4271 = vsub.s32 4, %v4270
        %v4272 = vrot.slane %v4257, %v4271
        %v4273 = vlaneseq
        %v4274 = vshrl.u32 %v4273, 7
        %v4275 = vsub.s32 0, %v4274
        %v4276 = vrot.slane %v4258, %v4275
        %v4280 = vlaneseq
        %v4281 = vshrl.u32 %v4280, 7
        %v4282 = vsub.s32 0, %v4281
        %v4283 = vrot.slane %v4268, %v4282
        %v4284 = vlaneseq
        %v4285 = vshrl.u32 %v4284, 7
        %v4286 = vsub.s32 0, %v4285
        %v4287 = vrot.slane %v4272, %v4286
        %v4288 = vlaneseq
        %v4289 = vshrl.u32 %v4288, 7
        %v4290 = vsub.s32 0, %v4289
        %v4291 = vrot.slane %v4276, %v4290
        %v4292 = vmul.f32 %v4261, %v4283
        %v4293 = vmul.f32 %v4261, %v4287
        %v4294 = vmul.f32 %v4261, %v4291
        %4298 = vrot.lane.b32.xlu0 %v4292, 127
        %v4299 = vpop.permute.xlu0 %4298
        %4300 = vrot.lane.b32.xlu0 %v4293, 127
        %v4301 = vpop.permute.xlu0 %4300
        %4302 = vrot.lane.b32.xlu0 %v4294, 127
        %v4303 = vpop.permute.xlu0 %4302
        %v4304 = vsel %vm453, %v4299, %v4301
        %v4305 = vsel %vm453, %v4301, %v4303
        %v4309 = vadd.f32 %v4152, %v4304
        %v4310 = vadd.f32 %v4153, %v4305
        %v4311 = vadd.f32 %v4154, %v4303
        %4312 = vset.pattern.permute.xlu0 77
        %4313 = vperm.xlu0 %4312, %v215
        %v4314 = vpop.permute.xlu0 %4313
        %v4316 = vlaneseq
        %v4317 = vshrl.u32 %v4316, 7
        %v4318 = vsub.s32 1, %v4317
        %v4319 = vrot.slane %v4257, %v4318
        %v4320 = vlaneseq
        %v4321 = vshrl.u32 %v4320, 7
        %v4322 = vsub.s32 5, %v4321
        %v4323 = vrot.slane %v4257, %v4322
        %v4324 = vlaneseq
        %v4325 = vshrl.u32 %v4324, 7
        %v4326 = vsub.s32 1, %v4325
        %v4327 = vrot.slane %v4258, %v4326
        %v4331 = vlaneseq
        %v4332 = vshrl.u32 %v4331, 7
        %v4333 = vsub.s32 1, %v4332
        %v4334 = vrot.slane %v4319, %v4333
        %v4335 = vlaneseq
        %v4336 = vshrl.u32 %v4335, 7
        %v4337 = vsub.s32 1, %v4336
        %v4338 = vrot.slane %v4323, %v4337
        %v4339 = vlaneseq
        %v4340 = vshrl.u32 %v4339, 7
        %v4341 = vsub.s32 1, %v4340
        %v4342 = vrot.slane %v4327, %v4341
        %v4343 = vmul.f32 %v4314, %v4334
        %v4344 = vmul.f32 %v4314, %v4338
        %v4345 = vmul.f32 %v4314, %v4342
        %4349 = vrot.lane.b32.xlu0 %v4343, 127
        %v4350 = vpop.permute.xlu0 %4349
        %4351 = vrot.lane.b32.xlu0 %v4344, 127
        %v4352 = vpop.permute.xlu0 %4351
        %4353 = vrot.lane.b32.xlu0 %v4345, 127
        %v4354 = vpop.permute.xlu0 %4353
        %v4355 = vsel %vm453, %v4350, %v4352
        %v4356 = vsel %vm453, %v4352, %v4354
        %v4360 = vadd.f32 %v4186, %v4355
        %v4361 = vadd.f32 %v4187, %v4356
        %v4362 = vadd.f32 %v4188, %v4354
        %4363 = vset.pattern.permute.xlu0 78
        %4364 = vperm.xlu0 %4363, %v215
        %v4365 = vpop.permute.xlu0 %4364
        %v4367 = vlaneseq
        %v4368 = vshrl.u32 %v4367, 7
        %v4369 = vsub.s32 2, %v4368
        %v4370 = vrot.slane %v4257, %v4369
        %v4371 = vlaneseq
        %v4372 = vshrl.u32 %v4371, 7
        %v4373 = vsub.s32 6, %v4372
        %v4374 = vrot.slane %v4257, %v4373
        %v4375 = vlaneseq
        %v4376 = vshrl.u32 %v4375, 7
        %v4377 = vsub.s32 2, %v4376
        %v4378 = vrot.slane %v4258, %v4377
        %v4382 = vlaneseq
        %v4383 = vshrl.u32 %v4382, 7
        %v4384 = vsub.s32 2, %v4383
        %v4385 = vrot.slane %v4370, %v4384
        %v4386 = vlaneseq
        %v4387 = vshrl.u32 %v4386, 7
        %v4388 = vsub.s32 2, %v4387
        %v4389 = vrot.slane %v4374, %v4388
        %v4390 = vlaneseq
        %v4391 = vshrl.u32 %v4390, 7
        %v4392 = vsub.s32 2, %v4391
        %v4393 = vrot.slane %v4378, %v4392
        %v4394 = vmul.f32 %v4365, %v4385
        %v4395 = vmul.f32 %v4365, %v4389
        %v4396 = vmul.f32 %v4365, %v4393
        %4400 = vrot.lane.b32.xlu0 %v4394, 127
        %v4401 = vpop.permute.xlu0 %4400
        %4402 = vrot.lane.b32.xlu0 %v4395, 127
        %v4403 = vpop.permute.xlu0 %4402
        %4404 = vrot.lane.b32.xlu0 %v4396, 127
        %v4405 = vpop.permute.xlu0 %4404
        %v4406 = vsel %vm453, %v4401, %v4403
        %v4407 = vsel %vm453, %v4403, %v4405
        %v4411 = vadd.f32 %v4220, %v4406
        %v4412 = vadd.f32 %v4221, %v4407
        %v4413 = vadd.f32 %v4222, %v4405
        %4414 = vset.pattern.permute.xlu0 79
        %4415 = vperm.xlu0 %4414, %v215
        %v4416 = vpop.permute.xlu0 %4415
        %v4418 = vlaneseq
        %v4419 = vshrl.u32 %v4418, 7
        %v4420 = vsub.s32 3, %v4419
        %v4421 = vrot.slane %v4257, %v4420
        %v4422 = vlaneseq
        %v4423 = vshrl.u32 %v4422, 7
        %v4424 = vsub.s32 7, %v4423
        %v4425 = vrot.slane %v4257, %v4424
        %v4426 = vlaneseq
        %v4427 = vshrl.u32 %v4426, 7
        %v4428 = vsub.s32 3, %v4427
        %v4429 = vrot.slane %v4258, %v4428
        %v4433 = vlaneseq
        %v4434 = vshrl.u32 %v4433, 7
        %v4435 = vsub.s32 3, %v4434
        %v4436 = vrot.slane %v4421, %v4435
        %v4437 = vlaneseq
        %v4438 = vshrl.u32 %v4437, 7
        %v4439 = vsub.s32 3, %v4438
        %v4440 = vrot.slane %v4425, %v4439
        %v4441 = vlaneseq
        %v4442 = vshrl.u32 %v4441, 7
        %v4443 = vsub.s32 3, %v4442
        %v4444 = vrot.slane %v4429, %v4443
        %v4445 = vmul.f32 %v4416, %v4436
        %v4446 = vmul.f32 %v4416, %v4440
        %v4447 = vmul.f32 %v4416, %v4444
        %4451 = vrot.lane.b32.xlu0 %v4445, 127
        %v4452 = vpop.permute.xlu0 %4451
        %4453 = vrot.lane.b32.xlu0 %v4446, 127
        %v4454 = vpop.permute.xlu0 %4453
        %4455 = vrot.lane.b32.xlu0 %v4447, 127
        %v4456 = vpop.permute.xlu0 %4455
        %v4457 = vsel %vm453, %v4452, %v4454
        %v4458 = vsel %vm453, %v4454, %v4456
        %v4462 = vadd.f32 %v4254, %v4457
        %v4463 = vadd.f32 %v4255, %v4458
        %v4464 = vadd.f32 %v4256, %v4456
        %v4465 = vld [vmem:[%s615] ss:$8 sm:$0x3]
        %v4467 = vlaneseq
        %v4468 = vshrl.u32 %v4467, 7
        %v4469 = vsub.s32 0, %v4468
        %v4470 = vrot.slane %v4465, %v4469
        %v4471 = vlaneseq
        %v4472 = vshrl.u32 %v4471, 7
        %v4473 = vsub.s32 1, %v4472
        %v4474 = vrot.slane %v4465, %v4473
        %v4475 = vcombine.low %v4470, %v4474
        %4476 = vrot.lane.b32.xlu0 %v4475, 113
        %v4477 = vpop.permute.xlu0 %4476
        %v4478 = vrot.slane %v4477, 4
        %v4479 = vsel %vm630, %v4478, %v4477
        %v4482 = vmul.f32 %v4257, %v4479
        %v4483 = vmul.f32 %v4258, %v4478
        %4484 = vset.pattern.permute.xlu0 80
        %4485 = vperm.xlu0 %4484, %v215
        %v4486 = vpop.permute.xlu0 %4485
        %v4490 = vlaneseq
        %v4491 = vshrl.u32 %v4490, 7
        %v4492 = vsub.s32 0, %v4491
        %v4493 = vrot.slane %v4482, %v4492
        %v4494 = vlaneseq
        %v4495 = vshrl.u32 %v4494, 7
        %v4496 = vsub.s32 4, %v4495
        %v4497 = vrot.slane %v4482, %v4496
        %v4498 = vlaneseq
        %v4499 = vshrl.u32 %v4498, 7
        %v4500 = vsub.s32 0, %v4499
        %v4501 = vrot.slane %v4483, %v4500
        %v4505 = vlaneseq
        %v4506 = vshrl.u32 %v4505, 7
        %v4507 = vsub.s32 0, %v4506
        %v4508 = vrot.slane %v4493, %v4507
        %v4509 = vlaneseq
        %v4510 = vshrl.u32 %v4509, 7
        %v4511 = vsub.s32 0, %v4510
        %v4512 = vrot.slane %v4497, %v4511
        %v4513 = vlaneseq
        %v4514 = vshrl.u32 %v4513, 7
        %v4515 = vsub.s32 0, %v4514
        %v4516 = vrot.slane %v4501, %v4515
        %v4517 = vmul.f32 %v4486, %v4508
        %v4518 = vmul.f32 %v4486, %v4512
        %v4519 = vmul.f32 %v4486, %v4516
        %4523 = vrot.lane.b32.xlu0 %v4517, 126
        %v4524 = vpop.permute.xlu0 %4523
        %4525 = vrot.lane.b32.xlu0 %v4518, 126
        %v4526 = vpop.permute.xlu0 %4525
        %4527 = vrot.lane.b32.xlu0 %v4519, 126
        %v4528 = vpop.permute.xlu0 %4527
        %v4529 = vsel %vm681, %v4524, %v4526
        %v4530 = vsel %vm681, %v4526, %v4528
        %v4534 = vadd.f32 %v4309, %v4529
        %v4535 = vadd.f32 %v4310, %v4530
        %v4536 = vadd.f32 %v4311, %v4528
        %4537 = vset.pattern.permute.xlu0 81
        %4538 = vperm.xlu0 %4537, %v215
        %v4539 = vpop.permute.xlu0 %4538
        %v4541 = vlaneseq
        %v4542 = vshrl.u32 %v4541, 7
        %v4543 = vsub.s32 1, %v4542
        %v4544 = vrot.slane %v4482, %v4543
        %v4545 = vlaneseq
        %v4546 = vshrl.u32 %v4545, 7
        %v4547 = vsub.s32 5, %v4546
        %v4548 = vrot.slane %v4482, %v4547
        %v4549 = vlaneseq
        %v4550 = vshrl.u32 %v4549, 7
        %v4551 = vsub.s32 1, %v4550
        %v4552 = vrot.slane %v4483, %v4551
        %v4556 = vlaneseq
        %v4557 = vshrl.u32 %v4556, 7
        %v4558 = vsub.s32 1, %v4557
        %v4559 = vrot.slane %v4544, %v4558
        %v4560 = vlaneseq
        %v4561 = vshrl.u32 %v4560, 7
        %v4562 = vsub.s32 1, %v4561
        %v4563 = vrot.slane %v4548, %v4562
        %v4564 = vlaneseq
        %v4565 = vshrl.u32 %v4564, 7
        %v4566 = vsub.s32 1, %v4565
        %v4567 = vrot.slane %v4552, %v4566
        %v4568 = vmul.f32 %v4539, %v4559
        %v4569 = vmul.f32 %v4539, %v4563
        %v4570 = vmul.f32 %v4539, %v4567
        %4574 = vrot.lane.b32.xlu0 %v4568, 126
        %v4575 = vpop.permute.xlu0 %4574
        %4576 = vrot.lane.b32.xlu0 %v4569, 126
        %v4577 = vpop.permute.xlu0 %4576
        %4578 = vrot.lane.b32.xlu0 %v4570, 126
        %v4579 = vpop.permute.xlu0 %4578
        %v4580 = vsel %vm681, %v4575, %v4577
        %v4581 = vsel %vm681, %v4577, %v4579
        %v4585 = vadd.f32 %v4360, %v4580
        %v4586 = vadd.f32 %v4361, %v4581
        %v4587 = vadd.f32 %v4362, %v4579
        %4588 = vset.pattern.permute.xlu0 82
        %4589 = vperm.xlu0 %4588, %v215
        %v4590 = vpop.permute.xlu0 %4589
        %v4592 = vlaneseq
        %v4593 = vshrl.u32 %v4592, 7
        %v4594 = vsub.s32 2, %v4593
        %v4595 = vrot.slane %v4482, %v4594
        %v4596 = vlaneseq
        %v4597 = vshrl.u32 %v4596, 7
        %v4598 = vsub.s32 6, %v4597
        %v4599 = vrot.slane %v4482, %v4598
        %v4600 = vlaneseq
        %v4601 = vshrl.u32 %v4600, 7
        %v4602 = vsub.s32 2, %v4601
        %v4603 = vrot.slane %v4483, %v4602
        %v4607 = vlaneseq
        %v4608 = vshrl.u32 %v4607, 7
        %v4609 = vsub.s32 2, %v4608
        %v4610 = vrot.slane %v4595, %v4609
        %v4611 = vlaneseq
        %v4612 = vshrl.u32 %v4611, 7
        %v4613 = vsub.s32 2, %v4612
        %v4614 = vrot.slane %v4599, %v4613
        %v4615 = vlaneseq
        %v4616 = vshrl.u32 %v4615, 7
        %v4617 = vsub.s32 2, %v4616
        %v4618 = vrot.slane %v4603, %v4617
        %v4619 = vmul.f32 %v4590, %v4610
        %v4620 = vmul.f32 %v4590, %v4614
        %v4621 = vmul.f32 %v4590, %v4618
        %4625 = vrot.lane.b32.xlu0 %v4619, 126
        %v4626 = vpop.permute.xlu0 %4625
        %4627 = vrot.lane.b32.xlu0 %v4620, 126
        %v4628 = vpop.permute.xlu0 %4627
        %4629 = vrot.lane.b32.xlu0 %v4621, 126
        %v4630 = vpop.permute.xlu0 %4629
        %v4631 = vsel %vm681, %v4626, %v4628
        %v4632 = vsel %vm681, %v4628, %v4630
        %v4636 = vadd.f32 %v4411, %v4631
        %v4637 = vadd.f32 %v4412, %v4632
        %v4638 = vadd.f32 %v4413, %v4630
        %4639 = vset.pattern.permute.xlu0 83
        %4640 = vperm.xlu0 %4639, %v215
        %v4641 = vpop.permute.xlu0 %4640
        %v4643 = vlaneseq
        %v4644 = vshrl.u32 %v4643, 7
        %v4645 = vsub.s32 3, %v4644
        %v4646 = vrot.slane %v4482, %v4645
        %v4647 = vlaneseq
        %v4648 = vshrl.u32 %v4647, 7
        %v4649 = vsub.s32 7, %v4648
        %v4650 = vrot.slane %v4482, %v4649
        %v4651 = vlaneseq
        %v4652 = vshrl.u32 %v4651, 7
        %v4653 = vsub.s32 3, %v4652
        %v4654 = vrot.slane %v4483, %v4653
        %v4658 = vlaneseq
        %v4659 = vshrl.u32 %v4658, 7
        %v4660 = vsub.s32 3, %v4659
        %v4661 = vrot.slane %v4646, %v4660
        %v4662 = vlaneseq
        %v4663 = vshrl.u32 %v4662, 7
        %v4664 = vsub.s32 3, %v4663
        %v4665 = vrot.slane %v4650, %v4664
        %v4666 = vlaneseq
        %v4667 = vshrl.u32 %v4666, 7
        %v4668 = vsub.s32 3, %v4667
        %v4669 = vrot.slane %v4654, %v4668
        %v4670 = vmul.f32 %v4641, %v4661
        %v4671 = vmul.f32 %v4641, %v4665
        %v4672 = vmul.f32 %v4641, %v4669
        %4676 = vrot.lane.b32.xlu0 %v4670, 126
        %v4677 = vpop.permute.xlu0 %4676
        %4678 = vrot.lane.b32.xlu0 %v4671, 126
        %v4679 = vpop.permute.xlu0 %4678
        %4680 = vrot.lane.b32.xlu0 %v4672, 126
        %v4681 = vpop.permute.xlu0 %4680
        %v4682 = vsel %vm681, %v4677, %v4679
        %v4683 = vsel %vm681, %v4679, %v4681
        %v4687 = vadd.f32 %v4462, %v4682
        %v4688 = vadd.f32 %v4463, %v4683
        %v4689 = vadd.f32 %v4464, %v4681
        %v4690 = vld [vmem:[#allocation2] sm:$0xff]
        %v4691 = vld [vmem:[#allocation2 + $0x8] sm:$0xf]
        %v4692 = vld [vmem:[%s845] ss:$8 sm:$0x3]
        %v4694 = vlaneseq
        %v4695 = vshrl.u32 %v4694, 7
        %v4696 = vsub.s32 0, %v4695
        %v4697 = vrot.slane %v4692, %v4696
        %v4698 = vlaneseq
        %v4699 = vshrl.u32 %v4698, 7
        %v4700 = vsub.s32 1, %v4699
        %v4701 = vrot.slane %v4692, %v4700
        %v4702 = vcombine.low %v4697, %v4701
        %4703 = vrot.lane.b32.xlu0 %v4702, 127
        %v4704 = vpop.permute.xlu0 %4703
        %v4705 = vrot.slane %v4704, 4
        %v4706 = vsel %vm453, %v4705, %v4704
        %v4709 = vmul.f32 %v4690, %v4706
        %v4710 = vmul.f32 %v4691, %v4705
        %4711 = vset.pattern.permute.xlu0 84
        %4712 = vperm.xlu0 %4711, %v215
        %v4713 = vpop.permute.xlu0 %4712
        %v4717 = vlaneseq
        %v4718 = vshrl.u32 %v4717, 7
        %v4719 = vsub.s32 0, %v4718
        %v4720 = vrot.slane %v4709, %v4719
        %v4721 = vlaneseq
        %v4722 = vshrl.u32 %v4721, 7
        %v4723 = vsub.s32 4, %v4722
        %v4724 = vrot.slane %v4709, %v4723
        %v4725 = vlaneseq
        %v4726 = vshrl.u32 %v4725, 7
        %v4727 = vsub.s32 0, %v4726
        %v4728 = vrot.slane %v4710, %v4727
        %v4732 = vlaneseq
        %v4733 = vshrl.u32 %v4732, 7
        %v4734 = vsub.s32 0, %v4733
        %v4735 = vrot.slane %v4720, %v4734
        %v4736 = vlaneseq
        %v4737 = vshrl.u32 %v4736, 7
        %v4738 = vsub.s32 0, %v4737
        %v4739 = vrot.slane %v4724, %v4738
        %v4740 = vlaneseq
        %v4741 = vshrl.u32 %v4740, 7
        %v4742 = vsub.s32 0, %v4741
        %v4743 = vrot.slane %v4728, %v4742
        %v4744 = vmul.f32 %v4713, %v4735
        %v4745 = vmul.f32 %v4713, %v4739
        %v4746 = vmul.f32 %v4713, %v4743
        %4750 = vrot.lane.b32.xlu0 %v4744, 112
        %v4751 = vpop.permute.xlu0 %4750
        %4752 = vrot.lane.b32.xlu0 %v4745, 112
        %v4753 = vpop.permute.xlu0 %4752
        %4754 = vrot.lane.b32.xlu0 %v4746, 112
        %v4755 = vpop.permute.xlu0 %4754
        %v4756 = vsel %vm910, %v4751, %v4753
        %v4757 = vsel %vm910, %v4753, %v4755
        %v4761 = vadd.f32 %v4534, %v4756
        %v4762 = vadd.f32 %v4535, %v4757
        %v4763 = vadd.f32 %v4536, %v4755
        %4764 = vset.pattern.permute.xlu0 85
        %4765 = vperm.xlu0 %4764, %v215
        %v4766 = vpop.permute.xlu0 %4765
        %v4768 = vlaneseq
        %v4769 = vshrl.u32 %v4768, 7
        %v4770 = vsub.s32 1, %v4769
        %v4771 = vrot.slane %v4709, %v4770
        %v4772 = vlaneseq
        %v4773 = vshrl.u32 %v4772, 7
        %v4774 = vsub.s32 5, %v4773
        %v4775 = vrot.slane %v4709, %v4774
        %v4776 = vlaneseq
        %v4777 = vshrl.u32 %v4776, 7
        %v4778 = vsub.s32 1, %v4777
        %v4779 = vrot.slane %v4710, %v4778
        %v4783 = vlaneseq
        %v4784 = vshrl.u32 %v4783, 7
        %v4785 = vsub.s32 1, %v4784
        %v4786 = vrot.slane %v4771, %v4785
        %v4787 = vlaneseq
        %v4788 = vshrl.u32 %v4787, 7
        %v4789 = vsub.s32 1, %v4788
        %v4790 = vrot.slane %v4775, %v4789
        %v4791 = vlaneseq
        %v4792 = vshrl.u32 %v4791, 7
        %v4793 = vsub.s32 1, %v4792
        %v4794 = vrot.slane %v4779, %v4793
        %v4795 = vmul.f32 %v4766, %v4786
        %v4796 = vmul.f32 %v4766, %v4790
        %v4797 = vmul.f32 %v4766, %v4794
        %4801 = vrot.lane.b32.xlu0 %v4795, 112
        %v4802 = vpop.permute.xlu0 %4801
        %4803 = vrot.lane.b32.xlu0 %v4796, 112
        %v4804 = vpop.permute.xlu0 %4803
        %4805 = vrot.lane.b32.xlu0 %v4797, 112
        %v4806 = vpop.permute.xlu0 %4805
        %v4807 = vsel %vm910, %v4802, %v4804
        %v4808 = vsel %vm910, %v4804, %v4806
        %v4812 = vadd.f32 %v4585, %v4807
        %v4813 = vadd.f32 %v4586, %v4808
        %v4814 = vadd.f32 %v4587, %v4806
        %4815 = vset.pattern.permute.xlu0 86
        %4816 = vperm.xlu0 %4815, %v215
        %v4817 = vpop.permute.xlu0 %4816
        %v4819 = vlaneseq
        %v4820 = vshrl.u32 %v4819, 7
        %v4821 = vsub.s32 2, %v4820
        %v4822 = vrot.slane %v4709, %v4821
        %v4823 = vlaneseq
        %v4824 = vshrl.u32 %v4823, 7
        %v4825 = vsub.s32 6, %v4824
        %v4826 = vrot.slane %v4709, %v4825
        %v4827 = vlaneseq
        %v4828 = vshrl.u32 %v4827, 7
        %v4829 = vsub.s32 2, %v4828
        %v4830 = vrot.slane %v4710, %v4829
        %v4834 = vlaneseq
        %v4835 = vshrl.u32 %v4834, 7
        %v4836 = vsub.s32 2, %v4835
        %v4837 = vrot.slane %v4822, %v4836
        %v4838 = vlaneseq
        %v4839 = vshrl.u32 %v4838, 7
        %v4840 = vsub.s32 2, %v4839
        %v4841 = vrot.slane %v4826, %v4840
        %v4842 = vlaneseq
        %v4843 = vshrl.u32 %v4842, 7
        %v4844 = vsub.s32 2, %v4843
        %v4845 = vrot.slane %v4830, %v4844
        %v4846 = vmul.f32 %v4817, %v4837
        %v4847 = vmul.f32 %v4817, %v4841
        %v4848 = vmul.f32 %v4817, %v4845
        %4852 = vrot.lane.b32.xlu0 %v4846, 112
        %v4853 = vpop.permute.xlu0 %4852
        %4854 = vrot.lane.b32.xlu0 %v4847, 112
        %v4855 = vpop.permute.xlu0 %4854
        %4856 = vrot.lane.b32.xlu0 %v4848, 112
        %v4857 = vpop.permute.xlu0 %4856
        %v4858 = vsel %vm910, %v4853, %v4855
        %v4859 = vsel %vm910, %v4855, %v4857
        %v4863 = vadd.f32 %v4636, %v4858
        %v4864 = vadd.f32 %v4637, %v4859
        %v4865 = vadd.f32 %v4638, %v4857
        %4866 = vset.pattern.permute.xlu0 87
        %4867 = vperm.xlu0 %4866, %v215
        %v4868 = vpop.permute.xlu0 %4867
        %v4870 = vlaneseq
        %v4871 = vshrl.u32 %v4870, 7
        %v4872 = vsub.s32 3, %v4871
        %v4873 = vrot.slane %v4709, %v4872
        %v4874 = vlaneseq
        %v4875 = vshrl.u32 %v4874, 7
        %v4876 = vsub.s32 7, %v4875
        %v4877 = vrot.slane %v4709, %v4876
        %v4878 = vlaneseq
        %v4879 = vshrl.u32 %v4878, 7
        %v4880 = vsub.s32 3, %v4879
        %v4881 = vrot.slane %v4710, %v4880
        %v4885 = vlaneseq
        %v4886 = vshrl.u32 %v4885, 7
        %v4887 = vsub.s32 3, %v4886
        %v4888 = vrot.slane %v4873, %v4887
        %v4889 = vlaneseq
        %v4890 = vshrl.u32 %v4889, 7
        %v4891 = vsub.s32 3, %v4890
        %v4892 = vrot.slane %v4877, %v4891
        %v4893 = vlaneseq
        %v4894 = vshrl.u32 %v4893, 7
        %v4895 = vsub.s32 3, %v4894
        %v4896 = vrot.slane %v4881, %v4895
        %v4897 = vmul.f32 %v4868, %v4888
        %v4898 = vmul.f32 %v4868, %v4892
        %v4899 = vmul.f32 %v4868, %v4896
        %4903 = vrot.lane.b32.xlu0 %v4897, 112
        %v4904 = vpop.permute.xlu0 %4903
        %4905 = vrot.lane.b32.xlu0 %v4898, 112
        %v4906 = vpop.permute.xlu0 %4905
        %4907 = vrot.lane.b32.xlu0 %v4899, 112
        %v4908 = vpop.permute.xlu0 %4907
        %v4909 = vsel %vm910, %v4904, %v4906
        %v4910 = vsel %vm910, %v4906, %v4908
        %v4914 = vadd.f32 %v4687, %v4909
        %v4915 = vadd.f32 %v4688, %v4910
        %v4916 = vadd.f32 %v4689, %v4908
        %v4917 = vld [vmem:[#allocation2 + $0x4] sm:$0xff]
        %4918 = vset.pattern.permute.xlu0 88
        %4919 = vperm.xlu0 %4918, %v215
        %v4920 = vpop.permute.xlu0 %4919
        %v4923 = vlaneseq
        %v4924 = vshrl.u32 %v4923, 7
        %v4925 = vsub.s32 0, %v4924
        %v4926 = vrot.slane %v4917, %v4925
        %v4927 = vlaneseq
        %v4928 = vshrl.u32 %v4927, 7
        %v4929 = vsub.s32 4, %v4928
        %v4930 = vrot.slane %v4917, %v4929
        %v4933 = vlaneseq
        %v4934 = vshrl.u32 %v4933, 7
        %v4935 = vsub.s32 0, %v4934
        %v4936 = vrot.slane %v4926, %v4935
        %v4937 = vlaneseq
        %v4938 = vshrl.u32 %v4937, 7
        %v4939 = vsub.s32 0, %v4938
        %v4940 = vrot.slane %v4930, %v4939
        %v4941 = vmul.f32 %v4920, %v4936
        %v4942 = vmul.f32 %v4920, %v4940
        %4945 = vrot.lane.b32.xlu0 %v4941, 111
        %v4946 = vpop.permute.xlu0 %4945
        %4947 = vrot.lane.b32.xlu0 %v4942, 111
        %v4948 = vpop.permute.xlu0 %4947
        %v4949 = vsel %vm262, %v4946, %v4948
        %v4953 = vadd.f32 %v4761, %v4946
        %v4954 = vadd.f32 %v4762, %v4949
        %v4955 = vadd.f32 %v4763, %v4948
        %4956 = vset.pattern.permute.xlu0 89
        %4957 = vperm.xlu0 %4956, %v215
        %v4958 = vpop.permute.xlu0 %4957
        %v4960 = vlaneseq
        %v4961 = vshrl.u32 %v4960, 7
        %v4962 = vsub.s32 1, %v4961
        %v4963 = vrot.slane %v4917, %v4962
        %v4964 = vlaneseq
        %v4965 = vshrl.u32 %v4964, 7
        %v4966 = vsub.s32 5, %v4965
        %v4967 = vrot.slane %v4917, %v4966
        %v4970 = vlaneseq
        %v4971 = vshrl.u32 %v4970, 7
        %v4972 = vsub.s32 1, %v4971
        %v4973 = vrot.slane %v4963, %v4972
        %v4974 = vlaneseq
        %v4975 = vshrl.u32 %v4974, 7
        %v4976 = vsub.s32 1, %v4975
        %v4977 = vrot.slane %v4967, %v4976
        %v4978 = vmul.f32 %v4958, %v4973
        %v4979 = vmul.f32 %v4958, %v4977
        %4982 = vrot.lane.b32.xlu0 %v4978, 111
        %v4983 = vpop.permute.xlu0 %4982
        %4984 = vrot.lane.b32.xlu0 %v4979, 111
        %v4985 = vpop.permute.xlu0 %4984
        %v4986 = vsel %vm262, %v4983, %v4985
        %v4990 = vadd.f32 %v4812, %v4983
        %v4991 = vadd.f32 %v4813, %v4986
        %v4992 = vadd.f32 %v4814, %v4985
        %4993 = vset.pattern.permute.xlu0 90
        %4994 = vperm.xlu0 %4993, %v215
        %v4995 = vpop.permute.xlu0 %4994
        %v4997 = vlaneseq
        %v4998 = vshrl.u32 %v4997, 7
        %v4999 = vsub.s32 2, %v4998
        %v5000 = vrot.slane %v4917, %v4999
        %v5001 = vlaneseq
        %v5002 = vshrl.u32 %v5001, 7
        %v5003 = vsub.s32 6, %v5002
        %v5004 = vrot.slane %v4917, %v5003
        %v5007 = vlaneseq
        %v5008 = vshrl.u32 %v5007, 7
        %v5009 = vsub.s32 2, %v5008
        %v5010 = vrot.slane %v5000, %v5009
        %v5011 = vlaneseq
        %v5012 = vshrl.u32 %v5011, 7
        %v5013 = vsub.s32 2, %v5012
        %v5014 = vrot.slane %v5004, %v5013
        %v5015 = vmul.f32 %v4995, %v5010
        %v5016 = vmul.f32 %v4995, %v5014
        %5019 = vrot.lane.b32.xlu0 %v5015, 111
        %v5020 = vpop.permute.xlu0 %5019
        %5021 = vrot.lane.b32.xlu0 %v5016, 111
        %v5022 = vpop.permute.xlu0 %5021
        %v5023 = vsel %vm262, %v5020, %v5022
        %v5027 = vadd.f32 %v4863, %v5020
        %v5028 = vadd.f32 %v4864, %v5023
        %v5029 = vadd.f32 %v4865, %v5022
        %5030 = vset.pattern.permute.xlu0 91
        %5031 = vperm.xlu0 %5030, %v215
        %v5032 = vpop.permute.xlu0 %5031
        %v5034 = vlaneseq
        %v5035 = vshrl.u32 %v5034, 7
        %v5036 = vsub.s32 3, %v5035
        %v5037 = vrot.slane %v4917, %v5036
        %v5038 = vlaneseq
        %v5039 = vshrl.u32 %v5038, 7
        %v5040 = vsub.s32 7, %v5039
        %v5041 = vrot.slane %v4917, %v5040
        %v5044 = vlaneseq
        %v5045 = vshrl.u32 %v5044, 7
        %v5046 = vsub.s32 3, %v5045
        %v5047 = vrot.slane %v5037, %v5046
        %v5048 = vlaneseq
        %v5049 = vshrl.u32 %v5048, 7
        %v5050 = vsub.s32 3, %v5049
        %v5051 = vrot.slane %v5041, %v5050
        %v5052 = vmul.f32 %v5032, %v5047
        %v5053 = vmul.f32 %v5032, %v5051
        %5056 = vrot.lane.b32.xlu0 %v5052, 111
        %v5057 = vpop.permute.xlu0 %5056
        %5058 = vrot.lane.b32.xlu0 %v5053, 111
        %v5059 = vpop.permute.xlu0 %5058
        %v5060 = vsel %vm262, %v5057, %v5059
        %v5064 = vadd.f32 %v4914, %v5057
        %v5065 = vadd.f32 %v4915, %v5060
        %v5066 = vadd.f32 %v4916, %v5059
        %v5067 = vld [vmem:[#allocation2 + $0x4] sm:$0xff]
        %v5068 = vld [vmem:[#allocation2 + $0xc] sm:$0xf]
        %v5069 = vld [vmem:[%s1224] ss:$8 sm:$0x3]
        %v5071 = vlaneseq
        %v5072 = vshrl.u32 %v5071, 7
        %v5073 = vsub.s32 0, %v5072
        %v5074 = vrot.slane %v5069, %v5073
        %v5075 = vlaneseq
        %v5076 = vshrl.u32 %v5075, 7
        %v5077 = vsub.s32 1, %v5076
        %v5078 = vrot.slane %v5069, %v5077
        %v5079 = vcombine.low %v5074, %v5078
        %5080 = vrot.lane.b32.xlu0 %v5079, 1
        %v5081 = vpop.permute.xlu0 %5080
        %v5082 = vrot.slane %v5081, 4
        %v5083 = vsel %vm1239, %v5082, %v5081
        %v5086 = vmul.f32 %v5067, %v5083
        %v5087 = vmul.f32 %v5068, %v5082
        %5088 = vset.pattern.permute.xlu0 92
        %5089 = vperm.xlu0 %5088, %v215
        %v5090 = vpop.permute.xlu0 %5089
        %v5094 = vlaneseq
        %v5095 = vshrl.u32 %v5094, 7
        %v5096 = vsub.s32 0, %v5095
        %v5097 = vrot.slane %v5086, %v5096
        %v5098 = vlaneseq
        %v5099 = vshrl.u32 %v5098, 7
        %v5100 = vsub.s32 4, %v5099
        %v5101 = vrot.slane %v5086, %v5100
        %v5102 = vlaneseq
        %v5103 = vshrl.u32 %v5102, 7
        %v5104 = vsub.s32 0, %v5103
        %v5105 = vrot.slane %v5087, %v5104
        %v5109 = vlaneseq
        %v5110 = vshrl.u32 %v5109, 7
        %v5111 = vsub.s32 0, %v5110
        %v5112 = vrot.slane %v5097, %v5111
        %v5113 = vlaneseq
        %v5114 = vshrl.u32 %v5113, 7
        %v5115 = vsub.s32 0, %v5114
        %v5116 = vrot.slane %v5101, %v5115
        %v5117 = vlaneseq
        %v5118 = vshrl.u32 %v5117, 7
        %v5119 = vsub.s32 0, %v5118
        %v5120 = vrot.slane %v5105, %v5119
        %v5121 = vmul.f32 %v5090, %v5112
        %v5122 = vmul.f32 %v5090, %v5116
        %v5123 = vmul.f32 %v5090, %v5120
        %5127 = vrot.lane.b32.xlu0 %v5121, 110
        %v5128 = vpop.permute.xlu0 %5127
        %5129 = vrot.lane.b32.xlu0 %v5122, 110
        %v5130 = vpop.permute.xlu0 %5129
        %5131 = vrot.lane.b32.xlu0 %v5123, 110
        %v5132 = vpop.permute.xlu0 %5131
        %v5133 = vsel %vm1290, %v5128, %v5130
        %v5134 = vsel %vm1290, %v5130, %v5132
        %v5138 = vadd.f32 %v4953, %v5128
        %v5139 = vadd.f32 %v4954, %v5133
        %v5140 = vadd.f32 %v4955, %v5134
        %5141 = vset.pattern.permute.xlu0 93
        %5142 = vperm.xlu0 %5141, %v215
        %v5143 = vpop.permute.xlu0 %5142
        %v5145 = vlaneseq
        %v5146 = vshrl.u32 %v5145, 7
        %v5147 = vsub.s32 1, %v5146
        %v5148 = vrot.slane %v5086, %v5147
        %v5149 = vlaneseq
        %v5150 = vshrl.u32 %v5149, 7
        %v5151 = vsub.s32 5, %v5150
        %v5152 = vrot.slane %v5086, %v5151
        %v5153 = vlaneseq
        %v5154 = vshrl.u32 %v5153, 7
        %v5155 = vsub.s32 1, %v5154
        %v5156 = vrot.slane %v5087, %v5155
        %v5160 = vlaneseq
        %v5161 = vshrl.u32 %v5160, 7
        %v5162 = vsub.s32 1, %v5161
        %v5163 = vrot.slane %v5148, %v5162
        %v5164 = vlaneseq
        %v5165 = vshrl.u32 %v5164, 7
        %v5166 = vsub.s32 1, %v5165
        %v5167 = vrot.slane %v5152, %v5166
        %v5168 = vlaneseq
        %v5169 = vshrl.u32 %v5168, 7
        %v5170 = vsub.s32 1, %v5169
        %v5171 = vrot.slane %v5156, %v5170
        %v5172 = vmul.f32 %v5143, %v5163
        %v5173 = vmul.f32 %v5143, %v5167
        %v5174 = vmul.f32 %v5143, %v5171
        %5178 = vrot.lane.b32.xlu0 %v5172, 110
        %v5179 = vpop.permute.xlu0 %5178
        %5180 = vrot.lane.b32.xlu0 %v5173, 110
        %v5181 = vpop.permute.xlu0 %5180
        %5182 = vrot.lane.b32.xlu0 %v5174, 110
        %v5183 = vpop.permute.xlu0 %5182
        %v5184 = vsel %vm1290, %v5179, %v5181
        %v5185 = vsel %vm1290, %v5181, %v5183
        %v5189 = vadd.f32 %v4990, %v5179
        %v5190 = vadd.f32 %v4991, %v5184
        %v5191 = vadd.f32 %v4992, %v5185
        %5192 = vset.pattern.permute.xlu0 94
        %5193 = vperm.xlu0 %5192, %v215
        %v5194 = vpop.permute.xlu0 %5193
        %v5196 = vlaneseq
        %v5197 = vshrl.u32 %v5196, 7
        %v5198 = vsub.s32 2, %v5197
        %v5199 = vrot.slane %v5086, %v5198
        %v5200 = vlaneseq
        %v5201 = vshrl.u32 %v5200, 7
        %v5202 = vsub.s32 6, %v5201
        %v5203 = vrot.slane %v5086, %v5202
        %v5204 = vlaneseq
        %v5205 = vshrl.u32 %v5204, 7
        %v5206 = vsub.s32 2, %v5205
        %v5207 = vrot.slane %v5087, %v5206
        %v5211 = vlaneseq
        %v5212 = vshrl.u32 %v5211, 7
        %v5213 = vsub.s32 2, %v5212
        %v5214 = vrot.slane %v5199, %v5213
        %v5215 = vlaneseq
        %v5216 = vshrl.u32 %v5215, 7
        %v5217 = vsub.s32 2, %v5216
        %v5218 = vrot.slane %v5203, %v5217
        %v5219 = vlaneseq
        %v5220 = vshrl.u32 %v5219, 7
        %v5221 = vsub.s32 2, %v5220
        %v5222 = vrot.slane %v5207, %v5221
        %v5223 = vmul.f32 %v5194, %v5214
        %v5224 = vmul.f32 %v5194, %v5218
        %v5225 = vmul.f32 %v5194, %v5222
        %5229 = vrot.lane.b32.xlu0 %v5223, 110
        %v5230 = vpop.permute.xlu0 %5229
        %5231 = vrot.lane.b32.xlu0 %v5224, 110
        %v5232 = vpop.permute.xlu0 %5231
        %5233 = vrot.lane.b32.xlu0 %v5225, 110
        %v5234 = vpop.permute.xlu0 %5233
        %v5235 = vsel %vm1290, %v5230, %v5232
        %v5236 = vsel %vm1290, %v5232, %v5234
        %v5240 = vadd.f32 %v5027, %v5230
        %v5241 = vadd.f32 %v5028, %v5235
        %v5242 = vadd.f32 %v5029, %v5236
        %5243 = vset.pattern.permute.xlu0 95
        %5244 = vperm.xlu0 %5243, %v215
        %v5245 = vpop.permute.xlu0 %5244
        %v5247 = vlaneseq
        %v5248 = vshrl.u32 %v5247, 7
        %v5249 = vsub.s32 3, %v5248
        %v5250 = vrot.slane %v5086, %v5249
        %v5251 = vlaneseq
        %v5252 = vshrl.u32 %v5251, 7
        %v5253 = vsub.s32 7, %v5252
        %v5254 = vrot.slane %v5086, %v5253
        %v5255 = vlaneseq
        %v5256 = vshrl.u32 %v5255, 7
        %v5257 = vsub.s32 3, %v5256
        %v5258 = vrot.slane %v5087, %v5257
        %v5262 = vlaneseq
        %v5263 = vshrl.u32 %v5262, 7
        %v5264 = vsub.s32 3, %v5263
        %v5265 = vrot.slane %v5250, %v5264
        %v5266 = vlaneseq
        %v5267 = vshrl.u32 %v5266, 7
        %v5268 = vsub.s32 3, %v5267
        %v5269 = vrot.slane %v5254, %v5268
        %v5270 = vlaneseq
        %v5271 = vshrl.u32 %v5270, 7
        %v5272 = vsub.s32 3, %v5271
        %v5273 = vrot.slane %v5258, %v5272
        %v5274 = vmul.f32 %v5245, %v5265
        %v5275 = vmul.f32 %v5245, %v5269
        %v5276 = vmul.f32 %v5245, %v5273
        %5280 = vrot.lane.b32.xlu0 %v5274, 110
        %v5281 = vpop.permute.xlu0 %5280
        %5282 = vrot.lane.b32.xlu0 %v5275, 110
        %v5283 = vpop.permute.xlu0 %5282
        %5284 = vrot.lane.b32.xlu0 %v5276, 110
        %v5285 = vpop.permute.xlu0 %5284
        %v5286 = vsel %vm1290, %v5281, %v5283
        %v5287 = vsel %vm1290, %v5283, %v5285
        %v5291 = vadd.f32 %v5064, %v5281
        %v5292 = vadd.f32 %v5065, %v5286
        %v5293 = vadd.f32 %v5066, %v5287
        %v5294 = vld [vmem:[#allocation2 + $0x4] sm:$0xff]
        %v5295 = vld [vmem:[#allocation2 + $0xc] sm:$0xf]
        %v5296 = vld [vmem:[%s1454] ss:$8 sm:$0x3]
        %v5298 = vlaneseq
        %v5299 = vshrl.u32 %v5298, 7
        %v5300 = vsub.s32 0, %v5299
        %v5301 = vrot.slane %v5296, %v5300
        %v5302 = vlaneseq
        %v5303 = vshrl.u32 %v5302, 7
        %v5304 = vsub.s32 1, %v5303
        %v5305 = vrot.slane %v5296, %v5304
        %v5306 = vcombine.low %v5301, %v5305
        %5307 = vrot.lane.b32.xlu0 %v5306, 15
        %v5308 = vpop.permute.xlu0 %5307
        %v5309 = vrot.slane %v5308, 4
        %v5310 = vsel %vm1469, %v5309, %v5308
        %v5313 = vmul.f32 %v5294, %v5310
        %v5314 = vmul.f32 %v5295, %v5309
        %5315 = vset.pattern.permute.xlu0 96
        %5316 = vperm.xlu0 %5315, %v215
        %v5317 = vpop.permute.xlu0 %5316
        %v5321 = vlaneseq
        %v5322 = vshrl.u32 %v5321, 7
        %v5323 = vsub.s32 0, %v5322
        %v5324 = vrot.slane %v5313, %v5323
        %v5325 = vlaneseq
        %v5326 = vshrl.u32 %v5325, 7
        %v5327 = vsub.s32 4, %v5326
        %v5328 = vrot.slane %v5313, %v5327
        %v5329 = vlaneseq
        %v5330 = vshrl.u32 %v5329, 7
        %v5331 = vsub.s32 0, %v5330
        %v5332 = vrot.slane %v5314, %v5331
        %v5336 = vlaneseq
        %v5337 = vshrl.u32 %v5336, 7
        %v5338 = vsub.s32 0, %v5337
        %v5339 = vrot.slane %v5324, %v5338
        %v5340 = vlaneseq
        %v5341 = vshrl.u32 %v5340, 7
        %v5342 = vsub.s32 0, %v5341
        %v5343 = vrot.slane %v5328, %v5342
        %v5344 = vlaneseq
        %v5345 = vshrl.u32 %v5344, 7
        %v5346 = vsub.s32 0, %v5345
        %v5347 = vrot.slane %v5332, %v5346
        %v5348 = vmul.f32 %v5317, %v5339
        %v5349 = vmul.f32 %v5317, %v5343
        %v5350 = vmul.f32 %v5317, %v5347
        %5354 = vrot.lane.b32.xlu0 %v5348, 96
        %v5355 = vpop.permute.xlu0 %5354
        %5356 = vrot.lane.b32.xlu0 %v5349, 96
        %v5357 = vpop.permute.xlu0 %5356
        %5358 = vrot.lane.b32.xlu0 %v5350, 96
        %v5359 = vpop.permute.xlu0 %5358
        %v5360 = vsel %vm1520, %v5355, %v5357
        %v5361 = vsel %vm1520, %v5357, %v5359
        %v5365 = vadd.f32 %v5138, %v5355
        %v5366 = vadd.f32 %v5139, %v5360
        %v5367 = vadd.f32 %v5140, %v5361
        %5368 = vset.pattern.permute.xlu0 97
        %5369 = vperm.xlu0 %5368, %v215
        %v5370 = vpop.permute.xlu0 %5369
        %v5372 = vlaneseq
        %v5373 = vshrl.u32 %v5372, 7
        %v5374 = vsub.s32 1, %v5373
        %v5375 = vrot.slane %v5313, %v5374
        %v5376 = vlaneseq
        %v5377 = vshrl.u32 %v5376, 7
        %v5378 = vsub.s32 5, %v5377
        %v5379 = vrot.slane %v5313, %v5378
        %v5380 = vlaneseq
        %v5381 = vshrl.u32 %v5380, 7
        %v5382 = vsub.s32 1, %v5381
        %v5383 = vrot.slane %v5314, %v5382
        %v5387 = vlaneseq
        %v5388 = vshrl.u32 %v5387, 7
        %v5389 = vsub.s32 1, %v5388
        %v5390 = vrot.slane %v5375, %v5389
        %v5391 = vlaneseq
        %v5392 = vshrl.u32 %v5391, 7
        %v5393 = vsub.s32 1, %v5392
        %v5394 = vrot.slane %v5379, %v5393
        %v5395 = vlaneseq
        %v5396 = vshrl.u32 %v5395, 7
        %v5397 = vsub.s32 1, %v5396
        %v5398 = vrot.slane %v5383, %v5397
        %v5399 = vmul.f32 %v5370, %v5390
        %v5400 = vmul.f32 %v5370, %v5394
        %v5401 = vmul.f32 %v5370, %v5398
        %5405 = vrot.lane.b32.xlu0 %v5399, 96
        %v5406 = vpop.permute.xlu0 %5405
        %5407 = vrot.lane.b32.xlu0 %v5400, 96
        %v5408 = vpop.permute.xlu0 %5407
        %5409 = vrot.lane.b32.xlu0 %v5401, 96
        %v5410 = vpop.permute.xlu0 %5409
        %v5411 = vsel %vm1520, %v5406, %v5408
        %v5412 = vsel %vm1520, %v5408, %v5410
        %v5416 = vadd.f32 %v5189, %v5406
        %v5417 = vadd.f32 %v5190, %v5411
        %v5418 = vadd.f32 %v5191, %v5412
        %5419 = vset.pattern.permute.xlu0 98
        %5420 = vperm.xlu0 %5419, %v215
        %v5421 = vpop.permute.xlu0 %5420
        %v5423 = vlaneseq
        %v5424 = vshrl.u32 %v5423, 7
        %v5425 = vsub.s32 2, %v5424
        %v5426 = vrot.slane %v5313, %v5425
        %v5427 = vlaneseq
        %v5428 = vshrl.u32 %v5427, 7
        %v5429 = vsub.s32 6, %v5428
        %v5430 = vrot.slane %v5313, %v5429
        %v5431 = vlaneseq
        %v5432 = vshrl.u32 %v5431, 7
        %v5433 = vsub.s32 2, %v5432
        %v5434 = vrot.slane %v5314, %v5433
        %v5438 = vlaneseq
        %v5439 = vshrl.u32 %v5438, 7
        %v5440 = vsub.s32 2, %v5439
        %v5441 = vrot.slane %v5426, %v5440
        %v5442 = vlaneseq
        %v5443 = vshrl.u32 %v5442, 7
        %v5444 = vsub.s32 2, %v5443
        %v5445 = vrot.slane %v5430, %v5444
        %v5446 = vlaneseq
        %v5447 = vshrl.u32 %v5446, 7
        %v5448 = vsub.s32 2, %v5447
        %v5449 = vrot.slane %v5434, %v5448
        %v5450 = vmul.f32 %v5421, %v5441
        %v5451 = vmul.f32 %v5421, %v5445
        %v5452 = vmul.f32 %v5421, %v5449
        %5456 = vrot.lane.b32.xlu0 %v5450, 96
        %v5457 = vpop.permute.xlu0 %5456
        %5458 = vrot.lane.b32.xlu0 %v5451, 96
        %v5459 = vpop.permute.xlu0 %5458
        %5460 = vrot.lane.b32.xlu0 %v5452, 96
        %v5461 = vpop.permute.xlu0 %5460
        %v5462 = vsel %vm1520, %v5457, %v5459
        %v5463 = vsel %vm1520, %v5459, %v5461
        %v5467 = vadd.f32 %v5240, %v5457
        %v5468 = vadd.f32 %v5241, %v5462
        %v5469 = vadd.f32 %v5242, %v5463
        %5470 = vset.pattern.permute.xlu0 99
        %5471 = vperm.xlu0 %5470, %v215
        %v5472 = vpop.permute.xlu0 %5471
        %v5474 = vlaneseq
        %v5475 = vshrl.u32 %v5474, 7
        %v5476 = vsub.s32 3, %v5475
        %v5477 = vrot.slane %v5313, %v5476
        %v5478 = vlaneseq
        %v5479 = vshrl.u32 %v5478, 7
        %v5480 = vsub.s32 7, %v5479
        %v5481 = vrot.slane %v5313, %v5480
        %v5482 = vlaneseq
        %v5483 = vshrl.u32 %v5482, 7
        %v5484 = vsub.s32 3, %v5483
        %v5485 = vrot.slane %v5314, %v5484
        %v5489 = vlaneseq
        %v5490 = vshrl.u32 %v5489, 7
        %v5491 = vsub.s32 3, %v5490
        %v5492 = vrot.slane %v5477, %v5491
        %v5493 = vlaneseq
        %v5494 = vshrl.u32 %v5493, 7
        %v5495 = vsub.s32 3, %v5494
        %v5496 = vrot.slane %v5481, %v5495
        %v5497 = vlaneseq
        %v5498 = vshrl.u32 %v5497, 7
        %v5499 = vsub.s32 3, %v5498
        %v5500 = vrot.slane %v5485, %v5499
        %v5501 = vmul.f32 %v5472, %v5492
        %v5502 = vmul.f32 %v5472, %v5496
        %v5503 = vmul.f32 %v5472, %v5500
        %5507 = vrot.lane.b32.xlu0 %v5501, 96
        %v5508 = vpop.permute.xlu0 %5507
        %5509 = vrot.lane.b32.xlu0 %v5502, 96
        %v5510 = vpop.permute.xlu0 %5509
        %5511 = vrot.lane.b32.xlu0 %v5503, 96
        %v5512 = vpop.permute.xlu0 %5511
        %v5513 = vsel %vm1520, %v5508, %v5510
        %v5514 = vsel %vm1520, %v5510, %v5512
        %v5518 = vadd.f32 %v5291, %v5508
        %v5519 = vadd.f32 %v5292, %v5513
        %v5520 = vadd.f32 %v5293, %v5514
        %v5521 = vld [vmem:[#allocation2 + $0x4] sm:$0xff]
        %v5522 = vld [vmem:[#allocation2 + $0xc] sm:$0xf]
        %5523 = vset.pattern.permute.xlu0 100
        %5524 = vperm.xlu0 %5523, %v215
        %v5525 = vpop.permute.xlu0 %5524
        %v5529 = vlaneseq
        %v5530 = vshrl.u32 %v5529, 7
        %v5531 = vsub.s32 0, %v5530
        %v5532 = vrot.slane %v5521, %v5531
        %v5533 = vlaneseq
        %v5534 = vshrl.u32 %v5533, 7
        %v5535 = vsub.s32 4, %v5534
        %v5536 = vrot.slane %v5521, %v5535
        %v5537 = vlaneseq
        %v5538 = vshrl.u32 %v5537, 7
        %v5539 = vsub.s32 0, %v5538
        %v5540 = vrot.slane %v5522, %v5539
        %v5544 = vlaneseq
        %v5545 = vshrl.u32 %v5544, 7
        %v5546 = vsub.s32 0, %v5545
        %v5547 = vrot.slane %v5532, %v5546
        %v5548 = vlaneseq
        %v5549 = vshrl.u32 %v5548, 7
        %v5550 = vsub.s32 0, %v5549
        %v5551 = vrot.slane %v5536, %v5550
        %v5552 = vlaneseq
        %v5553 = vshrl.u32 %v5552, 7
        %v5554 = vsub.s32 0, %v5553
        %v5555 = vrot.slane %v5540, %v5554
        %v5556 = vmul.f32 %v5525, %v5547
        %v5557 = vmul.f32 %v5525, %v5551
        %v5558 = vmul.f32 %v5525, %v5555
        %5562 = vrot.lane.b32.xlu0 %v5556, 95
        %v5563 = vpop.permute.xlu0 %5562
        %5564 = vrot.lane.b32.xlu0 %v5557, 95
        %v5565 = vpop.permute.xlu0 %5564
        %5566 = vrot.lane.b32.xlu0 %v5558, 95
        %v5567 = vpop.permute.xlu0 %5566
        %v5568 = vsel %vm1729, %v5563, %v5565
        %v5569 = vsel %vm1729, %v5565, %v5567
        %v5573 = vadd.f32 %v5365, %v5563
        %v5574 = vadd.f32 %v5366, %v5568
        %v5575 = vadd.f32 %v5367, %v5569
        %5576 = vset.pattern.permute.xlu0 101
        %5577 = vperm.xlu0 %5576, %v215
        %v5578 = vpop.permute.xlu0 %5577
        %v5580 = vlaneseq
        %v5581 = vshrl.u32 %v5580, 7
        %v5582 = vsub.s32 1, %v5581
        %v5583 = vrot.slane %v5521, %v5582
        %v5584 = vlaneseq
        %v5585 = vshrl.u32 %v5584, 7
        %v5586 = vsub.s32 5, %v5585
        %v5587 = vrot.slane %v5521, %v5586
        %v5588 = vlaneseq
        %v5589 = vshrl.u32 %v5588, 7
        %v5590 = vsub.s32 1, %v5589
        %v5591 = vrot.slane %v5522, %v5590
        %v5595 = vlaneseq
        %v5596 = vshrl.u32 %v5595, 7
        %v5597 = vsub.s32 1, %v5596
        %v5598 = vrot.slane %v5583, %v5597
        %v5599 = vlaneseq
        %v5600 = vshrl.u32 %v5599, 7
        %v5601 = vsub.s32 1, %v5600
        %v5602 = vrot.slane %v5587, %v5601
        %v5603 = vlaneseq
        %v5604 = vshrl.u32 %v5603, 7
        %v5605 = vsub.s32 1, %v5604
        %v5606 = vrot.slane %v5591, %v5605
        %v5607 = vmul.f32 %v5578, %v5598
        %v5608 = vmul.f32 %v5578, %v5602
        %v5609 = vmul.f32 %v5578, %v5606
        %5613 = vrot.lane.b32.xlu0 %v5607, 95
        %v5614 = vpop.permute.xlu0 %5613
        %5615 = vrot.lane.b32.xlu0 %v5608, 95
        %v5616 = vpop.permute.xlu0 %5615
        %5617 = vrot.lane.b32.xlu0 %v5609, 95
        %v5618 = vpop.permute.xlu0 %5617
        %v5619 = vsel %vm1729, %v5614, %v5616
        %v5620 = vsel %vm1729, %v5616, %v5618
        %v5624 = vadd.f32 %v5416, %v5614
        %v5625 = vadd.f32 %v5417, %v5619
        %v5626 = vadd.f32 %v5418, %v5620
        %5627 = vset.pattern.permute.xlu0 102
        %5628 = vperm.xlu0 %5627, %v215
        %v5629 = vpop.permute.xlu0 %5628
        %v5631 = vlaneseq
        %v5632 = vshrl.u32 %v5631, 7
        %v5633 = vsub.s32 2, %v5632
        %v5634 = vrot.slane %v5521, %v5633
        %v5635 = vlaneseq
        %v5636 = vshrl.u32 %v5635, 7
        %v5637 = vsub.s32 6, %v5636
        %v5638 = vrot.slane %v5521, %v5637
        %v5639 = vlaneseq
        %v5640 = vshrl.u32 %v5639, 7
        %v5641 = vsub.s32 2, %v5640
        %v5642 = vrot.slane %v5522, %v5641
        %v5646 = vlaneseq
        %v5647 = vshrl.u32 %v5646, 7
        %v5648 = vsub.s32 2, %v5647
        %v5649 = vrot.slane %v5634, %v5648
        %v5650 = vlaneseq
        %v5651 = vshrl.u32 %v5650, 7
        %v5652 = vsub.s32 2, %v5651
        %v5653 = vrot.slane %v5638, %v5652
        %v5654 = vlaneseq
        %v5655 = vshrl.u32 %v5654, 7
        %v5656 = vsub.s32 2, %v5655
        %v5657 = vrot.slane %v5642, %v5656
        %v5658 = vmul.f32 %v5629, %v5649
        %v5659 = vmul.f32 %v5629, %v5653
        %v5660 = vmul.f32 %v5629, %v5657
        %5664 = vrot.lane.b32.xlu0 %v5658, 95
        %v5665 = vpop.permute.xlu0 %5664
        %5666 = vrot.lane.b32.xlu0 %v5659, 95
        %v5667 = vpop.permute.xlu0 %5666
        %5668 = vrot.lane.b32.xlu0 %v5660, 95
        %v5669 = vpop.permute.xlu0 %5668
        %v5670 = vsel %vm1729, %v5665, %v5667
        %v5671 = vsel %vm1729, %v5667, %v5669
        %v5675 = vadd.f32 %v5467, %v5665
        %v5676 = vadd.f32 %v5468, %v5670
        %v5677 = vadd.f32 %v5469, %v5671
        %5678 = vset.pattern.permute.xlu0 103
        %5679 = vperm.xlu0 %5678, %v215
        %v5680 = vpop.permute.xlu0 %5679
        %v5682 = vlaneseq
        %v5683 = vshrl.u32 %v5682, 7
        %v5684 = vsub.s32 3, %v5683
        %v5685 = vrot.slane %v5521, %v5684
        %v5686 = vlaneseq
        %v5687 = vshrl.u32 %v5686, 7
        %v5688 = vsub.s32 7, %v5687
        %v5689 = vrot.slane %v5521, %v5688
        %v5690 = vlaneseq
        %v5691 = vshrl.u32 %v5690, 7
        %v5692 = vsub.s32 3, %v5691
        %v5693 = vrot.slane %v5522, %v5692
        %v5697 = vlaneseq
        %v5698 = vshrl.u32 %v5697, 7
        %v5699 = vsub.s32 3, %v5698
        %v5700 = vrot.slane %v5685, %v5699
        %v5701 = vlaneseq
        %v5702 = vshrl.u32 %v5701, 7
        %v5703 = vsub.s32 3, %v5702
        %v5704 = vrot.slane %v5689, %v5703
        %v5705 = vlaneseq
        %v5706 = vshrl.u32 %v5705, 7
        %v5707 = vsub.s32 3, %v5706
        %v5708 = vrot.slane %v5693, %v5707
        %v5709 = vmul.f32 %v5680, %v5700
        %v5710 = vmul.f32 %v5680, %v5704
        %v5711 = vmul.f32 %v5680, %v5708
        %5715 = vrot.lane.b32.xlu0 %v5709, 95
        %v5716 = vpop.permute.xlu0 %5715
        %5717 = vrot.lane.b32.xlu0 %v5710, 95
        %v5718 = vpop.permute.xlu0 %5717
        %5719 = vrot.lane.b32.xlu0 %v5711, 95
        %v5720 = vpop.permute.xlu0 %5719
        %v5721 = vsel %vm1729, %v5716, %v5718
        %v5722 = vsel %vm1729, %v5718, %v5720
        %v5726 = vadd.f32 %v5518, %v5716
        %v5727 = vadd.f32 %v5519, %v5721
        %v5728 = vadd.f32 %v5520, %v5722
        %v5729 = vld [vmem:[%s1891] ss:$8 sm:$0x3]
        %v5731 = vlaneseq
        %v5732 = vshrl.u32 %v5731, 7
        %v5733 = vsub.s32 0, %v5732
        %v5734 = vrot.slane %v5729, %v5733
        %v5735 = vlaneseq
        %v5736 = vshrl.u32 %v5735, 7
        %v5737 = vsub.s32 1, %v5736
        %v5738 = vrot.slane %v5729, %v5737
        %v5739 = vcombine.low %v5734, %v5738
        %5740 = vrot.lane.b32.xlu0 %v5739, 17
        %v5741 = vpop.permute.xlu0 %5740
        %v5742 = vrot.slane %v5741, 4
        %v5743 = vsel %vm1906, %v5742, %v5741
        %v5746 = vmul.f32 %v5521, %v5743
        %v5747 = vmul.f32 %v5522, %v5742
        %5748 = vset.pattern.permute.xlu0 104
        %5749 = vperm.xlu0 %5748, %v215
        %v5750 = vpop.permute.xlu0 %5749
        %v5754 = vlaneseq
        %v5755 = vshrl.u32 %v5754, 7
        %v5756 = vsub.s32 0, %v5755
        %v5757 = vrot.slane %v5746, %v5756
        %v5758 = vlaneseq
        %v5759 = vshrl.u32 %v5758, 7
        %v5760 = vsub.s32 4, %v5759
        %v5761 = vrot.slane %v5746, %v5760
        %v5762 = vlaneseq
        %v5763 = vshrl.u32 %v5762, 7
        %v5764 = vsub.s32 0, %v5763
        %v5765 = vrot.slane %v5747, %v5764
        %v5769 = vlaneseq
        %v5770 = vshrl.u32 %v5769, 7
        %v5771 = vsub.s32 0, %v5770
        %v5772 = vrot.slane %v5757, %v5771
        %v5773 = vlaneseq
        %v5774 = vshrl.u32 %v5773, 7
        %v5775 = vsub.s32 0, %v5774
        %v5776 = vrot.slane %v5761, %v5775
        %v5777 = vlaneseq
        %v5778 = vshrl.u32 %v5777, 7
        %v5779 = vsub.s32 0, %v5778
        %v5780 = vrot.slane %v5765, %v5779
        %v5781 = vmul.f32 %v5750, %v5772
        %v5782 = vmul.f32 %v5750, %v5776
        %v5783 = vmul.f32 %v5750, %v5780
        %5787 = vrot.lane.b32.xlu0 %v5781, 94
        %v5788 = vpop.permute.xlu0 %5787
        %5789 = vrot.lane.b32.xlu0 %v5782, 94
        %v5790 = vpop.permute.xlu0 %5789
        %5791 = vrot.lane.b32.xlu0 %v5783, 94
        %v5792 = vpop.permute.xlu0 %5791
        %v5793 = vsel %vm1957, %v5788, %v5790
        %v5794 = vsel %vm1957, %v5790, %v5792
        %v5798 = vadd.f32 %v5573, %v5788
        %v5799 = vadd.f32 %v5574, %v5793
        %v5800 = vadd.f32 %v5575, %v5794
        %5801 = vset.pattern.permute.xlu0 105
        %5802 = vperm.xlu0 %5801, %v215
        %v5803 = vpop.permute.xlu0 %5802
        %v5805 = vlaneseq
        %v5806 = vshrl.u32 %v5805, 7
        %v5807 = vsub.s32 1, %v5806
        %v5808 = vrot.slane %v5746, %v5807
        %v5809 = vlaneseq
        %v5810 = vshrl.u32 %v5809, 7
        %v5811 = vsub.s32 5, %v5810
        %v5812 = vrot.slane %v5746, %v5811
        %v5813 = vlaneseq
        %v5814 = vshrl.u32 %v5813, 7
        %v5815 = vsub.s32 1, %v5814
        %v5816 = vrot.slane %v5747, %v5815
        %v5820 = vlaneseq
        %v5821 = vshrl.u32 %v5820, 7
        %v5822 = vsub.s32 1, %v5821
        %v5823 = vrot.slane %v5808, %v5822
        %v5824 = vlaneseq
        %v5825 = vshrl.u32 %v5824, 7
        %v5826 = vsub.s32 1, %v5825
        %v5827 = vrot.slane %v5812, %v5826
        %v5828 = vlaneseq
        %v5829 = vshrl.u32 %v5828, 7
        %v5830 = vsub.s32 1, %v5829
        %v5831 = vrot.slane %v5816, %v5830
        %v5832 = vmul.f32 %v5803, %v5823
        %v5833 = vmul.f32 %v5803, %v5827
        %v5834 = vmul.f32 %v5803, %v5831
        %5838 = vrot.lane.b32.xlu0 %v5832, 94
        %v5839 = vpop.permute.xlu0 %5838
        %5840 = vrot.lane.b32.xlu0 %v5833, 94
        %v5841 = vpop.permute.xlu0 %5840
        %5842 = vrot.lane.b32.xlu0 %v5834, 94
        %v5843 = vpop.permute.xlu0 %5842
        %v5844 = vsel %vm1957, %v5839, %v5841
        %v5845 = vsel %vm1957, %v5841, %v5843
        %v5849 = vadd.f32 %v5624, %v5839
        %v5850 = vadd.f32 %v5625, %v5844
        %v5851 = vadd.f32 %v5626, %v5845
        %5852 = vset.pattern.permute.xlu0 106
        %5853 = vperm.xlu0 %5852, %v215
        %v5854 = vpop.permute.xlu0 %5853
        %v5856 = vlaneseq
        %v5857 = vshrl.u32 %v5856, 7
        %v5858 = vsub.s32 2, %v5857
        %v5859 = vrot.slane %v5746, %v5858
        %v5860 = vlaneseq
        %v5861 = vshrl.u32 %v5860, 7
        %v5862 = vsub.s32 6, %v5861
        %v5863 = vrot.slane %v5746, %v5862
        %v5864 = vlaneseq
        %v5865 = vshrl.u32 %v5864, 7
        %v5866 = vsub.s32 2, %v5865
        %v5867 = vrot.slane %v5747, %v5866
        %v5871 = vlaneseq
        %v5872 = vshrl.u32 %v5871, 7
        %v5873 = vsub.s32 2, %v5872
        %v5874 = vrot.slane %v5859, %v5873
        %v5875 = vlaneseq
        %v5876 = vshrl.u32 %v5875, 7
        %v5877 = vsub.s32 2, %v5876
        %v5878 = vrot.slane %v5863, %v5877
        %v5879 = vlaneseq
        %v5880 = vshrl.u32 %v5879, 7
        %v5881 = vsub.s32 2, %v5880
        %v5882 = vrot.slane %v5867, %v5881
        %v5883 = vmul.f32 %v5854, %v5874
        %v5884 = vmul.f32 %v5854, %v5878
        %v5885 = vmul.f32 %v5854, %v5882
        %5889 = vrot.lane.b32.xlu0 %v5883, 94
        %v5890 = vpop.permute.xlu0 %5889
        %5891 = vrot.lane.b32.xlu0 %v5884, 94
        %v5892 = vpop.permute.xlu0 %5891
        %5893 = vrot.lane.b32.xlu0 %v5885, 94
        %v5894 = vpop.permute.xlu0 %5893
        %v5895 = vsel %vm1957, %v5890, %v5892
        %v5896 = vsel %vm1957, %v5892, %v5894
        %v5900 = vadd.f32 %v5675, %v5890
        %v5901 = vadd.f32 %v5676, %v5895
        %v5902 = vadd.f32 %v5677, %v5896
        %5903 = vset.pattern.permute.xlu0 107
        %5904 = vperm.xlu0 %5903, %v215
        %v5905 = vpop.permute.xlu0 %5904
        %v5907 = vlaneseq
        %v5908 = vshrl.u32 %v5907, 7
        %v5909 = vsub.s32 3, %v5908
        %v5910 = vrot.slane %v5746, %v5909
        %v5911 = vlaneseq
        %v5912 = vshrl.u32 %v5911, 7
        %v5913 = vsub.s32 7, %v5912
        %v5914 = vrot.slane %v5746, %v5913
        %v5915 = vlaneseq
        %v5916 = vshrl.u32 %v5915, 7
        %v5917 = vsub.s32 3, %v5916
        %v5918 = vrot.slane %v5747, %v5917
        %v5922 = vlaneseq
        %v5923 = vshrl.u32 %v5922, 7
        %v5924 = vsub.s32 3, %v5923
        %v5925 = vrot.slane %v5910, %v5924
        %v5926 = vlaneseq
        %v5927 = vshrl.u32 %v5926, 7
        %v5928 = vsub.s32 3, %v5927
        %v5929 = vrot.slane %v5914, %v5928
        %v5930 = vlaneseq
        %v5931 = vshrl.u32 %v5930, 7
        %v5932 = vsub.s32 3, %v5931
        %v5933 = vrot.slane %v5918, %v5932
        %v5934 = vmul.f32 %v5905, %v5925
        %v5935 = vmul.f32 %v5905, %v5929
        %v5936 = vmul.f32 %v5905, %v5933
        %5940 = vrot.lane.b32.xlu0 %v5934, 94
        %v5941 = vpop.permute.xlu0 %5940
        %5942 = vrot.lane.b32.xlu0 %v5935, 94
        %v5943 = vpop.permute.xlu0 %5942
        %5944 = vrot.lane.b32.xlu0 %v5936, 94
        %v5945 = vpop.permute.xlu0 %5944
        %v5946 = vsel %vm1957, %v5941, %v5943
        %v5947 = vsel %vm1957, %v5943, %v5945
        %v5951 = vadd.f32 %v5726, %v5941
        %v5952 = vadd.f32 %v5727, %v5946
        %v5953 = vadd.f32 %v5728, %v5947
        %v5954 = vadd.f32 %v5798, %v5849
        %v5955 = vadd.f32 %v5799, %v5850
        %v5956 = vadd.f32 %v5800, %v5851
        %v5957 = vadd.f32 %v5900, %v5951
        %v5958 = vadd.f32 %v5901, %v5952
        %v5959 = vadd.f32 %v5902, %v5953
        %v5960 = vadd.f32 %v5954, %v5957
        %v5961 = vadd.f32 %v5955, %v5958
        %v5962 = vadd.f32 %v5956, %v5959
        %5963 = vset.pattern.permute.xlu0 110
        %5964 = vperm.xlu0 %5963, %v215
        %v5965 = vpop.permute.xlu0 %5964
        %v5967 = vadd.f32 %v5960, %v5965
        %v5968 = vadd.f32 %v5961, %v5965
        %v5969 = vadd.f32 %v5962, %v5965
        %v5970 = vld [vmem:[#allocation3] sm:$0xff]
        %v5971 = vld [vmem:[#allocation3 + $0x8] sm:$0xff]
        %v5972 = vld [vmem:[#allocation3 + $0x10] sm:$0xff]
        %v5973 = vld [vmem:[#allocation3 + $0x18] sm:$0xff]
        %v5974 = vld [vmem:[#allocation3 + $0x20] sm:$0xff]
        %v5975 = vld [vmem:[#allocation3 + $0x28] sm:$0xff]
        %v5976 = vld [vmem:[#allocation3 + $0x30] sm:$0xff]
        %v5977 = vld [vmem:[#allocation3 + $0x38] sm:$0xff]
        %v5978 = vld [vmem:[#allocation3 + $0x40] sm:$0xff]
        %v5979 = vld [vmem:[#allocation3 + $0x48] sm:$0xff]
        %v5980 = vld [vmem:[#allocation3 + $0x50] sm:$0xff]
        %v5981 = vld [vmem:[#allocation3 + $0x58] sm:$0xff]
        %v5982 = vld [vmem:[#allocation3 + $0x60] sm:$0xff]
        %v5983 = vld [vmem:[#allocation3 + $0x68] sm:$0xff]
        %v5984 = vld [vmem:[#allocation3 + $0x70] sm:$0xff]
        %v5985 = vld [vmem:[#allocation3 + $0x78] sm:$0xff]
        %v5986 = vld [vmem:[#allocation3 + $0x80] sm:$0xff]
        %v5987 = vld [vmem:[#allocation3 + $0x88] sm:$0xff]
        %v5988 = vld [vmem:[#allocation3 + $0x90] sm:$0xff]
        %v5989 = vld [vmem:[#allocation3 + $0x98] sm:$0xff]
        %v5990 = vld [vmem:[#allocation3 + $0xa0] sm:$0xff]
        %v5991 = vld [vmem:[#allocation3 + $0xa8] sm:$0xff]
        %v5992 = vld [vmem:[#allocation3 + $0xb0] sm:$0xff]
        %v5993 = vld [vmem:[#allocation3 + $0xb8] sm:$0xff]
        %v5994 = vld [vmem:[#allocation3 + $0xc0] sm:$0xff]
        %v5995 = vld [vmem:[#allocation3 + $0xc8] sm:$0xff]
        %v5996 = vld [vmem:[#allocation3 + $0xd0] sm:$0xff]
        %v5997 = vld [vmem:[#allocation3 + $0xd8] sm:$0xff]
        %v5998 = vld [vmem:[#allocation3 + $0xe0] sm:$0xff]
        %v5999 = vld [vmem:[#allocation3 + $0xe8] sm:$0xff]
        %v6000 = vld [vmem:[#allocation3 + $0xf0] sm:$0xff]
        %v6001 = vld [vmem:[#allocation3 + $0xf8] sm:$0xff]
        %v6002 = vld [vmem:[#allocation3 + $0x100] sm:$0xff]
        %v6003 = vld [vmem:[#allocation3 + $0x108] sm:$0xff]
        %v6004 = vld [vmem:[#allocation3 + $0x110] sm:$0xff]
        %v6005 = vld [vmem:[#allocation3 + $0x118] sm:$0xff]
        %v6006 = vld [vmem:[#allocation3 + $0x120] sm:$0xff]
        %v6007 = vld [vmem:[#allocation3 + $0x128] sm:$0xff]
        %v6008 = vld [vmem:[#allocation3 + $0x130] sm:$0xff]
        %v6009 = vld [vmem:[#allocation3 + $0x138] sm:$0xff]
        %v6010 = vld [vmem:[#allocation3 + $0x140] sm:$0xff]
        %v6011 = vld [vmem:[#allocation3 + $0x148] sm:$0xff]
        %v6012 = vld [vmem:[#allocation3 + $0x150] sm:$0xff]
        %v6013 = vld [vmem:[#allocation3 + $0x158] sm:$0xff]
        %v6014 = vld [vmem:[#allocation3 + $0x160] sm:$0xff]
        %v6015 = vld [vmem:[#allocation3 + $0x168] sm:$0xff]
        %v6016 = vld [vmem:[#allocation3 + $0x170] sm:$0xff]
        %v6017 = vld [vmem:[#allocation3 + $0x178] sm:$0xff]
        %v6018 = vld [vmem:[#allocation3 + $0x180] sm:$0xff]
        %v6019 = vld [vmem:[#allocation3 + $0x188] sm:$0xff]
        %v6020 = vld [vmem:[#allocation3 + $0x190] sm:$0xff]
        %v6021 = vld [vmem:[#allocation3 + $0x198] sm:$0xff]
        %v6022 = vld [vmem:[#allocation3 + $0x1a0] sm:$0xff]
        %v6023 = vld [vmem:[#allocation3 + $0x1a8] sm:$0xff]
        %v6024 = vld [vmem:[#allocation3 + $0x1b0] sm:$0xff]
        %v6025 = vld [vmem:[#allocation3 + $0x1b8] sm:$0xff]
        %v6026 = vld [vmem:[#allocation3 + $0x1c0] sm:$0xff]
        %v6027 = vld [vmem:[#allocation3 + $0x1c8] sm:$0xff]
        %v6028 = vld [vmem:[#allocation3 + $0x1d0] sm:$0xff]
        %v6029 = vld [vmem:[#allocation3 + $0x1d8] sm:$0xff]
        %v6030 = vld [vmem:[#allocation3 + $0x1e0] sm:$0xff]
        %v6031 = vld [vmem:[#allocation3 + $0x1e8] sm:$0xff]
        %v6032 = vld [vmem:[#allocation3 + $0x1f0] sm:$0xff]
        %v6033 = vld [vmem:[#allocation3 + $0x1f8] sm:$0xff]
        %v6034 = vld [vmem:[#allocation3 + $0x200] sm:$0xff]
        %v6035 = vld [vmem:[#allocation3 + $0x208] sm:$0xff]
        %v6036 = vld [vmem:[#allocation3 + $0x210] sm:$0xff]
        %v6037 = vld [vmem:[#allocation3 + $0x218] sm:$0xff]
        %v6038 = vld [vmem:[#allocation3 + $0x220] sm:$0xff]
        %v6039 = vld [vmem:[#allocation3 + $0x228] sm:$0xff]
        %v6040 = vld [vmem:[#allocation3 + $0x230] sm:$0xff]
        %v6041 = vld [vmem:[#allocation3 + $0x238] sm:$0xff]
        %v6042 = vld [vmem:[#allocation3 + $0x240] sm:$0xff]
        %v6043 = vld [vmem:[#allocation3 + $0x248] sm:$0xff]
        %v6044 = vld [vmem:[#allocation3 + $0x250] sm:$0xff]
        %v6045 = vld [vmem:[#allocation3 + $0x258] sm:$0xff]
        %v6046 = vld [vmem:[#allocation3 + $0x260] sm:$0xff]
        %v6047 = vld [vmem:[#allocation3 + $0x268] sm:$0xff]
        %v6048 = vld [vmem:[#allocation3 + $0x270] sm:$0xff]
        %v6049 = vld [vmem:[#allocation3 + $0x278] sm:$0xff]
        %v6050 = vld [vmem:[#allocation3 + $0x280] sm:$0xff]
        %v6051 = vld [vmem:[#allocation3 + $0x288] sm:$0xff]
        %v6052 = vld [vmem:[#allocation3 + $0x290] sm:$0xff]
        %v6053 = vld [vmem:[#allocation3 + $0x298] sm:$0xff]
        %v6054 = vld [vmem:[#allocation3 + $0x2a0] sm:$0xff]
        %v6055 = vld [vmem:[#allocation3 + $0x2a8] sm:$0xff]
        %v6056 = vld [vmem:[#allocation3 + $0x2b0] sm:$0xff]
        %v6057 = vld [vmem:[#allocation3 + $0x2b8] sm:$0xff]
        %v6058 = vld [vmem:[#allocation3 + $0x2c0] sm:$0xff]
        %v6059 = vld [vmem:[#allocation3 + $0x2c8] sm:$0xff]
        %v6060 = vld [vmem:[#allocation3 + $0x2d0] sm:$0xff]
        %v6061 = vld [vmem:[#allocation3 + $0x2d8] sm:$0xff]
        %v6062 = vld [vmem:[#allocation3 + $0x2e0] sm:$0xff]
        %v6063 = vld [vmem:[#allocation3 + $0x2e8] sm:$0xff]
        %v6064 = vld [vmem:[#allocation3 + $0x2f0] sm:$0xff]
        %v6065 = vld [vmem:[#allocation3 + $0x2f8] sm:$0xff]
        %v6066 = vld [vmem:[#allocation3 + $0x300] sm:$0xff]
        %v6067 = vld [vmem:[#allocation3 + $0x308] sm:$0xff]
        %v6068 = vld [vmem:[#allocation3 + $0x310] sm:$0xff]
        %v6069 = vld [vmem:[#allocation3 + $0x318] sm:$0xff]
        %v6070 = vld [vmem:[#allocation3 + $0x320] sm:$0xff]
        %v6071 = vld [vmem:[#allocation3 + $0x328] sm:$0xff]
        %v6072 = vld [vmem:[#allocation3 + $0x330] sm:$0xff]
        %v6073 = vld [vmem:[#allocation3 + $0x338] sm:$0xff]
        %v6074 = vld [vmem:[#allocation3 + $0x340] sm:$0xff]
        %v6075 = vld [vmem:[#allocation3 + $0x348] sm:$0xff]
        %v6076 = vld [vmem:[#allocation3 + $0x350] sm:$0xff]
        %v6077 = vld [vmem:[#allocation3 + $0x358] sm:$0xff]
        %v6078 = vld [vmem:[#allocation3 + $0x360] sm:$0xff]
        %v6079 = vld [vmem:[#allocation3 + $0x368] sm:$0xff]
        %v6080 = vld [vmem:[#allocation3 + $0x370] sm:$0xff]
        %v6081 = vld [vmem:[#allocation3 + $0x378] sm:$0xff]
        %v6082 = vld [vmem:[#allocation3 + $0x380] sm:$0xff]
        %v6083 = vld [vmem:[#allocation3 + $0x388] sm:$0xff]
        %v6084 = vld [vmem:[#allocation3 + $0x390] sm:$0xff]
        %v6085 = vld [vmem:[#allocation3 + $0x398] sm:$0xff]
        %v6086 = vld [vmem:[#allocation3 + $0x3a0] sm:$0xff]
        %v6087 = vld [vmem:[#allocation3 + $0x3a8] sm:$0xff]
        %v6088 = vld [vmem:[#allocation3 + $0x3b0] sm:$0xff]
        %v6089 = vld [vmem:[#allocation3 + $0x3b8] sm:$0xff]
        %v6090 = vld [vmem:[#allocation3 + $0x3c0] sm:$0xff]
        %v6091 = vld [vmem:[#allocation3 + $0x3c8] sm:$0xff]
        %v6092 = vld [vmem:[#allocation3 + $0x3d0] sm:$0xff]
        %v6093 = vld [vmem:[#allocation3 + $0x3d8] sm:$0xff]
        %v6094 = vld [vmem:[#allocation3 + $0x3e0] sm:$0xff]
        %v6095 = vld [vmem:[#allocation3 + $0x3e8] sm:$0xff]
        %v6096 = vld [vmem:[#allocation3 + $0x3f0] sm:$0xff]
        %v6097 = vld [vmem:[#allocation3 + $0x3f8] sm:$0xff]
        %v6098 = vld [vmem:[#allocation3 + $0x400] sm:$0xff]
        %v6099 = vld [vmem:[#allocation3 + $0x408] sm:$0xff]
        %v6100 = vld [vmem:[#allocation3 + $0x410] sm:$0xff]
        %v6101 = vld [vmem:[#allocation3 + $0x418] sm:$0xff]
        %v6102 = vld [vmem:[#allocation3 + $0x420] sm:$0xff]
        %v6103 = vld [vmem:[#allocation3 + $0x428] sm:$0xff]
        %v6104 = vld [vmem:[#allocation3 + $0x430] sm:$0xff]
        %v6105 = vld [vmem:[#allocation3 + $0x438] sm:$0xff]
        %v6106 = vld [vmem:[#allocation3 + $0x440] sm:$0xff]
        %v6107 = vld [vmem:[#allocation3 + $0x448] sm:$0xff]
        %v6108 = vld [vmem:[#allocation3 + $0x450] sm:$0xff]
        %v6109 = vld [vmem:[#allocation3 + $0x458] sm:$0xff]
        %v6110 = vld [vmem:[#allocation3 + $0x460] sm:$0xff]
        %v6111 = vld [vmem:[#allocation3 + $0x468] sm:$0xff]
        %v6112 = vld [vmem:[#allocation3 + $0x470] sm:$0xff]
        %v6113 = vld [vmem:[#allocation3 + $0x478] sm:$0xff]
        %v6114 = vld [vmem:[#allocation3 + $0x480] sm:$0xff]
        %v6115 = vld [vmem:[#allocation3 + $0x488] sm:$0xff]
        %v6116 = vld [vmem:[#allocation3 + $0x490] sm:$0xff]
        %v6117 = vld [vmem:[#allocation3 + $0x498] sm:$0xff]
        %v6118 = vld [vmem:[#allocation3 + $0x4a0] sm:$0xff]
        %v6119 = vld [vmem:[#allocation3 + $0x4a8] sm:$0xff]
        %v6120 = vld [vmem:[#allocation3 + $0x4b0] sm:$0xff]
        %v6121 = vld [vmem:[#allocation3 + $0x4b8] sm:$0xff]
        %v6122 = vld [vmem:[#allocation3 + $0x4c0] sm:$0xff]
        %v6123 = vld [vmem:[#allocation3 + $0x4c8] sm:$0xff]
        %v6124 = vld [vmem:[#allocation3 + $0x4d0] sm:$0xff]
        %v6125 = vld [vmem:[#allocation3 + $0x4d8] sm:$0xff]
        %v6126 = vld [vmem:[#allocation3 + $0x4e0] sm:$0xff]
        %v6127 = vld [vmem:[#allocation3 + $0x4e8] sm:$0xff]
        %v6128 = vld [vmem:[#allocation3 + $0x4f0] sm:$0xff]
        %v6129 = vld [vmem:[#allocation3 + $0x4f8] sm:$0xff]
        %v6130 = vld [vmem:[#allocation3 + $0x500] sm:$0xff]
        %v6131 = vld [vmem:[#allocation3 + $0x508] sm:$0xff]
        %v6132 = vld [vmem:[#allocation3 + $0x510] sm:$0xff]
        %v6133 = vld [vmem:[#allocation3 + $0x518] sm:$0xff]
        %v6134 = vld [vmem:[#allocation3 + $0x520] sm:$0xff]
        %v6135 = vld [vmem:[#allocation3 + $0x528] sm:$0xff]
        %v6136 = vld [vmem:[#allocation3 + $0x530] sm:$0xff]
        %v6137 = vld [vmem:[#allocation3 + $0x538] sm:$0xff]
        %v6138 = vld [vmem:[#allocation3 + $0x540] sm:$0xff]
        %v6139 = vld [vmem:[#allocation3 + $0x548] sm:$0xff]
        %v6140 = vld [vmem:[#allocation3 + $0x550] sm:$0xff]
        %v6141 = vld [vmem:[#allocation3 + $0x558] sm:$0xff]
        %v6142 = vld [vmem:[#allocation3 + $0x560] sm:$0xff]
        %v6143 = vld [vmem:[#allocation3 + $0x568] sm:$0xff]
        %v6144 = vld [vmem:[#allocation3 + $0x570] sm:$0xff]
        %v6145 = vld [vmem:[#allocation3 + $0x578] sm:$0xff]
        %v6146 = vld [vmem:[#allocation3 + $0x580] sm:$0xff]
        %v6147 = vld [vmem:[#allocation3 + $0x588] sm:$0xff]
        %v6148 = vld [vmem:[#allocation3 + $0x590] sm:$0xff]
        %v6149 = vld [vmem:[#allocation3 + $0x598] sm:$0xff]
        %v6150 = vld [vmem:[#allocation3 + $0x5a0] sm:$0xff]
        %v6151 = vld [vmem:[#allocation3 + $0x5a8] sm:$0xff]
        %v6152 = vld [vmem:[#allocation3 + $0x5b0] sm:$0xff]
        %v6153 = vld [vmem:[#allocation3 + $0x5b8] sm:$0xff]
        %v6154 = vld [vmem:[#allocation3 + $0x5c0] sm:$0xff]
        %v6155 = vld [vmem:[#allocation3 + $0x5c8] sm:$0xff]
        %v6156 = vld [vmem:[#allocation3 + $0x5d0] sm:$0xff]
        %v6157 = vld [vmem:[#allocation3 + $0x5d8] sm:$0xff]
        %v6158 = vld [vmem:[#allocation3 + $0x5e0] sm:$0xff]
        %v6159 = vld [vmem:[#allocation3 + $0x5e8] sm:$0xff]
        %v6160 = vld [vmem:[#allocation3 + $0x5f0] sm:$0xff]
        %v6161 = vld [vmem:[#allocation3 + $0x5f8] sm:$0xff]
        %v6162 = vld [vmem:[#allocation3 + $0x600] sm:$0xff]
        %v6163 = vld [vmem:[#allocation3 + $0x608] sm:$0xff]
        %v6164 = vld [vmem:[#allocation3 + $0x610] sm:$0xff]
        %v6165 = vld [vmem:[#allocation3 + $0x618] sm:$0xff]
        %v6166 = vld [vmem:[#allocation3 + $0x620] sm:$0xff]
        %v6167 = vld [vmem:[#allocation3 + $0x628] sm:$0xff]
        %v6168 = vld [vmem:[#allocation3 + $0x630] sm:$0xff]
        %v6169 = vld [vmem:[#allocation3 + $0x638] sm:$0xff]
        %v6170 = vld [vmem:[#allocation3 + $0x640] sm:$0xff]
        %v6171 = vld [vmem:[#allocation3 + $0x648] sm:$0xff]
        %v6172 = vld [vmem:[#allocation3 + $0x650] sm:$0xff]
        %v6173 = vld [vmem:[#allocation3 + $0x658] sm:$0xff]
        %v6174 = vld [vmem:[#allocation3 + $0x660] sm:$0xff]
        %v6175 = vld [vmem:[#allocation3 + $0x668] sm:$0xff]
        %v6176 = vld [vmem:[#allocation3 + $0x670] sm:$0xff]
        %v6177 = vld [vmem:[#allocation3 + $0x678] sm:$0xff]
        %v6178 = vld [vmem:[#allocation3 + $0x680] sm:$0xff]
        %v6179 = vld [vmem:[#allocation3 + $0x688] sm:$0xff]
        %v6180 = vld [vmem:[#allocation3 + $0x690] sm:$0xff]
        %v6181 = vld [vmem:[#allocation3 + $0x698] sm:$0xff]
        %v6182 = vld [vmem:[#allocation3 + $0x6a0] sm:$0xff]
        %v6183 = vld [vmem:[#allocation3 + $0x6a8] sm:$0xff]
        %v6184 = vld [vmem:[#allocation3 + $0x6b0] sm:$0xff]
        %v6185 = vld [vmem:[#allocation3 + $0x6b8] sm:$0xff]
        %v6186 = vld [vmem:[#allocation3 + $0x6c0] sm:$0xff]
        %v6187 = vld [vmem:[#allocation3 + $0x6c8] sm:$0xff]
        %v6188 = vld [vmem:[#allocation3 + $0x6d0] sm:$0xff]
        %v6189 = vld [vmem:[#allocation3 + $0x6d8] sm:$0xff]
        %v6190 = vld [vmem:[#allocation3 + $0x6e0] sm:$0xff]
        %v6191 = vld [vmem:[#allocation3 + $0x6e8] sm:$0xff]
        %v6192 = vld [vmem:[#allocation3 + $0x6f0] sm:$0xff]
        %v6193 = vld [vmem:[#allocation3 + $0x6f8] sm:$0xff]
        %v6194 = vld [vmem:[#allocation3 + $0x700] sm:$0xff]
        %v6195 = vld [vmem:[#allocation3 + $0x708] sm:$0xff]
        %v6196 = vld [vmem:[#allocation3 + $0x710] sm:$0xff]
        %v6197 = vld [vmem:[#allocation3 + $0x718] sm:$0xff]
        %v6198 = vld [vmem:[#allocation3 + $0x720] sm:$0xff]
        %v6199 = vld [vmem:[#allocation3 + $0x728] sm:$0xff]
        %v6200 = vld [vmem:[#allocation3 + $0x730] sm:$0xff]
        %v6201 = vld [vmem:[#allocation3 + $0x738] sm:$0xff]
        %v6202 = vld [vmem:[#allocation3 + $0x740] sm:$0xff]
        %v6203 = vld [vmem:[#allocation3 + $0x748] sm:$0xff]
        %v6204 = vld [vmem:[#allocation3 + $0x750] sm:$0xff]
        %v6205 = vld [vmem:[#allocation3 + $0x758] sm:$0xff]
        %v6206 = vld [vmem:[#allocation3 + $0x760] sm:$0xff]
        %v6207 = vld [vmem:[#allocation3 + $0x768] sm:$0xff]
        %v6208 = vld [vmem:[#allocation3 + $0x770] sm:$0xff]
        %v6209 = vld [vmem:[#allocation3 + $0x778] sm:$0xff]
        %v6210 = vld [vmem:[#allocation3 + $0x780] sm:$0xff]
        %v6211 = vld [vmem:[#allocation3 + $0x788] sm:$0xff]
        %v6212 = vld [vmem:[#allocation3 + $0x790] sm:$0xff]
        %v6213 = vld [vmem:[#allocation3 + $0x798] sm:$0xff]
        %v6214 = vld [vmem:[#allocation3 + $0x7a0] sm:$0xff]
        %v6215 = vld [vmem:[#allocation3 + $0x7a8] sm:$0xff]
        %v6216 = vld [vmem:[#allocation3 + $0x7b0] sm:$0xff]
        %v6217 = vld [vmem:[#allocation3 + $0x7b8] sm:$0xff]
        %v6218 = vld [vmem:[#allocation3 + $0x7c0] sm:$0xff]
        %v6219 = vld [vmem:[#allocation3 + $0x7c8] sm:$0xff]
        %v6220 = vld [vmem:[#allocation3 + $0x7d0] sm:$0xff]
        %v6221 = vld [vmem:[#allocation3 + $0x7d8] sm:$0xff]
        %v6222 = vld [vmem:[#allocation3 + $0x7e0] sm:$0xff]
        %v6223 = vld [vmem:[#allocation3 + $0x7e8] sm:$0xff]
        %v6224 = vld [vmem:[#allocation3 + $0x7f0] sm:$0xff]
        %v6225 = vld [vmem:[#allocation3 + $0x7f8] sm:$0xff]
        %6229 = vrot.lane.b32.xlu0 %v5967, 17
        %v6230 = vpop.permute.xlu0 %6229
        %6231 = vrot.lane.b32.xlu0 %v5968, 17
        %v6232 = vpop.permute.xlu0 %6231
        %6233 = vrot.lane.b32.xlu0 %v5969, 17
        %v6234 = vpop.permute.xlu0 %6233
        %v6235 = vsel %vm1906, %v6230, %v6232
        %v6236 = vsel %vm1906, %v6232, %v6234
        %6239 = vmatprep.subr.mxu0 %v5971
        %6240 = vmatpush1.msra.mxu0 %v5970
        %6241 = vmatprep.subr.mxu0 %v5979
        %6242 = vmatpush1.msra.mxu0 %v5978
        %6243 = vmatprep.subr.mxu0 %v5987
        %6244 = vmatpush1.msra.mxu0 %v5986
        %6245 = vmatprep.subr.mxu0 %v5995
        %6246 = vmatpush1.msra.mxu0 %v5994
        %6247 = vmatprep.subr.mxu0 %v6003
        %6248 = vmatpush1.msra.mxu0 %v6002
        %6249 = vmatprep.subr.mxu0 %v6011
        %6250 = vmatpush1.msra.mxu0 %v6010
        %6251 = vmatprep.subr.mxu0 %v6019
        %6252 = vmatpush1.msra.mxu0 %v6018
        %6253 = vmatprep.subr.mxu0 %v6027
        %6254 = vmatpush1.msra.mxu0 %v6026
        %6255 = vmatprep.subr.mxu0 %v6035
        %6256 = vmatpush1.msra.mxu0 %v6034
        %6257 = vmatprep.subr.mxu0 %v6043
        %6258 = vmatpush1.msra.mxu0 %v6042
        %6259 = vmatprep.subr.mxu0 %v6051
        %6260 = vmatpush1.msra.mxu0 %v6050
        %6261 = vmatprep.subr.mxu0 %v6059
        %6262 = vmatpush1.msra.mxu0 %v6058
        %6263 = vmatprep.subr.mxu0 %v6067
        %6264 = vmatpush1.msra.mxu0 %v6066
        %6265 = vmatprep.subr.mxu0 %v6075
        %6266 = vmatpush1.msra.mxu0 %v6074
        %6267 = vmatprep.subr.mxu0 %v6083
        %6268 = vmatpush1.msra.mxu0 %v6082
        %6269 = vmatprep.subr.mxu0 %v6091
        %6270 = vmatpush1.msra.mxu0 %v6090
        %6271 = vmatprep.subr.mxu0 %v6099
        %6272 = vmatpush1.msra.mxu0 %v6098
        %6273 = vmatprep.subr.mxu0 %v6107
        %6274 = vmatpush1.msra.mxu0 %v6106
        %6275 = vmatprep.subr.mxu0 %v6115
        %6276 = vmatpush1.msra.mxu0 %v6114
        %6277 = vmatprep.subr.mxu0 %v6123
        %6278 = vmatpush1.msra.mxu0 %v6122
        %6279 = vmatprep.subr.mxu0 %v6131
        %6280 = vmatpush1.msra.mxu0 %v6130
        %6281 = vmatprep.subr.mxu0 %v6139
        %6282 = vmatpush1.msra.mxu0 %v6138
        %6283 = vmatprep.subr.mxu0 %v6147
        %6284 = vmatpush1.msra.mxu0 %v6146
        %6285 = vmatprep.subr.mxu0 %v6155
        %6286 = vmatpush1.msra.mxu0 %v6154
        %6287 = vmatprep.subr.mxu0 %v6163
        %6288 = vmatpush1.msra.mxu0 %v6162
        %6289 = vmatprep.subr.mxu0 %v6171
        %6290 = vmatpush1.msra.mxu0 %v6170
        %6291 = vmatprep.subr.mxu0 %v6179
        %6292 = vmatpush1.msra.mxu0 %v6178
        %6293 = vmatprep.subr.mxu0 %v6187
        %6294 = vmatpush1.msra.mxu0 %v6186
        %6295 = vmatprep.subr.mxu0 %v6195
        %6296 = vmatpush1.msra.mxu0 %v6194
        %6297 = vmatprep.subr.mxu0 %v6203
        %6298 = vmatpush1.msra.mxu0 %v6202
        %6299 = vmatprep.subr.mxu0 %v6211
        %6300 = vmatpush1.msra.mxu0 %v6210
        %6301 = vmatprep.subr.mxu0 %v6219
        %6302 = vmatpush1.msra.mxu0 %v6218
        %6303 = vmatprep.mubr.f32.mxu0 %v6236
        %6304 = vmatmul.mubr.f32.gmra.mrb[0].mxu0 %v6235
        %v6305 = vpop.f32.mrb[0].mxu0
        %v6306 = vadd.f32 0.0, %v6305
        %v6307 = vpop.f32.mrb[0].mxu0
        %v6308 = vadd.f32 0.0, %v6307
        %6309 = vdwg.mxu0
        %6310 = vmatprep.subr.mxu0 %v5973
        %6311 = vmatpush1.msra.mxu0 %v5972
        %6312 = vmatprep.subr.mxu0 %v5981
        %6313 = vmatpush1.msra.mxu0 %v5980
        %6314 = vmatprep.subr.mxu0 %v5989
        %6315 = vmatpush1.msra.mxu0 %v5988
        %6316 = vmatprep.subr.mxu0 %v5997
        %6317 = vmatpush1.msra.mxu0 %v5996
        %6318 = vmatprep.subr.mxu0 %v6005
        %6319 = vmatpush1.msra.mxu0 %v6004
        %6320 = vmatprep.subr.mxu0 %v6013
        %6321 = vmatpush1.msra.mxu0 %v6012
        %6322 = vmatprep.subr.mxu0 %v6021
        %6323 = vmatpush1.msra.mxu0 %v6020
        %6324 = vmatprep.subr.mxu0 %v6029
        %6325 = vmatpush1.msra.mxu0 %v6028
        %6326 = vmatprep.subr.mxu0 %v6037
        %6327 = vmatpush1.msra.mxu0 %v6036
        %6328 = vmatprep.subr.mxu0 %v6045
        %6329 = vmatpush1.msra.mxu0 %v6044
        %6330 = vmatprep.subr.mxu0 %v6053
        %6331 = vmatpush1.msra.mxu0 %v6052
        %6332 = vmatprep.subr.mxu0 %v6061
        %6333 = vmatpush1.msra.mxu0 %v6060
        %6334 = vmatprep.subr.mxu0 %v6069
        %6335 = vmatpush1.msra.mxu0 %v6068
        %6336 = vmatprep.subr.mxu0 %v6077
        %6337 = vmatpush1.msra.mxu0 %v6076
        %6338 = vmatprep.subr.mxu0 %v6085
        %6339 = vmatpush1.msra.mxu0 %v6084
        %6340 = vmatprep.subr.mxu0 %v6093
        %6341 = vmatpush1.msra.mxu0 %v6092
        %6342 = vmatprep.subr.mxu0 %v6101
        %6343 = vmatpush1.msra.mxu0 %v6100
        %6344 = vmatprep.subr.mxu0 %v6109
        %6345 = vmatpush1.msra.mxu0 %v6108
        %6346 = vmatprep.subr.mxu0 %v6117
        %6347 = vmatpush1.msra.mxu0 %v6116
        %6348 = vmatprep.subr.mxu0 %v6125
        %6349 = vmatpush1.msra.mxu0 %v6124
        %6350 = vmatprep.subr.mxu0 %v6133
        %6351 = vmatpush1.msra.mxu0 %v6132
        %6352 = vmatprep.subr.mxu0 %v6141
        %6353 = vmatpush1.msra.mxu0 %v6140
        %6354 = vmatprep.subr.mxu0 %v6149
        %6355 = vmatpush1.msra.mxu0 %v6148
        %6356 = vmatprep.subr.mxu0 %v6157
        %6357 = vmatpush1.msra.mxu0 %v6156
        %6358 = vmatprep.subr.mxu0 %v6165
        %6359 = vmatpush1.msra.mxu0 %v6164
        %6360 = vmatprep.subr.mxu0 %v6173
        %6361 = vmatpush1.msra.mxu0 %v6172
        %6362 = vmatprep.subr.mxu0 %v6181
        %6363 = vmatpush1.msra.mxu0 %v6180
        %6364 = vmatprep.subr.mxu0 %v6189
        %6365 = vmatpush1.msra.mxu0 %v6188
        %6366 = vmatprep.subr.mxu0 %v6197
        %6367 = vmatpush1.msra.mxu0 %v6196
        %6368 = vmatprep.subr.mxu0 %v6205
        %6369 = vmatpush1.msra.mxu0 %v6204
        %6370 = vmatprep.subr.mxu0 %v6213
        %6371 = vmatpush1.msra.mxu0 %v6212
        %6372 = vmatprep.subr.mxu0 %v6221
        %6373 = vmatpush1.msra.mxu0 %v6220
        %6374 = vmatprep.mubr.f32.mxu0 %v6236
        %6375 = vmatmul.mubr.f32.gmra.mrb[0].mxu0 %v6235
        %v6376 = vpop.f32.mrb[0].mxu0
        %v6377 = vadd.f32 0.0, %v6376
        %v6378 = vpop.f32.mrb[0].mxu0
        %v6379 = vadd.f32 0.0, %v6378
        %6380 = vdwg.mxu0
        %6381 = vmatprep.subr.mxu0 %v5975
        %6382 = vmatpush1.msra.mxu0 %v5974
        %6383 = vmatprep.subr.mxu0 %v5983
        %6384 = vmatpush1.msra.mxu0 %v5982
        %6385 = vmatprep.subr.mxu0 %v5991
        %6386 = vmatpush1.msra.mxu0 %v5990
        %6387 = vmatprep.subr.mxu0 %v5999
        %6388 = vmatpush1.msra.mxu0 %v5998
        %6389 = vmatprep.subr.mxu0 %v6007
        %6390 = vmatpush1.msra.mxu0 %v6006
        %6391 = vmatprep.subr.mxu0 %v6015
        %6392 = vmatpush1.msra.mxu0 %v6014
        %6393 = vmatprep.subr.mxu0 %v6023
        %6394 = vmatpush1.msra.mxu0 %v6022
        %6395 = vmatprep.subr.mxu0 %v6031
        %6396 = vmatpush1.msra.mxu0 %v6030
        %6397 = vmatprep.subr.mxu0 %v6039
        %6398 = vmatpush1.msra.mxu0 %v6038
        %6399 = vmatprep.subr.mxu0 %v6047
        %6400 = vmatpush1.msra.mxu0 %v6046
        %6401 = vmatprep.subr.mxu0 %v6055
        %6402 = vmatpush1.msra.mxu0 %v6054
        %6403 = vmatprep.subr.mxu0 %v6063
        %6404 = vmatpush1.msra.mxu0 %v6062
        %6405 = vmatprep.subr.mxu0 %v6071
        %6406 = vmatpush1.msra.mxu0 %v6070
        %6407 = vmatprep.subr.mxu0 %v6079
        %6408 = vmatpush1.msra.mxu0 %v6078
        %6409 = vmatprep.subr.mxu0 %v6087
        %6410 = vmatpush1.msra.mxu0 %v6086
        %6411 = vmatprep.subr.mxu0 %v6095
        %6412 = vmatpush1.msra.mxu0 %v6094
        %6413 = vmatprep.subr.mxu0 %v6103
        %6414 = vmatpush1.msra.mxu0 %v6102
        %6415 = vmatprep.subr.mxu0 %v6111
        %6416 = vmatpush1.msra.mxu0 %v6110
        %6417 = vmatprep.subr.mxu0 %v6119
        %6418 = vmatpush1.msra.mxu0 %v6118
        %6419 = vmatprep.subr.mxu0 %v6127
        %6420 = vmatpush1.msra.mxu0 %v6126
        %6421 = vmatprep.subr.mxu0 %v6135
        %6422 = vmatpush1.msra.mxu0 %v6134
        %6423 = vmatprep.subr.mxu0 %v6143
        %6424 = vmatpush1.msra.mxu0 %v6142
        %6425 = vmatprep.subr.mxu0 %v6151
        %6426 = vmatpush1.msra.mxu0 %v6150
        %6427 = vmatprep.subr.mxu0 %v6159
        %6428 = vmatpush1.msra.mxu0 %v6158
        %6429 = vmatprep.subr.mxu0 %v6167
        %6430 = vmatpush1.msra.mxu0 %v6166
        %6431 = vmatprep.subr.mxu0 %v6175
        %6432 = vmatpush1.msra.mxu0 %v6174
        %6433 = vmatprep.subr.mxu0 %v6183
        %6434 = vmatpush1.msra.mxu0 %v6182
        %6435 = vmatprep.subr.mxu0 %v6191
        %6436 = vmatpush1.msra.mxu0 %v6190
        %6437 = vmatprep.subr.mxu0 %v6199
        %6438 = vmatpush1.msra.mxu0 %v6198
        %6439 = vmatprep.subr.mxu0 %v6207
        %6440 = vmatpush1.msra.mxu0 %v6206
        %6441 = vmatprep.subr.mxu0 %v6215
        %6442 = vmatpush1.msra.mxu0 %v6214
        %6443 = vmatprep.subr.mxu0 %v6223
        %6444 = vmatpush1.msra.mxu0 %v6222
        %6445 = vmatprep.mubr.f32.mxu0 %v6236
        %6446 = vmatmul.mubr.f32.gmra.mrb[0].mxu0 %v6235
        %v6447 = vpop.f32.mrb[0].mxu0
        %v6448 = vadd.f32 0.0, %v6447
        %v6449 = vpop.f32.mrb[0].mxu0
        %v6450 = vadd.f32 0.0, %v6449
        %6451 = vdwg.mxu0
        %6452 = vmatprep.subr.mxu0 %v5977
        %6453 = vmatpush1.msra.mxu0 %v5976
        %6454 = vmatprep.subr.mxu0 %v5985
        %6455 = vmatpush1.msra.mxu0 %v5984
        %6456 = vmatprep.subr.mxu0 %v5993
        %6457 = vmatpush1.msra.mxu0 %v5992
        %6458 = vmatprep.subr.mxu0 %v6001
        %6459 = vmatpush1.msra.mxu0 %v6000
        %6460 = vmatprep.subr.mxu0 %v6009
        %6461 = vmatpush1.msra.mxu0 %v6008
        %6462 = vmatprep.subr.mxu0 %v6017
        %6463 = vmatpush1.msra.mxu0 %v6016
        %6464 = vmatprep.subr.mxu0 %v6025
        %6465 = vmatpush1.msra.mxu0 %v6024
        %6466 = vmatprep.subr.mxu0 %v6033
        %6467 = vmatpush1.msra.mxu0 %v6032
        %6468 = vmatprep.subr.mxu0 %v6041
        %6469 = vmatpush1.msra.mxu0 %v6040
        %6470 = vmatprep.subr.mxu0 %v6049
        %6471 = vmatpush1.msra.mxu0 %v6048
        %6472 = vmatprep.subr.mxu0 %v6057
        %6473 = vmatpush1.msra.mxu0 %v6056
        %6474 = vmatprep.subr.mxu0 %v6065
        %6475 = vmatpush1.msra.mxu0 %v6064
        %6476 = vmatprep.subr.mxu0 %v6073
        %6477 = vmatpush1.msra.mxu0 %v6072
        %6478 = vmatprep.subr.mxu0 %v6081
        %6479 = vmatpush1.msra.mxu0 %v6080
        %6480 = vmatprep.subr.mxu0 %v6089
        %6481 = vmatpush1.msra.mxu0 %v6088
        %6482 = vmatprep.subr.mxu0 %v6097
        %6483 = vmatpush1.msra.mxu0 %v6096
        %6484 = vmatprep.subr.mxu0 %v6105
        %6485 = vmatpush1.msra.mxu0 %v6104
        %6486 = vmatprep.subr.mxu0 %v6113
        %6487 = vmatpush1.msra.mxu0 %v6112
        %6488 = vmatprep.subr.mxu0 %v6121
        %6489 = vmatpush1.msra.mxu0 %v6120
        %6490 = vmatprep.subr.mxu0 %v6129
        %6491 = vmatpush1.msra.mxu0 %v6128
        %6492 = vmatprep.subr.mxu0 %v6137
        %6493 = vmatpush1.msra.mxu0 %v6136
        %6494 = vmatprep.subr.mxu0 %v6145
        %6495 = vmatpush1.msra.mxu0 %v6144
        %6496 = vmatprep.subr.mxu0 %v6153
        %6497 = vmatpush1.msra.mxu0 %v6152
        %6498 = vmatprep.subr.mxu0 %v6161
        %6499 = vmatpush1.msra.mxu0 %v6160
        %6500 = vmatprep.subr.mxu0 %v6169
        %6501 = vmatpush1.msra.mxu0 %v6168
        %6502 = vmatprep.subr.mxu0 %v6177
        %6503 = vmatpush1.msra.mxu0 %v6176
        %6504 = vmatprep.subr.mxu0 %v6185
        %6505 = vmatpush1.msra.mxu0 %v6184
        %6506 = vmatprep.subr.mxu0 %v6193
        %6507 = vmatpush1.msra.mxu0 %v6192
        %6508 = vmatprep.subr.mxu0 %v6201
        %6509 = vmatpush1.msra.mxu0 %v6200
        %6510 = vmatprep.subr.mxu0 %v6209
        %6511 = vmatpush1.msra.mxu0 %v6208
        %6512 = vmatprep.subr.mxu0 %v6217
        %6513 = vmatpush1.msra.mxu0 %v6216
        %6514 = vmatprep.subr.mxu0 %v6225
        %6515 = vmatpush1.msra.mxu0 %v6224
        %6516 = vmatprep.mubr.f32.mxu0 %v6236
        %6517 = vmatmul.mubr.f32.gmra.mrb[0].mxu0 %v6235
        %v6518 = vpop.f32.mrb[0].mxu0
        %v6519 = vadd.f32 0.0, %v6518
        %v6520 = vpop.f32.mrb[0].mxu0
        %v6521 = vadd.f32 0.0, %v6520
        %6522 = vdwg.mxu0
        %6523 = vst [vmem:[%s212] sm:$0xff] %v6306
        %6524 = vst [vmem:[%s212 + $0x8] sm:$0xff] %v6308
        %6525 = vst [vmem:[%s212 + $0x10] sm:$0xff] %v6377
        %6526 = vst [vmem:[%s212 + $0x18] sm:$0xff] %v6379
        %6527 = vst [vmem:[%s212 + $0x20] sm:$0xff] %v6448
        %6528 = vst [vmem:[%s212 + $0x28] sm:$0xff] %v6450
        %6529 = vst [vmem:[%s212 + $0x30] sm:$0xff] %v6519
        %6530 = vst [vmem:[%s212 + $0x38] sm:$0xff] %v6521
        %p6531 = scmp.lt.s32.totalorder %s16, 1
        %s6532 = scalar_select %p6531, %s16, 1
        %s6533 = smul.addr %s6532, 8
        %s6534 = smul.addr %s6533, 8
        %s6535 = scalar_lea.vmem %s4, %s6534
        // Predicated region
        $region41: #{up_layer_forward.1} parent=35 // pred_check
          %p6536 = pneg %p123
        $region42: #{up_layer_forward.1} parent=35 // pred_check_branch
          %6538 = sbr.rel (%p6536) target = $region44
        $region43: #{up_layer_forward.1} parent=35 // pred_region
          _
        $region44: #{up_layer_forward.1} parent=35 // pred_fallthru
          _
      $region36: #{up_layer_forward.1} parent=5 // pred_fallthru
        _
      %p6539 = scmp.le.s32.totalorder 2, %s11
      // Predicated region
      $region45: #{up_layer_forward.1} parent=5 // pred_check
        %p6540 = pneg %p6539
      $region46: #{up_layer_forward.1} parent=5 // pred_check_branch
        %6542 = sbr.rel (%p6540) target = $region48
      $region47: #{up_layer_forward.1} parent=5 // pred_region
        %s6543 = ssub.s32 %s11, 2
        // Predicated region
        $region49: #{up_layer_forward.1} parent=47 // pred_check
          %p6544 = pneg %p129
        $region50: #{up_layer_forward.1} parent=47 // pred_check_branch
          %6546 = sbr.rel (%p6544) target = $region52
        $region51: #{up_layer_forward.1} parent=47 // pred_region
          %p6547 = scmp.lt.s32.totalorder %s17, 1
          %s6548 = scalar_select %p6547, %s17, 1
          %s6549 = smul.addr %s6548, 8
          %s6550 = smul.addr %s6549, 8
          %s6551 = scalar_lea.vmem %s4, %s6550
        $region52: #{up_layer_forward.1} parent=47 // pred_fallthru
          _
      $region48: #{up_layer_forward.1} parent=5 // pred_fallthru
        _
    $region6: #{up_layer_forward.1} parent=1 // loop_footer
      %s15 = sadd.s32 1, %s11
    $region7: #{up_layer_forward.1} parent=1 // loop_footer_branch
      %10 = sbr.rel target = $region3
    $region8: #{up_layer_forward.1} parent=1 // loop_exit
      _
    %6552 = vsyncpa [#allocation4], 1
    %s6553 = scalar_lea.sflag [#allocation4], 1
    %6554 = vsyncpa %s6553, 1

</llo_original>
